<compile_context>
chip_gen: v7x
topology: tpu7x:2x2x1
jax: 0.10.0
libtpu: 0.0.40
codegen_flags: <defaults>
</compile_context>

<pallas_src>
import functools

import jax
import jax.numpy as jnp
from jax.experimental import pallas as pl
from jax.experimental.pallas import tpu as pltpu


_PAR1 = pltpu.CompilerParams(dimension_semantics=("parallel",))


def _rup(x, m):
    return (x + m - 1) // m * m


def _apply_act(y, act):
    if act == "relu":
        return jnp.maximum(y, 0.0)
    if act == "sigmoid":
        return jax.nn.sigmoid(y)
    if act == "gelu":
        return jax.nn.gelu(y)
    return y


# ----------------------------------------------------------------------------
# Tiled MXU matmul with fused (BN-scale/shift + bias + act + gate) epilogue
# ----------------------------------------------------------------------------
def _mm_kernel(*refs, nk, act, has_ss, has_gate):
    a_ref, b_ref = refs[0], refs[1]
    p = 2
    ss_ref = refs[p] if has_ss else None
    p += int(has_ss)
    gate_ref = refs[p] if has_gate else None
    p += int(has_gate)
    o_ref, acc_ref = refs[p], refs[p + 1]
    k = pl.program_id(2)

    @pl.when(k == 0)
    def _init():
        acc_ref[...] = jnp.zeros_like(acc_ref)

    acc_ref[...] += jnp.dot(a_ref[...], b_ref[...],
                            preferred_element_type=jnp.float32)

    @pl.when(k == nk - 1)
    def _finalize():
        y = acc_ref[...]
        if has_ss:
            y = y * ss_ref[0:1, :] + ss_ref[1:2, :]
        y = _apply_act(y, act)
        if has_gate:
            y = y * gate_ref[...]
        o_ref[...] = y.astype(o_ref.dtype)


def matmul(a, b, *, bias=None, scale=None, shift=None, act=None, gate=None):
    """(M,K)@(K,N) -> (M,N) f32; bf16 operands, f32 K-accumulation in VMEM."""
    M, K = a.shape
    N = b.shape[1]
    has_ss = (bias is not None) or (scale is not None) or (shift is not None)
    has_gate = gate is not None

    tm = min(256, _rup(M, 8))
    tk = min(512, _rup(K, 128))
    tn = min(256, _rup(N, 128))
    Mp, Kp, Np = _rup(M, tm), _rup(K, tk), _rup(N, tn)
    grid = (Mp // tm, Np // tn, Kp // tk)

    ap = jnp.pad(a.astype(jnp.float32),
                 ((0, Mp - M), (0, Kp - K))).astype(jnp.bfloat16)
    bp = jnp.pad(b.astype(jnp.float32),
                 ((0, Kp - K), (0, Np - N))).astype(jnp.bfloat16)

    in_specs = [pl.BlockSpec((tm, tk), lambda i, j, k: (i, k)),
                pl.BlockSpec((tk, tn), lambda i, j, k: (k, j))]
    args = [ap, bp]
    if has_ss:
        s = (jnp.ones((N,), jnp.float32) if scale is None
             else scale.astype(jnp.float32))
        t = (jnp.zeros((N,), jnp.float32) if shift is None
             else shift.astype(jnp.float32))
        if bias is not None:
            t = t + bias.astype(jnp.float32) * s
        ss = jnp.pad(jnp.stack([s, t]), ((0, 0), (0, Np - N)))
        in_specs.append(pl.BlockSpec((2, tn), lambda i, j, k: (0, j)))
        args.append(ss)
    if has_gate:
        gp = jnp.pad(gate.astype(jnp.float32), ((0, Mp - M), (0, Np - N)))
        in_specs.append(pl.BlockSpec((tm, tn), lambda i, j, k: (i, j)))
        args.append(gp)

    out = pl.pallas_call(
        functools.partial(_mm_kernel, nk=grid[2], act=act,
                          has_ss=has_ss, has_gate=has_gate),
        grid=grid,
        in_specs=in_specs,
        out_specs=pl.BlockSpec((tm, tn), lambda i, j, k: (i, j)),
        out_shape=jax.ShapeDtypeStruct((Mp, Np), jnp.float32),
        scratch_shapes=[pltpu.VMEM((tm, tn), jnp.float32)],
        compiler_params=pltpu.CompilerParams(
            dimension_semantics=("parallel", "parallel", "arbitrary"),
            vmem_limit_bytes=32 * 1024 * 1024),
    )(*args)
    return out[:M, :N]


def _bn_scale_shift(bn, eps=1e-5):
    s = bn["gamma"] / jnp.sqrt(bn["var"] + eps)
    t = bn["beta"] - bn["mean"] * s
    return s, t


def conv1x1(x, w, *, bias=None, bn=None, act=None, gate=None):
    """1x1 conv (+ optional fused BN / act / elementwise gate). x: NHWC."""
    B, H, W, Cin = x.shape
    Cout = w.shape[0]
    wm = w.reshape(Cout, Cin).T
    scale = shift = None
    if bn is not None:
        scale, shift = _bn_scale_shift(bn)
    g2 = gate.reshape(B * H * W, Cout) if gate is not None else None
    y = matmul(x.reshape(B * H * W, Cin), wm,
               bias=bias, scale=scale, shift=shift, act=act, gate=g2)
    return y.reshape(B, H, W, Cout)


def conv3x3_s2(x, w, bias):
    """3x3 stride-2 pad-1 down-sample conv via 9-tap im2col + tiled matmul."""
    B, H, W, Cin = x.shape
    Cout = w.shape[0]
    xp = jnp.pad(x, ((0, 0), (1, 1), (1, 1), (0, 0)))
    OH, OW = (H + 2 - 3) // 2 + 1, (W + 2 - 3) // 2 + 1
    cols = [xp[:, i:i + 2 * (OH - 1) + 1:2, j:j + 2 * (OW - 1) + 1:2, :]
            for i in range(3) for j in range(3)]
    patches = jnp.concatenate(cols, axis=-1).reshape(B * OH * OW, 9 * Cin)
    wm = jnp.transpose(w, (2, 3, 1, 0)).reshape(9 * Cin, Cout)
    y = matmul(patches, wm, bias=bias)
    return y.reshape(B, OH, OW, Cout)


# ----------------------------------------------------------------------------
# Fused DepthWiseConv (3x3 dw + 1x1 pw + BN + act) kernel, grid over batch
# ----------------------------------------------------------------------------
def _dwc_kernel(xp_ref, dww_ref, dwb_ref, pww_ref, ss_ref, o_ref, *, H, W, act):
    xp = xp_ref[0]                      # (H+2, W+2, Cin)
    dww = dww_ref[...]                  # (3, 3, Cin)
    Cin = xp.shape[-1]
    acc = jnp.zeros((H, W, Cin), jnp.float32)
    for i in range(3):
        for j in range(3):
            acc = acc + xp[i:i + H, j:j + W, :] * dww[i, j]
    acc = acc + dwb_ref[...]            # (1, Cin) broadcast
    y = jnp.dot(acc.reshape(H * W, Cin), pww_ref[...],
                preferred_element_type=jnp.float32)
    y = y * ss_ref[0:1, :] + ss_ref[1:2, :]
    y = _apply_act(y, act)
    o_ref[0] = y.reshape(H, W, o_ref.shape[-1])


def dwc_bn(x, p, bn, act):
    """DepthWiseConv module fused with the following BatchNorm + activation."""
    B, H, W, Cin = x.shape
    Cout = p["pw_w"].shape[0]
    xp = jnp.pad(x, ((0, 0), (1, 1), (1, 1), (0, 0))).astype(jnp.float32)
    dww = jnp.transpose(p["dw_w"].reshape(Cin, 3, 3), (1, 2, 0))
    dwb = p["dw_b"].reshape(1, Cin)
    pww = p["pw_w"].reshape(Cout, Cin).T
    if bn is not None:
        s, t = _bn_scale_shift(bn)
    else:
        s = jnp.ones((Cout,), jnp.float32)
        t = jnp.zeros((Cout,), jnp.float32)
    t = t + p["pw_b"] * s
    ss = jnp.stack([s, t]).astype(jnp.float32)
    return pl.pallas_call(
        functools.partial(_dwc_kernel, H=H, W=W, act=act),
        grid=(B,),
        in_specs=[
            pl.BlockSpec((1, H + 2, W + 2, Cin), lambda b: (b, 0, 0, 0)),
            pl.BlockSpec((3, 3, Cin), lambda b: (0, 0, 0)),
            pl.BlockSpec((1, Cin), lambda b: (0, 0)),
            pl.BlockSpec((Cin, Cout), lambda b: (0, 0)),
            pl.BlockSpec((2, Cout), lambda b: (0, 0)),
        ],
        out_specs=pl.BlockSpec((1, H, W, Cout), lambda b: (b, 0, 0, 0)),
        out_shape=jax.ShapeDtypeStruct((B, H, W, Cout), jnp.float32),
        compiler_params=_PAR1,
    )(xp, dww.astype(jnp.float32), dwb.astype(jnp.float32),
      pww.astype(jnp.float32), ss)


# ----------------------------------------------------------------------------
# Direct shifted-window conv (stride 1, kh x kw), grid over batch
# ----------------------------------------------------------------------------
def _convk_kernel(xp_ref, w_ref, ss_ref, o_ref, *, kh, kw, OH, OW, act):
    xp = xp_ref[0]                      # (OH+kh-1, OW+kw-1, Cin)
    Cin = xp.shape[-1]
    Cout = o_ref.shape[-1]
    acc = jnp.zeros((OH * OW, Cout), jnp.float32)
    for i in range(kh):
        for j in range(kw):
            win = xp[i:i + OH, j:j + OW, :].reshape(OH * OW, Cin)
            acc = acc + jnp.dot(win, w_ref[i * kw + j],
                                preferred_element_type=jnp.float32)
    y = acc * ss_ref[0:1, :] + ss_ref[1:2, :]
    y = _apply_act(y, act)
    o_ref[0] = y.reshape(OH, OW, Cout)


def convk(x, w_torch, bias=None, act=None):
    """Stride-1 'same' conv with odd kernel (kh, kw); no im2col expansion."""
    B, H, W, Cin = x.shape
    Cout, _, kh, kw = w_torch.shape
    ph, pw = kh // 2, kw // 2
    xp = jnp.pad(x, ((0, 0), (ph, ph), (pw, pw), (0, 0))).astype(jnp.float32)
    wt = jnp.transpose(w_torch, (2, 3, 1, 0)).reshape(kh * kw, Cin, Cout)
    s = jnp.ones((Cout,), jnp.float32)
    t = (jnp.zeros((Cout,), jnp.float32) if bias is None
         else bias.astype(jnp.float32))
    ss = jnp.stack([s, t])
    return pl.pallas_call(
        functools.partial(_convk_kernel, kh=kh, kw=kw, OH=H, OW=W, act=act),
        grid=(B,),
        in_specs=[
            pl.BlockSpec((1, H + 2 * ph, W + 2 * pw, Cin),
                         lambda b: (b, 0, 0, 0)),
            pl.BlockSpec((kh * kw, Cin, Cout), lambda b: (0, 0, 0)),
            pl.BlockSpec((2, Cout), lambda b: (0, 0)),
        ],
        out_specs=pl.BlockSpec((1, H, W, Cout), lambda b: (b, 0, 0, 0)),
        out_shape=jax.ShapeDtypeStruct((B, H, W, Cout), jnp.float32),
        compiler_params=_PAR1,
    )(xp, wt.astype(jnp.float32), ss)


# ----------------------------------------------------------------------------
# SpatialAttention (channel pool -> 7x7 conv -> sigmoid -> gate), fused
# ----------------------------------------------------------------------------
def _chpool_kernel(x_ref, o_ref):
    x = x_ref[0]
    o_ref[0] = jnp.concatenate(
        [jnp.mean(x, axis=-1, keepdims=True),
         jnp.max(x, axis=-1, keepdims=True)], axis=-1)


def _sa_gate_kernel(gf_ref, fp_ref, w_ref, o_ref, *, OH, OW):
    fp = fp_ref[0]                      # (OH+6, OW+6, 2)
    acc = jnp.zeros((OH * OW, 1), jnp.float32)
    for i in range(7):
        for j in range(7):
            win = fp[i:i + OH, j:j + OW, :].reshape(OH * OW, 2)
            acc = acc + jnp.dot(win, w_ref[i * 7 + j],
                                preferred_element_type=jnp.float32)
    att = jax.nn.sigmoid(acc).reshape(OH, OW, 1)
    o_ref[0] = gf_ref[0] * att          # broadcast over channels in-kernel


def spatial_gate(gf, w7_torch):
    B, H, W, C = gf.shape
    pooled = pl.pallas_call(
        _chpool_kernel,
        grid=(B,),
        in_specs=[pl.BlockSpec((1, H, W, C), lambda b: (b, 0, 0, 0))],
        out_specs=pl.BlockSpec((1, H, W, 2), lambda b: (b, 0, 0, 0)),
        out_shape=jax.ShapeDtypeStruct((B, H, W, 2), jnp.float32),
        compiler_params=_PAR1,
    )(gf)
    fp = jnp.pad(pooled, ((0, 0), (3, 3), (3, 3), (0, 0)))
    wt = jnp.transpose(w7_torch, (2, 3, 1, 0)).reshape(49, 2, 1)
    return pl.pallas_call(
        functools.partial(_sa_gate_kernel, OH=H, OW=W),
        grid=(B,),
        in_specs=[
            pl.BlockSpec((1, H, W, C), lambda b: (b, 0, 0, 0)),
            pl.BlockSpec((1, H + 6, W + 6, 2), lambda b: (b, 0, 0, 0)),
            pl.BlockSpec((49, 2, 1), lambda b: (0, 0, 0)),
        ],
        out_specs=pl.BlockSpec((1, H, W, C), lambda b: (b, 0, 0, 0)),
        out_shape=jax.ShapeDtypeStruct((B, H, W, C), jnp.float32),
        compiler_params=_PAR1,
    )(gf, fp, wt.astype(jnp.float32))


# ----------------------------------------------------------------------------
# ChannelAttention (avg/max pool + FC + sigmoid) and channel gating
# ----------------------------------------------------------------------------
def _ca_kernel(y_ref, w1_ref, w2_ref, att_ref):
    y = y_ref[0]                        # (S, C)
    avg = jnp.mean(y, axis=0, keepdims=True)
    mx = jnp.max(y, axis=0, keepdims=True)

    def head(v):
        h = jnp.maximum(jnp.dot(v, w1_ref[...],
                                preferred_element_type=jnp.float32), 0.0)
        return jnp.dot(h, w2_ref[...], preferred_element_type=jnp.float32)

    att_ref[0] = jax.nn.sigmoid(head(avg) + head(mx))


def _cgate_kernel(y_ref, att_ref, o_ref):
    o_ref[0] = y_ref[0] * att_ref[0]    # (H,W,C) * (1,C) broadcast in-kernel


def channel_gate(y, fc1_w, fc2_w):
    B, H, W, C = y.shape
    Cr = fc1_w.shape[0]
    w1 = fc1_w.reshape(Cr, C).T         # (C, Cr)
    w2 = fc2_w.reshape(C, Cr).T         # (Cr, C)
    y3 = y.reshape(B, H * W, C)
    att = pl.pallas_call(
        _ca_kernel,
        grid=(B,),
        in_specs=[
            pl.BlockSpec((1, H * W, C), lambda b: (b, 0, 0)),
            pl.BlockSpec((C, Cr), lambda b: (0, 0)),
            pl.BlockSpec((Cr, C), lambda b: (0, 0)),
        ],
        out_specs=pl.BlockSpec((1, 1, C), lambda b: (b, 0, 0)),
        out_shape=jax.ShapeDtypeStruct((B, 1, C), jnp.float32),
        compiler_params=_PAR1,
    )(y3, w1.astype(jnp.float32), w2.astype(jnp.float32))
    return pl.pallas_call(
        _cgate_kernel,
        grid=(B,),
        in_specs=[
            pl.BlockSpec((1, H, W, C), lambda b: (b, 0, 0, 0)),
            pl.BlockSpec((1, 1, C), lambda b: (b, 0, 0)),
        ],
        out_specs=pl.BlockSpec((1, H, W, C), lambda b: (b, 0, 0, 0)),
        out_shape=jax.ShapeDtypeStruct((B, H, W, C), jnp.float32),
        compiler_params=_PAR1,
    )(y, att)


# ----------------------------------------------------------------------------
# Small fused elementwise / normalization kernels
# ----------------------------------------------------------------------------
def _add4_kernel(a_ref, b_ref, c_ref, d_ref, o_ref):
    o_ref[...] = a_ref[...] + b_ref[...] + c_ref[...] + d_ref[...]


def add4(a, b, c, d):
    B = a.shape[0]
    blk = (1,) + a.shape[1:]
    spec = pl.BlockSpec(blk, lambda i: (i,) + (0,) * (a.ndim - 1))
    return pl.pallas_call(
        _add4_kernel, grid=(B,),
        in_specs=[spec, spec, spec, spec], out_specs=spec,
        out_shape=jax.ShapeDtypeStruct(a.shape, jnp.float32),
        compiler_params=_PAR1,
    )(a, b, c, d)


def _add2_kernel(a_ref, b_ref, o_ref):
    o_ref[...] = a_ref[...] + b_ref[...]


def add2(a, b):
    M, N = a.shape
    tm = min(512, _rup(M, 8))
    Mp = _rup(M, tm)
    ap = jnp.pad(a, ((0, Mp - M), (0, 0)))
    bp = jnp.pad(b, ((0, Mp - M), (0, 0)))
    spec = pl.BlockSpec((tm, N), lambda i: (i, 0))
    out = pl.pallas_call(
        _add2_kernel, grid=(Mp // tm,),
        in_specs=[spec, spec], out_specs=spec,
        out_shape=jax.ShapeDtypeStruct((Mp, N), jnp.float32),
        compiler_params=_PAR1,
    )(ap, bp)
    return out[:M]


def _add_ln_kernel(x_ref, y_ref, g_ref, b_ref, o_ref, *, eps):
    s = x_ref[...] + y_ref[...]
    mu = jnp.mean(s, axis=-1, keepdims=True)
    var = jnp.mean((s - mu) ** 2, axis=-1, keepdims=True)
    o_ref[...] = (s - mu) * jax.lax.rsqrt(var + eps) * g_ref[...] + b_ref[...]


def add_layernorm(x, y, gamma, beta, eps=1e-5):
    M, N = x.shape
    tm = min(512, _rup(M, 8))
    Mp = _rup(M, tm)
    xp = jnp.pad(x, ((0, Mp - M), (0, 0)))
    yp = jnp.pad(y, ((0, Mp - M), (0, 0)))
    spec = pl.BlockSpec((tm, N), lambda i: (i, 0))
    vspec = pl.BlockSpec((1, N), lambda i: (0, 0))
    out = pl.pallas_call(
        functools.partial(_add_ln_kernel, eps=eps),
        grid=(Mp // tm,),
        in_specs=[spec, spec, vspec, vspec], out_specs=spec,
        out_shape=jax.ShapeDtypeStruct((Mp, N), jnp.float32),
        compiler_params=_PAR1,
    )(xp, yp, gamma.reshape(1, N), beta.reshape(1, N))
    return out[:M]


# ----------------------------------------------------------------------------
# Fused attention kernel (QK^T, mask, softmax, PV) per (batch*head)
# ----------------------------------------------------------------------------
def _attn_kernel(q_ref, k_ref, v_ref, m_ref, o_ref, *, scale):
    q = q_ref[0]
    k = k_ref[0]
    v = v_ref[0]
    s = jax.lax.dot_general(q, k, (((1,), (1,)), ((), ())),
                            preferred_element_type=jnp.float32) * scale
    s = s + m_ref[...]                  # (1, Tp) key-padding mask, broadcast
    mx = jnp.max(s, axis=-1, keepdims=True)
    p = jnp.exp(s - mx)
    p = p / jnp.sum(p, axis=-1, keepdims=True)
    o_ref[0] = jnp.dot(p, v, preferred_element_type=jnp.float32)


def fused_attention(q, k, v, T, scale):
    G, Tp, hd = q.shape
    mask = jnp.where(jnp.arange(Tp) < T, 0.0, -1e30)
    mask = mask.astype(jnp.float32).reshape(1, Tp)
    spec = pl.BlockSpec((1, Tp, hd), lambda g: (g, 0, 0))
    mspec = pl.BlockSpec((1, Tp), lambda g: (0, 0))
    return pl.pallas_call(
        functools.partial(_attn_kernel, scale=float(scale)),
        grid=(G,),
        in_specs=[spec, spec, spec, mspec],
        out_specs=spec,
        out_shape=jax.ShapeDtypeStruct((G, Tp, hd), jnp.float32),
        compiler_params=_PAR1,
    )(q, k, v, mask)


# ----------------------------------------------------------------------------
# Module forwards
# ----------------------------------------------------------------------------
def ddc_block(x, p):                                # DDCBlock
    y = dwc_bn(x, p["dwc1"], p["bn1"], "relu")
    y = dwc_bn(y, p["dwc2"], p["bn2"], "relu")
    return y


def tdc_block(x, p):                                # TDCBlock
    y = dwc_bn(x, p["dwc1"], p["bn1"], "relu")
    y = dwc_bn(y, p["dwc2"], p["bn2"], "relu")
    y = dwc_bn(y, p["dwc3"], p["bn3"], "relu")
    return y


def encoder_bottleneck(x, p):                       # EncoderBottleneck
    d = conv3x3_s2(x, p["down_w"], p["down_b"])
    y = conv1x1(d, p["c1_w"], bn=p["bn1"], act="relu")
    y = ddc_block(y, p["ddc"])
    y = conv1x1(y, p["c2_w"], bn=p["bn2"], act="relu")
    return y


def vit_down(x, p):                                 # VitDown
    d = conv3x3_s2(x, p["down_w"], p["down_b"])
    return conv1x1(d, p["c_w"], bn=p["bn"], act="relu")


def local_feature(x, p):                            # LocalFeature
    b0 = conv1x1(x, p["c11_1_w"], bias=p["c11_1_b"])
    b1 = convk(convk(b0, p["c13_w"], p["c13_b"]), p["c31_w"], p["c31_b"])
    b2 = convk(convk(b0, p["c15_w"], p["c15_b"]), p["c51_w"], p["c51_b"])
    b3 = convk(convk(b0, p["c17_w"], p["c17_b"]), p["c71_w"], p["c71_b"])
    mix = add4(b0, b1, b2, b3)
    # Conv11_2 with the skip gating multiply fused into the matmul epilogue.
    return conv1x1(mix, p["c11_2_w"], bias=p["c11_2_b"], gate=x)


def feature_fusion(gf, lf, p):                      # FeatureFusion
    gated = spatial_gate(gf, p["sa_w"])
    xcat = jnp.concatenate([gated, lf], axis=-1)
    y = conv1x1(xcat, p["fc1_w"], bn=p["bn"])       # fc_1 + BN (no act)
    return channel_gate(y, p["ca_fc1_w"], p["ca_fc2_w"])


def transformer_block(zf, blk, B, T, E, h):
    hd = E // h
    Tp = _rup(T, 8)
    qkv = matmul(zf, blk["qkv_w"])                  # (B*T, 3E), no bias
    qkv = qkv.reshape(B, T, 3, h, hd)
    qkv = jnp.pad(qkv, ((0, 0), (0, Tp - T), (0, 0), (0, 0), (0, 0)))
    q = qkv[:, :, 0].transpose(0, 2, 1, 3).reshape(B * h, Tp, hd)
    k = qkv[:, :, 1].transpose(0, 2, 1, 3).reshape(B * h, Tp, hd)
    v = qkv[:, :, 2].transpose(0, 2, 1, 3).reshape(B * h, Tp, hd)
    ctx = fused_attention(q, k, v, T, hd ** -0.5)   # (B*h, Tp, hd)
    ctx = ctx.reshape(B, h, Tp, hd)[:, :, :T, :]
    ctx = ctx.transpose(0, 2, 1, 3).reshape(B * T, E)
    attn_out = matmul(ctx, blk["out_w"])
    x = add_layernorm(zf, attn_out, blk["ln1_g"], blk["ln1_b"])
    hmid = matmul(x, blk["mlp_w1"], bias=blk["mlp_b1"], act="gelu")
    hout = matmul(hmid, blk["mlp_w2"], bias=blk["mlp_b2"])
    x = add_layernorm(x, hout, blk["ln2_g"], blk["ln2_b"])
    return x


def vit_forward(x, p, head_num):                    # ViT (patch_dim=1, no head)
    B, H, W, C = x.shape
    E = p["proj_w"].shape[1]
    T = H * W + 1
    proj = matmul(x.reshape(B * H * W, C), p["proj_w"], bias=p["proj_b"])
    proj = proj.reshape(B, H * W, E)
    cls = jnp.broadcast_to(p["cls"], (B, 1, E))
    z = jnp.concatenate([cls, proj], axis=1).reshape(B * T, E)
    pos = jnp.broadcast_to(p["pos"][None, :T, :], (B, T, E)).reshape(B * T, E)
    zf = add2(z, pos)
    for blk in p["blocks"]:
        zf = transformer_block(zf, blk, B, T, E, head_num)
    return zf.reshape(B, T, E)[:, 1:, :]            # drop cls token


def encoder_forward(x_nchw, P, cfg):
    x = jnp.transpose(x_nchw, (0, 2, 3, 1)).astype(jnp.float32)  # NCHW -> NHWC
    vit_dim = cfg["img_dim"] // cfg["patch_dim"] * 2

    x = tdc_block(x, P["conv_term_1"])
    x1 = encoder_bottleneck(x, P["conv_enc_1"])
    x2 = encoder_bottleneck(x1, P["conv_enc_2"])
    x3 = vit_down(x2, P["conv_vit_down_1"])

    x3_l = local_feature(x3, P["local_enc_1"])
    x3_t = vit_forward(x3, P["vit_enc_1"], cfg["head_num"])      # (B, xy, C)
    B = x3.shape[0]
    C3 = x3.shape[-1]
    x3_g = x3_t.reshape(B, vit_dim, vit_dim, C3)    # 'b (x y) c -> b x y c'
    x3 = feature_fusion(x3_g, x3_l, P["ff1"])

    x4 = vit_down(x3, P["conv_vit_down_2"])
    x4_l = local_feature(x4, P["local_enc_2"])
    x4_g = convk(x4, P["replace_w"], bias=None)     # 7x7 direct conv, no bias
    x4 = feature_fusion(x4_g, x4_l, P["ff2"])
    x4 = ddc_block(x4, P["conv_term_2"])

    to_nchw = lambda t: jnp.transpose(t, (0, 3, 1, 2))
    return to_nchw(x1), to_nchw(x2), to_nchw(x3), to_nchw(x4)


# ----------------------------------------------------------------------------
# Deterministic parameter initialisation (synthetic weights, torch layouts)
# ----------------------------------------------------------------------------
class PGen:
    def __init__(self, seed):
        self.key = jax.random.PRNGKey(seed)

    def __call__(self, shape, scale=0.1):
        self.key, sub = jax.random.split(self.key)
        return jax.random.normal(sub, shape, jnp.float32) * scale


def init_bn(c):
    return dict(gamma=jnp.ones((c,), jnp.float32),
                beta=jnp.zeros((c,), jnp.float32),
                mean=jnp.zeros((c,), jnp.float32),
                var=jnp.ones((c,), jnp.float32))


def init_dwc(g, cin, cout):
    return dict(dw_w=g((cin, 1, 3, 3)), dw_b=g((cin,)),
                pw_w=g((cout, cin, 1, 1)), pw_b=g((cout,)))


def init_ddc(g, cin, cout):
    return dict(dwc1=init_dwc(g, cin, cout), bn1=init_bn(cout),
                dwc2=init_dwc(g, cout, cout), bn2=init_bn(cout))


def init_tdc(g, cin, cout, mid=32):
    return dict(dwc1=init_dwc(g, cin, mid), bn1=init_bn(mid),
                dwc2=init_dwc(g, mid, mid), bn2=init_bn(mid),
                dwc3=init_dwc(g, mid, cout), bn3=init_bn(cout))


def init_enc_bottleneck(g, cin, cout):
    width = cout  # base_width = 64
    return dict(down_w=g((cin, cin, 3, 3)), down_b=g((cin,)),
                c1_w=g((width, cin, 1, 1)), bn1=init_bn(width),
                ddc=init_ddc(g, width, width),
                c2_w=g((cout, width, 1, 1)), bn2=init_bn(cout))


def init_vitdown(g, cin, cout):
    return dict(down_w=g((cin, cin, 3, 3)), down_b=g((cin,)),
                c_w=g((cout, cin, 1, 1)), bn=init_bn(cout))


def init_localfeature(g, c, r=16):
    m = c // r
    return dict(c11_1_w=g((m, c, 1, 1)), c11_1_b=g((m,)),
                c13_w=g((m, m, 1, 3)), c13_b=g((m,)),
                c31_w=g((m, m, 3, 1)), c31_b=g((m,)),
                c15_w=g((m, m, 1, 5)), c15_b=g((m,)),
                c51_w=g((m, m, 5, 1)), c51_b=g((m,)),
                c17_w=g((m, m, 1, 7)), c17_b=g((m,)),
                c71_w=g((m, m, 7, 1)), c71_b=g((m,)),
                c11_2_w=g((c, m, 1, 1)), c11_2_b=g((c,)))


def init_ff(g, c, r=16):
    return dict(sa_w=g((1, 2, 7, 7)),
                fc1_w=g((c, 2 * c, 1, 1)), bn=init_bn(c),
                ca_fc1_w=g((c // r, c, 1, 1)), ca_fc2_w=g((c, c // r, 1, 1)))


def init_vit(g, tokens, emb, mlp_dim, blocks):
    p = dict(proj_w=g((emb, emb)), proj_b=g((emb,)),
             cls=g((1, 1, emb)), pos=g((tokens + 1, emb)), blocks=[])
    for _ in range(blocks):
        p["blocks"].append(dict(
            qkv_w=g((emb, 3 * emb)), out_w=g((emb, emb)),
            ln1_g=jnp.ones((emb,), jnp.float32),
            ln1_b=jnp.zeros((emb,), jnp.float32),
            mlp_w1=g((emb, mlp_dim)), mlp_b1=g((mlp_dim,)),
            mlp_w2=g((mlp_dim, emb)), mlp_b2=g((emb,)),
            ln2_g=jnp.ones((emb,), jnp.float32),
            ln2_b=jnp.zeros((emb,), jnp.float32)))
    return p


def init_encoder_params(cfg, seed=42):
    g = PGen(seed)
    oc, ic = cfg["out_channels"], cfg["in_channels"]
    vit_dim = cfg["img_dim"] // cfg["patch_dim"] * 2
    return dict(
        conv_term_1=init_tdc(g, ic, oc // 2),
        conv_enc_1=init_enc_bottleneck(g, oc // 2, oc),
        conv_enc_2=init_enc_bottleneck(g, oc, oc * 2),
        conv_vit_down_1=init_vitdown(g, oc * 2, oc * 4),
        conv_vit_down_2=init_vitdown(g, oc * 4, oc * 8),
        vit_enc_1=init_vit(g, vit_dim * vit_dim, oc * 4,
                           cfg["mlp_dim"], cfg["block_num"]),
        replace_w=g((oc * 8, oc * 8, 7, 7)),
        local_enc_1=init_localfeature(g, oc * 4),
        ff1=init_ff(g, oc * 4),
        local_enc_2=init_localfeature(g, oc * 8),
        ff2=init_ff(g, oc * 8),
        conv_term_2=init_ddc(g, oc * 8, oc * 4),
    )


# ----------------------------------------------------------------------------
if __name__ == "__main__":
    cfg = dict(img_dim=32, in_channels=3, out_channels=8,
               head_num=4, mlp_dim=64, block_num=2, patch_dim=16)
    # Required for the Encoder's rearrange to be shape-consistent:
    assert cfg["img_dim"] // cfg["patch_dim"] * 2 == cfg["img_dim"] // 8

    params = init_encoder_params(cfg, seed=42)

    key = jax.random.PRNGKey(0)
    x = jax.random.normal(
        key, (2, cfg["in_channels"], cfg["img_dim"], cfg["img_dim"]),
        jnp.float32)

    x1, x2, x3, x4 = encoder_forward(x, params, cfg)
    (x1, x2, x3, x4) = jax.block_until_ready((x1, x2, x3, x4))

    oc, d = cfg["out_channels"], cfg["img_dim"]
    assert x1.shape == (2, oc, d // 2, d // 2)
    assert x2.shape == (2, oc * 2, d // 4, d // 4)
    assert x3.shape == (2, oc * 4, d // 8, d // 8)
    assert x4.shape == (2, oc * 4, d // 16, d // 16)
    assert all(bool(jnp.all(jnp.isfinite(t))) for t in (x1, x2, x3, x4))
    print("KERNEL_OK")
</pallas_src>

<mosaic_0001>
module attributes {stable_mosaic.version = 11 : i64} {
  func.func @_dwc_kernel(%arg0: i32, %arg1: memref<1x34x34x3xf32, #tpu.memory_space<vmem>>, %arg2: memref<3x3x3xf32, #tpu.memory_space<vmem>>, %arg3: memref<1x3xf32, #tpu.memory_space<vmem>>, %arg4: memref<3x32xf32, #tpu.memory_space<vmem>>, %arg5: memref<2x32xf32, #tpu.memory_space<vmem>>, %arg6: memref<1x32x32x32xf32, #tpu.memory_space<vmem>>) attributes {dimension_semantics = [#tpu.dimension_semantics<parallel>], iteration_bounds = array<i64: 2>, scalar_prefetch = 0 : i64, scratch_operands = 0 : i64, tpu.core_type = #tpu.core_type<tc>, window_params = [{transform_indices = @transform_0, window_bounds = array<i64: 1, 34, 34, 3>}, {pipeline_mode = #tpu.pipeline_mode<synchronous>, transform_indices = @transform_1, window_bounds = array<i64: 3, 3, 3>}, {pipeline_mode = #tpu.pipeline_mode<synchronous>, transform_indices = @transform_2, window_bounds = array<i64: 1, 3>}, {pipeline_mode = #tpu.pipeline_mode<synchronous>, transform_indices = @transform_3, window_bounds = array<i64: 3, 32>}, {pipeline_mode = #tpu.pipeline_mode<synchronous>, transform_indices = @transform_4, window_bounds = array<i64: 2, 32>}, {transform_indices = @transform_5, window_bounds = array<i64: 1, 32, 32, 32>}]} {
    %c0 = arith.constant 0 : index
    %c0_0 = arith.constant 0 : index
    %c0_1 = arith.constant 0 : index
    %c0_2 = arith.constant 0 : index
    %0 = vector.load %arg1[%c0, %c0_0, %c0_1, %c0_2] : memref<1x34x34x3xf32, #tpu.memory_space<vmem>>, vector<1x34x34x3xf32>
    %1 = vector.shape_cast %0 : vector<1x34x34x3xf32> to vector<34x34x3xf32>
    %c0_3 = arith.constant 0 : index
    %c0_4 = arith.constant 0 : index
    %c0_5 = arith.constant 0 : index
    %2 = vector.load %arg2[%c0_3, %c0_4, %c0_5] : memref<3x3x3xf32, #tpu.memory_space<vmem>>, vector<3x3x3xf32>
    %cst = arith.constant 0.000000e+00 : f32
    %3 = vector.broadcast %cst : f32 to vector<32x32x3xf32>
    %4 = vector.extract_strided_slice %1 {offsets = [0, 0, 0], sizes = [32, 32, 3], strides = [1, 1, 1]} : vector<34x34x3xf32> to vector<32x32x3xf32>
    %5 = vector.extract_strided_slice %2 {offsets = [0, 0, 0], sizes = [1, 1, 3], strides = [1, 1, 1]} : vector<3x3x3xf32> to vector<1x1x3xf32>
    %6 = vector.shape_cast %5 : vector<1x1x3xf32> to vector<3xf32>
    %7 = vector.shape_cast %6 : vector<3xf32> to vector<1x1x3xf32>
    %8 = vector.broadcast %7 : vector<1x1x3xf32> to vector<32x32x3xf32>
    %9 = arith.mulf %4, %8 : vector<32x32x3xf32>
    %10 = arith.addf %3, %9 : vector<32x32x3xf32>
    %11 = vector.extract_strided_slice %1 {offsets = [0, 1, 0], sizes = [32, 32, 3], strides = [1, 1, 1]} : vector<34x34x3xf32> to vector<32x32x3xf32>
    %12 = vector.extract_strided_slice %2 {offsets = [0, 1, 0], sizes = [1, 1, 3], strides = [1, 1, 1]} : vector<3x3x3xf32> to vector<1x1x3xf32>
    %13 = vector.shape_cast %12 : vector<1x1x3xf32> to vector<3xf32>
    %14 = vector.shape_cast %13 : vector<3xf32> to vector<1x1x3xf32>
    %15 = vector.broadcast %14 : vector<1x1x3xf32> to vector<32x32x3xf32>
    %16 = arith.mulf %11, %15 : vector<32x32x3xf32>
    %17 = arith.addf %10, %16 : vector<32x32x3xf32>
    %18 = vector.extract_strided_slice %1 {offsets = [0, 2, 0], sizes = [32, 32, 3], strides = [1, 1, 1]} : vector<34x34x3xf32> to vector<32x32x3xf32>
    %19 = vector.extract_strided_slice %2 {offsets = [0, 2, 0], sizes = [1, 1, 3], strides = [1, 1, 1]} : vector<3x3x3xf32> to vector<1x1x3xf32>
    %20 = vector.shape_cast %19 : vector<1x1x3xf32> to vector<3xf32>
    %21 = vector.shape_cast %20 : vector<3xf32> to vector<1x1x3xf32>
    %22 = vector.broadcast %21 : vector<1x1x3xf32> to vector<32x32x3xf32>
    %23 = arith.mulf %18, %22 : vector<32x32x3xf32>
    %24 = arith.addf %17, %23 : vector<32x32x3xf32>
    %25 = vector.extract_strided_slice %1 {offsets = [1, 0, 0], sizes = [32, 32, 3], strides = [1, 1, 1]} : vector<34x34x3xf32> to vector<32x32x3xf32>
    %26 = vector.extract_strided_slice %2 {offsets = [1, 0, 0], sizes = [1, 1, 3], strides = [1, 1, 1]} : vector<3x3x3xf32> to vector<1x1x3xf32>
    %27 = vector.shape_cast %26 : vector<1x1x3xf32> to vector<3xf32>
    %28 = vector.shape_cast %27 : vector<3xf32> to vector<1x1x3xf32>
    %29 = vector.broadcast %28 : vector<1x1x3xf32> to vector<32x32x3xf32>
    %30 = arith.mulf %25, %29 : vector<32x32x3xf32>
    %31 = arith.addf %24, %30 : vector<32x32x3xf32>
    %32 = vector.extract_strided_slice %1 {offsets = [1, 1, 0], sizes = [32, 32, 3], strides = [1, 1, 1]} : vector<34x34x3xf32> to vector<32x32x3xf32>
    %33 = vector.extract_strided_slice %2 {offsets = [1, 1, 0], sizes = [1, 1, 3], strides = [1, 1, 1]} : vector<3x3x3xf32> to vector<1x1x3xf32>
    %34 = vector.shape_cast %33 : vector<1x1x3xf32> to vector<3xf32>
    %35 = vector.shape_cast %34 : vector<3xf32> to vector<1x1x3xf32>
    %36 = vector.broadcast %35 : vector<1x1x3xf32> to vector<32x32x3xf32>
    %37 = arith.mulf %32, %36 : vector<32x32x3xf32>
    %38 = arith.addf %31, %37 : vector<32x32x3xf32>
    %39 = vector.extract_strided_slice %1 {offsets = [1, 2, 0], sizes = [32, 32, 3], strides = [1, 1, 1]} : vector<34x34x3xf32> to vector<32x32x3xf32>
    %40 = vector.extract_strided_slice %2 {offsets = [1, 2, 0], sizes = [1, 1, 3], strides = [1, 1, 1]} : vector<3x3x3xf32> to vector<1x1x3xf32>
    %41 = vector.shape_cast %40 : vector<1x1x3xf32> to vector<3xf32>
    %42 = vector.shape_cast %41 : vector<3xf32> to vector<1x1x3xf32>
    %43 = vector.broadcast %42 : vector<1x1x3xf32> to vector<32x32x3xf32>
    %44 = arith.mulf %39, %43 : vector<32x32x3xf32>
    %45 = arith.addf %38, %44 : vector<32x32x3xf32>
    %46 = vector.extract_strided_slice %1 {offsets = [2, 0, 0], sizes = [32, 32, 3], strides = [1, 1, 1]} : vector<34x34x3xf32> to vector<32x32x3xf32>
    %47 = vector.extract_strided_slice %2 {offsets = [2, 0, 0], sizes = [1, 1, 3], strides = [1, 1, 1]} : vector<3x3x3xf32> to vector<1x1x3xf32>
    %48 = vector.shape_cast %47 : vector<1x1x3xf32> to vector<3xf32>
    %49 = vector.shape_cast %48 : vector<3xf32> to vector<1x1x3xf32>
    %50 = vector.broadcast %49 : vector<1x1x3xf32> to vector<32x32x3xf32>
    %51 = arith.mulf %46, %50 : vector<32x32x3xf32>
    %52 = arith.addf %45, %51 : vector<32x32x3xf32>
    %53 = vector.extract_strided_slice %1 {offsets = [2, 1, 0], sizes = [32, 32, 3], strides = [1, 1, 1]} : vector<34x34x3xf32> to vector<32x32x3xf32>
    %54 = vector.extract_strided_slice %2 {offsets = [2, 1, 0], sizes = [1, 1, 3], strides = [1, 1, 1]} : vector<3x3x3xf32> to vector<1x1x3xf32>
    %55 = vector.shape_cast %54 : vector<1x1x3xf32> to vector<3xf32>
    %56 = vector.shape_cast %55 : vector<3xf32> to vector<1x1x3xf32>
    %57 = vector.broadcast %56 : vector<1x1x3xf32> to vector<32x32x3xf32>
    %58 = arith.mulf %53, %57 : vector<32x32x3xf32>
    %59 = arith.addf %52, %58 : vector<32x32x3xf32>
    %60 = vector.extract_strided_slice %1 {offsets = [2, 2, 0], sizes = [32, 32, 3], strides = [1, 1, 1]} : vector<34x34x3xf32> to vector<32x32x3xf32>
    %61 = vector.extract_strided_slice %2 {offsets = [2, 2, 0], sizes = [1, 1, 3], strides = [1, 1, 1]} : vector<3x3x3xf32> to vector<1x1x3xf32>
    %62 = vector.shape_cast %61 : vector<1x1x3xf32> to vector<3xf32>
    %63 = vector.shape_cast %62 : vector<3xf32> to vector<1x1x3xf32>
    %64 = vector.broadcast %63 : vector<1x1x3xf32> to vector<32x32x3xf32>
    %65 = arith.mulf %60, %64 : vector<32x32x3xf32>
    %66 = arith.addf %59, %65 : vector<32x32x3xf32>
    %c0_6 = arith.constant 0 : index
    %c0_7 = arith.constant 0 : index
    %67 = vector.load %arg3[%c0_6, %c0_7] : memref<1x3xf32, #tpu.memory_space<vmem>>, vector<1x3xf32>
    %68 = vector.shape_cast %67 : vector<1x3xf32> to vector<1x1x3xf32>
    %69 = vector.broadcast %68 : vector<1x1x3xf32> to vector<32x32x3xf32>
    %70 = arith.addf %66, %69 : vector<32x32x3xf32>
    %71 = vector.shape_cast %70 : vector<32x32x3xf32> to vector<1024x3xf32>
    %c0_8 = arith.constant 0 : index
    %c0_9 = arith.constant 0 : index
    %72 = vector.load %arg4[%c0_8, %c0_9] : memref<3x32xf32, #tpu.memory_space<vmem>>, vector<3x32xf32>
    %cst_10 = arith.constant dense<0.000000e+00> : vector<1024x32xf32>
    %73 = tpu.matmul %71, %72, %cst_10 {dimension_numbers = #tpu.dot_dimension_numbers<[1], [0], [0], [1], [0, 0, 1, 1], [], []>} : vector<1024x3xf32>, vector<3x32xf32>, vector<1024x32xf32> -> vector<1024x32xf32>
    %c0_11 = arith.constant 0 : index
    %c0_12 = arith.constant 0 : index
    %74 = vector.load %arg5[%c0_11, %c0_12] : memref<2x32xf32, #tpu.memory_space<vmem>>, vector<1x32xf32>
    %75 = vector.broadcast %74 : vector<1x32xf32> to vector<1024x32xf32>
    %76 = arith.mulf %73, %75 : vector<1024x32xf32>
    %c1 = arith.constant 1 : index
    %c0_13 = arith.constant 0 : index
    %77 = vector.load %arg5[%c1, %c0_13] : memref<2x32xf32, #tpu.memory_space<vmem>>, vector<1x32xf32>
    %78 = vector.broadcast %77 : vector<1x32xf32> to vector<1024x32xf32>
    %79 = arith.addf %76, %78 : vector<1024x32xf32>
    %cst_14 = arith.constant 0.000000e+00 : f32
    %80 = vector.broadcast %cst_14 : f32 to vector<1024x32xf32>
    %81 = arith.maximumf %79, %80 : vector<1024x32xf32>
    %82 = vector.shape_cast %81 : vector<1024x32xf32> to vector<32x32x32xf32>
    %c0_15 = arith.constant 0 : index
    %c0_16 = arith.constant 0 : index
    %c0_17 = arith.constant 0 : index
    %c0_18 = arith.constant 0 : index
    %83 = vector.load %arg6[%c0_15, %c0_16, %c0_17, %c0_18] : memref<1x32x32x32xf32, #tpu.memory_space<vmem>>, vector<1x32x32x32xf32>
    %84 = vector.shape_cast %83 : vector<1x32x32x32xf32> to vector<32x32x32xf32>
    %85 = vector.shape_cast %82 : vector<32x32x32xf32> to vector<1x32x32x32xf32>
    tpu.vector_store %arg6[%c0_15, %c0_16, %c0_17, %c0_18], %85 {strides = array<i32>} : memref<1x32x32x32xf32, #tpu.memory_space<vmem>>, vector<1x32x32x32xf32>,
    return
  }
  func.func @transform_0(%arg0: i32) -> (i32, i32, i32, i32) {
    %c0_i32 = arith.constant 0 : i32
    %c0_i32_0 = arith.constant 0 : i32
    %c0_i32_1 = arith.constant 0 : i32
    %c0_i32_2 = arith.constant 0 : i32
    return %arg0, %c0_i32, %c0_i32_0, %c0_i32_1 : i32, i32, i32, i32
  }
  func.func @transform_1(%arg0: i32) -> (i32, i32, i32) {
    %c0_i32 = arith.constant 0 : i32
    %c0_i32_0 = arith.constant 0 : i32
    %c0_i32_1 = arith.constant 0 : i32
    %c0_i32_2 = arith.constant 0 : i32
    return %c0_i32, %c0_i32_0, %c0_i32_1 : i32, i32, i32
  }
  func.func @transform_2(%arg0: i32) -> (i32, i32) {
    %c0_i32 = arith.constant 0 : i32
    %c0_i32_0 = arith.constant 0 : i32
    %c0_i32_1 = arith.constant 0 : i32
    return %c0_i32, %c0_i32_0 : i32, i32
  }
  func.func @transform_3(%arg0: i32) -> (i32, i32) {
    %c0_i32 = arith.constant 0 : i32
    %c0_i32_0 = arith.constant 0 : i32
    %c0_i32_1 = arith.constant 0 : i32
    return %c0_i32, %c0_i32_0 : i32, i32
  }
  func.func @transform_4(%arg0: i32) -> (i32, i32) {
    %c0_i32 = arith.constant 0 : i32
    %c0_i32_0 = arith.constant 0 : i32
    %c0_i32_1 = arith.constant 0 : i32
    return %c0_i32, %c0_i32_0 : i32, i32
  }
  func.func @transform_5(%arg0: i32) -> (i32, i32, i32, i32) {
    %c0_i32 = arith.constant 0 : i32
    %c0_i32_0 = arith.constant 0 : i32
    %c0_i32_1 = arith.constant 0 : i32
    %c0_i32_2 = arith.constant 0 : i32
    return %arg0, %c0_i32, %c0_i32_0, %c0_i32_1 : i32, i32, i32, i32
  }
}

</mosaic_0001>

<llo_original>
// kernel: tpu_custom_call.1
$region0: #{tpu_custom_call.1}
  #allocation0 [shape = 'u32[]', space=smem, size = 0x4, offset = 0x4, fixed_abs, tag = 'smem constant byte address 0x4 - core index']
  #allocation1 [shape = 'u32[144,128]{1,0:T(1,128)}', space=vmem, size = 0x12000, scoped, tag = 'internal scratch']
  %s0 = inlined_call_operand.vmem [shape: f32[2,34,34,3], index: 0, kind: input, shape index: {}]
  %s1 = inlined_call_operand.vmem [shape: f32[3,3,3], index: 1, kind: input, shape index: {}]
  %s2 = inlined_call_operand.vmem [shape: f32[1,3], index: 2, kind: input, shape index: {}]
  %s3 = inlined_call_operand.vmem [shape: f32[3,32], index: 3, kind: input, shape index: {}]
  %s4 = inlined_call_operand.vmem [shape: f32[2,32], index: 4, kind: input, shape index: {}]
  %s5 = inlined_call_operand.hbm [shape: f32[2,32,32,32], index: 5, kind: output, shape index: {}]
  %s6 = sld [smem:[#allocation0]]
  $region53: #{tpu_custom_call.1} parent=0
    _
  %s8 = ssub.s32 1, %s6
  %s9 = scalar_select 0, %s8, %s6
  $region1: #{tpu_custom_call.1} parent=0
    #allocation2 [shape = 'u8[1048576]{0}', space=vmem, size = 0x100000, scoped, tag = 'output window, operand 0']
    #allocation3 [shape = 's32[2]{0}', space=sflag, size = 0x8, scoped, tag = 'scoped memory for tpu_custom_call.1']
    %10 = vsyncpa [#allocation3], 0
    %s11 = scalar_lea.sflag [#allocation3], 1
    %12 = vsyncpa %s11, 0
    loop: start=0, step=1, limit=4
    $region2: #{tpu_custom_call.1} parent=1 // loop_pre_header
      _
    $region3: #{tpu_custom_call.1} parent=1 // loop_header
      %s14 = sphi 0, %s18
      %p15 = scmp.ge.s32.totalorder %s14, 4
      %s24 = sphi 0, %s26
      %s27 = sphi 0, %s24
      %s28 = sphi 0, %s27
      %s44 = sphi 0, %s28
      %s48 = sphi 0, %s48
      %s50 = sphi 0, %s48
      %s51 = sphi 0, %s50
      %s65 = sphi 0, %s51
      %s69 = sphi 0, %s69
      %s71 = sphi 0, %s69
      %s72 = sphi 0, %s71
      %s86 = sphi 0, %s72
      %s90 = sphi 0, %s90
      %s92 = sphi 0, %s90
      %s93 = sphi 0, %s92
      %s107 = sphi 0, %s93
      %s111 = sphi 0, %s111
      %s113 = sphi 0, %s111
      %s114 = sphi 0, %s113
      %s128 = sphi 0, %s114
      %s134 = sphi 0, %s136
      %s137 = sphi 0, %s134
      %s138 = sphi 0, %s137
      %s154 = sphi 0, %s138
    $region4: #{tpu_custom_call.1} parent=1 // loop_header_branch
      %17 = sbr.rel (%p15) target = $region8
    $region5: #{tpu_custom_call.1} parent=1 // loop_body
      %s19 = ssub.s32 %s14, 1
      %s20 = ssub.s32 %s14, 2
      %s21 = sadd.s32 %s14, 1
      %s22 = ssub.s32 %s14, %s21
      %p23 = scmp.eq.s32.totalorder %s22, 0
      %s25 = sadd.s32 %s24, 1
      %s26 = scalar_select %p23, %s24, %s25
      %p29 = pneg %p23
      %p30 = scmp.eq.s32.totalorder %s14, 1
      %p31 = por %p29, %p30
      %p32 = scmp.ne.s32.totalorder %s24, %s27
      %p33 = scmp.eq.s32.totalorder %s14, 0
      %p34 = por %p32, %p33
      %p35 = scmp.ne.s32.totalorder %s24, %s27
      %p36 = scmp.eq.s32.totalorder %s19, 1
      %p37 = por %p35, %p36
      %p38 = scmp.ne.s32.totalorder %s27, %s28
      %p39 = scmp.eq.s32.totalorder %s19, 0
      %p40 = por %p38, %p39
      %p41 = scmp.ne.s32.totalorder %s27, %s28
      %p42 = scmp.eq.s32.totalorder %s20, 1
      %p43 = por %p41, %p42
      %p45 = scmp.ne.s32.totalorder %s28, %s44
      %p46 = scmp.eq.s32.totalorder %s20, 0
      %p47 = por %p45, %p46
      %s49 = sadd.s32 %s48, 1
      %p52 = scmp.eq.s32.totalorder %s14, 1
      %p53 = scmp.ne.s32.totalorder %s48, %s50
      %p54 = scmp.eq.s32.totalorder %s14, 0
      %p55 = por %p53, %p54
      %p56 = scmp.ne.s32.totalorder %s48, %s50
      %p57 = scmp.eq.s32.totalorder %s19, 1
      %p58 = por %p56, %p57
      %p59 = scmp.ne.s32.totalorder %s50, %s51
      %p60 = scmp.eq.s32.totalorder %s19, 0
      %p61 = por %p59, %p60
      %p62 = scmp.ne.s32.totalorder %s50, %s51
      %p63 = scmp.eq.s32.totalorder %s20, 1
      %p64 = por %p62, %p63
      %p66 = scmp.ne.s32.totalorder %s51, %s65
      %p67 = scmp.eq.s32.totalorder %s20, 0
      %p68 = por %p66, %p67
      %s70 = sadd.s32 %s69, 1
      %p73 = scmp.eq.s32.totalorder %s14, 1
      %p74 = scmp.ne.s32.totalorder %s69, %s71
      %p75 = scmp.eq.s32.totalorder %s14, 0
      %p76 = por %p74, %p75
      %p77 = scmp.ne.s32.totalorder %s69, %s71
      %p78 = scmp.eq.s32.totalorder %s19, 1
      %p79 = por %p77, %p78
      %p80 = scmp.ne.s32.totalorder %s71, %s72
      %p81 = scmp.eq.s32.totalorder %s19, 0
      %p82 = por %p80, %p81
      %p83 = scmp.ne.s32.totalorder %s71, %s72
      %p84 = scmp.eq.s32.totalorder %s20, 1
      %p85 = por %p83, %p84
      %p87 = scmp.ne.s32.totalorder %s72, %s86
      %p88 = scmp.eq.s32.totalorder %s20, 0
      %p89 = por %p87, %p88
      %s91 = sadd.s32 %s90, 1
      %p94 = scmp.eq.s32.totalorder %s14, 1
      %p95 = scmp.ne.s32.totalorder %s90, %s92
      %p96 = scmp.eq.s32.totalorder %s14, 0
      %p97 = por %p95, %p96
      %p98 = scmp.ne.s32.totalorder %s90, %s92
      %p99 = scmp.eq.s32.totalorder %s19, 1
      %p100 = por %p98, %p99
      %p101 = scmp.ne.s32.totalorder %s92, %s93
      %p102 = scmp.eq.s32.totalorder %s19, 0
      %p103 = por %p101, %p102
      %p104 = scmp.ne.s32.totalorder %s92, %s93
      %p105 = scmp.eq.s32.totalorder %s20, 1
      %p106 = por %p104, %p105
      %p108 = scmp.ne.s32.totalorder %s93, %s107
      %p109 = scmp.eq.s32.totalorder %s20, 0
      %p110 = por %p108, %p109
      %s112 = sadd.s32 %s111, 1
      %p115 = scmp.eq.s32.totalorder %s14, 1
      %p116 = scmp.ne.s32.totalorder %s111, %s113
      %p117 = scmp.eq.s32.totalorder %s14, 0
      %p118 = por %p116, %p117
      %p119 = scmp.ne.s32.totalorder %s111, %s113
      %p120 = scmp.eq.s32.totalorder %s19, 1
      %p121 = por %p119, %p120
      %p122 = scmp.ne.s32.totalorder %s113, %s114
      %p123 = scmp.eq.s32.totalorder %s19, 0
      %p124 = por %p122, %p123
      %p125 = scmp.ne.s32.totalorder %s113, %s114
      %p126 = scmp.eq.s32.totalorder %s20, 1
      %p127 = por %p125, %p126
      %p129 = scmp.ne.s32.totalorder %s114, %s128
      %p130 = scmp.eq.s32.totalorder %s20, 0
      %p131 = por %p129, %p130
      %s132 = ssub.s32 %s14, %s21
      %p133 = scmp.eq.s32.totalorder %s132, 0
      %s135 = sadd.s32 %s134, 1
      %s136 = scalar_select %p133, %s134, %s135
      %p139 = pneg %p133
      %p140 = scmp.eq.s32.totalorder %s14, 1
      %p141 = por %p139, %p140
      %p142 = scmp.ne.s32.totalorder %s134, %s137
      %p143 = scmp.eq.s32.totalorder %s14, 0
      %p144 = por %p142, %p143
      %p145 = scmp.ne.s32.totalorder %s134, %s137
      %p146 = scmp.eq.s32.totalorder %s19, 1
      %p147 = por %p145, %p146
      %p148 = scmp.ne.s32.totalorder %s137, %s138
      %p149 = scmp.eq.s32.totalorder %s19, 0
      %p150 = por %p148, %p149
      %p151 = scmp.ne.s32.totalorder %s137, %s138
      %p152 = scmp.eq.s32.totalorder %s20, 1
      %p153 = por %p151, %p152
      %p155 = scmp.ne.s32.totalorder %s138, %s154
      %p156 = scmp.eq.s32.totalorder %s20, 0
      %p157 = por %p155, %p156
      %p158 = scmp.le.s32.totalorder 1, %s14
      %p159 = scmp.lt.s32.totalorder %s14, 3
      %p160 = pnand %p158, %p159
      %p161 = pneg %p160
      // Predicated region
      $region9: #{tpu_custom_call.1} parent=5 // pred_check
        _
      $region10: #{tpu_custom_call.1} parent=5 // pred_check_branch
        %163 = sbr.rel (%p160) target = $region12
      $region11: #{tpu_custom_call.1} parent=5 // pred_region
        %s164 = ssub.s32 %s14, 1
        // Predicated region
        $region13: #{tpu_custom_call.1} parent=11 // pred_check
          %p165 = pneg %p61
        $region14: #{tpu_custom_call.1} parent=11 // pred_check_branch
          %167 = sbr.rel (%p165) target = $region16
        $region15: #{tpu_custom_call.1} parent=11 // pred_region
          _
        $region16: #{tpu_custom_call.1} parent=11 // pred_fallthru
          _
        // Predicated region
        $region17: #{tpu_custom_call.1} parent=11 // pred_check
          %p168 = pneg %p82
        $region18: #{tpu_custom_call.1} parent=11 // pred_check_branch
          %170 = sbr.rel (%p168) target = $region20
        $region19: #{tpu_custom_call.1} parent=11 // pred_region
          _
        $region20: #{tpu_custom_call.1} parent=11 // pred_fallthru
          _
        // Predicated region
        $region21: #{tpu_custom_call.1} parent=11 // pred_check
          %p171 = pneg %p103
        $region22: #{tpu_custom_call.1} parent=11 // pred_check_branch
          %173 = sbr.rel (%p171) target = $region24
        $region23: #{tpu_custom_call.1} parent=11 // pred_region
          _
        $region24: #{tpu_custom_call.1} parent=11 // pred_fallthru
          _
        // Predicated region
        $region25: #{tpu_custom_call.1} parent=11 // pred_check
          %p174 = pneg %p124
        $region26: #{tpu_custom_call.1} parent=11 // pred_check_branch
          %176 = sbr.rel (%p174) target = $region28
        $region27: #{tpu_custom_call.1} parent=11 // pred_region
          _
        $region28: #{tpu_custom_call.1} parent=11 // pred_fallthru
          _
      $region12: #{tpu_custom_call.1} parent=5 // pred_fallthru
        _
      %p177 = scmp.lt.s32.totalorder %s14, 2
      // Predicated region
      $region29: #{tpu_custom_call.1} parent=5 // pred_check
        %p178 = pneg %p177
      $region30: #{tpu_custom_call.1} parent=5 // pred_check_branch
        %180 = sbr.rel (%p178) target = $region32
      $region31: #{tpu_custom_call.1} parent=5 // pred_region
        // Predicated region
        $region33: #{tpu_custom_call.1} parent=31 // pred_check
          %p181 = pneg %p34
        $region34: #{tpu_custom_call.1} parent=31 // pred_check_branch
          %183 = sbr.rel (%p181) target = $region36
        $region35: #{tpu_custom_call.1} parent=31 // pred_region
          %p184 = scmp.lt.s32.totalorder %s14, 1
          %s185 = scalar_select %p184, %s14, 1
          %s186 = smul.addr %s185, 170
          %s187 = smul.addr %s186, 8
          %s188 = scalar_lea.vmem %s0, %s187
        $region36: #{tpu_custom_call.1} parent=31 // pred_fallthru
          _
      $region32: #{tpu_custom_call.1} parent=5 // pred_fallthru
        _
      %p189 = scmp.le.s32.totalorder 1, %s14
      %p190 = scmp.lt.s32.totalorder %s14, 3
      %p191 = pnand %p189, %p190
      %p192 = pneg %p191
      // Predicated region
      $region37: #{tpu_custom_call.1} parent=5 // pred_check
        _
      $region38: #{tpu_custom_call.1} parent=5 // pred_check_branch
        %194 = sbr.rel (%p191) target = $region40
      $region39: #{tpu_custom_call.1} parent=5 // pred_region
        %s195 = ssub.s32 %s14, 1
        %p196 = scmp.lt.s32.totalorder %s19, 1
        %s197 = scalar_select %p196, %s19, 1
        %s198 = smul.addr %s197, 170
        %s199 = smul.addr %s198, 8
        %s200 = scalar_lea.vmem %s0, %s199
        %p201 = pneg %p40
        %p202 = pneg %p37
        %p203 = pneg %p61
        %p204 = pneg %p58
        %p205 = pneg %p82
        %p206 = pneg %p79
        %p207 = pneg %p103
        %p208 = pneg %p100
        %p209 = pneg %p124
        %p210 = pneg %p121
        %p211 = pneg %p150
        %p212 = pneg %p147
        %s213 = sand.u32 %s137, 1
        %s214 = scalar_lea.sflag [#allocation3], %s213
        %s215 = sand.u32 %s137, 1
        %s216 = smul.addr %s215, 1024
        %s217 = scalar_lea.vmem [#allocation2], %s216
        %p218 = scmp.lt.s32.totalorder %s19, 1
        %s219 = scalar_select %p218, %s19, 1
        %s220 = smul.addr %s219, 170
        %s221 = smul.addr %s220, 8
        %s222 = scalar_lea.vmem %s0, %s221
        %v223 = vld [vmem:[%s222] sm:$0xff]
        %v224 = vld [vmem:[%s222 + $0x8] sm:$0xff]
        %v225 = vld [vmem:[%s222 + $0x10] sm:$0xff]
        %v226 = vld [vmem:[%s222 + $0x18] sm:$0xff]
        %v227 = vld [vmem:[%s222 + $0x20] sm:$0x3]
        %v228 = vld [vmem:[%s222 + $0x28] sm:$0xff]
        %v229 = vld [vmem:[%s222 + $0x30] sm:$0xff]
        %v230 = vld [vmem:[%s222 + $0x38] sm:$0xff]
        %v231 = vld [vmem:[%s222 + $0x40] sm:$0xff]
        %v232 = vld [vmem:[%s222 + $0x48] sm:$0x3]
        %v233 = vld [vmem:[%s222 + $0x50] sm:$0xff]
        %v234 = vld [vmem:[%s222 + $0x58] sm:$0xff]
        %v235 = vld [vmem:[%s222 + $0x60] sm:$0xff]
        %v236 = vld [vmem:[%s222 + $0x68] sm:$0xff]
        %v237 = vld [vmem:[%s222 + $0x70] sm:$0x3]
        %v238 = vld [vmem:[%s222 + $0x78] sm:$0xff]
        %v239 = vld [vmem:[%s222 + $0x80] sm:$0xff]
        %v240 = vld [vmem:[%s222 + $0x88] sm:$0xff]
        %v241 = vld [vmem:[%s222 + $0x90] sm:$0xff]
        %v242 = vld [vmem:[%s222 + $0x98] sm:$0x3]
        %v243 = vld [vmem:[%s222 + $0xa0] sm:$0xff]
        %v244 = vld [vmem:[%s222 + $0xa8] sm:$0xff]
        %v245 = vld [vmem:[%s222 + $0xb0] sm:$0xff]
        %v246 = vld [vmem:[%s222 + $0xb8] sm:$0xff]
        %v247 = vld [vmem:[%s222 + $0xc0] sm:$0x3]
        %v248 = vld [vmem:[%s222 + $0xc8] sm:$0xff]
        %v249 = vld [vmem:[%s222 + $0xd0] sm:$0xff]
        %v250 = vld [vmem:[%s222 + $0xd8] sm:$0xff]
        %v251 = vld [vmem:[%s222 + $0xe0] sm:$0xff]
        %v252 = vld [vmem:[%s222 + $0xe8] sm:$0x3]
        %v253 = vld [vmem:[%s222 + $0xf0] sm:$0xff]
        %v254 = vld [vmem:[%s222 + $0xf8] sm:$0xff]
        %v255 = vld [vmem:[%s222 + $0x100] sm:$0xff]
        %v256 = vld [vmem:[%s222 + $0x108] sm:$0xff]
        %v257 = vld [vmem:[%s222 + $0x110] sm:$0x3]
        %v258 = vld [vmem:[%s222 + $0x118] sm:$0xff]
        %v259 = vld [vmem:[%s222 + $0x120] sm:$0xff]
        %v260 = vld [vmem:[%s222 + $0x128] sm:$0xff]
        %v261 = vld [vmem:[%s222 + $0x130] sm:$0xff]
        %v262 = vld [vmem:[%s222 + $0x138] sm:$0x3]
        %v263 = vld [vmem:[%s222 + $0x140] sm:$0xff]
        %v264 = vld [vmem:[%s222 + $0x148] sm:$0xff]
        %v265 = vld [vmem:[%s222 + $0x150] sm:$0xff]
        %v266 = vld [vmem:[%s222 + $0x158] sm:$0xff]
        %v267 = vld [vmem:[%s222 + $0x160] sm:$0x3]
        %v268 = vld [vmem:[%s222 + $0x168] sm:$0xff]
        %v269 = vld [vmem:[%s222 + $0x170] sm:$0xff]
        %v270 = vld [vmem:[%s222 + $0x178] sm:$0xff]
        %v271 = vld [vmem:[%s222 + $0x180] sm:$0xff]
        %v272 = vld [vmem:[%s222 + $0x188] sm:$0x3]
        %v273 = vld [vmem:[%s222 + $0x190] sm:$0xff]
        %v274 = vld [vmem:[%s222 + $0x198] sm:$0xff]
        %v275 = vld [vmem:[%s222 + $0x1a0] sm:$0xff]
        %v276 = vld [vmem:[%s222 + $0x1a8] sm:$0xff]
        %v277 = vld [vmem:[%s222 + $0x1b0] sm:$0x3]
        %v278 = vld [vmem:[%s222 + $0x1b8] sm:$0xff]
        %v279 = vld [vmem:[%s222 + $0x1c0] sm:$0xff]
        %v280 = vld [vmem:[%s222 + $0x1c8] sm:$0xff]
        %v281 = vld [vmem:[%s222 + $0x1d0] sm:$0xff]
        %v282 = vld [vmem:[%s222 + $0x1d8] sm:$0x3]
        %v283 = vld [vmem:[%s222 + $0x1e0] sm:$0xff]
        %v284 = vld [vmem:[%s222 + $0x1e8] sm:$0xff]
        %v285 = vld [vmem:[%s222 + $0x1f0] sm:$0xff]
        %v286 = vld [vmem:[%s222 + $0x1f8] sm:$0xff]
        %v287 = vld [vmem:[%s222 + $0x200] sm:$0x3]
        %v288 = vld [vmem:[%s222 + $0x208] sm:$0xff]
        %v289 = vld [vmem:[%s222 + $0x210] sm:$0xff]
        %v290 = vld [vmem:[%s222 + $0x218] sm:$0xff]
        %v291 = vld [vmem:[%s222 + $0x220] sm:$0xff]
        %v292 = vld [vmem:[%s222 + $0x228] sm:$0x3]
        %v293 = vld [vmem:[%s222 + $0x230] sm:$0xff]
        %v294 = vld [vmem:[%s222 + $0x238] sm:$0xff]
        %v295 = vld [vmem:[%s222 + $0x240] sm:$0xff]
        %v296 = vld [vmem:[%s222 + $0x248] sm:$0xff]
        %v297 = vld [vmem:[%s222 + $0x250] sm:$0x3]
        %v298 = vld [vmem:[%s222 + $0x258] sm:$0xff]
        %v299 = vld [vmem:[%s222 + $0x260] sm:$0xff]
        %v300 = vld [vmem:[%s222 + $0x268] sm:$0xff]
        %v301 = vld [vmem:[%s222 + $0x270] sm:$0xff]
        %v302 = vld [vmem:[%s222 + $0x278] sm:$0x3]
        %v303 = vld [vmem:[%s222 + $0x280] sm:$0xff]
        %v304 = vld [vmem:[%s222 + $0x288] sm:$0xff]
        %v305 = vld [vmem:[%s222 + $0x290] sm:$0xff]
        %v306 = vld [vmem:[%s222 + $0x298] sm:$0xff]
        %v307 = vld [vmem:[%s222 + $0x2a0] sm:$0x3]
        %v308 = vld [vmem:[%s222 + $0x2a8] sm:$0xff]
        %v309 = vld [vmem:[%s222 + $0x2b0] sm:$0xff]
        %v310 = vld [vmem:[%s222 + $0x2b8] sm:$0xff]
        %v311 = vld [vmem:[%s222 + $0x2c0] sm:$0xff]
        %v312 = vld [vmem:[%s222 + $0x2c8] sm:$0x3]
        %v313 = vld [vmem:[%s222 + $0x2d0] sm:$0xff]
        %v314 = vld [vmem:[%s222 + $0x2d8] sm:$0xff]
        %v315 = vld [vmem:[%s222 + $0x2e0] sm:$0xff]
        %v316 = vld [vmem:[%s222 + $0x2e8] sm:$0xff]
        %v317 = vld [vmem:[%s222 + $0x2f0] sm:$0x3]
        %v318 = vld [vmem:[%s222 + $0x2f8] sm:$0xff]
        %v319 = vld [vmem:[%s222 + $0x300] sm:$0xff]
        %v320 = vld [vmem:[%s222 + $0x308] sm:$0xff]
        %v321 = vld [vmem:[%s222 + $0x310] sm:$0xff]
        %v322 = vld [vmem:[%s222 + $0x318] sm:$0x3]
        %v323 = vld [vmem:[%s222 + $0x320] sm:$0xff]
        %v324 = vld [vmem:[%s222 + $0x328] sm:$0xff]
        %v325 = vld [vmem:[%s222 + $0x330] sm:$0xff]
        %v326 = vld [vmem:[%s222 + $0x338] sm:$0xff]
        %v327 = vld [vmem:[%s222 + $0x340] sm:$0x3]
        %v328 = vld [vmem:[%s222 + $0x348] sm:$0xff]
        %v329 = vld [vmem:[%s222 + $0x350] sm:$0xff]
        %v330 = vld [vmem:[%s222 + $0x358] sm:$0xff]
        %v331 = vld [vmem:[%s222 + $0x360] sm:$0xff]
        %v332 = vld [vmem:[%s222 + $0x368] sm:$0x3]
        %v333 = vld [vmem:[%s222 + $0x370] sm:$0xff]
        %v334 = vld [vmem:[%s222 + $0x378] sm:$0xff]
        %v335 = vld [vmem:[%s222 + $0x380] sm:$0xff]
        %v336 = vld [vmem:[%s222 + $0x388] sm:$0xff]
        %v337 = vld [vmem:[%s222 + $0x390] sm:$0x3]
        %v338 = vld [vmem:[%s222 + $0x398] sm:$0xff]
        %v339 = vld [vmem:[%s222 + $0x3a0] sm:$0xff]
        %v340 = vld [vmem:[%s222 + $0x3a8] sm:$0xff]
        %v341 = vld [vmem:[%s222 + $0x3b0] sm:$0xff]
        %v342 = vld [vmem:[%s222 + $0x3b8] sm:$0x3]
        %v343 = vld [vmem:[%s222 + $0x3c0] sm:$0xff]
        %v344 = vld [vmem:[%s222 + $0x3c8] sm:$0xff]
        %v345 = vld [vmem:[%s222 + $0x3d0] sm:$0xff]
        %v346 = vld [vmem:[%s222 + $0x3d8] sm:$0xff]
        %v347 = vld [vmem:[%s222 + $0x3e0] sm:$0x3]
        %v348 = vld [vmem:[%s222 + $0x3e8] sm:$0xff]
        %v349 = vld [vmem:[%s222 + $0x3f0] sm:$0xff]
        %v350 = vld [vmem:[%s222 + $0x3f8] sm:$0xff]
        %v351 = vld [vmem:[%s222 + $0x400] sm:$0xff]
        %v352 = vld [vmem:[%s222 + $0x408] sm:$0x3]
        %v353 = vld [vmem:[%s222 + $0x410] sm:$0xff]
        %v354 = vld [vmem:[%s222 + $0x418] sm:$0xff]
        %v355 = vld [vmem:[%s222 + $0x420] sm:$0xff]
        %v356 = vld [vmem:[%s222 + $0x428] sm:$0xff]
        %v357 = vld [vmem:[%s222 + $0x430] sm:$0x3]
        %v358 = vld [vmem:[%s222 + $0x438] sm:$0xff]
        %v359 = vld [vmem:[%s222 + $0x440] sm:$0xff]
        %v360 = vld [vmem:[%s222 + $0x448] sm:$0xff]
        %v361 = vld [vmem:[%s222 + $0x450] sm:$0xff]
        %v362 = vld [vmem:[%s222 + $0x458] sm:$0x3]
        %v363 = vld [vmem:[%s222 + $0x460] sm:$0xff]
        %v364 = vld [vmem:[%s222 + $0x468] sm:$0xff]
        %v365 = vld [vmem:[%s222 + $0x470] sm:$0xff]
        %v366 = vld [vmem:[%s222 + $0x478] sm:$0xff]
        %v367 = vld [vmem:[%s222 + $0x480] sm:$0x3]
        %v368 = vld [vmem:[%s222 + $0x488] sm:$0xff]
        %v369 = vld [vmem:[%s222 + $0x490] sm:$0xff]
        %v370 = vld [vmem:[%s222 + $0x498] sm:$0xff]
        %v371 = vld [vmem:[%s222 + $0x4a0] sm:$0xff]
        %v372 = vld [vmem:[%s222 + $0x4a8] sm:$0x3]
        %v373 = vld [vmem:[%s222 + $0x4b0] sm:$0xff]
        %v374 = vld [vmem:[%s222 + $0x4b8] sm:$0xff]
        %v375 = vld [vmem:[%s222 + $0x4c0] sm:$0xff]
        %v376 = vld [vmem:[%s222 + $0x4c8] sm:$0xff]
        %v377 = vld [vmem:[%s222 + $0x4d0] sm:$0x3]
        %v378 = vld [vmem:[%s222 + $0x4d8] sm:$0xff]
        %v379 = vld [vmem:[%s222 + $0x4e0] sm:$0xff]
        %v380 = vld [vmem:[%s222 + $0x4e8] sm:$0xff]
        %v381 = vld [vmem:[%s222 + $0x4f0] sm:$0xff]
        %v382 = vld [vmem:[%s222 + $0x4f8] sm:$0x3]
        %v383 = vld [vmem:[%s222 + $0x500] sm:$0xff]
        %v384 = vld [vmem:[%s222 + $0x508] sm:$0xff]
        %v385 = vld [vmem:[%s222 + $0x510] sm:$0xff]
        %v386 = vld [vmem:[%s222 + $0x518] sm:$0xff]
        %v387 = vld [vmem:[%s222 + $0x520] sm:$0x3]
        %v388 = vld [vmem:[%s222 + $0x528] sm:$0xff]
        %v389 = vld [vmem:[%s222 + $0x530] sm:$0xff]
        %v390 = vld [vmem:[%s222 + $0x538] sm:$0xff]
        %v391 = vld [vmem:[%s222 + $0x540] sm:$0xff]
        %v392 = vld [vmem:[%s222 + $0x548] sm:$0x3]
        %v393 = vld [vmem:[%s1] sm:$0x7]
        %v394 = vld [vmem:[%s1 + $0x4] sm:$0x7]
        %v395 = vld [vmem:[%s1 + $0x8] sm:$0x7]
        %v396 = vlaneseq
        %v397 = vshrl.u32 %v396, 7
        %v398 = vsub.s32 0, %v397
        %v399 = vrot.slane %v393, %v398
        %v400 = vmul.f32 %v223, %v399
        %v401 = vmul.f32 %v224, %v399
        %v402 = vmul.f32 %v225, %v399
        %v403 = vmul.f32 %v226, %v399
        %v404 = vmul.f32 %v228, %v399
        %v405 = vmul.f32 %v229, %v399
        %v406 = vmul.f32 %v230, %v399
        %v407 = vmul.f32 %v231, %v399
        %v408 = vmul.f32 %v233, %v399
        %v409 = vmul.f32 %v234, %v399
        %v410 = vmul.f32 %v235, %v399
        %v411 = vmul.f32 %v236, %v399
        %v412 = vmul.f32 %v238, %v399
        %v413 = vmul.f32 %v239, %v399
        %v414 = vmul.f32 %v240, %v399
        %v415 = vmul.f32 %v241, %v399
        %v416 = vmul.f32 %v243, %v399
        %v417 = vmul.f32 %v244, %v399
        %v418 = vmul.f32 %v245, %v399
        %v419 = vmul.f32 %v246, %v399
        %v420 = vmul.f32 %v248, %v399
        %v421 = vmul.f32 %v249, %v399
        %v422 = vmul.f32 %v250, %v399
        %v423 = vmul.f32 %v251, %v399
        %v424 = vmul.f32 %v253, %v399
        %v425 = vmul.f32 %v254, %v399
        %v426 = vmul.f32 %v255, %v399
        %v427 = vmul.f32 %v256, %v399
        %v428 = vmul.f32 %v258, %v399
        %v429 = vmul.f32 %v259, %v399
        %v430 = vmul.f32 %v260, %v399
        %v431 = vmul.f32 %v261, %v399
        %v432 = vmul.f32 %v263, %v399
        %v433 = vmul.f32 %v264, %v399
        %v434 = vmul.f32 %v265, %v399
        %v435 = vmul.f32 %v266, %v399
        %v436 = vmul.f32 %v268, %v399
        %v437 = vmul.f32 %v269, %v399
        %v438 = vmul.f32 %v270, %v399
        %v439 = vmul.f32 %v271, %v399
        %v440 = vmul.f32 %v273, %v399
        %v441 = vmul.f32 %v274, %v399
        %v442 = vmul.f32 %v275, %v399
        %v443 = vmul.f32 %v276, %v399
        %v444 = vmul.f32 %v278, %v399
        %v445 = vmul.f32 %v279, %v399
        %v446 = vmul.f32 %v280, %v399
        %v447 = vmul.f32 %v281, %v399
        %v448 = vmul.f32 %v283, %v399
        %v449 = vmul.f32 %v284, %v399
        %v450 = vmul.f32 %v285, %v399
        %v451 = vmul.f32 %v286, %v399
        %v452 = vmul.f32 %v288, %v399
        %v453 = vmul.f32 %v289, %v399
        %v454 = vmul.f32 %v290, %v399
        %v455 = vmul.f32 %v291, %v399
        %v456 = vmul.f32 %v293, %v399
        %v457 = vmul.f32 %v294, %v399
        %v458 = vmul.f32 %v295, %v399
        %v459 = vmul.f32 %v296, %v399
        %v460 = vmul.f32 %v298, %v399
        %v461 = vmul.f32 %v299, %v399
        %v462 = vmul.f32 %v300, %v399
        %v463 = vmul.f32 %v301, %v399
        %v464 = vmul.f32 %v303, %v399
        %v465 = vmul.f32 %v304, %v399
        %v466 = vmul.f32 %v305, %v399
        %v467 = vmul.f32 %v306, %v399
        %v468 = vmul.f32 %v308, %v399
        %v469 = vmul.f32 %v309, %v399
        %v470 = vmul.f32 %v310, %v399
        %v471 = vmul.f32 %v311, %v399
        %v472 = vmul.f32 %v313, %v399
        %v473 = vmul.f32 %v314, %v399
        %v474 = vmul.f32 %v315, %v399
        %v475 = vmul.f32 %v316, %v399
        %v476 = vmul.f32 %v318, %v399
        %v477 = vmul.f32 %v319, %v399
        %v478 = vmul.f32 %v320, %v399
        %v479 = vmul.f32 %v321, %v399
        %v480 = vmul.f32 %v323, %v399
        %v481 = vmul.f32 %v324, %v399
        %v482 = vmul.f32 %v325, %v399
        %v483 = vmul.f32 %v326, %v399
        %v484 = vmul.f32 %v328, %v399
        %v485 = vmul.f32 %v329, %v399
        %v486 = vmul.f32 %v330, %v399
        %v487 = vmul.f32 %v331, %v399
        %v488 = vmul.f32 %v333, %v399
        %v489 = vmul.f32 %v334, %v399
        %v490 = vmul.f32 %v335, %v399
        %v491 = vmul.f32 %v336, %v399
        %v492 = vmul.f32 %v338, %v399
        %v493 = vmul.f32 %v339, %v399
        %v494 = vmul.f32 %v340, %v399
        %v495 = vmul.f32 %v341, %v399
        %v496 = vmul.f32 %v343, %v399
        %v497 = vmul.f32 %v344, %v399
        %v498 = vmul.f32 %v345, %v399
        %v499 = vmul.f32 %v346, %v399
        %v500 = vmul.f32 %v348, %v399
        %v501 = vmul.f32 %v349, %v399
        %v502 = vmul.f32 %v350, %v399
        %v503 = vmul.f32 %v351, %v399
        %v504 = vmul.f32 %v353, %v399
        %v505 = vmul.f32 %v354, %v399
        %v506 = vmul.f32 %v355, %v399
        %v507 = vmul.f32 %v356, %v399
        %v508 = vmul.f32 %v358, %v399
        %v509 = vmul.f32 %v359, %v399
        %v510 = vmul.f32 %v360, %v399
        %v511 = vmul.f32 %v361, %v399
        %v512 = vmul.f32 %v363, %v399
        %v513 = vmul.f32 %v364, %v399
        %v514 = vmul.f32 %v365, %v399
        %v515 = vmul.f32 %v366, %v399
        %v516 = vmul.f32 %v368, %v399
        %v517 = vmul.f32 %v369, %v399
        %v518 = vmul.f32 %v370, %v399
        %v519 = vmul.f32 %v371, %v399
        %v520 = vmul.f32 %v373, %v399
        %v521 = vmul.f32 %v374, %v399
        %v522 = vmul.f32 %v375, %v399
        %v523 = vmul.f32 %v376, %v399
        %v524 = vmul.f32 %v378, %v399
        %v525 = vmul.f32 %v379, %v399
        %v526 = vmul.f32 %v380, %v399
        %v527 = vmul.f32 %v381, %v399
        %v528 = vadd.f32 %v400, 0.0
        %v529 = vadd.f32 %v401, 0.0
        %v530 = vadd.f32 %v402, 0.0
        %v531 = vadd.f32 %v403, 0.0
        %v532 = vadd.f32 %v404, 0.0
        %v533 = vadd.f32 %v405, 0.0
        %v534 = vadd.f32 %v406, 0.0
        %v535 = vadd.f32 %v407, 0.0
        %v536 = vadd.f32 %v408, 0.0
        %v537 = vadd.f32 %v409, 0.0
        %v538 = vadd.f32 %v410, 0.0
        %v539 = vadd.f32 %v411, 0.0
        %v540 = vadd.f32 %v412, 0.0
        %v541 = vadd.f32 %v413, 0.0
        %v542 = vadd.f32 %v414, 0.0
        %v543 = vadd.f32 %v415, 0.0
        %v544 = vadd.f32 %v416, 0.0
        %v545 = vadd.f32 %v417, 0.0
        %v546 = vadd.f32 %v418, 0.0
        %v547 = vadd.f32 %v419, 0.0
        %v548 = vadd.f32 %v420, 0.0
        %v549 = vadd.f32 %v421, 0.0
        %v550 = vadd.f32 %v422, 0.0
        %v551 = vadd.f32 %v423, 0.0
        %v552 = vadd.f32 %v424, 0.0
        %v553 = vadd.f32 %v425, 0.0
        %v554 = vadd.f32 %v426, 0.0
        %v555 = vadd.f32 %v427, 0.0
        %v556 = vadd.f32 %v428, 0.0
        %v557 = vadd.f32 %v429, 0.0
        %v558 = vadd.f32 %v430, 0.0
        %v559 = vadd.f32 %v431, 0.0
        %v560 = vadd.f32 %v432, 0.0
        %v561 = vadd.f32 %v433, 0.0
        %v562 = vadd.f32 %v434, 0.0
        %v563 = vadd.f32 %v435, 0.0
        %v564 = vadd.f32 %v436, 0.0
        %v565 = vadd.f32 %v437, 0.0
        %v566 = vadd.f32 %v438, 0.0
        %v567 = vadd.f32 %v439, 0.0
        %v568 = vadd.f32 %v440, 0.0
        %v569 = vadd.f32 %v441, 0.0
        %v570 = vadd.f32 %v442, 0.0
        %v571 = vadd.f32 %v443, 0.0
        %v572 = vadd.f32 %v444, 0.0
        %v573 = vadd.f32 %v445, 0.0
        %v574 = vadd.f32 %v446, 0.0
        %v575 = vadd.f32 %v447, 0.0
        %v576 = vadd.f32 %v448, 0.0
        %v577 = vadd.f32 %v449, 0.0
        %v578 = vadd.f32 %v450, 0.0
        %v579 = vadd.f32 %v451, 0.0
        %v580 = vadd.f32 %v452, 0.0
        %v581 = vadd.f32 %v453, 0.0
        %v582 = vadd.f32 %v454, 0.0
        %v583 = vadd.f32 %v455, 0.0
        %v584 = vadd.f32 %v456, 0.0
        %v585 = vadd.f32 %v457, 0.0
        %v586 = vadd.f32 %v458, 0.0
        %v587 = vadd.f32 %v459, 0.0
        %v588 = vadd.f32 %v460, 0.0
        %v589 = vadd.f32 %v461, 0.0
        %v590 = vadd.f32 %v462, 0.0
        %v591 = vadd.f32 %v463, 0.0
        %v592 = vadd.f32 %v464, 0.0
        %v593 = vadd.f32 %v465, 0.0
        %v594 = vadd.f32 %v466, 0.0
        %v595 = vadd.f32 %v467, 0.0
        %v596 = vadd.f32 %v468, 0.0
        %v597 = vadd.f32 %v469, 0.0
        %v598 = vadd.f32 %v470, 0.0
        %v599 = vadd.f32 %v471, 0.0
        %v600 = vadd.f32 %v472, 0.0
        %v601 = vadd.f32 %v473, 0.0
        %v602 = vadd.f32 %v474, 0.0
        %v603 = vadd.f32 %v475, 0.0
        %v604 = vadd.f32 %v476, 0.0
        %v605 = vadd.f32 %v477, 0.0
        %v606 = vadd.f32 %v478, 0.0
        %v607 = vadd.f32 %v479, 0.0
        %v608 = vadd.f32 %v480, 0.0
        %v609 = vadd.f32 %v481, 0.0
        %v610 = vadd.f32 %v482, 0.0
        %v611 = vadd.f32 %v483, 0.0
        %v612 = vadd.f32 %v484, 0.0
        %v613 = vadd.f32 %v485, 0.0
        %v614 = vadd.f32 %v486, 0.0
        %v615 = vadd.f32 %v487, 0.0
        %v616 = vadd.f32 %v488, 0.0
        %v617 = vadd.f32 %v489, 0.0
        %v618 = vadd.f32 %v490, 0.0
        %v619 = vadd.f32 %v491, 0.0
        %v620 = vadd.f32 %v492, 0.0
        %v621 = vadd.f32 %v493, 0.0
        %v622 = vadd.f32 %v494, 0.0
        %v623 = vadd.f32 %v495, 0.0
        %v624 = vadd.f32 %v496, 0.0
        %v625 = vadd.f32 %v497, 0.0
        %v626 = vadd.f32 %v498, 0.0
        %v627 = vadd.f32 %v499, 0.0
        %v628 = vadd.f32 %v500, 0.0
        %v629 = vadd.f32 %v501, 0.0
        %v630 = vadd.f32 %v502, 0.0
        %v631 = vadd.f32 %v503, 0.0
        %v632 = vadd.f32 %v504, 0.0
        %v633 = vadd.f32 %v505, 0.0
        %v634 = vadd.f32 %v506, 0.0
        %v635 = vadd.f32 %v507, 0.0
        %v636 = vadd.f32 %v508, 0.0
        %v637 = vadd.f32 %v509, 0.0
        %v638 = vadd.f32 %v510, 0.0
        %v639 = vadd.f32 %v511, 0.0
        %v640 = vadd.f32 %v512, 0.0
        %v641 = vadd.f32 %v513, 0.0
        %v642 = vadd.f32 %v514, 0.0
        %v643 = vadd.f32 %v515, 0.0
        %v644 = vadd.f32 %v516, 0.0
        %v645 = vadd.f32 %v517, 0.0
        %v646 = vadd.f32 %v518, 0.0
        %v647 = vadd.f32 %v519, 0.0
        %v648 = vadd.f32 %v520, 0.0
        %v649 = vadd.f32 %v521, 0.0
        %v650 = vadd.f32 %v522, 0.0
        %v651 = vadd.f32 %v523, 0.0
        %v652 = vadd.f32 %v524, 0.0
        %v653 = vadd.f32 %v525, 0.0
        %v654 = vadd.f32 %v526, 0.0
        %v655 = vadd.f32 %v527, 0.0
        %v656 = vlaneseq
        %v657 = vshrl.u32 %v656, 7
        %v658 = vsub.s32 1, %v657
        %v659 = vrot.slane %v393, %v658
        %v660 = vmul.f32 %v223, %v659
        %v661 = vmul.f32 %v224, %v659
        %v662 = vmul.f32 %v225, %v659
        %v663 = vmul.f32 %v226, %v659
        %v664 = vmul.f32 %v227, %v659
        %v665 = vmul.f32 %v228, %v659
        %v666 = vmul.f32 %v229, %v659
        %v667 = vmul.f32 %v230, %v659
        %v668 = vmul.f32 %v231, %v659
        %v669 = vmul.f32 %v232, %v659
        %v670 = vmul.f32 %v233, %v659
        %v671 = vmul.f32 %v234, %v659
        %v672 = vmul.f32 %v235, %v659
        %v673 = vmul.f32 %v236, %v659
        %v674 = vmul.f32 %v237, %v659
        %v675 = vmul.f32 %v238, %v659
        %v676 = vmul.f32 %v239, %v659
        %v677 = vmul.f32 %v240, %v659
        %v678 = vmul.f32 %v241, %v659
        %v679 = vmul.f32 %v242, %v659
        %v680 = vmul.f32 %v243, %v659
        %v681 = vmul.f32 %v244, %v659
        %v682 = vmul.f32 %v245, %v659
        %v683 = vmul.f32 %v246, %v659
        %v684 = vmul.f32 %v247, %v659
        %v685 = vmul.f32 %v248, %v659
        %v686 = vmul.f32 %v249, %v659
        %v687 = vmul.f32 %v250, %v659
        %v688 = vmul.f32 %v251, %v659
        %v689 = vmul.f32 %v252, %v659
        %v690 = vmul.f32 %v253, %v659
        %v691 = vmul.f32 %v254, %v659
        %v692 = vmul.f32 %v255, %v659
        %v693 = vmul.f32 %v256, %v659
        %v694 = vmul.f32 %v257, %v659
        %v695 = vmul.f32 %v258, %v659
        %v696 = vmul.f32 %v259, %v659
        %v697 = vmul.f32 %v260, %v659
        %v698 = vmul.f32 %v261, %v659
        %v699 = vmul.f32 %v262, %v659
        %v700 = vmul.f32 %v263, %v659
        %v701 = vmul.f32 %v264, %v659
        %v702 = vmul.f32 %v265, %v659
        %v703 = vmul.f32 %v266, %v659
        %v704 = vmul.f32 %v267, %v659
        %v705 = vmul.f32 %v268, %v659
        %v706 = vmul.f32 %v269, %v659
        %v707 = vmul.f32 %v270, %v659
        %v708 = vmul.f32 %v271, %v659
        %v709 = vmul.f32 %v272, %v659
        %v710 = vmul.f32 %v273, %v659
        %v711 = vmul.f32 %v274, %v659
        %v712 = vmul.f32 %v275, %v659
        %v713 = vmul.f32 %v276, %v659
        %v714 = vmul.f32 %v277, %v659
        %v715 = vmul.f32 %v278, %v659
        %v716 = vmul.f32 %v279, %v659
        %v717 = vmul.f32 %v280, %v659
        %v718 = vmul.f32 %v281, %v659
        %v719 = vmul.f32 %v282, %v659
        %v720 = vmul.f32 %v283, %v659
        %v721 = vmul.f32 %v284, %v659
        %v722 = vmul.f32 %v285, %v659
        %v723 = vmul.f32 %v286, %v659
        %v724 = vmul.f32 %v287, %v659
        %v725 = vmul.f32 %v288, %v659
        %v726 = vmul.f32 %v289, %v659
        %v727 = vmul.f32 %v290, %v659
        %v728 = vmul.f32 %v291, %v659
        %v729 = vmul.f32 %v292, %v659
        %v730 = vmul.f32 %v293, %v659
        %v731 = vmul.f32 %v294, %v659
        %v732 = vmul.f32 %v295, %v659
        %v733 = vmul.f32 %v296, %v659
        %v734 = vmul.f32 %v297, %v659
        %v735 = vmul.f32 %v298, %v659
        %v736 = vmul.f32 %v299, %v659
        %v737 = vmul.f32 %v300, %v659
        %v738 = vmul.f32 %v301, %v659
        %v739 = vmul.f32 %v302, %v659
        %v740 = vmul.f32 %v303, %v659
        %v741 = vmul.f32 %v304, %v659
        %v742 = vmul.f32 %v305, %v659
        %v743 = vmul.f32 %v306, %v659
        %v744 = vmul.f32 %v307, %v659
        %v745 = vmul.f32 %v308, %v659
        %v746 = vmul.f32 %v309, %v659
        %v747 = vmul.f32 %v310, %v659
        %v748 = vmul.f32 %v311, %v659
        %v749 = vmul.f32 %v312, %v659
        %v750 = vmul.f32 %v313, %v659
        %v751 = vmul.f32 %v314, %v659
        %v752 = vmul.f32 %v315, %v659
        %v753 = vmul.f32 %v316, %v659
        %v754 = vmul.f32 %v317, %v659
        %v755 = vmul.f32 %v318, %v659
        %v756 = vmul.f32 %v319, %v659
        %v757 = vmul.f32 %v320, %v659
        %v758 = vmul.f32 %v321, %v659
        %v759 = vmul.f32 %v322, %v659
        %v760 = vmul.f32 %v323, %v659
        %v761 = vmul.f32 %v324, %v659
        %v762 = vmul.f32 %v325, %v659
        %v763 = vmul.f32 %v326, %v659
        %v764 = vmul.f32 %v327, %v659
        %v765 = vmul.f32 %v328, %v659
        %v766 = vmul.f32 %v329, %v659
        %v767 = vmul.f32 %v330, %v659
        %v768 = vmul.f32 %v331, %v659
        %v769 = vmul.f32 %v332, %v659
        %v770 = vmul.f32 %v333, %v659
        %v771 = vmul.f32 %v334, %v659
        %v772 = vmul.f32 %v335, %v659
        %v773 = vmul.f32 %v336, %v659
        %v774 = vmul.f32 %v337, %v659
        %v775 = vmul.f32 %v338, %v659
        %v776 = vmul.f32 %v339, %v659
        %v777 = vmul.f32 %v340, %v659
        %v778 = vmul.f32 %v341, %v659
        %v779 = vmul.f32 %v342, %v659
        %v780 = vmul.f32 %v343, %v659
        %v781 = vmul.f32 %v344, %v659
        %v782 = vmul.f32 %v345, %v659
        %v783 = vmul.f32 %v346, %v659
        %v784 = vmul.f32 %v347, %v659
        %v785 = vmul.f32 %v348, %v659
        %v786 = vmul.f32 %v349, %v659
        %v787 = vmul.f32 %v350, %v659
        %v788 = vmul.f32 %v351, %v659
        %v789 = vmul.f32 %v352, %v659
        %v790 = vmul.f32 %v353, %v659
        %v791 = vmul.f32 %v354, %v659
        %v792 = vmul.f32 %v355, %v659
        %v793 = vmul.f32 %v356, %v659
        %v794 = vmul.f32 %v357, %v659
        %v795 = vmul.f32 %v358, %v659
        %v796 = vmul.f32 %v359, %v659
        %v797 = vmul.f32 %v360, %v659
        %v798 = vmul.f32 %v361, %v659
        %v799 = vmul.f32 %v362, %v659
        %v800 = vmul.f32 %v363, %v659
        %v801 = vmul.f32 %v364, %v659
        %v802 = vmul.f32 %v365, %v659
        %v803 = vmul.f32 %v366, %v659
        %v804 = vmul.f32 %v367, %v659
        %v805 = vmul.f32 %v368, %v659
        %v806 = vmul.f32 %v369, %v659
        %v807 = vmul.f32 %v370, %v659
        %v808 = vmul.f32 %v371, %v659
        %v809 = vmul.f32 %v372, %v659
        %v810 = vmul.f32 %v373, %v659
        %v811 = vmul.f32 %v374, %v659
        %v812 = vmul.f32 %v375, %v659
        %v813 = vmul.f32 %v376, %v659
        %v814 = vmul.f32 %v377, %v659
        %v815 = vmul.f32 %v378, %v659
        %v816 = vmul.f32 %v379, %v659
        %v817 = vmul.f32 %v380, %v659
        %v818 = vmul.f32 %v381, %v659
        %v819 = vmul.f32 %v382, %v659
        %vm980 = vcmask 1046528
        %v981 = vrot.slane %v660, 1
        %v982 = vrot.slane %v661, 1
        %v983 = vsel %vm980, %v981, %v982
        %v984 = vrot.slane %v662, 1
        %v985 = vsel %vm980, %v982, %v984
        %v986 = vrot.slane %v663, 1
        %v987 = vsel %vm980, %v984, %v986
        %v988 = vrot.slane %v664, 1
        %v989 = vsel %vm980, %v986, %v988
        %v990 = vrot.slane %v665, 1
        %v991 = vrot.slane %v666, 1
        %v992 = vsel %vm980, %v990, %v991
        %v993 = vrot.slane %v667, 1
        %v994 = vsel %vm980, %v991, %v993
        %v995 = vrot.slane %v668, 1
        %v996 = vsel %vm980, %v993, %v995
        %v997 = vrot.slane %v669, 1
        %v998 = vsel %vm980, %v995, %v997
        %v999 = vrot.slane %v670, 1
        %v1000 = vrot.slane %v671, 1
        %v1001 = vsel %vm980, %v999, %v1000
        %v1002 = vrot.slane %v672, 1
        %v1003 = vsel %vm980, %v1000, %v1002
        %v1004 = vrot.slane %v673, 1
        %v1005 = vsel %vm980, %v1002, %v1004
        %v1006 = vrot.slane %v674, 1
        %v1007 = vsel %vm980, %v1004, %v1006
        %v1008 = vrot.slane %v675, 1
        %v1009 = vrot.slane %v676, 1
        %v1010 = vsel %vm980, %v1008, %v1009
        %v1011 = vrot.slane %v677, 1
        %v1012 = vsel %vm980, %v1009, %v1011
        %v1013 = vrot.slane %v678, 1
        %v1014 = vsel %vm980, %v1011, %v1013
        %v1015 = vrot.slane %v679, 1
        %v1016 = vsel %vm980, %v1013, %v1015
        %v1017 = vrot.slane %v680, 1
        %v1018 = vrot.slane %v681, 1
        %v1019 = vsel %vm980, %v1017, %v1018
        %v1020 = vrot.slane %v682, 1
        %v1021 = vsel %vm980, %v1018, %v1020
        %v1022 = vrot.slane %v683, 1
        %v1023 = vsel %vm980, %v1020, %v1022
        %v1024 = vrot.slane %v684, 1
        %v1025 = vsel %vm980, %v1022, %v1024
        %v1026 = vrot.slane %v685, 1
        %v1027 = vrot.slane %v686, 1
        %v1028 = vsel %vm980, %v1026, %v1027
        %v1029 = vrot.slane %v687, 1
        %v1030 = vsel %vm980, %v1027, %v1029
        %v1031 = vrot.slane %v688, 1
        %v1032 = vsel %vm980, %v1029, %v1031
        %v1033 = vrot.slane %v689, 1
        %v1034 = vsel %vm980, %v1031, %v1033
        %v1035 = vrot.slane %v690, 1
        %v1036 = vrot.slane %v691, 1
        %v1037 = vsel %vm980, %v1035, %v1036
        %v1038 = vrot.slane %v692, 1
        %v1039 = vsel %vm980, %v1036, %v1038
        %v1040 = vrot.slane %v693, 1
        %v1041 = vsel %vm980, %v1038, %v1040
        %v1042 = vrot.slane %v694, 1
        %v1043 = vsel %vm980, %v1040, %v1042
        %v1044 = vrot.slane %v695, 1
        %v1045 = vrot.slane %v696, 1
        %v1046 = vsel %vm980, %v1044, %v1045
        %v1047 = vrot.slane %v697, 1
        %v1048 = vsel %vm980, %v1045, %v1047
        %v1049 = vrot.slane %v698, 1
        %v1050 = vsel %vm980, %v1047, %v1049
        %v1051 = vrot.slane %v699, 1
        %v1052 = vsel %vm980, %v1049, %v1051
        %v1053 = vrot.slane %v700, 1
        %v1054 = vrot.slane %v701, 1
        %v1055 = vsel %vm980, %v1053, %v1054
        %v1056 = vrot.slane %v702, 1
        %v1057 = vsel %vm980, %v1054, %v1056
        %v1058 = vrot.slane %v703, 1
        %v1059 = vsel %vm980, %v1056, %v1058
        %v1060 = vrot.slane %v704, 1
        %v1061 = vsel %vm980, %v1058, %v1060
        %v1062 = vrot.slane %v705, 1
        %v1063 = vrot.slane %v706, 1
        %v1064 = vsel %vm980, %v1062, %v1063
        %v1065 = vrot.slane %v707, 1
        %v1066 = vsel %vm980, %v1063, %v1065
        %v1067 = vrot.slane %v708, 1
        %v1068 = vsel %vm980, %v1065, %v1067
        %v1069 = vrot.slane %v709, 1
        %v1070 = vsel %vm980, %v1067, %v1069
        %v1071 = vrot.slane %v710, 1
        %v1072 = vrot.slane %v711, 1
        %v1073 = vsel %vm980, %v1071, %v1072
        %v1074 = vrot.slane %v712, 1
        %v1075 = vsel %vm980, %v1072, %v1074
        %v1076 = vrot.slane %v713, 1
        %v1077 = vsel %vm980, %v1074, %v1076
        %v1078 = vrot.slane %v714, 1
        %v1079 = vsel %vm980, %v1076, %v1078
        %v1080 = vrot.slane %v715, 1
        %v1081 = vrot.slane %v716, 1
        %v1082 = vsel %vm980, %v1080, %v1081
        %v1083 = vrot.slane %v717, 1
        %v1084 = vsel %vm980, %v1081, %v1083
        %v1085 = vrot.slane %v718, 1
        %v1086 = vsel %vm980, %v1083, %v1085
        %v1087 = vrot.slane %v719, 1
        %v1088 = vsel %vm980, %v1085, %v1087
        %v1089 = vrot.slane %v720, 1
        %v1090 = vrot.slane %v721, 1
        %v1091 = vsel %vm980, %v1089, %v1090
        %v1092 = vrot.slane %v722, 1
        %v1093 = vsel %vm980, %v1090, %v1092
        %v1094 = vrot.slane %v723, 1
        %v1095 = vsel %vm980, %v1092, %v1094
        %v1096 = vrot.slane %v724, 1
        %v1097 = vsel %vm980, %v1094, %v1096
        %v1098 = vrot.slane %v725, 1
        %v1099 = vrot.slane %v726, 1
        %v1100 = vsel %vm980, %v1098, %v1099
        %v1101 = vrot.slane %v727, 1
        %v1102 = vsel %vm980, %v1099, %v1101
        %v1103 = vrot.slane %v728, 1
        %v1104 = vsel %vm980, %v1101, %v1103
        %v1105 = vrot.slane %v729, 1
        %v1106 = vsel %vm980, %v1103, %v1105
        %v1107 = vrot.slane %v730, 1
        %v1108 = vrot.slane %v731, 1
        %v1109 = vsel %vm980, %v1107, %v1108
        %v1110 = vrot.slane %v732, 1
        %v1111 = vsel %vm980, %v1108, %v1110
        %v1112 = vrot.slane %v733, 1
        %v1113 = vsel %vm980, %v1110, %v1112
        %v1114 = vrot.slane %v734, 1
        %v1115 = vsel %vm980, %v1112, %v1114
        %v1116 = vrot.slane %v735, 1
        %v1117 = vrot.slane %v736, 1
        %v1118 = vsel %vm980, %v1116, %v1117
        %v1119 = vrot.slane %v737, 1
        %v1120 = vsel %vm980, %v1117, %v1119
        %v1121 = vrot.slane %v738, 1
        %v1122 = vsel %vm980, %v1119, %v1121
        %v1123 = vrot.slane %v739, 1
        %v1124 = vsel %vm980, %v1121, %v1123
        %v1125 = vrot.slane %v740, 1
        %v1126 = vrot.slane %v741, 1
        %v1127 = vsel %vm980, %v1125, %v1126
        %v1128 = vrot.slane %v742, 1
        %v1129 = vsel %vm980, %v1126, %v1128
        %v1130 = vrot.slane %v743, 1
        %v1131 = vsel %vm980, %v1128, %v1130
        %v1132 = vrot.slane %v744, 1
        %v1133 = vsel %vm980, %v1130, %v1132
        %v1134 = vrot.slane %v745, 1
        %v1135 = vrot.slane %v746, 1
        %v1136 = vsel %vm980, %v1134, %v1135
        %v1137 = vrot.slane %v747, 1
        %v1138 = vsel %vm980, %v1135, %v1137
        %v1139 = vrot.slane %v748, 1
        %v1140 = vsel %vm980, %v1137, %v1139
        %v1141 = vrot.slane %v749, 1
        %v1142 = vsel %vm980, %v1139, %v1141
        %v1143 = vrot.slane %v750, 1
        %v1144 = vrot.slane %v751, 1
        %v1145 = vsel %vm980, %v1143, %v1144
        %v1146 = vrot.slane %v752, 1
        %v1147 = vsel %vm980, %v1144, %v1146
        %v1148 = vrot.slane %v753, 1
        %v1149 = vsel %vm980, %v1146, %v1148
        %v1150 = vrot.slane %v754, 1
        %v1151 = vsel %vm980, %v1148, %v1150
        %v1152 = vrot.slane %v755, 1
        %v1153 = vrot.slane %v756, 1
        %v1154 = vsel %vm980, %v1152, %v1153
        %v1155 = vrot.slane %v757, 1
        %v1156 = vsel %vm980, %v1153, %v1155
        %v1157 = vrot.slane %v758, 1
        %v1158 = vsel %vm980, %v1155, %v1157
        %v1159 = vrot.slane %v759, 1
        %v1160 = vsel %vm980, %v1157, %v1159
        %v1161 = vrot.slane %v760, 1
        %v1162 = vrot.slane %v761, 1
        %v1163 = vsel %vm980, %v1161, %v1162
        %v1164 = vrot.slane %v762, 1
        %v1165 = vsel %vm980, %v1162, %v1164
        %v1166 = vrot.slane %v763, 1
        %v1167 = vsel %vm980, %v1164, %v1166
        %v1168 = vrot.slane %v764, 1
        %v1169 = vsel %vm980, %v1166, %v1168
        %v1170 = vrot.slane %v765, 1
        %v1171 = vrot.slane %v766, 1
        %v1172 = vsel %vm980, %v1170, %v1171
        %v1173 = vrot.slane %v767, 1
        %v1174 = vsel %vm980, %v1171, %v1173
        %v1175 = vrot.slane %v768, 1
        %v1176 = vsel %vm980, %v1173, %v1175
        %v1177 = vrot.slane %v769, 1
        %v1178 = vsel %vm980, %v1175, %v1177
        %v1179 = vrot.slane %v770, 1
        %v1180 = vrot.slane %v771, 1
        %v1181 = vsel %vm980, %v1179, %v1180
        %v1182 = vrot.slane %v772, 1
        %v1183 = vsel %vm980, %v1180, %v1182
        %v1184 = vrot.slane %v773, 1
        %v1185 = vsel %vm980, %v1182, %v1184
        %v1186 = vrot.slane %v774, 1
        %v1187 = vsel %vm980, %v1184, %v1186
        %v1188 = vrot.slane %v775, 1
        %v1189 = vrot.slane %v776, 1
        %v1190 = vsel %vm980, %v1188, %v1189
        %v1191 = vrot.slane %v777, 1
        %v1192 = vsel %vm980, %v1189, %v1191
        %v1193 = vrot.slane %v778, 1
        %v1194 = vsel %vm980, %v1191, %v1193
        %v1195 = vrot.slane %v779, 1
        %v1196 = vsel %vm980, %v1193, %v1195
        %v1197 = vrot.slane %v780, 1
        %v1198 = vrot.slane %v781, 1
        %v1199 = vsel %vm980, %v1197, %v1198
        %v1200 = vrot.slane %v782, 1
        %v1201 = vsel %vm980, %v1198, %v1200
        %v1202 = vrot.slane %v783, 1
        %v1203 = vsel %vm980, %v1200, %v1202
        %v1204 = vrot.slane %v784, 1
        %v1205 = vsel %vm980, %v1202, %v1204
        %v1206 = vrot.slane %v785, 1
        %v1207 = vrot.slane %v786, 1
        %v1208 = vsel %vm980, %v1206, %v1207
        %v1209 = vrot.slane %v787, 1
        %v1210 = vsel %vm980, %v1207, %v1209
        %v1211 = vrot.slane %v788, 1
        %v1212 = vsel %vm980, %v1209, %v1211
        %v1213 = vrot.slane %v789, 1
        %v1214 = vsel %vm980, %v1211, %v1213
        %v1215 = vrot.slane %v790, 1
        %v1216 = vrot.slane %v791, 1
        %v1217 = vsel %vm980, %v1215, %v1216
        %v1218 = vrot.slane %v792, 1
        %v1219 = vsel %vm980, %v1216, %v1218
        %v1220 = vrot.slane %v793, 1
        %v1221 = vsel %vm980, %v1218, %v1220
        %v1222 = vrot.slane %v794, 1
        %v1223 = vsel %vm980, %v1220, %v1222
        %v1224 = vrot.slane %v795, 1
        %v1225 = vrot.slane %v796, 1
        %v1226 = vsel %vm980, %v1224, %v1225
        %v1227 = vrot.slane %v797, 1
        %v1228 = vsel %vm980, %v1225, %v1227
        %v1229 = vrot.slane %v798, 1
        %v1230 = vsel %vm980, %v1227, %v1229
        %v1231 = vrot.slane %v799, 1
        %v1232 = vsel %vm980, %v1229, %v1231
        %v1233 = vrot.slane %v800, 1
        %v1234 = vrot.slane %v801, 1
        %v1235 = vsel %vm980, %v1233, %v1234
        %v1236 = vrot.slane %v802, 1
        %v1237 = vsel %vm980, %v1234, %v1236
        %v1238 = vrot.slane %v803, 1
        %v1239 = vsel %vm980, %v1236, %v1238
        %v1240 = vrot.slane %v804, 1
        %v1241 = vsel %vm980, %v1238, %v1240
        %v1242 = vrot.slane %v805, 1
        %v1243 = vrot.slane %v806, 1
        %v1244 = vsel %vm980, %v1242, %v1243
        %v1245 = vrot.slane %v807, 1
        %v1246 = vsel %vm980, %v1243, %v1245
        %v1247 = vrot.slane %v808, 1
        %v1248 = vsel %vm980, %v1245, %v1247
        %v1249 = vrot.slane %v809, 1
        %v1250 = vsel %vm980, %v1247, %v1249
        %v1251 = vrot.slane %v810, 1
        %v1252 = vrot.slane %v811, 1
        %v1253 = vsel %vm980, %v1251, %v1252
        %v1254 = vrot.slane %v812, 1
        %v1255 = vsel %vm980, %v1252, %v1254
        %v1256 = vrot.slane %v813, 1
        %v1257 = vsel %vm980, %v1254, %v1256
        %v1258 = vrot.slane %v814, 1
        %v1259 = vsel %vm980, %v1256, %v1258
        %v1260 = vrot.slane %v815, 1
        %v1261 = vrot.slane %v816, 1
        %v1262 = vsel %vm980, %v1260, %v1261
        %v1263 = vrot.slane %v817, 1
        %v1264 = vsel %vm980, %v1261, %v1263
        %v1265 = vrot.slane %v818, 1
        %v1266 = vsel %vm980, %v1263, %v1265
        %v1267 = vrot.slane %v819, 1
        %v1268 = vsel %vm980, %v1265, %v1267
        %v1397 = vadd.f32 %v528, %v983
        %v1398 = vadd.f32 %v529, %v985
        %v1399 = vadd.f32 %v530, %v987
        %v1400 = vadd.f32 %v531, %v989
        %v1401 = vadd.f32 %v532, %v992
        %v1402 = vadd.f32 %v533, %v994
        %v1403 = vadd.f32 %v534, %v996
        %v1404 = vadd.f32 %v535, %v998
        %v1405 = vadd.f32 %v536, %v1001
        %v1406 = vadd.f32 %v537, %v1003
        %v1407 = vadd.f32 %v538, %v1005
        %v1408 = vadd.f32 %v539, %v1007
        %v1409 = vadd.f32 %v540, %v1010
        %v1410 = vadd.f32 %v541, %v1012
        %v1411 = vadd.f32 %v542, %v1014
        %v1412 = vadd.f32 %v543, %v1016
        %v1413 = vadd.f32 %v544, %v1019
        %v1414 = vadd.f32 %v545, %v1021
        %v1415 = vadd.f32 %v546, %v1023
        %v1416 = vadd.f32 %v547, %v1025
        %v1417 = vadd.f32 %v548, %v1028
        %v1418 = vadd.f32 %v549, %v1030
        %v1419 = vadd.f32 %v550, %v1032
        %v1420 = vadd.f32 %v551, %v1034
        %v1421 = vadd.f32 %v552, %v1037
        %v1422 = vadd.f32 %v553, %v1039
        %v1423 = vadd.f32 %v554, %v1041
        %v1424 = vadd.f32 %v555, %v1043
        %v1425 = vadd.f32 %v556, %v1046
        %v1426 = vadd.f32 %v557, %v1048
        %v1427 = vadd.f32 %v558, %v1050
        %v1428 = vadd.f32 %v559, %v1052
        %v1429 = vadd.f32 %v560, %v1055
        %v1430 = vadd.f32 %v561, %v1057
        %v1431 = vadd.f32 %v562, %v1059
        %v1432 = vadd.f32 %v563, %v1061
        %v1433 = vadd.f32 %v564, %v1064
        %v1434 = vadd.f32 %v565, %v1066
        %v1435 = vadd.f32 %v566, %v1068
        %v1436 = vadd.f32 %v567, %v1070
        %v1437 = vadd.f32 %v568, %v1073
        %v1438 = vadd.f32 %v569, %v1075
        %v1439 = vadd.f32 %v570, %v1077
        %v1440 = vadd.f32 %v571, %v1079
        %v1441 = vadd.f32 %v572, %v1082
        %v1442 = vadd.f32 %v573, %v1084
        %v1443 = vadd.f32 %v574, %v1086
        %v1444 = vadd.f32 %v575, %v1088
        %v1445 = vadd.f32 %v576, %v1091
        %v1446 = vadd.f32 %v577, %v1093
        %v1447 = vadd.f32 %v578, %v1095
        %v1448 = vadd.f32 %v579, %v1097
        %v1449 = vadd.f32 %v580, %v1100
        %v1450 = vadd.f32 %v581, %v1102
        %v1451 = vadd.f32 %v582, %v1104
        %v1452 = vadd.f32 %v583, %v1106
        %v1453 = vadd.f32 %v584, %v1109
        %v1454 = vadd.f32 %v585, %v1111
        %v1455 = vadd.f32 %v586, %v1113
        %v1456 = vadd.f32 %v587, %v1115
        %v1457 = vadd.f32 %v588, %v1118
        %v1458 = vadd.f32 %v589, %v1120
        %v1459 = vadd.f32 %v590, %v1122
        %v1460 = vadd.f32 %v591, %v1124
        %v1461 = vadd.f32 %v592, %v1127
        %v1462 = vadd.f32 %v593, %v1129
        %v1463 = vadd.f32 %v594, %v1131
        %v1464 = vadd.f32 %v595, %v1133
        %v1465 = vadd.f32 %v596, %v1136
        %v1466 = vadd.f32 %v597, %v1138
        %v1467 = vadd.f32 %v598, %v1140
        %v1468 = vadd.f32 %v599, %v1142
        %v1469 = vadd.f32 %v600, %v1145
        %v1470 = vadd.f32 %v601, %v1147
        %v1471 = vadd.f32 %v602, %v1149
        %v1472 = vadd.f32 %v603, %v1151
        %v1473 = vadd.f32 %v604, %v1154
        %v1474 = vadd.f32 %v605, %v1156
        %v1475 = vadd.f32 %v606, %v1158
        %v1476 = vadd.f32 %v607, %v1160
        %v1477 = vadd.f32 %v608, %v1163
        %v1478 = vadd.f32 %v609, %v1165
        %v1479 = vadd.f32 %v610, %v1167
        %v1480 = vadd.f32 %v611, %v1169
        %v1481 = vadd.f32 %v612, %v1172
        %v1482 = vadd.f32 %v613, %v1174
        %v1483 = vadd.f32 %v614, %v1176
        %v1484 = vadd.f32 %v615, %v1178
        %v1485 = vadd.f32 %v616, %v1181
        %v1486 = vadd.f32 %v617, %v1183
        %v1487 = vadd.f32 %v618, %v1185
        %v1488 = vadd.f32 %v619, %v1187
        %v1489 = vadd.f32 %v620, %v1190
        %v1490 = vadd.f32 %v621, %v1192
        %v1491 = vadd.f32 %v622, %v1194
        %v1492 = vadd.f32 %v623, %v1196
        %v1493 = vadd.f32 %v624, %v1199
        %v1494 = vadd.f32 %v625, %v1201
        %v1495 = vadd.f32 %v626, %v1203
        %v1496 = vadd.f32 %v627, %v1205
        %v1497 = vadd.f32 %v628, %v1208
        %v1498 = vadd.f32 %v629, %v1210
        %v1499 = vadd.f32 %v630, %v1212
        %v1500 = vadd.f32 %v631, %v1214
        %v1501 = vadd.f32 %v632, %v1217
        %v1502 = vadd.f32 %v633, %v1219
        %v1503 = vadd.f32 %v634, %v1221
        %v1504 = vadd.f32 %v635, %v1223
        %v1505 = vadd.f32 %v636, %v1226
        %v1506 = vadd.f32 %v637, %v1228
        %v1507 = vadd.f32 %v638, %v1230
        %v1508 = vadd.f32 %v639, %v1232
        %v1509 = vadd.f32 %v640, %v1235
        %v1510 = vadd.f32 %v641, %v1237
        %v1511 = vadd.f32 %v642, %v1239
        %v1512 = vadd.f32 %v643, %v1241
        %v1513 = vadd.f32 %v644, %v1244
        %v1514 = vadd.f32 %v645, %v1246
        %v1515 = vadd.f32 %v646, %v1248
        %v1516 = vadd.f32 %v647, %v1250
        %v1517 = vadd.f32 %v648, %v1253
        %v1518 = vadd.f32 %v649, %v1255
        %v1519 = vadd.f32 %v650, %v1257
        %v1520 = vadd.f32 %v651, %v1259
        %v1521 = vadd.f32 %v652, %v1262
        %v1522 = vadd.f32 %v653, %v1264
        %v1523 = vadd.f32 %v654, %v1266
        %v1524 = vadd.f32 %v655, %v1268
        %v1525 = vlaneseq
        %v1526 = vshrl.u32 %v1525, 7
        %v1527 = vsub.s32 2, %v1526
        %v1528 = vrot.slane %v393, %v1527
        %v1529 = vmul.f32 %v223, %v1528
        %v1530 = vmul.f32 %v224, %v1528
        %v1531 = vmul.f32 %v225, %v1528
        %v1532 = vmul.f32 %v226, %v1528
        %v1533 = vmul.f32 %v227, %v1528
        %v1534 = vmul.f32 %v228, %v1528
        %v1535 = vmul.f32 %v229, %v1528
        %v1536 = vmul.f32 %v230, %v1528
        %v1537 = vmul.f32 %v231, %v1528
        %v1538 = vmul.f32 %v232, %v1528
        %v1539 = vmul.f32 %v233, %v1528
        %v1540 = vmul.f32 %v234, %v1528
        %v1541 = vmul.f32 %v235, %v1528
        %v1542 = vmul.f32 %v236, %v1528
        %v1543 = vmul.f32 %v237, %v1528
        %v1544 = vmul.f32 %v238, %v1528
        %v1545 = vmul.f32 %v239, %v1528
        %v1546 = vmul.f32 %v240, %v1528
        %v1547 = vmul.f32 %v241, %v1528
        %v1548 = vmul.f32 %v242, %v1528
        %v1549 = vmul.f32 %v243, %v1528
        %v1550 = vmul.f32 %v244, %v1528
        %v1551 = vmul.f32 %v245, %v1528
        %v1552 = vmul.f32 %v246, %v1528
        %v1553 = vmul.f32 %v247, %v1528
        %v1554 = vmul.f32 %v248, %v1528
        %v1555 = vmul.f32 %v249, %v1528
        %v1556 = vmul.f32 %v250, %v1528
        %v1557 = vmul.f32 %v251, %v1528
        %v1558 = vmul.f32 %v252, %v1528
        %v1559 = vmul.f32 %v253, %v1528
        %v1560 = vmul.f32 %v254, %v1528
        %v1561 = vmul.f32 %v255, %v1528
        %v1562 = vmul.f32 %v256, %v1528
        %v1563 = vmul.f32 %v257, %v1528
        %v1564 = vmul.f32 %v258, %v1528
        %v1565 = vmul.f32 %v259, %v1528
        %v1566 = vmul.f32 %v260, %v1528
        %v1567 = vmul.f32 %v261, %v1528
        %v1568 = vmul.f32 %v262, %v1528
        %v1569 = vmul.f32 %v263, %v1528
        %v1570 = vmul.f32 %v264, %v1528
        %v1571 = vmul.f32 %v265, %v1528
        %v1572 = vmul.f32 %v266, %v1528
        %v1573 = vmul.f32 %v267, %v1528
        %v1574 = vmul.f32 %v268, %v1528
        %v1575 = vmul.f32 %v269, %v1528
        %v1576 = vmul.f32 %v270, %v1528
        %v1577 = vmul.f32 %v271, %v1528
        %v1578 = vmul.f32 %v272, %v1528
        %v1579 = vmul.f32 %v273, %v1528
        %v1580 = vmul.f32 %v274, %v1528
        %v1581 = vmul.f32 %v275, %v1528
        %v1582 = vmul.f32 %v276, %v1528
        %v1583 = vmul.f32 %v277, %v1528
        %v1584 = vmul.f32 %v278, %v1528
        %v1585 = vmul.f32 %v279, %v1528
        %v1586 = vmul.f32 %v280, %v1528
        %v1587 = vmul.f32 %v281, %v1528
        %v1588 = vmul.f32 %v282, %v1528
        %v1589 = vmul.f32 %v283, %v1528
        %v1590 = vmul.f32 %v284, %v1528
        %v1591 = vmul.f32 %v285, %v1528
        %v1592 = vmul.f32 %v286, %v1528
        %v1593 = vmul.f32 %v287, %v1528
        %v1594 = vmul.f32 %v288, %v1528
        %v1595 = vmul.f32 %v289, %v1528
        %v1596 = vmul.f32 %v290, %v1528
        %v1597 = vmul.f32 %v291, %v1528
        %v1598 = vmul.f32 %v292, %v1528
        %v1599 = vmul.f32 %v293, %v1528
        %v1600 = vmul.f32 %v294, %v1528
        %v1601 = vmul.f32 %v295, %v1528
        %v1602 = vmul.f32 %v296, %v1528
        %v1603 = vmul.f32 %v297, %v1528
        %v1604 = vmul.f32 %v298, %v1528
        %v1605 = vmul.f32 %v299, %v1528
        %v1606 = vmul.f32 %v300, %v1528
        %v1607 = vmul.f32 %v301, %v1528
        %v1608 = vmul.f32 %v302, %v1528
        %v1609 = vmul.f32 %v303, %v1528
        %v1610 = vmul.f32 %v304, %v1528
        %v1611 = vmul.f32 %v305, %v1528
        %v1612 = vmul.f32 %v306, %v1528
        %v1613 = vmul.f32 %v307, %v1528
        %v1614 = vmul.f32 %v308, %v1528
        %v1615 = vmul.f32 %v309, %v1528
        %v1616 = vmul.f32 %v310, %v1528
        %v1617 = vmul.f32 %v311, %v1528
        %v1618 = vmul.f32 %v312, %v1528
        %v1619 = vmul.f32 %v313, %v1528
        %v1620 = vmul.f32 %v314, %v1528
        %v1621 = vmul.f32 %v315, %v1528
        %v1622 = vmul.f32 %v316, %v1528
        %v1623 = vmul.f32 %v317, %v1528
        %v1624 = vmul.f32 %v318, %v1528
        %v1625 = vmul.f32 %v319, %v1528
        %v1626 = vmul.f32 %v320, %v1528
        %v1627 = vmul.f32 %v321, %v1528
        %v1628 = vmul.f32 %v322, %v1528
        %v1629 = vmul.f32 %v323, %v1528
        %v1630 = vmul.f32 %v324, %v1528
        %v1631 = vmul.f32 %v325, %v1528
        %v1632 = vmul.f32 %v326, %v1528
        %v1633 = vmul.f32 %v327, %v1528
        %v1634 = vmul.f32 %v328, %v1528
        %v1635 = vmul.f32 %v329, %v1528
        %v1636 = vmul.f32 %v330, %v1528
        %v1637 = vmul.f32 %v331, %v1528
        %v1638 = vmul.f32 %v332, %v1528
        %v1639 = vmul.f32 %v333, %v1528
        %v1640 = vmul.f32 %v334, %v1528
        %v1641 = vmul.f32 %v335, %v1528
        %v1642 = vmul.f32 %v336, %v1528
        %v1643 = vmul.f32 %v337, %v1528
        %v1644 = vmul.f32 %v338, %v1528
        %v1645 = vmul.f32 %v339, %v1528
        %v1646 = vmul.f32 %v340, %v1528
        %v1647 = vmul.f32 %v341, %v1528
        %v1648 = vmul.f32 %v342, %v1528
        %v1649 = vmul.f32 %v343, %v1528
        %v1650 = vmul.f32 %v344, %v1528
        %v1651 = vmul.f32 %v345, %v1528
        %v1652 = vmul.f32 %v346, %v1528
        %v1653 = vmul.f32 %v347, %v1528
        %v1654 = vmul.f32 %v348, %v1528
        %v1655 = vmul.f32 %v349, %v1528
        %v1656 = vmul.f32 %v350, %v1528
        %v1657 = vmul.f32 %v351, %v1528
        %v1658 = vmul.f32 %v352, %v1528
        %v1659 = vmul.f32 %v353, %v1528
        %v1660 = vmul.f32 %v354, %v1528
        %v1661 = vmul.f32 %v355, %v1528
        %v1662 = vmul.f32 %v356, %v1528
        %v1663 = vmul.f32 %v357, %v1528
        %v1664 = vmul.f32 %v358, %v1528
        %v1665 = vmul.f32 %v359, %v1528
        %v1666 = vmul.f32 %v360, %v1528
        %v1667 = vmul.f32 %v361, %v1528
        %v1668 = vmul.f32 %v362, %v1528
        %v1669 = vmul.f32 %v363, %v1528
        %v1670 = vmul.f32 %v364, %v1528
        %v1671 = vmul.f32 %v365, %v1528
        %v1672 = vmul.f32 %v366, %v1528
        %v1673 = vmul.f32 %v367, %v1528
        %v1674 = vmul.f32 %v368, %v1528
        %v1675 = vmul.f32 %v369, %v1528
        %v1676 = vmul.f32 %v370, %v1528
        %v1677 = vmul.f32 %v371, %v1528
        %v1678 = vmul.f32 %v372, %v1528
        %v1679 = vmul.f32 %v373, %v1528
        %v1680 = vmul.f32 %v374, %v1528
        %v1681 = vmul.f32 %v375, %v1528
        %v1682 = vmul.f32 %v376, %v1528
        %v1683 = vmul.f32 %v377, %v1528
        %v1684 = vmul.f32 %v378, %v1528
        %v1685 = vmul.f32 %v379, %v1528
        %v1686 = vmul.f32 %v380, %v1528
        %v1687 = vmul.f32 %v381, %v1528
        %v1688 = vmul.f32 %v382, %v1528
        %vm1849 = vcmask 1045504
        %v1850 = vrot.slane %v1529, 2
        %v1851 = vrot.slane %v1530, 2
        %v1852 = vsel %vm1849, %v1850, %v1851
        %v1853 = vrot.slane %v1531, 2
        %v1854 = vsel %vm1849, %v1851, %v1853
        %v1855 = vrot.slane %v1532, 2
        %v1856 = vsel %vm1849, %v1853, %v1855
        %v1857 = vrot.slane %v1533, 2
        %v1858 = vsel %vm1849, %v1855, %v1857
        %v1859 = vrot.slane %v1534, 2
        %v1860 = vrot.slane %v1535, 2
        %v1861 = vsel %vm1849, %v1859, %v1860
        %v1862 = vrot.slane %v1536, 2
        %v1863 = vsel %vm1849, %v1860, %v1862
        %v1864 = vrot.slane %v1537, 2
        %v1865 = vsel %vm1849, %v1862, %v1864
        %v1866 = vrot.slane %v1538, 2
        %v1867 = vsel %vm1849, %v1864, %v1866
        %v1868 = vrot.slane %v1539, 2
        %v1869 = vrot.slane %v1540, 2
        %v1870 = vsel %vm1849, %v1868, %v1869
        %v1871 = vrot.slane %v1541, 2
        %v1872 = vsel %vm1849, %v1869, %v1871
        %v1873 = vrot.slane %v1542, 2
        %v1874 = vsel %vm1849, %v1871, %v1873
        %v1875 = vrot.slane %v1543, 2
        %v1876 = vsel %vm1849, %v1873, %v1875
        %v1877 = vrot.slane %v1544, 2
        %v1878 = vrot.slane %v1545, 2
        %v1879 = vsel %vm1849, %v1877, %v1878
        %v1880 = vrot.slane %v1546, 2
        %v1881 = vsel %vm1849, %v1878, %v1880
        %v1882 = vrot.slane %v1547, 2
        %v1883 = vsel %vm1849, %v1880, %v1882
        %v1884 = vrot.slane %v1548, 2
        %v1885 = vsel %vm1849, %v1882, %v1884
        %v1886 = vrot.slane %v1549, 2
        %v1887 = vrot.slane %v1550, 2
        %v1888 = vsel %vm1849, %v1886, %v1887
        %v1889 = vrot.slane %v1551, 2
        %v1890 = vsel %vm1849, %v1887, %v1889
        %v1891 = vrot.slane %v1552, 2
        %v1892 = vsel %vm1849, %v1889, %v1891
        %v1893 = vrot.slane %v1553, 2
        %v1894 = vsel %vm1849, %v1891, %v1893
        %v1895 = vrot.slane %v1554, 2
        %v1896 = vrot.slane %v1555, 2
        %v1897 = vsel %vm1849, %v1895, %v1896
        %v1898 = vrot.slane %v1556, 2
        %v1899 = vsel %vm1849, %v1896, %v1898
        %v1900 = vrot.slane %v1557, 2
        %v1901 = vsel %vm1849, %v1898, %v1900
        %v1902 = vrot.slane %v1558, 2
        %v1903 = vsel %vm1849, %v1900, %v1902
        %v1904 = vrot.slane %v1559, 2
        %v1905 = vrot.slane %v1560, 2
        %v1906 = vsel %vm1849, %v1904, %v1905
        %v1907 = vrot.slane %v1561, 2
        %v1908 = vsel %vm1849, %v1905, %v1907
        %v1909 = vrot.slane %v1562, 2
        %v1910 = vsel %vm1849, %v1907, %v1909
        %v1911 = vrot.slane %v1563, 2
        %v1912 = vsel %vm1849, %v1909, %v1911
        %v1913 = vrot.slane %v1564, 2
        %v1914 = vrot.slane %v1565, 2
        %v1915 = vsel %vm1849, %v1913, %v1914
        %v1916 = vrot.slane %v1566, 2
        %v1917 = vsel %vm1849, %v1914, %v1916
        %v1918 = vrot.slane %v1567, 2
        %v1919 = vsel %vm1849, %v1916, %v1918
        %v1920 = vrot.slane %v1568, 2
        %v1921 = vsel %vm1849, %v1918, %v1920
        %v1922 = vrot.slane %v1569, 2
        %v1923 = vrot.slane %v1570, 2
        %v1924 = vsel %vm1849, %v1922, %v1923
        %v1925 = vrot.slane %v1571, 2
        %v1926 = vsel %vm1849, %v1923, %v1925
        %v1927 = vrot.slane %v1572, 2
        %v1928 = vsel %vm1849, %v1925, %v1927
        %v1929 = vrot.slane %v1573, 2
        %v1930 = vsel %vm1849, %v1927, %v1929
        %v1931 = vrot.slane %v1574, 2
        %v1932 = vrot.slane %v1575, 2
        %v1933 = vsel %vm1849, %v1931, %v1932
        %v1934 = vrot.slane %v1576, 2
        %v1935 = vsel %vm1849, %v1932, %v1934
        %v1936 = vrot.slane %v1577, 2
        %v1937 = vsel %vm1849, %v1934, %v1936
        %v1938 = vrot.slane %v1578, 2
        %v1939 = vsel %vm1849, %v1936, %v1938
        %v1940 = vrot.slane %v1579, 2
        %v1941 = vrot.slane %v1580, 2
        %v1942 = vsel %vm1849, %v1940, %v1941
        %v1943 = vrot.slane %v1581, 2
        %v1944 = vsel %vm1849, %v1941, %v1943
        %v1945 = vrot.slane %v1582, 2
        %v1946 = vsel %vm1849, %v1943, %v1945
        %v1947 = vrot.slane %v1583, 2
        %v1948 = vsel %vm1849, %v1945, %v1947
        %v1949 = vrot.slane %v1584, 2
        %v1950 = vrot.slane %v1585, 2
        %v1951 = vsel %vm1849, %v1949, %v1950
        %v1952 = vrot.slane %v1586, 2
        %v1953 = vsel %vm1849, %v1950, %v1952
        %v1954 = vrot.slane %v1587, 2
        %v1955 = vsel %vm1849, %v1952, %v1954
        %v1956 = vrot.slane %v1588, 2
        %v1957 = vsel %vm1849, %v1954, %v1956
        %v1958 = vrot.slane %v1589, 2
        %v1959 = vrot.slane %v1590, 2
        %v1960 = vsel %vm1849, %v1958, %v1959
        %v1961 = vrot.slane %v1591, 2
        %v1962 = vsel %vm1849, %v1959, %v1961
        %v1963 = vrot.slane %v1592, 2
        %v1964 = vsel %vm1849, %v1961, %v1963
        %v1965 = vrot.slane %v1593, 2
        %v1966 = vsel %vm1849, %v1963, %v1965
        %v1967 = vrot.slane %v1594, 2
        %v1968 = vrot.slane %v1595, 2
        %v1969 = vsel %vm1849, %v1967, %v1968
        %v1970 = vrot.slane %v1596, 2
        %v1971 = vsel %vm1849, %v1968, %v1970
        %v1972 = vrot.slane %v1597, 2
        %v1973 = vsel %vm1849, %v1970, %v1972
        %v1974 = vrot.slane %v1598, 2
        %v1975 = vsel %vm1849, %v1972, %v1974
        %v1976 = vrot.slane %v1599, 2
        %v1977 = vrot.slane %v1600, 2
        %v1978 = vsel %vm1849, %v1976, %v1977
        %v1979 = vrot.slane %v1601, 2
        %v1980 = vsel %vm1849, %v1977, %v1979
        %v1981 = vrot.slane %v1602, 2
        %v1982 = vsel %vm1849, %v1979, %v1981
        %v1983 = vrot.slane %v1603, 2
        %v1984 = vsel %vm1849, %v1981, %v1983
        %v1985 = vrot.slane %v1604, 2
        %v1986 = vrot.slane %v1605, 2
        %v1987 = vsel %vm1849, %v1985, %v1986
        %v1988 = vrot.slane %v1606, 2
        %v1989 = vsel %vm1849, %v1986, %v1988
        %v1990 = vrot.slane %v1607, 2
        %v1991 = vsel %vm1849, %v1988, %v1990
        %v1992 = vrot.slane %v1608, 2
        %v1993 = vsel %vm1849, %v1990, %v1992
        %v1994 = vrot.slane %v1609, 2
        %v1995 = vrot.slane %v1610, 2
        %v1996 = vsel %vm1849, %v1994, %v1995
        %v1997 = vrot.slane %v1611, 2
        %v1998 = vsel %vm1849, %v1995, %v1997
        %v1999 = vrot.slane %v1612, 2
        %v2000 = vsel %vm1849, %v1997, %v1999
        %v2001 = vrot.slane %v1613, 2
        %v2002 = vsel %vm1849, %v1999, %v2001
        %v2003 = vrot.slane %v1614, 2
        %v2004 = vrot.slane %v1615, 2
        %v2005 = vsel %vm1849, %v2003, %v2004
        %v2006 = vrot.slane %v1616, 2
        %v2007 = vsel %vm1849, %v2004, %v2006
        %v2008 = vrot.slane %v1617, 2
        %v2009 = vsel %vm1849, %v2006, %v2008
        %v2010 = vrot.slane %v1618, 2
        %v2011 = vsel %vm1849, %v2008, %v2010
        %v2012 = vrot.slane %v1619, 2
        %v2013 = vrot.slane %v1620, 2
        %v2014 = vsel %vm1849, %v2012, %v2013
        %v2015 = vrot.slane %v1621, 2
        %v2016 = vsel %vm1849, %v2013, %v2015
        %v2017 = vrot.slane %v1622, 2
        %v2018 = vsel %vm1849, %v2015, %v2017
        %v2019 = vrot.slane %v1623, 2
        %v2020 = vsel %vm1849, %v2017, %v2019
        %v2021 = vrot.slane %v1624, 2
        %v2022 = vrot.slane %v1625, 2
        %v2023 = vsel %vm1849, %v2021, %v2022
        %v2024 = vrot.slane %v1626, 2
        %v2025 = vsel %vm1849, %v2022, %v2024
        %v2026 = vrot.slane %v1627, 2
        %v2027 = vsel %vm1849, %v2024, %v2026
        %v2028 = vrot.slane %v1628, 2
        %v2029 = vsel %vm1849, %v2026, %v2028
        %v2030 = vrot.slane %v1629, 2
        %v2031 = vrot.slane %v1630, 2
        %v2032 = vsel %vm1849, %v2030, %v2031
        %v2033 = vrot.slane %v1631, 2
        %v2034 = vsel %vm1849, %v2031, %v2033
        %v2035 = vrot.slane %v1632, 2
        %v2036 = vsel %vm1849, %v2033, %v2035
        %v2037 = vrot.slane %v1633, 2
        %v2038 = vsel %vm1849, %v2035, %v2037
        %v2039 = vrot.slane %v1634, 2
        %v2040 = vrot.slane %v1635, 2
        %v2041 = vsel %vm1849, %v2039, %v2040
        %v2042 = vrot.slane %v1636, 2
        %v2043 = vsel %vm1849, %v2040, %v2042
        %v2044 = vrot.slane %v1637, 2
        %v2045 = vsel %vm1849, %v2042, %v2044
        %v2046 = vrot.slane %v1638, 2
        %v2047 = vsel %vm1849, %v2044, %v2046
        %v2048 = vrot.slane %v1639, 2
        %v2049 = vrot.slane %v1640, 2
        %v2050 = vsel %vm1849, %v2048, %v2049
        %v2051 = vrot.slane %v1641, 2
        %v2052 = vsel %vm1849, %v2049, %v2051
        %v2053 = vrot.slane %v1642, 2
        %v2054 = vsel %vm1849, %v2051, %v2053
        %v2055 = vrot.slane %v1643, 2
        %v2056 = vsel %vm1849, %v2053, %v2055
        %v2057 = vrot.slane %v1644, 2
        %v2058 = vrot.slane %v1645, 2
        %v2059 = vsel %vm1849, %v2057, %v2058
        %v2060 = vrot.slane %v1646, 2
        %v2061 = vsel %vm1849, %v2058, %v2060
        %v2062 = vrot.slane %v1647, 2
        %v2063 = vsel %vm1849, %v2060, %v2062
        %v2064 = vrot.slane %v1648, 2
        %v2065 = vsel %vm1849, %v2062, %v2064
        %v2066 = vrot.slane %v1649, 2
        %v2067 = vrot.slane %v1650, 2
        %v2068 = vsel %vm1849, %v2066, %v2067
        %v2069 = vrot.slane %v1651, 2
        %v2070 = vsel %vm1849, %v2067, %v2069
        %v2071 = vrot.slane %v1652, 2
        %v2072 = vsel %vm1849, %v2069, %v2071
        %v2073 = vrot.slane %v1653, 2
        %v2074 = vsel %vm1849, %v2071, %v2073
        %v2075 = vrot.slane %v1654, 2
        %v2076 = vrot.slane %v1655, 2
        %v2077 = vsel %vm1849, %v2075, %v2076
        %v2078 = vrot.slane %v1656, 2
        %v2079 = vsel %vm1849, %v2076, %v2078
        %v2080 = vrot.slane %v1657, 2
        %v2081 = vsel %vm1849, %v2078, %v2080
        %v2082 = vrot.slane %v1658, 2
        %v2083 = vsel %vm1849, %v2080, %v2082
        %v2084 = vrot.slane %v1659, 2
        %v2085 = vrot.slane %v1660, 2
        %v2086 = vsel %vm1849, %v2084, %v2085
        %v2087 = vrot.slane %v1661, 2
        %v2088 = vsel %vm1849, %v2085, %v2087
        %v2089 = vrot.slane %v1662, 2
        %v2090 = vsel %vm1849, %v2087, %v2089
        %v2091 = vrot.slane %v1663, 2
        %v2092 = vsel %vm1849, %v2089, %v2091
        %v2093 = vrot.slane %v1664, 2
        %v2094 = vrot.slane %v1665, 2
        %v2095 = vsel %vm1849, %v2093, %v2094
        %v2096 = vrot.slane %v1666, 2
        %v2097 = vsel %vm1849, %v2094, %v2096
        %v2098 = vrot.slane %v1667, 2
        %v2099 = vsel %vm1849, %v2096, %v2098
        %v2100 = vrot.slane %v1668, 2
        %v2101 = vsel %vm1849, %v2098, %v2100
        %v2102 = vrot.slane %v1669, 2
        %v2103 = vrot.slane %v1670, 2
        %v2104 = vsel %vm1849, %v2102, %v2103
        %v2105 = vrot.slane %v1671, 2
        %v2106 = vsel %vm1849, %v2103, %v2105
        %v2107 = vrot.slane %v1672, 2
        %v2108 = vsel %vm1849, %v2105, %v2107
        %v2109 = vrot.slane %v1673, 2
        %v2110 = vsel %vm1849, %v2107, %v2109
        %v2111 = vrot.slane %v1674, 2
        %v2112 = vrot.slane %v1675, 2
        %v2113 = vsel %vm1849, %v2111, %v2112
        %v2114 = vrot.slane %v1676, 2
        %v2115 = vsel %vm1849, %v2112, %v2114
        %v2116 = vrot.slane %v1677, 2
        %v2117 = vsel %vm1849, %v2114, %v2116
        %v2118 = vrot.slane %v1678, 2
        %v2119 = vsel %vm1849, %v2116, %v2118
        %v2120 = vrot.slane %v1679, 2
        %v2121 = vrot.slane %v1680, 2
        %v2122 = vsel %vm1849, %v2120, %v2121
        %v2123 = vrot.slane %v1681, 2
        %v2124 = vsel %vm1849, %v2121, %v2123
        %v2125 = vrot.slane %v1682, 2
        %v2126 = vsel %vm1849, %v2123, %v2125
        %v2127 = vrot.slane %v1683, 2
        %v2128 = vsel %vm1849, %v2125, %v2127
        %v2129 = vrot.slane %v1684, 2
        %v2130 = vrot.slane %v1685, 2
        %v2131 = vsel %vm1849, %v2129, %v2130
        %v2132 = vrot.slane %v1686, 2
        %v2133 = vsel %vm1849, %v2130, %v2132
        %v2134 = vrot.slane %v1687, 2
        %v2135 = vsel %vm1849, %v2132, %v2134
        %v2136 = vrot.slane %v1688, 2
        %v2137 = vsel %vm1849, %v2134, %v2136
        %v2266 = vadd.f32 %v1397, %v1852
        %v2267 = vadd.f32 %v1398, %v1854
        %v2268 = vadd.f32 %v1399, %v1856
        %v2269 = vadd.f32 %v1400, %v1858
        %v2270 = vadd.f32 %v1401, %v1861
        %v2271 = vadd.f32 %v1402, %v1863
        %v2272 = vadd.f32 %v1403, %v1865
        %v2273 = vadd.f32 %v1404, %v1867
        %v2274 = vadd.f32 %v1405, %v1870
        %v2275 = vadd.f32 %v1406, %v1872
        %v2276 = vadd.f32 %v1407, %v1874
        %v2277 = vadd.f32 %v1408, %v1876
        %v2278 = vadd.f32 %v1409, %v1879
        %v2279 = vadd.f32 %v1410, %v1881
        %v2280 = vadd.f32 %v1411, %v1883
        %v2281 = vadd.f32 %v1412, %v1885
        %v2282 = vadd.f32 %v1413, %v1888
        %v2283 = vadd.f32 %v1414, %v1890
        %v2284 = vadd.f32 %v1415, %v1892
        %v2285 = vadd.f32 %v1416, %v1894
        %v2286 = vadd.f32 %v1417, %v1897
        %v2287 = vadd.f32 %v1418, %v1899
        %v2288 = vadd.f32 %v1419, %v1901
        %v2289 = vadd.f32 %v1420, %v1903
        %v2290 = vadd.f32 %v1421, %v1906
        %v2291 = vadd.f32 %v1422, %v1908
        %v2292 = vadd.f32 %v1423, %v1910
        %v2293 = vadd.f32 %v1424, %v1912
        %v2294 = vadd.f32 %v1425, %v1915
        %v2295 = vadd.f32 %v1426, %v1917
        %v2296 = vadd.f32 %v1427, %v1919
        %v2297 = vadd.f32 %v1428, %v1921
        %v2298 = vadd.f32 %v1429, %v1924
        %v2299 = vadd.f32 %v1430, %v1926
        %v2300 = vadd.f32 %v1431, %v1928
        %v2301 = vadd.f32 %v1432, %v1930
        %v2302 = vadd.f32 %v1433, %v1933
        %v2303 = vadd.f32 %v1434, %v1935
        %v2304 = vadd.f32 %v1435, %v1937
        %v2305 = vadd.f32 %v1436, %v1939
        %v2306 = vadd.f32 %v1437, %v1942
        %v2307 = vadd.f32 %v1438, %v1944
        %v2308 = vadd.f32 %v1439, %v1946
        %v2309 = vadd.f32 %v1440, %v1948
        %v2310 = vadd.f32 %v1441, %v1951
        %v2311 = vadd.f32 %v1442, %v1953
        %v2312 = vadd.f32 %v1443, %v1955
        %v2313 = vadd.f32 %v1444, %v1957
        %v2314 = vadd.f32 %v1445, %v1960
        %v2315 = vadd.f32 %v1446, %v1962
        %v2316 = vadd.f32 %v1447, %v1964
        %v2317 = vadd.f32 %v1448, %v1966
        %v2318 = vadd.f32 %v1449, %v1969
        %v2319 = vadd.f32 %v1450, %v1971
        %v2320 = vadd.f32 %v1451, %v1973
        %v2321 = vadd.f32 %v1452, %v1975
        %v2322 = vadd.f32 %v1453, %v1978
        %v2323 = vadd.f32 %v1454, %v1980
        %v2324 = vadd.f32 %v1455, %v1982
        %v2325 = vadd.f32 %v1456, %v1984
        %v2326 = vadd.f32 %v1457, %v1987
        %v2327 = vadd.f32 %v1458, %v1989
        %v2328 = vadd.f32 %v1459, %v1991
        %v2329 = vadd.f32 %v1460, %v1993
        %v2330 = vadd.f32 %v1461, %v1996
        %v2331 = vadd.f32 %v1462, %v1998
        %v2332 = vadd.f32 %v1463, %v2000
        %v2333 = vadd.f32 %v1464, %v2002
        %v2334 = vadd.f32 %v1465, %v2005
        %v2335 = vadd.f32 %v1466, %v2007
        %v2336 = vadd.f32 %v1467, %v2009
        %v2337 = vadd.f32 %v1468, %v2011
        %v2338 = vadd.f32 %v1469, %v2014
        %v2339 = vadd.f32 %v1470, %v2016
        %v2340 = vadd.f32 %v1471, %v2018
        %v2341 = vadd.f32 %v1472, %v2020
        %v2342 = vadd.f32 %v1473, %v2023
        %v2343 = vadd.f32 %v1474, %v2025
        %v2344 = vadd.f32 %v1475, %v2027
        %v2345 = vadd.f32 %v1476, %v2029
        %v2346 = vadd.f32 %v1477, %v2032
        %v2347 = vadd.f32 %v1478, %v2034
        %v2348 = vadd.f32 %v1479, %v2036
        %v2349 = vadd.f32 %v1480, %v2038
        %v2350 = vadd.f32 %v1481, %v2041
        %v2351 = vadd.f32 %v1482, %v2043
        %v2352 = vadd.f32 %v1483, %v2045
        %v2353 = vadd.f32 %v1484, %v2047
        %v2354 = vadd.f32 %v1485, %v2050
        %v2355 = vadd.f32 %v1486, %v2052
        %v2356 = vadd.f32 %v1487, %v2054
        %v2357 = vadd.f32 %v1488, %v2056
        %v2358 = vadd.f32 %v1489, %v2059
        %v2359 = vadd.f32 %v1490, %v2061
        %v2360 = vadd.f32 %v1491, %v2063
        %v2361 = vadd.f32 %v1492, %v2065
        %v2362 = vadd.f32 %v1493, %v2068
        %v2363 = vadd.f32 %v1494, %v2070
        %v2364 = vadd.f32 %v1495, %v2072
        %v2365 = vadd.f32 %v1496, %v2074
        %v2366 = vadd.f32 %v1497, %v2077
        %v2367 = vadd.f32 %v1498, %v2079
        %v2368 = vadd.f32 %v1499, %v2081
        %v2369 = vadd.f32 %v1500, %v2083
        %v2370 = vadd.f32 %v1501, %v2086
        %v2371 = vadd.f32 %v1502, %v2088
        %v2372 = vadd.f32 %v1503, %v2090
        %v2373 = vadd.f32 %v1504, %v2092
        %v2374 = vadd.f32 %v1505, %v2095
        %v2375 = vadd.f32 %v1506, %v2097
        %v2376 = vadd.f32 %v1507, %v2099
        %v2377 = vadd.f32 %v1508, %v2101
        %v2378 = vadd.f32 %v1509, %v2104
        %v2379 = vadd.f32 %v1510, %v2106
        %v2380 = vadd.f32 %v1511, %v2108
        %v2381 = vadd.f32 %v1512, %v2110
        %v2382 = vadd.f32 %v1513, %v2113
        %v2383 = vadd.f32 %v1514, %v2115
        %v2384 = vadd.f32 %v1515, %v2117
        %v2385 = vadd.f32 %v1516, %v2119
        %v2386 = vadd.f32 %v1517, %v2122
        %v2387 = vadd.f32 %v1518, %v2124
        %v2388 = vadd.f32 %v1519, %v2126
        %v2389 = vadd.f32 %v1520, %v2128
        %v2390 = vadd.f32 %v1521, %v2131
        %v2391 = vadd.f32 %v1522, %v2133
        %v2392 = vadd.f32 %v1523, %v2135
        %v2393 = vadd.f32 %v1524, %v2137
        %v2394 = vlaneseq
        %v2395 = vshrl.u32 %v2394, 7
        %v2396 = vsub.s32 0, %v2395
        %v2397 = vrot.slane %v394, %v2396
        %v2398 = vmul.f32 %v228, %v2397
        %v2399 = vmul.f32 %v229, %v2397
        %v2400 = vmul.f32 %v230, %v2397
        %v2401 = vmul.f32 %v231, %v2397
        %v2402 = vmul.f32 %v233, %v2397
        %v2403 = vmul.f32 %v234, %v2397
        %v2404 = vmul.f32 %v235, %v2397
        %v2405 = vmul.f32 %v236, %v2397
        %v2406 = vmul.f32 %v238, %v2397
        %v2407 = vmul.f32 %v239, %v2397
        %v2408 = vmul.f32 %v240, %v2397
        %v2409 = vmul.f32 %v241, %v2397
        %v2410 = vmul.f32 %v243, %v2397
        %v2411 = vmul.f32 %v244, %v2397
        %v2412 = vmul.f32 %v245, %v2397
        %v2413 = vmul.f32 %v246, %v2397
        %v2414 = vmul.f32 %v248, %v2397
        %v2415 = vmul.f32 %v249, %v2397
        %v2416 = vmul.f32 %v250, %v2397
        %v2417 = vmul.f32 %v251, %v2397
        %v2418 = vmul.f32 %v253, %v2397
        %v2419 = vmul.f32 %v254, %v2397
        %v2420 = vmul.f32 %v255, %v2397
        %v2421 = vmul.f32 %v256, %v2397
        %v2422 = vmul.f32 %v258, %v2397
        %v2423 = vmul.f32 %v259, %v2397
        %v2424 = vmul.f32 %v260, %v2397
        %v2425 = vmul.f32 %v261, %v2397
        %v2426 = vmul.f32 %v263, %v2397
        %v2427 = vmul.f32 %v264, %v2397
        %v2428 = vmul.f32 %v265, %v2397
        %v2429 = vmul.f32 %v266, %v2397
        %v2430 = vmul.f32 %v268, %v2397
        %v2431 = vmul.f32 %v269, %v2397
        %v2432 = vmul.f32 %v270, %v2397
        %v2433 = vmul.f32 %v271, %v2397
        %v2434 = vmul.f32 %v273, %v2397
        %v2435 = vmul.f32 %v274, %v2397
        %v2436 = vmul.f32 %v275, %v2397
        %v2437 = vmul.f32 %v276, %v2397
        %v2438 = vmul.f32 %v278, %v2397
        %v2439 = vmul.f32 %v279, %v2397
        %v2440 = vmul.f32 %v280, %v2397
        %v2441 = vmul.f32 %v281, %v2397
        %v2442 = vmul.f32 %v283, %v2397
        %v2443 = vmul.f32 %v284, %v2397
        %v2444 = vmul.f32 %v285, %v2397
        %v2445 = vmul.f32 %v286, %v2397
        %v2446 = vmul.f32 %v288, %v2397
        %v2447 = vmul.f32 %v289, %v2397
        %v2448 = vmul.f32 %v290, %v2397
        %v2449 = vmul.f32 %v291, %v2397
        %v2450 = vmul.f32 %v293, %v2397
        %v2451 = vmul.f32 %v294, %v2397
        %v2452 = vmul.f32 %v295, %v2397
        %v2453 = vmul.f32 %v296, %v2397
        %v2454 = vmul.f32 %v298, %v2397
        %v2455 = vmul.f32 %v299, %v2397
        %v2456 = vmul.f32 %v300, %v2397
        %v2457 = vmul.f32 %v301, %v2397
        %v2458 = vmul.f32 %v303, %v2397
        %v2459 = vmul.f32 %v304, %v2397
        %v2460 = vmul.f32 %v305, %v2397
        %v2461 = vmul.f32 %v306, %v2397
        %v2462 = vmul.f32 %v308, %v2397
        %v2463 = vmul.f32 %v309, %v2397
        %v2464 = vmul.f32 %v310, %v2397
        %v2465 = vmul.f32 %v311, %v2397
        %v2466 = vmul.f32 %v313, %v2397
        %v2467 = vmul.f32 %v314, %v2397
        %v2468 = vmul.f32 %v315, %v2397
        %v2469 = vmul.f32 %v316, %v2397
        %v2470 = vmul.f32 %v318, %v2397
        %v2471 = vmul.f32 %v319, %v2397
        %v2472 = vmul.f32 %v320, %v2397
        %v2473 = vmul.f32 %v321, %v2397
        %v2474 = vmul.f32 %v323, %v2397
        %v2475 = vmul.f32 %v324, %v2397
        %v2476 = vmul.f32 %v325, %v2397
        %v2477 = vmul.f32 %v326, %v2397
        %v2478 = vmul.f32 %v328, %v2397
        %v2479 = vmul.f32 %v329, %v2397
        %v2480 = vmul.f32 %v330, %v2397
        %v2481 = vmul.f32 %v331, %v2397
        %v2482 = vmul.f32 %v333, %v2397
        %v2483 = vmul.f32 %v334, %v2397
        %v2484 = vmul.f32 %v335, %v2397
        %v2485 = vmul.f32 %v336, %v2397
        %v2486 = vmul.f32 %v338, %v2397
        %v2487 = vmul.f32 %v339, %v2397
        %v2488 = vmul.f32 %v340, %v2397
        %v2489 = vmul.f32 %v341, %v2397
        %v2490 = vmul.f32 %v343, %v2397
        %v2491 = vmul.f32 %v344, %v2397
        %v2492 = vmul.f32 %v345, %v2397
        %v2493 = vmul.f32 %v346, %v2397
        %v2494 = vmul.f32 %v348, %v2397
        %v2495 = vmul.f32 %v349, %v2397
        %v2496 = vmul.f32 %v350, %v2397
        %v2497 = vmul.f32 %v351, %v2397
        %v2498 = vmul.f32 %v353, %v2397
        %v2499 = vmul.f32 %v354, %v2397
        %v2500 = vmul.f32 %v355, %v2397
        %v2501 = vmul.f32 %v356, %v2397
        %v2502 = vmul.f32 %v358, %v2397
        %v2503 = vmul.f32 %v359, %v2397
        %v2504 = vmul.f32 %v360, %v2397
        %v2505 = vmul.f32 %v361, %v2397
        %v2506 = vmul.f32 %v363, %v2397
        %v2507 = vmul.f32 %v364, %v2397
        %v2508 = vmul.f32 %v365, %v2397
        %v2509 = vmul.f32 %v366, %v2397
        %v2510 = vmul.f32 %v368, %v2397
        %v2511 = vmul.f32 %v369, %v2397
        %v2512 = vmul.f32 %v370, %v2397
        %v2513 = vmul.f32 %v371, %v2397
        %v2514 = vmul.f32 %v373, %v2397
        %v2515 = vmul.f32 %v374, %v2397
        %v2516 = vmul.f32 %v375, %v2397
        %v2517 = vmul.f32 %v376, %v2397
        %v2518 = vmul.f32 %v378, %v2397
        %v2519 = vmul.f32 %v379, %v2397
        %v2520 = vmul.f32 %v380, %v2397
        %v2521 = vmul.f32 %v381, %v2397
        %v2522 = vmul.f32 %v383, %v2397
        %v2523 = vmul.f32 %v384, %v2397
        %v2524 = vmul.f32 %v385, %v2397
        %v2525 = vmul.f32 %v386, %v2397
        %v2526 = vadd.f32 %v2266, %v2398
        %v2527 = vadd.f32 %v2267, %v2399
        %v2528 = vadd.f32 %v2268, %v2400
        %v2529 = vadd.f32 %v2269, %v2401
        %v2530 = vadd.f32 %v2270, %v2402
        %v2531 = vadd.f32 %v2271, %v2403
        %v2532 = vadd.f32 %v2272, %v2404
        %v2533 = vadd.f32 %v2273, %v2405
        %v2534 = vadd.f32 %v2274, %v2406
        %v2535 = vadd.f32 %v2275, %v2407
        %v2536 = vadd.f32 %v2276, %v2408
        %v2537 = vadd.f32 %v2277, %v2409
        %v2538 = vadd.f32 %v2278, %v2410
        %v2539 = vadd.f32 %v2279, %v2411
        %v2540 = vadd.f32 %v2280, %v2412
        %v2541 = vadd.f32 %v2281, %v2413
        %v2542 = vadd.f32 %v2282, %v2414
        %v2543 = vadd.f32 %v2283, %v2415
        %v2544 = vadd.f32 %v2284, %v2416
        %v2545 = vadd.f32 %v2285, %v2417
        %v2546 = vadd.f32 %v2286, %v2418
        %v2547 = vadd.f32 %v2287, %v2419
        %v2548 = vadd.f32 %v2288, %v2420
        %v2549 = vadd.f32 %v2289, %v2421
        %v2550 = vadd.f32 %v2290, %v2422
        %v2551 = vadd.f32 %v2291, %v2423
        %v2552 = vadd.f32 %v2292, %v2424
        %v2553 = vadd.f32 %v2293, %v2425
        %v2554 = vadd.f32 %v2294, %v2426
        %v2555 = vadd.f32 %v2295, %v2427
        %v2556 = vadd.f32 %v2296, %v2428
        %v2557 = vadd.f32 %v2297, %v2429
        %v2558 = vadd.f32 %v2298, %v2430
        %v2559 = vadd.f32 %v2299, %v2431
        %v2560 = vadd.f32 %v2300, %v2432
        %v2561 = vadd.f32 %v2301, %v2433
        %v2562 = vadd.f32 %v2302, %v2434
        %v2563 = vadd.f32 %v2303, %v2435
        %v2564 = vadd.f32 %v2304, %v2436
        %v2565 = vadd.f32 %v2305, %v2437
        %v2566 = vadd.f32 %v2306, %v2438
        %v2567 = vadd.f32 %v2307, %v2439
        %v2568 = vadd.f32 %v2308, %v2440
        %v2569 = vadd.f32 %v2309, %v2441
        %v2570 = vadd.f32 %v2310, %v2442
        %v2571 = vadd.f32 %v2311, %v2443
        %v2572 = vadd.f32 %v2312, %v2444
        %v2573 = vadd.f32 %v2313, %v2445
        %v2574 = vadd.f32 %v2314, %v2446
        %v2575 = vadd.f32 %v2315, %v2447
        %v2576 = vadd.f32 %v2316, %v2448
        %v2577 = vadd.f32 %v2317, %v2449
        %v2578 = vadd.f32 %v2318, %v2450
        %v2579 = vadd.f32 %v2319, %v2451
        %v2580 = vadd.f32 %v2320, %v2452
        %v2581 = vadd.f32 %v2321, %v2453
        %v2582 = vadd.f32 %v2322, %v2454
        %v2583 = vadd.f32 %v2323, %v2455
        %v2584 = vadd.f32 %v2324, %v2456
        %v2585 = vadd.f32 %v2325, %v2457
        %v2586 = vadd.f32 %v2326, %v2458
        %v2587 = vadd.f32 %v2327, %v2459
        %v2588 = vadd.f32 %v2328, %v2460
        %v2589 = vadd.f32 %v2329, %v2461
        %v2590 = vadd.f32 %v2330, %v2462
        %v2591 = vadd.f32 %v2331, %v2463
        %v2592 = vadd.f32 %v2332, %v2464
        %v2593 = vadd.f32 %v2333, %v2465
        %v2594 = vadd.f32 %v2334, %v2466
        %v2595 = vadd.f32 %v2335, %v2467
        %v2596 = vadd.f32 %v2336, %v2468
        %v2597 = vadd.f32 %v2337, %v2469
        %v2598 = vadd.f32 %v2338, %v2470
        %v2599 = vadd.f32 %v2339, %v2471
        %v2600 = vadd.f32 %v2340, %v2472
        %v2601 = vadd.f32 %v2341, %v2473
        %v2602 = vadd.f32 %v2342, %v2474
        %v2603 = vadd.f32 %v2343, %v2475
        %v2604 = vadd.f32 %v2344, %v2476
        %v2605 = vadd.f32 %v2345, %v2477
        %v2606 = vadd.f32 %v2346, %v2478
        %v2607 = vadd.f32 %v2347, %v2479
        %v2608 = vadd.f32 %v2348, %v2480
        %v2609 = vadd.f32 %v2349, %v2481
        %v2610 = vadd.f32 %v2350, %v2482
        %v2611 = vadd.f32 %v2351, %v2483
        %v2612 = vadd.f32 %v2352, %v2484
        %v2613 = vadd.f32 %v2353, %v2485
        %v2614 = vadd.f32 %v2354, %v2486
        %v2615 = vadd.f32 %v2355, %v2487
        %v2616 = vadd.f32 %v2356, %v2488
        %v2617 = vadd.f32 %v2357, %v2489
        %v2618 = vadd.f32 %v2358, %v2490
        %v2619 = vadd.f32 %v2359, %v2491
        %v2620 = vadd.f32 %v2360, %v2492
        %v2621 = vadd.f32 %v2361, %v2493
        %v2622 = vadd.f32 %v2362, %v2494
        %v2623 = vadd.f32 %v2363, %v2495
        %v2624 = vadd.f32 %v2364, %v2496
        %v2625 = vadd.f32 %v2365, %v2497
        %v2626 = vadd.f32 %v2366, %v2498
        %v2627 = vadd.f32 %v2367, %v2499
        %v2628 = vadd.f32 %v2368, %v2500
        %v2629 = vadd.f32 %v2369, %v2501
        %v2630 = vadd.f32 %v2370, %v2502
        %v2631 = vadd.f32 %v2371, %v2503
        %v2632 = vadd.f32 %v2372, %v2504
        %v2633 = vadd.f32 %v2373, %v2505
        %v2634 = vadd.f32 %v2374, %v2506
        %v2635 = vadd.f32 %v2375, %v2507
        %v2636 = vadd.f32 %v2376, %v2508
        %v2637 = vadd.f32 %v2377, %v2509
        %v2638 = vadd.f32 %v2378, %v2510
        %v2639 = vadd.f32 %v2379, %v2511
        %v2640 = vadd.f32 %v2380, %v2512
        %v2641 = vadd.f32 %v2381, %v2513
        %v2642 = vadd.f32 %v2382, %v2514
        %v2643 = vadd.f32 %v2383, %v2515
        %v2644 = vadd.f32 %v2384, %v2516
        %v2645 = vadd.f32 %v2385, %v2517
        %v2646 = vadd.f32 %v2386, %v2518
        %v2647 = vadd.f32 %v2387, %v2519
        %v2648 = vadd.f32 %v2388, %v2520
        %v2649 = vadd.f32 %v2389, %v2521
        %v2650 = vadd.f32 %v2390, %v2522
        %v2651 = vadd.f32 %v2391, %v2523
        %v2652 = vadd.f32 %v2392, %v2524
        %v2653 = vadd.f32 %v2393, %v2525
        %v2654 = vlaneseq
        %v2655 = vshrl.u32 %v2654, 7
        %v2656 = vsub.s32 1, %v2655
        %v2657 = vrot.slane %v394, %v2656
        %v2658 = vmul.f32 %v228, %v2657
        %v2659 = vmul.f32 %v229, %v2657
        %v2660 = vmul.f32 %v230, %v2657
        %v2661 = vmul.f32 %v231, %v2657
        %v2662 = vmul.f32 %v232, %v2657
        %v2663 = vmul.f32 %v233, %v2657
        %v2664 = vmul.f32 %v234, %v2657
        %v2665 = vmul.f32 %v235, %v2657
        %v2666 = vmul.f32 %v236, %v2657
        %v2667 = vmul.f32 %v237, %v2657
        %v2668 = vmul.f32 %v238, %v2657
        %v2669 = vmul.f32 %v239, %v2657
        %v2670 = vmul.f32 %v240, %v2657
        %v2671 = vmul.f32 %v241, %v2657
        %v2672 = vmul.f32 %v242, %v2657
        %v2673 = vmul.f32 %v243, %v2657
        %v2674 = vmul.f32 %v244, %v2657
        %v2675 = vmul.f32 %v245, %v2657
        %v2676 = vmul.f32 %v246, %v2657
        %v2677 = vmul.f32 %v247, %v2657
        %v2678 = vmul.f32 %v248, %v2657
        %v2679 = vmul.f32 %v249, %v2657
        %v2680 = vmul.f32 %v250, %v2657
        %v2681 = vmul.f32 %v251, %v2657
        %v2682 = vmul.f32 %v252, %v2657
        %v2683 = vmul.f32 %v253, %v2657
        %v2684 = vmul.f32 %v254, %v2657
        %v2685 = vmul.f32 %v255, %v2657
        %v2686 = vmul.f32 %v256, %v2657
        %v2687 = vmul.f32 %v257, %v2657
        %v2688 = vmul.f32 %v258, %v2657
        %v2689 = vmul.f32 %v259, %v2657
        %v2690 = vmul.f32 %v260, %v2657
        %v2691 = vmul.f32 %v261, %v2657
        %v2692 = vmul.f32 %v262, %v2657
        %v2693 = vmul.f32 %v263, %v2657
        %v2694 = vmul.f32 %v264, %v2657
        %v2695 = vmul.f32 %v265, %v2657
        %v2696 = vmul.f32 %v266, %v2657
        %v2697 = vmul.f32 %v267, %v2657
        %v2698 = vmul.f32 %v268, %v2657
        %v2699 = vmul.f32 %v269, %v2657
        %v2700 = vmul.f32 %v270, %v2657
        %v2701 = vmul.f32 %v271, %v2657
        %v2702 = vmul.f32 %v272, %v2657
        %v2703 = vmul.f32 %v273, %v2657
        %v2704 = vmul.f32 %v274, %v2657
        %v2705 = vmul.f32 %v275, %v2657
        %v2706 = vmul.f32 %v276, %v2657
        %v2707 = vmul.f32 %v277, %v2657
        %v2708 = vmul.f32 %v278, %v2657
        %v2709 = vmul.f32 %v279, %v2657
        %v2710 = vmul.f32 %v280, %v2657
        %v2711 = vmul.f32 %v281, %v2657
        %v2712 = vmul.f32 %v282, %v2657
        %v2713 = vmul.f32 %v283, %v2657
        %v2714 = vmul.f32 %v284, %v2657
        %v2715 = vmul.f32 %v285, %v2657
        %v2716 = vmul.f32 %v286, %v2657
        %v2717 = vmul.f32 %v287, %v2657
        %v2718 = vmul.f32 %v288, %v2657
        %v2719 = vmul.f32 %v289, %v2657
        %v2720 = vmul.f32 %v290, %v2657
        %v2721 = vmul.f32 %v291, %v2657
        %v2722 = vmul.f32 %v292, %v2657
        %v2723 = vmul.f32 %v293, %v2657
        %v2724 = vmul.f32 %v294, %v2657
        %v2725 = vmul.f32 %v295, %v2657
        %v2726 = vmul.f32 %v296, %v2657
        %v2727 = vmul.f32 %v297, %v2657
        %v2728 = vmul.f32 %v298, %v2657
        %v2729 = vmul.f32 %v299, %v2657
        %v2730 = vmul.f32 %v300, %v2657
        %v2731 = vmul.f32 %v301, %v2657
        %v2732 = vmul.f32 %v302, %v2657
        %v2733 = vmul.f32 %v303, %v2657
        %v2734 = vmul.f32 %v304, %v2657
        %v2735 = vmul.f32 %v305, %v2657
        %v2736 = vmul.f32 %v306, %v2657
        %v2737 = vmul.f32 %v307, %v2657
        %v2738 = vmul.f32 %v308, %v2657
        %v2739 = vmul.f32 %v309, %v2657
        %v2740 = vmul.f32 %v310, %v2657
        %v2741 = vmul.f32 %v311, %v2657
        %v2742 = vmul.f32 %v312, %v2657
        %v2743 = vmul.f32 %v313, %v2657
        %v2744 = vmul.f32 %v314, %v2657
        %v2745 = vmul.f32 %v315, %v2657
        %v2746 = vmul.f32 %v316, %v2657
        %v2747 = vmul.f32 %v317, %v2657
        %v2748 = vmul.f32 %v318, %v2657
        %v2749 = vmul.f32 %v319, %v2657
        %v2750 = vmul.f32 %v320, %v2657
        %v2751 = vmul.f32 %v321, %v2657
        %v2752 = vmul.f32 %v322, %v2657
        %v2753 = vmul.f32 %v323, %v2657
        %v2754 = vmul.f32 %v324, %v2657
        %v2755 = vmul.f32 %v325, %v2657
        %v2756 = vmul.f32 %v326, %v2657
        %v2757 = vmul.f32 %v327, %v2657
        %v2758 = vmul.f32 %v328, %v2657
        %v2759 = vmul.f32 %v329, %v2657
        %v2760 = vmul.f32 %v330, %v2657
        %v2761 = vmul.f32 %v331, %v2657
        %v2762 = vmul.f32 %v332, %v2657
        %v2763 = vmul.f32 %v333, %v2657
        %v2764 = vmul.f32 %v334, %v2657
        %v2765 = vmul.f32 %v335, %v2657
        %v2766 = vmul.f32 %v336, %v2657
        %v2767 = vmul.f32 %v337, %v2657
        %v2768 = vmul.f32 %v338, %v2657
        %v2769 = vmul.f32 %v339, %v2657
        %v2770 = vmul.f32 %v340, %v2657
        %v2771 = vmul.f32 %v341, %v2657
        %v2772 = vmul.f32 %v342, %v2657
        %v2773 = vmul.f32 %v343, %v2657
        %v2774 = vmul.f32 %v344, %v2657
        %v2775 = vmul.f32 %v345, %v2657
        %v2776 = vmul.f32 %v346, %v2657
        %v2777 = vmul.f32 %v347, %v2657
        %v2778 = vmul.f32 %v348, %v2657
        %v2779 = vmul.f32 %v349, %v2657
        %v2780 = vmul.f32 %v350, %v2657
        %v2781 = vmul.f32 %v351, %v2657
        %v2782 = vmul.f32 %v352, %v2657
        %v2783 = vmul.f32 %v353, %v2657
        %v2784 = vmul.f32 %v354, %v2657
        %v2785 = vmul.f32 %v355, %v2657
        %v2786 = vmul.f32 %v356, %v2657
        %v2787 = vmul.f32 %v357, %v2657
        %v2788 = vmul.f32 %v358, %v2657
        %v2789 = vmul.f32 %v359, %v2657
        %v2790 = vmul.f32 %v360, %v2657
        %v2791 = vmul.f32 %v361, %v2657
        %v2792 = vmul.f32 %v362, %v2657
        %v2793 = vmul.f32 %v363, %v2657
        %v2794 = vmul.f32 %v364, %v2657
        %v2795 = vmul.f32 %v365, %v2657
        %v2796 = vmul.f32 %v366, %v2657
        %v2797 = vmul.f32 %v367, %v2657
        %v2798 = vmul.f32 %v368, %v2657
        %v2799 = vmul.f32 %v369, %v2657
        %v2800 = vmul.f32 %v370, %v2657
        %v2801 = vmul.f32 %v371, %v2657
        %v2802 = vmul.f32 %v372, %v2657
        %v2803 = vmul.f32 %v373, %v2657
        %v2804 = vmul.f32 %v374, %v2657
        %v2805 = vmul.f32 %v375, %v2657
        %v2806 = vmul.f32 %v376, %v2657
        %v2807 = vmul.f32 %v377, %v2657
        %v2808 = vmul.f32 %v378, %v2657
        %v2809 = vmul.f32 %v379, %v2657
        %v2810 = vmul.f32 %v380, %v2657
        %v2811 = vmul.f32 %v381, %v2657
        %v2812 = vmul.f32 %v382, %v2657
        %v2813 = vmul.f32 %v383, %v2657
        %v2814 = vmul.f32 %v384, %v2657
        %v2815 = vmul.f32 %v385, %v2657
        %v2816 = vmul.f32 %v386, %v2657
        %v2817 = vmul.f32 %v387, %v2657
        %v2978 = vrot.slane %v2658, 1
        %v2979 = vrot.slane %v2659, 1
        %v2980 = vsel %vm980, %v2978, %v2979
        %v2981 = vrot.slane %v2660, 1
        %v2982 = vsel %vm980, %v2979, %v2981
        %v2983 = vrot.slane %v2661, 1
        %v2984 = vsel %vm980, %v2981, %v2983
        %v2985 = vrot.slane %v2662, 1
        %v2986 = vsel %vm980, %v2983, %v2985
        %v2987 = vrot.slane %v2663, 1
        %v2988 = vrot.slane %v2664, 1
        %v2989 = vsel %vm980, %v2987, %v2988
        %v2990 = vrot.slane %v2665, 1
        %v2991 = vsel %vm980, %v2988, %v2990
        %v2992 = vrot.slane %v2666, 1
        %v2993 = vsel %vm980, %v2990, %v2992
        %v2994 = vrot.slane %v2667, 1
        %v2995 = vsel %vm980, %v2992, %v2994
        %v2996 = vrot.slane %v2668, 1
        %v2997 = vrot.slane %v2669, 1
        %v2998 = vsel %vm980, %v2996, %v2997
        %v2999 = vrot.slane %v2670, 1
        %v3000 = vsel %vm980, %v2997, %v2999
        %v3001 = vrot.slane %v2671, 1
        %v3002 = vsel %vm980, %v2999, %v3001
        %v3003 = vrot.slane %v2672, 1
        %v3004 = vsel %vm980, %v3001, %v3003
        %v3005 = vrot.slane %v2673, 1
        %v3006 = vrot.slane %v2674, 1
        %v3007 = vsel %vm980, %v3005, %v3006
        %v3008 = vrot.slane %v2675, 1
        %v3009 = vsel %vm980, %v3006, %v3008
        %v3010 = vrot.slane %v2676, 1
        %v3011 = vsel %vm980, %v3008, %v3010
        %v3012 = vrot.slane %v2677, 1
        %v3013 = vsel %vm980, %v3010, %v3012
        %v3014 = vrot.slane %v2678, 1
        %v3015 = vrot.slane %v2679, 1
        %v3016 = vsel %vm980, %v3014, %v3015
        %v3017 = vrot.slane %v2680, 1
        %v3018 = vsel %vm980, %v3015, %v3017
        %v3019 = vrot.slane %v2681, 1
        %v3020 = vsel %vm980, %v3017, %v3019
        %v3021 = vrot.slane %v2682, 1
        %v3022 = vsel %vm980, %v3019, %v3021
        %v3023 = vrot.slane %v2683, 1
        %v3024 = vrot.slane %v2684, 1
        %v3025 = vsel %vm980, %v3023, %v3024
        %v3026 = vrot.slane %v2685, 1
        %v3027 = vsel %vm980, %v3024, %v3026
        %v3028 = vrot.slane %v2686, 1
        %v3029 = vsel %vm980, %v3026, %v3028
        %v3030 = vrot.slane %v2687, 1
        %v3031 = vsel %vm980, %v3028, %v3030
        %v3032 = vrot.slane %v2688, 1
        %v3033 = vrot.slane %v2689, 1
        %v3034 = vsel %vm980, %v3032, %v3033
        %v3035 = vrot.slane %v2690, 1
        %v3036 = vsel %vm980, %v3033, %v3035
        %v3037 = vrot.slane %v2691, 1
        %v3038 = vsel %vm980, %v3035, %v3037
        %v3039 = vrot.slane %v2692, 1
        %v3040 = vsel %vm980, %v3037, %v3039
        %v3041 = vrot.slane %v2693, 1
        %v3042 = vrot.slane %v2694, 1
        %v3043 = vsel %vm980, %v3041, %v3042
        %v3044 = vrot.slane %v2695, 1
        %v3045 = vsel %vm980, %v3042, %v3044
        %v3046 = vrot.slane %v2696, 1
        %v3047 = vsel %vm980, %v3044, %v3046
        %v3048 = vrot.slane %v2697, 1
        %v3049 = vsel %vm980, %v3046, %v3048
        %v3050 = vrot.slane %v2698, 1
        %v3051 = vrot.slane %v2699, 1
        %v3052 = vsel %vm980, %v3050, %v3051
        %v3053 = vrot.slane %v2700, 1
        %v3054 = vsel %vm980, %v3051, %v3053
        %v3055 = vrot.slane %v2701, 1
        %v3056 = vsel %vm980, %v3053, %v3055
        %v3057 = vrot.slane %v2702, 1
        %v3058 = vsel %vm980, %v3055, %v3057
        %v3059 = vrot.slane %v2703, 1
        %v3060 = vrot.slane %v2704, 1
        %v3061 = vsel %vm980, %v3059, %v3060
        %v3062 = vrot.slane %v2705, 1
        %v3063 = vsel %vm980, %v3060, %v3062
        %v3064 = vrot.slane %v2706, 1
        %v3065 = vsel %vm980, %v3062, %v3064
        %v3066 = vrot.slane %v2707, 1
        %v3067 = vsel %vm980, %v3064, %v3066
        %v3068 = vrot.slane %v2708, 1
        %v3069 = vrot.slane %v2709, 1
        %v3070 = vsel %vm980, %v3068, %v3069
        %v3071 = vrot.slane %v2710, 1
        %v3072 = vsel %vm980, %v3069, %v3071
        %v3073 = vrot.slane %v2711, 1
        %v3074 = vsel %vm980, %v3071, %v3073
        %v3075 = vrot.slane %v2712, 1
        %v3076 = vsel %vm980, %v3073, %v3075
        %v3077 = vrot.slane %v2713, 1
        %v3078 = vrot.slane %v2714, 1
        %v3079 = vsel %vm980, %v3077, %v3078
        %v3080 = vrot.slane %v2715, 1
        %v3081 = vsel %vm980, %v3078, %v3080
        %v3082 = vrot.slane %v2716, 1
        %v3083 = vsel %vm980, %v3080, %v3082
        %v3084 = vrot.slane %v2717, 1
        %v3085 = vsel %vm980, %v3082, %v3084
        %v3086 = vrot.slane %v2718, 1
        %v3087 = vrot.slane %v2719, 1
        %v3088 = vsel %vm980, %v3086, %v3087
        %v3089 = vrot.slane %v2720, 1
        %v3090 = vsel %vm980, %v3087, %v3089
        %v3091 = vrot.slane %v2721, 1
        %v3092 = vsel %vm980, %v3089, %v3091
        %v3093 = vrot.slane %v2722, 1
        %v3094 = vsel %vm980, %v3091, %v3093
        %v3095 = vrot.slane %v2723, 1
        %v3096 = vrot.slane %v2724, 1
        %v3097 = vsel %vm980, %v3095, %v3096
        %v3098 = vrot.slane %v2725, 1
        %v3099 = vsel %vm980, %v3096, %v3098
        %v3100 = vrot.slane %v2726, 1
        %v3101 = vsel %vm980, %v3098, %v3100
        %v3102 = vrot.slane %v2727, 1
        %v3103 = vsel %vm980, %v3100, %v3102
        %v3104 = vrot.slane %v2728, 1
        %v3105 = vrot.slane %v2729, 1
        %v3106 = vsel %vm980, %v3104, %v3105
        %v3107 = vrot.slane %v2730, 1
        %v3108 = vsel %vm980, %v3105, %v3107
        %v3109 = vrot.slane %v2731, 1
        %v3110 = vsel %vm980, %v3107, %v3109
        %v3111 = vrot.slane %v2732, 1
        %v3112 = vsel %vm980, %v3109, %v3111
        %v3113 = vrot.slane %v2733, 1
        %v3114 = vrot.slane %v2734, 1
        %v3115 = vsel %vm980, %v3113, %v3114
        %v3116 = vrot.slane %v2735, 1
        %v3117 = vsel %vm980, %v3114, %v3116
        %v3118 = vrot.slane %v2736, 1
        %v3119 = vsel %vm980, %v3116, %v3118
        %v3120 = vrot.slane %v2737, 1
        %v3121 = vsel %vm980, %v3118, %v3120
        %v3122 = vrot.slane %v2738, 1
        %v3123 = vrot.slane %v2739, 1
        %v3124 = vsel %vm980, %v3122, %v3123
        %v3125 = vrot.slane %v2740, 1
        %v3126 = vsel %vm980, %v3123, %v3125
        %v3127 = vrot.slane %v2741, 1
        %v3128 = vsel %vm980, %v3125, %v3127
        %v3129 = vrot.slane %v2742, 1
        %v3130 = vsel %vm980, %v3127, %v3129
        %v3131 = vrot.slane %v2743, 1
        %v3132 = vrot.slane %v2744, 1
        %v3133 = vsel %vm980, %v3131, %v3132
        %v3134 = vrot.slane %v2745, 1
        %v3135 = vsel %vm980, %v3132, %v3134
        %v3136 = vrot.slane %v2746, 1
        %v3137 = vsel %vm980, %v3134, %v3136
        %v3138 = vrot.slane %v2747, 1
        %v3139 = vsel %vm980, %v3136, %v3138
        %v3140 = vrot.slane %v2748, 1
        %v3141 = vrot.slane %v2749, 1
        %v3142 = vsel %vm980, %v3140, %v3141
        %v3143 = vrot.slane %v2750, 1
        %v3144 = vsel %vm980, %v3141, %v3143
        %v3145 = vrot.slane %v2751, 1
        %v3146 = vsel %vm980, %v3143, %v3145
        %v3147 = vrot.slane %v2752, 1
        %v3148 = vsel %vm980, %v3145, %v3147
        %v3149 = vrot.slane %v2753, 1
        %v3150 = vrot.slane %v2754, 1
        %v3151 = vsel %vm980, %v3149, %v3150
        %v3152 = vrot.slane %v2755, 1
        %v3153 = vsel %vm980, %v3150, %v3152
        %v3154 = vrot.slane %v2756, 1
        %v3155 = vsel %vm980, %v3152, %v3154
        %v3156 = vrot.slane %v2757, 1
        %v3157 = vsel %vm980, %v3154, %v3156
        %v3158 = vrot.slane %v2758, 1
        %v3159 = vrot.slane %v2759, 1
        %v3160 = vsel %vm980, %v3158, %v3159
        %v3161 = vrot.slane %v2760, 1
        %v3162 = vsel %vm980, %v3159, %v3161
        %v3163 = vrot.slane %v2761, 1
        %v3164 = vsel %vm980, %v3161, %v3163
        %v3165 = vrot.slane %v2762, 1
        %v3166 = vsel %vm980, %v3163, %v3165
        %v3167 = vrot.slane %v2763, 1
        %v3168 = vrot.slane %v2764, 1
        %v3169 = vsel %vm980, %v3167, %v3168
        %v3170 = vrot.slane %v2765, 1
        %v3171 = vsel %vm980, %v3168, %v3170
        %v3172 = vrot.slane %v2766, 1
        %v3173 = vsel %vm980, %v3170, %v3172
        %v3174 = vrot.slane %v2767, 1
        %v3175 = vsel %vm980, %v3172, %v3174
        %v3176 = vrot.slane %v2768, 1
        %v3177 = vrot.slane %v2769, 1
        %v3178 = vsel %vm980, %v3176, %v3177
        %v3179 = vrot.slane %v2770, 1
        %v3180 = vsel %vm980, %v3177, %v3179
        %v3181 = vrot.slane %v2771, 1
        %v3182 = vsel %vm980, %v3179, %v3181
        %v3183 = vrot.slane %v2772, 1
        %v3184 = vsel %vm980, %v3181, %v3183
        %v3185 = vrot.slane %v2773, 1
        %v3186 = vrot.slane %v2774, 1
        %v3187 = vsel %vm980, %v3185, %v3186
        %v3188 = vrot.slane %v2775, 1
        %v3189 = vsel %vm980, %v3186, %v3188
        %v3190 = vrot.slane %v2776, 1
        %v3191 = vsel %vm980, %v3188, %v3190
        %v3192 = vrot.slane %v2777, 1
        %v3193 = vsel %vm980, %v3190, %v3192
        %v3194 = vrot.slane %v2778, 1
        %v3195 = vrot.slane %v2779, 1
        %v3196 = vsel %vm980, %v3194, %v3195
        %v3197 = vrot.slane %v2780, 1
        %v3198 = vsel %vm980, %v3195, %v3197
        %v3199 = vrot.slane %v2781, 1
        %v3200 = vsel %vm980, %v3197, %v3199
        %v3201 = vrot.slane %v2782, 1
        %v3202 = vsel %vm980, %v3199, %v3201
        %v3203 = vrot.slane %v2783, 1
        %v3204 = vrot.slane %v2784, 1
        %v3205 = vsel %vm980, %v3203, %v3204
        %v3206 = vrot.slane %v2785, 1
        %v3207 = vsel %vm980, %v3204, %v3206
        %v3208 = vrot.slane %v2786, 1
        %v3209 = vsel %vm980, %v3206, %v3208
        %v3210 = vrot.slane %v2787, 1
        %v3211 = vsel %vm980, %v3208, %v3210
        %v3212 = vrot.slane %v2788, 1
        %v3213 = vrot.slane %v2789, 1
        %v3214 = vsel %vm980, %v3212, %v3213
        %v3215 = vrot.slane %v2790, 1
        %v3216 = vsel %vm980, %v3213, %v3215
        %v3217 = vrot.slane %v2791, 1
        %v3218 = vsel %vm980, %v3215, %v3217
        %v3219 = vrot.slane %v2792, 1
        %v3220 = vsel %vm980, %v3217, %v3219
        %v3221 = vrot.slane %v2793, 1
        %v3222 = vrot.slane %v2794, 1
        %v3223 = vsel %vm980, %v3221, %v3222
        %v3224 = vrot.slane %v2795, 1
        %v3225 = vsel %vm980, %v3222, %v3224
        %v3226 = vrot.slane %v2796, 1
        %v3227 = vsel %vm980, %v3224, %v3226
        %v3228 = vrot.slane %v2797, 1
        %v3229 = vsel %vm980, %v3226, %v3228
        %v3230 = vrot.slane %v2798, 1
        %v3231 = vrot.slane %v2799, 1
        %v3232 = vsel %vm980, %v3230, %v3231
        %v3233 = vrot.slane %v2800, 1
        %v3234 = vsel %vm980, %v3231, %v3233
        %v3235 = vrot.slane %v2801, 1
        %v3236 = vsel %vm980, %v3233, %v3235
        %v3237 = vrot.slane %v2802, 1
        %v3238 = vsel %vm980, %v3235, %v3237
        %v3239 = vrot.slane %v2803, 1
        %v3240 = vrot.slane %v2804, 1
        %v3241 = vsel %vm980, %v3239, %v3240
        %v3242 = vrot.slane %v2805, 1
        %v3243 = vsel %vm980, %v3240, %v3242
        %v3244 = vrot.slane %v2806, 1
        %v3245 = vsel %vm980, %v3242, %v3244
        %v3246 = vrot.slane %v2807, 1
        %v3247 = vsel %vm980, %v3244, %v3246
        %v3248 = vrot.slane %v2808, 1
        %v3249 = vrot.slane %v2809, 1
        %v3250 = vsel %vm980, %v3248, %v3249
        %v3251 = vrot.slane %v2810, 1
        %v3252 = vsel %vm980, %v3249, %v3251
        %v3253 = vrot.slane %v2811, 1
        %v3254 = vsel %vm980, %v3251, %v3253
        %v3255 = vrot.slane %v2812, 1
        %v3256 = vsel %vm980, %v3253, %v3255
        %v3257 = vrot.slane %v2813, 1
        %v3258 = vrot.slane %v2814, 1
        %v3259 = vsel %vm980, %v3257, %v3258
        %v3260 = vrot.slane %v2815, 1
        %v3261 = vsel %vm980, %v3258, %v3260
        %v3262 = vrot.slane %v2816, 1
        %v3263 = vsel %vm980, %v3260, %v3262
        %v3264 = vrot.slane %v2817, 1
        %v3265 = vsel %vm980, %v3262, %v3264
        %v3394 = vadd.f32 %v2526, %v2980
        %v3395 = vadd.f32 %v2527, %v2982
        %v3396 = vadd.f32 %v2528, %v2984
        %v3397 = vadd.f32 %v2529, %v2986
        %v3398 = vadd.f32 %v2530, %v2989
        %v3399 = vadd.f32 %v2531, %v2991
        %v3400 = vadd.f32 %v2532, %v2993
        %v3401 = vadd.f32 %v2533, %v2995
        %v3402 = vadd.f32 %v2534, %v2998
        %v3403 = vadd.f32 %v2535, %v3000
        %v3404 = vadd.f32 %v2536, %v3002
        %v3405 = vadd.f32 %v2537, %v3004
        %v3406 = vadd.f32 %v2538, %v3007
        %v3407 = vadd.f32 %v2539, %v3009
        %v3408 = vadd.f32 %v2540, %v3011
        %v3409 = vadd.f32 %v2541, %v3013
        %v3410 = vadd.f32 %v2542, %v3016
        %v3411 = vadd.f32 %v2543, %v3018
        %v3412 = vadd.f32 %v2544, %v3020
        %v3413 = vadd.f32 %v2545, %v3022
        %v3414 = vadd.f32 %v2546, %v3025
        %v3415 = vadd.f32 %v2547, %v3027
        %v3416 = vadd.f32 %v2548, %v3029
        %v3417 = vadd.f32 %v2549, %v3031
        %v3418 = vadd.f32 %v2550, %v3034
        %v3419 = vadd.f32 %v2551, %v3036
        %v3420 = vadd.f32 %v2552, %v3038
        %v3421 = vadd.f32 %v2553, %v3040
        %v3422 = vadd.f32 %v2554, %v3043
        %v3423 = vadd.f32 %v2555, %v3045
        %v3424 = vadd.f32 %v2556, %v3047
        %v3425 = vadd.f32 %v2557, %v3049
        %v3426 = vadd.f32 %v2558, %v3052
        %v3427 = vadd.f32 %v2559, %v3054
        %v3428 = vadd.f32 %v2560, %v3056
        %v3429 = vadd.f32 %v2561, %v3058
        %v3430 = vadd.f32 %v2562, %v3061
        %v3431 = vadd.f32 %v2563, %v3063
        %v3432 = vadd.f32 %v2564, %v3065
        %v3433 = vadd.f32 %v2565, %v3067
        %v3434 = vadd.f32 %v2566, %v3070
        %v3435 = vadd.f32 %v2567, %v3072
        %v3436 = vadd.f32 %v2568, %v3074
        %v3437 = vadd.f32 %v2569, %v3076
        %v3438 = vadd.f32 %v2570, %v3079
        %v3439 = vadd.f32 %v2571, %v3081
        %v3440 = vadd.f32 %v2572, %v3083
        %v3441 = vadd.f32 %v2573, %v3085
        %v3442 = vadd.f32 %v2574, %v3088
        %v3443 = vadd.f32 %v2575, %v3090
        %v3444 = vadd.f32 %v2576, %v3092
        %v3445 = vadd.f32 %v2577, %v3094
        %v3446 = vadd.f32 %v2578, %v3097
        %v3447 = vadd.f32 %v2579, %v3099
        %v3448 = vadd.f32 %v2580, %v3101
        %v3449 = vadd.f32 %v2581, %v3103
        %v3450 = vadd.f32 %v2582, %v3106
        %v3451 = vadd.f32 %v2583, %v3108
        %v3452 = vadd.f32 %v2584, %v3110
        %v3453 = vadd.f32 %v2585, %v3112
        %v3454 = vadd.f32 %v2586, %v3115
        %v3455 = vadd.f32 %v2587, %v3117
        %v3456 = vadd.f32 %v2588, %v3119
        %v3457 = vadd.f32 %v2589, %v3121
        %v3458 = vadd.f32 %v2590, %v3124
        %v3459 = vadd.f32 %v2591, %v3126
        %v3460 = vadd.f32 %v2592, %v3128
        %v3461 = vadd.f32 %v2593, %v3130
        %v3462 = vadd.f32 %v2594, %v3133
        %v3463 = vadd.f32 %v2595, %v3135
        %v3464 = vadd.f32 %v2596, %v3137
        %v3465 = vadd.f32 %v2597, %v3139
        %v3466 = vadd.f32 %v2598, %v3142
        %v3467 = vadd.f32 %v2599, %v3144
        %v3468 = vadd.f32 %v2600, %v3146
        %v3469 = vadd.f32 %v2601, %v3148
        %v3470 = vadd.f32 %v2602, %v3151
        %v3471 = vadd.f32 %v2603, %v3153
        %v3472 = vadd.f32 %v2604, %v3155
        %v3473 = vadd.f32 %v2605, %v3157
        %v3474 = vadd.f32 %v2606, %v3160
        %v3475 = vadd.f32 %v2607, %v3162
        %v3476 = vadd.f32 %v2608, %v3164
        %v3477 = vadd.f32 %v2609, %v3166
        %v3478 = vadd.f32 %v2610, %v3169
        %v3479 = vadd.f32 %v2611, %v3171
        %v3480 = vadd.f32 %v2612, %v3173
        %v3481 = vadd.f32 %v2613, %v3175
        %v3482 = vadd.f32 %v2614, %v3178
        %v3483 = vadd.f32 %v2615, %v3180
        %v3484 = vadd.f32 %v2616, %v3182
        %v3485 = vadd.f32 %v2617, %v3184
        %v3486 = vadd.f32 %v2618, %v3187
        %v3487 = vadd.f32 %v2619, %v3189
        %v3488 = vadd.f32 %v2620, %v3191
        %v3489 = vadd.f32 %v2621, %v3193
        %v3490 = vadd.f32 %v2622, %v3196
        %v3491 = vadd.f32 %v2623, %v3198
        %v3492 = vadd.f32 %v2624, %v3200
        %v3493 = vadd.f32 %v2625, %v3202
        %v3494 = vadd.f32 %v2626, %v3205
        %v3495 = vadd.f32 %v2627, %v3207
        %v3496 = vadd.f32 %v2628, %v3209
        %v3497 = vadd.f32 %v2629, %v3211
        %v3498 = vadd.f32 %v2630, %v3214
        %v3499 = vadd.f32 %v2631, %v3216
        %v3500 = vadd.f32 %v2632, %v3218
        %v3501 = vadd.f32 %v2633, %v3220
        %v3502 = vadd.f32 %v2634, %v3223
        %v3503 = vadd.f32 %v2635, %v3225
        %v3504 = vadd.f32 %v2636, %v3227
        %v3505 = vadd.f32 %v2637, %v3229
        %v3506 = vadd.f32 %v2638, %v3232
        %v3507 = vadd.f32 %v2639, %v3234
        %v3508 = vadd.f32 %v2640, %v3236
        %v3509 = vadd.f32 %v2641, %v3238
        %v3510 = vadd.f32 %v2642, %v3241
        %v3511 = vadd.f32 %v2643, %v3243
        %v3512 = vadd.f32 %v2644, %v3245
        %v3513 = vadd.f32 %v2645, %v3247
        %v3514 = vadd.f32 %v2646, %v3250
        %v3515 = vadd.f32 %v2647, %v3252
        %v3516 = vadd.f32 %v2648, %v3254
        %v3517 = vadd.f32 %v2649, %v3256
        %v3518 = vadd.f32 %v2650, %v3259
        %v3519 = vadd.f32 %v2651, %v3261
        %v3520 = vadd.f32 %v2652, %v3263
        %v3521 = vadd.f32 %v2653, %v3265
        %v3522 = vlaneseq
        %v3523 = vshrl.u32 %v3522, 7
        %v3524 = vsub.s32 2, %v3523
        %v3525 = vrot.slane %v394, %v3524
        %v3526 = vmul.f32 %v228, %v3525
        %v3527 = vmul.f32 %v229, %v3525
        %v3528 = vmul.f32 %v230, %v3525
        %v3529 = vmul.f32 %v231, %v3525
        %v3530 = vmul.f32 %v232, %v3525
        %v3531 = vmul.f32 %v233, %v3525
        %v3532 = vmul.f32 %v234, %v3525
        %v3533 = vmul.f32 %v235, %v3525
        %v3534 = vmul.f32 %v236, %v3525
        %v3535 = vmul.f32 %v237, %v3525
        %v3536 = vmul.f32 %v238, %v3525
        %v3537 = vmul.f32 %v239, %v3525
        %v3538 = vmul.f32 %v240, %v3525
        %v3539 = vmul.f32 %v241, %v3525
        %v3540 = vmul.f32 %v242, %v3525
        %v3541 = vmul.f32 %v243, %v3525
        %v3542 = vmul.f32 %v244, %v3525
        %v3543 = vmul.f32 %v245, %v3525
        %v3544 = vmul.f32 %v246, %v3525
        %v3545 = vmul.f32 %v247, %v3525
        %v3546 = vmul.f32 %v248, %v3525
        %v3547 = vmul.f32 %v249, %v3525
        %v3548 = vmul.f32 %v250, %v3525
        %v3549 = vmul.f32 %v251, %v3525
        %v3550 = vmul.f32 %v252, %v3525
        %v3551 = vmul.f32 %v253, %v3525
        %v3552 = vmul.f32 %v254, %v3525
        %v3553 = vmul.f32 %v255, %v3525
        %v3554 = vmul.f32 %v256, %v3525
        %v3555 = vmul.f32 %v257, %v3525
        %v3556 = vmul.f32 %v258, %v3525
        %v3557 = vmul.f32 %v259, %v3525
        %v3558 = vmul.f32 %v260, %v3525
        %v3559 = vmul.f32 %v261, %v3525
        %v3560 = vmul.f32 %v262, %v3525
        %v3561 = vmul.f32 %v263, %v3525
        %v3562 = vmul.f32 %v264, %v3525
        %v3563 = vmul.f32 %v265, %v3525
        %v3564 = vmul.f32 %v266, %v3525
        %v3565 = vmul.f32 %v267, %v3525
        %v3566 = vmul.f32 %v268, %v3525
        %v3567 = vmul.f32 %v269, %v3525
        %v3568 = vmul.f32 %v270, %v3525
        %v3569 = vmul.f32 %v271, %v3525
        %v3570 = vmul.f32 %v272, %v3525
        %v3571 = vmul.f32 %v273, %v3525
        %v3572 = vmul.f32 %v274, %v3525
        %v3573 = vmul.f32 %v275, %v3525
        %v3574 = vmul.f32 %v276, %v3525
        %v3575 = vmul.f32 %v277, %v3525
        %v3576 = vmul.f32 %v278, %v3525
        %v3577 = vmul.f32 %v279, %v3525
        %v3578 = vmul.f32 %v280, %v3525
        %v3579 = vmul.f32 %v281, %v3525
        %v3580 = vmul.f32 %v282, %v3525
        %v3581 = vmul.f32 %v283, %v3525
        %v3582 = vmul.f32 %v284, %v3525
        %v3583 = vmul.f32 %v285, %v3525
        %v3584 = vmul.f32 %v286, %v3525
        %v3585 = vmul.f32 %v287, %v3525
        %v3586 = vmul.f32 %v288, %v3525
        %v3587 = vmul.f32 %v289, %v3525
        %v3588 = vmul.f32 %v290, %v3525
        %v3589 = vmul.f32 %v291, %v3525
        %v3590 = vmul.f32 %v292, %v3525
        %v3591 = vmul.f32 %v293, %v3525
        %v3592 = vmul.f32 %v294, %v3525
        %v3593 = vmul.f32 %v295, %v3525
        %v3594 = vmul.f32 %v296, %v3525
        %v3595 = vmul.f32 %v297, %v3525
        %v3596 = vmul.f32 %v298, %v3525
        %v3597 = vmul.f32 %v299, %v3525
        %v3598 = vmul.f32 %v300, %v3525
        %v3599 = vmul.f32 %v301, %v3525
        %v3600 = vmul.f32 %v302, %v3525
        %v3601 = vmul.f32 %v303, %v3525
        %v3602 = vmul.f32 %v304, %v3525
        %v3603 = vmul.f32 %v305, %v3525
        %v3604 = vmul.f32 %v306, %v3525
        %v3605 = vmul.f32 %v307, %v3525
        %v3606 = vmul.f32 %v308, %v3525
        %v3607 = vmul.f32 %v309, %v3525
        %v3608 = vmul.f32 %v310, %v3525
        %v3609 = vmul.f32 %v311, %v3525
        %v3610 = vmul.f32 %v312, %v3525
        %v3611 = vmul.f32 %v313, %v3525
        %v3612 = vmul.f32 %v314, %v3525
        %v3613 = vmul.f32 %v315, %v3525
        %v3614 = vmul.f32 %v316, %v3525
        %v3615 = vmul.f32 %v317, %v3525
        %v3616 = vmul.f32 %v318, %v3525
        %v3617 = vmul.f32 %v319, %v3525
        %v3618 = vmul.f32 %v320, %v3525
        %v3619 = vmul.f32 %v321, %v3525
        %v3620 = vmul.f32 %v322, %v3525
        %v3621 = vmul.f32 %v323, %v3525
        %v3622 = vmul.f32 %v324, %v3525
        %v3623 = vmul.f32 %v325, %v3525
        %v3624 = vmul.f32 %v326, %v3525
        %v3625 = vmul.f32 %v327, %v3525
        %v3626 = vmul.f32 %v328, %v3525
        %v3627 = vmul.f32 %v329, %v3525
        %v3628 = vmul.f32 %v330, %v3525
        %v3629 = vmul.f32 %v331, %v3525
        %v3630 = vmul.f32 %v332, %v3525
        %v3631 = vmul.f32 %v333, %v3525
        %v3632 = vmul.f32 %v334, %v3525
        %v3633 = vmul.f32 %v335, %v3525
        %v3634 = vmul.f32 %v336, %v3525
        %v3635 = vmul.f32 %v337, %v3525
        %v3636 = vmul.f32 %v338, %v3525
        %v3637 = vmul.f32 %v339, %v3525
        %v3638 = vmul.f32 %v340, %v3525
        %v3639 = vmul.f32 %v341, %v3525
        %v3640 = vmul.f32 %v342, %v3525
        %v3641 = vmul.f32 %v343, %v3525
        %v3642 = vmul.f32 %v344, %v3525
        %v3643 = vmul.f32 %v345, %v3525
        %v3644 = vmul.f32 %v346, %v3525
        %v3645 = vmul.f32 %v347, %v3525
        %v3646 = vmul.f32 %v348, %v3525
        %v3647 = vmul.f32 %v349, %v3525
        %v3648 = vmul.f32 %v350, %v3525
        %v3649 = vmul.f32 %v351, %v3525
        %v3650 = vmul.f32 %v352, %v3525
        %v3651 = vmul.f32 %v353, %v3525
        %v3652 = vmul.f32 %v354, %v3525
        %v3653 = vmul.f32 %v355, %v3525
        %v3654 = vmul.f32 %v356, %v3525
        %v3655 = vmul.f32 %v357, %v3525
        %v3656 = vmul.f32 %v358, %v3525
        %v3657 = vmul.f32 %v359, %v3525
        %v3658 = vmul.f32 %v360, %v3525
        %v3659 = vmul.f32 %v361, %v3525
        %v3660 = vmul.f32 %v362, %v3525
        %v3661 = vmul.f32 %v363, %v3525
        %v3662 = vmul.f32 %v364, %v3525
        %v3663 = vmul.f32 %v365, %v3525
        %v3664 = vmul.f32 %v366, %v3525
        %v3665 = vmul.f32 %v367, %v3525
        %v3666 = vmul.f32 %v368, %v3525
        %v3667 = vmul.f32 %v369, %v3525
        %v3668 = vmul.f32 %v370, %v3525
        %v3669 = vmul.f32 %v371, %v3525
        %v3670 = vmul.f32 %v372, %v3525
        %v3671 = vmul.f32 %v373, %v3525
        %v3672 = vmul.f32 %v374, %v3525
        %v3673 = vmul.f32 %v375, %v3525
        %v3674 = vmul.f32 %v376, %v3525
        %v3675 = vmul.f32 %v377, %v3525
        %v3676 = vmul.f32 %v378, %v3525
        %v3677 = vmul.f32 %v379, %v3525
        %v3678 = vmul.f32 %v380, %v3525
        %v3679 = vmul.f32 %v381, %v3525
        %v3680 = vmul.f32 %v382, %v3525
        %v3681 = vmul.f32 %v383, %v3525
        %v3682 = vmul.f32 %v384, %v3525
        %v3683 = vmul.f32 %v385, %v3525
        %v3684 = vmul.f32 %v386, %v3525
        %v3685 = vmul.f32 %v387, %v3525
        %v3846 = vrot.slane %v3526, 2
        %v3847 = vrot.slane %v3527, 2
        %v3848 = vsel %vm1849, %v3846, %v3847
        %v3849 = vrot.slane %v3528, 2
        %v3850 = vsel %vm1849, %v3847, %v3849
        %v3851 = vrot.slane %v3529, 2
        %v3852 = vsel %vm1849, %v3849, %v3851
        %v3853 = vrot.slane %v3530, 2
        %v3854 = vsel %vm1849, %v3851, %v3853
        %v3855 = vrot.slane %v3531, 2
        %v3856 = vrot.slane %v3532, 2
        %v3857 = vsel %vm1849, %v3855, %v3856
        %v3858 = vrot.slane %v3533, 2
        %v3859 = vsel %vm1849, %v3856, %v3858
        %v3860 = vrot.slane %v3534, 2
        %v3861 = vsel %vm1849, %v3858, %v3860
        %v3862 = vrot.slane %v3535, 2
        %v3863 = vsel %vm1849, %v3860, %v3862
        %v3864 = vrot.slane %v3536, 2
        %v3865 = vrot.slane %v3537, 2
        %v3866 = vsel %vm1849, %v3864, %v3865
        %v3867 = vrot.slane %v3538, 2
        %v3868 = vsel %vm1849, %v3865, %v3867
        %v3869 = vrot.slane %v3539, 2
        %v3870 = vsel %vm1849, %v3867, %v3869
        %v3871 = vrot.slane %v3540, 2
        %v3872 = vsel %vm1849, %v3869, %v3871
        %v3873 = vrot.slane %v3541, 2
        %v3874 = vrot.slane %v3542, 2
        %v3875 = vsel %vm1849, %v3873, %v3874
        %v3876 = vrot.slane %v3543, 2
        %v3877 = vsel %vm1849, %v3874, %v3876
        %v3878 = vrot.slane %v3544, 2
        %v3879 = vsel %vm1849, %v3876, %v3878
        %v3880 = vrot.slane %v3545, 2
        %v3881 = vsel %vm1849, %v3878, %v3880
        %v3882 = vrot.slane %v3546, 2
        %v3883 = vrot.slane %v3547, 2
        %v3884 = vsel %vm1849, %v3882, %v3883
        %v3885 = vrot.slane %v3548, 2
        %v3886 = vsel %vm1849, %v3883, %v3885
        %v3887 = vrot.slane %v3549, 2
        %v3888 = vsel %vm1849, %v3885, %v3887
        %v3889 = vrot.slane %v3550, 2
        %v3890 = vsel %vm1849, %v3887, %v3889
        %v3891 = vrot.slane %v3551, 2
        %v3892 = vrot.slane %v3552, 2
        %v3893 = vsel %vm1849, %v3891, %v3892
        %v3894 = vrot.slane %v3553, 2
        %v3895 = vsel %vm1849, %v3892, %v3894
        %v3896 = vrot.slane %v3554, 2
        %v3897 = vsel %vm1849, %v3894, %v3896
        %v3898 = vrot.slane %v3555, 2
        %v3899 = vsel %vm1849, %v3896, %v3898
        %v3900 = vrot.slane %v3556, 2
        %v3901 = vrot.slane %v3557, 2
        %v3902 = vsel %vm1849, %v3900, %v3901
        %v3903 = vrot.slane %v3558, 2
        %v3904 = vsel %vm1849, %v3901, %v3903
        %v3905 = vrot.slane %v3559, 2
        %v3906 = vsel %vm1849, %v3903, %v3905
        %v3907 = vrot.slane %v3560, 2
        %v3908 = vsel %vm1849, %v3905, %v3907
        %v3909 = vrot.slane %v3561, 2
        %v3910 = vrot.slane %v3562, 2
        %v3911 = vsel %vm1849, %v3909, %v3910
        %v3912 = vrot.slane %v3563, 2
        %v3913 = vsel %vm1849, %v3910, %v3912
        %v3914 = vrot.slane %v3564, 2
        %v3915 = vsel %vm1849, %v3912, %v3914
        %v3916 = vrot.slane %v3565, 2
        %v3917 = vsel %vm1849, %v3914, %v3916
        %v3918 = vrot.slane %v3566, 2
        %v3919 = vrot.slane %v3567, 2
        %v3920 = vsel %vm1849, %v3918, %v3919
        %v3921 = vrot.slane %v3568, 2
        %v3922 = vsel %vm1849, %v3919, %v3921
        %v3923 = vrot.slane %v3569, 2
        %v3924 = vsel %vm1849, %v3921, %v3923
        %v3925 = vrot.slane %v3570, 2
        %v3926 = vsel %vm1849, %v3923, %v3925
        %v3927 = vrot.slane %v3571, 2
        %v3928 = vrot.slane %v3572, 2
        %v3929 = vsel %vm1849, %v3927, %v3928
        %v3930 = vrot.slane %v3573, 2
        %v3931 = vsel %vm1849, %v3928, %v3930
        %v3932 = vrot.slane %v3574, 2
        %v3933 = vsel %vm1849, %v3930, %v3932
        %v3934 = vrot.slane %v3575, 2
        %v3935 = vsel %vm1849, %v3932, %v3934
        %v3936 = vrot.slane %v3576, 2
        %v3937 = vrot.slane %v3577, 2
        %v3938 = vsel %vm1849, %v3936, %v3937
        %v3939 = vrot.slane %v3578, 2
        %v3940 = vsel %vm1849, %v3937, %v3939
        %v3941 = vrot.slane %v3579, 2
        %v3942 = vsel %vm1849, %v3939, %v3941
        %v3943 = vrot.slane %v3580, 2
        %v3944 = vsel %vm1849, %v3941, %v3943
        %v3945 = vrot.slane %v3581, 2
        %v3946 = vrot.slane %v3582, 2
        %v3947 = vsel %vm1849, %v3945, %v3946
        %v3948 = vrot.slane %v3583, 2
        %v3949 = vsel %vm1849, %v3946, %v3948
        %v3950 = vrot.slane %v3584, 2
        %v3951 = vsel %vm1849, %v3948, %v3950
        %v3952 = vrot.slane %v3585, 2
        %v3953 = vsel %vm1849, %v3950, %v3952
        %v3954 = vrot.slane %v3586, 2
        %v3955 = vrot.slane %v3587, 2
        %v3956 = vsel %vm1849, %v3954, %v3955
        %v3957 = vrot.slane %v3588, 2
        %v3958 = vsel %vm1849, %v3955, %v3957
        %v3959 = vrot.slane %v3589, 2
        %v3960 = vsel %vm1849, %v3957, %v3959
        %v3961 = vrot.slane %v3590, 2
        %v3962 = vsel %vm1849, %v3959, %v3961
        %v3963 = vrot.slane %v3591, 2
        %v3964 = vrot.slane %v3592, 2
        %v3965 = vsel %vm1849, %v3963, %v3964
        %v3966 = vrot.slane %v3593, 2
        %v3967 = vsel %vm1849, %v3964, %v3966
        %v3968 = vrot.slane %v3594, 2
        %v3969 = vsel %vm1849, %v3966, %v3968
        %v3970 = vrot.slane %v3595, 2
        %v3971 = vsel %vm1849, %v3968, %v3970
        %v3972 = vrot.slane %v3596, 2
        %v3973 = vrot.slane %v3597, 2
        %v3974 = vsel %vm1849, %v3972, %v3973
        %v3975 = vrot.slane %v3598, 2
        %v3976 = vsel %vm1849, %v3973, %v3975
        %v3977 = vrot.slane %v3599, 2
        %v3978 = vsel %vm1849, %v3975, %v3977
        %v3979 = vrot.slane %v3600, 2
        %v3980 = vsel %vm1849, %v3977, %v3979
        %v3981 = vrot.slane %v3601, 2
        %v3982 = vrot.slane %v3602, 2
        %v3983 = vsel %vm1849, %v3981, %v3982
        %v3984 = vrot.slane %v3603, 2
        %v3985 = vsel %vm1849, %v3982, %v3984
        %v3986 = vrot.slane %v3604, 2
        %v3987 = vsel %vm1849, %v3984, %v3986
        %v3988 = vrot.slane %v3605, 2
        %v3989 = vsel %vm1849, %v3986, %v3988
        %v3990 = vrot.slane %v3606, 2
        %v3991 = vrot.slane %v3607, 2
        %v3992 = vsel %vm1849, %v3990, %v3991
        %v3993 = vrot.slane %v3608, 2
        %v3994 = vsel %vm1849, %v3991, %v3993
        %v3995 = vrot.slane %v3609, 2
        %v3996 = vsel %vm1849, %v3993, %v3995
        %v3997 = vrot.slane %v3610, 2
        %v3998 = vsel %vm1849, %v3995, %v3997
        %v3999 = vrot.slane %v3611, 2
        %v4000 = vrot.slane %v3612, 2
        %v4001 = vsel %vm1849, %v3999, %v4000
        %v4002 = vrot.slane %v3613, 2
        %v4003 = vsel %vm1849, %v4000, %v4002
        %v4004 = vrot.slane %v3614, 2
        %v4005 = vsel %vm1849, %v4002, %v4004
        %v4006 = vrot.slane %v3615, 2
        %v4007 = vsel %vm1849, %v4004, %v4006
        %v4008 = vrot.slane %v3616, 2
        %v4009 = vrot.slane %v3617, 2
        %v4010 = vsel %vm1849, %v4008, %v4009
        %v4011 = vrot.slane %v3618, 2
        %v4012 = vsel %vm1849, %v4009, %v4011
        %v4013 = vrot.slane %v3619, 2
        %v4014 = vsel %vm1849, %v4011, %v4013
        %v4015 = vrot.slane %v3620, 2
        %v4016 = vsel %vm1849, %v4013, %v4015
        %v4017 = vrot.slane %v3621, 2
        %v4018 = vrot.slane %v3622, 2
        %v4019 = vsel %vm1849, %v4017, %v4018
        %v4020 = vrot.slane %v3623, 2
        %v4021 = vsel %vm1849, %v4018, %v4020
        %v4022 = vrot.slane %v3624, 2
        %v4023 = vsel %vm1849, %v4020, %v4022
        %v4024 = vrot.slane %v3625, 2
        %v4025 = vsel %vm1849, %v4022, %v4024
        %v4026 = vrot.slane %v3626, 2
        %v4027 = vrot.slane %v3627, 2
        %v4028 = vsel %vm1849, %v4026, %v4027
        %v4029 = vrot.slane %v3628, 2
        %v4030 = vsel %vm1849, %v4027, %v4029
        %v4031 = vrot.slane %v3629, 2
        %v4032 = vsel %vm1849, %v4029, %v4031
        %v4033 = vrot.slane %v3630, 2
        %v4034 = vsel %vm1849, %v4031, %v4033
        %v4035 = vrot.slane %v3631, 2
        %v4036 = vrot.slane %v3632, 2
        %v4037 = vsel %vm1849, %v4035, %v4036
        %v4038 = vrot.slane %v3633, 2
        %v4039 = vsel %vm1849, %v4036, %v4038
        %v4040 = vrot.slane %v3634, 2
        %v4041 = vsel %vm1849, %v4038, %v4040
        %v4042 = vrot.slane %v3635, 2
        %v4043 = vsel %vm1849, %v4040, %v4042
        %v4044 = vrot.slane %v3636, 2
        %v4045 = vrot.slane %v3637, 2
        %v4046 = vsel %vm1849, %v4044, %v4045
        %v4047 = vrot.slane %v3638, 2
        %v4048 = vsel %vm1849, %v4045, %v4047
        %v4049 = vrot.slane %v3639, 2
        %v4050 = vsel %vm1849, %v4047, %v4049
        %v4051 = vrot.slane %v3640, 2
        %v4052 = vsel %vm1849, %v4049, %v4051
        %v4053 = vrot.slane %v3641, 2
        %v4054 = vrot.slane %v3642, 2
        %v4055 = vsel %vm1849, %v4053, %v4054
        %v4056 = vrot.slane %v3643, 2
        %v4057 = vsel %vm1849, %v4054, %v4056
        %v4058 = vrot.slane %v3644, 2
        %v4059 = vsel %vm1849, %v4056, %v4058
        %v4060 = vrot.slane %v3645, 2
        %v4061 = vsel %vm1849, %v4058, %v4060
        %v4062 = vrot.slane %v3646, 2
        %v4063 = vrot.slane %v3647, 2
        %v4064 = vsel %vm1849, %v4062, %v4063
        %v4065 = vrot.slane %v3648, 2
        %v4066 = vsel %vm1849, %v4063, %v4065
        %v4067 = vrot.slane %v3649, 2
        %v4068 = vsel %vm1849, %v4065, %v4067
        %v4069 = vrot.slane %v3650, 2
        %v4070 = vsel %vm1849, %v4067, %v4069
        %v4071 = vrot.slane %v3651, 2
        %v4072 = vrot.slane %v3652, 2
        %v4073 = vsel %vm1849, %v4071, %v4072
        %v4074 = vrot.slane %v3653, 2
        %v4075 = vsel %vm1849, %v4072, %v4074
        %v4076 = vrot.slane %v3654, 2
        %v4077 = vsel %vm1849, %v4074, %v4076
        %v4078 = vrot.slane %v3655, 2
        %v4079 = vsel %vm1849, %v4076, %v4078
        %v4080 = vrot.slane %v3656, 2
        %v4081 = vrot.slane %v3657, 2
        %v4082 = vsel %vm1849, %v4080, %v4081
        %v4083 = vrot.slane %v3658, 2
        %v4084 = vsel %vm1849, %v4081, %v4083
        %v4085 = vrot.slane %v3659, 2
        %v4086 = vsel %vm1849, %v4083, %v4085
        %v4087 = vrot.slane %v3660, 2
        %v4088 = vsel %vm1849, %v4085, %v4087
        %v4089 = vrot.slane %v3661, 2
        %v4090 = vrot.slane %v3662, 2
        %v4091 = vsel %vm1849, %v4089, %v4090
        %v4092 = vrot.slane %v3663, 2
        %v4093 = vsel %vm1849, %v4090, %v4092
        %v4094 = vrot.slane %v3664, 2
        %v4095 = vsel %vm1849, %v4092, %v4094
        %v4096 = vrot.slane %v3665, 2
        %v4097 = vsel %vm1849, %v4094, %v4096
        %v4098 = vrot.slane %v3666, 2
        %v4099 = vrot.slane %v3667, 2
        %v4100 = vsel %vm1849, %v4098, %v4099
        %v4101 = vrot.slane %v3668, 2
        %v4102 = vsel %vm1849, %v4099, %v4101
        %v4103 = vrot.slane %v3669, 2
        %v4104 = vsel %vm1849, %v4101, %v4103
        %v4105 = vrot.slane %v3670, 2
        %v4106 = vsel %vm1849, %v4103, %v4105
        %v4107 = vrot.slane %v3671, 2
        %v4108 = vrot.slane %v3672, 2
        %v4109 = vsel %vm1849, %v4107, %v4108
        %v4110 = vrot.slane %v3673, 2
        %v4111 = vsel %vm1849, %v4108, %v4110
        %v4112 = vrot.slane %v3674, 2
        %v4113 = vsel %vm1849, %v4110, %v4112
        %v4114 = vrot.slane %v3675, 2
        %v4115 = vsel %vm1849, %v4112, %v4114
        %v4116 = vrot.slane %v3676, 2
        %v4117 = vrot.slane %v3677, 2
        %v4118 = vsel %vm1849, %v4116, %v4117
        %v4119 = vrot.slane %v3678, 2
        %v4120 = vsel %vm1849, %v4117, %v4119
        %v4121 = vrot.slane %v3679, 2
        %v4122 = vsel %vm1849, %v4119, %v4121
        %v4123 = vrot.slane %v3680, 2
        %v4124 = vsel %vm1849, %v4121, %v4123
        %v4125 = vrot.slane %v3681, 2
        %v4126 = vrot.slane %v3682, 2
        %v4127 = vsel %vm1849, %v4125, %v4126
        %v4128 = vrot.slane %v3683, 2
        %v4129 = vsel %vm1849, %v4126, %v4128
        %v4130 = vrot.slane %v3684, 2
        %v4131 = vsel %vm1849, %v4128, %v4130
        %v4132 = vrot.slane %v3685, 2
        %v4133 = vsel %vm1849, %v4130, %v4132
        %v4262 = vadd.f32 %v3394, %v3848
        %v4263 = vadd.f32 %v3395, %v3850
        %v4264 = vadd.f32 %v3396, %v3852
        %v4265 = vadd.f32 %v3397, %v3854
        %v4266 = vadd.f32 %v3398, %v3857
        %v4267 = vadd.f32 %v3399, %v3859
        %v4268 = vadd.f32 %v3400, %v3861
        %v4269 = vadd.f32 %v3401, %v3863
        %v4270 = vadd.f32 %v3402, %v3866
        %v4271 = vadd.f32 %v3403, %v3868
        %v4272 = vadd.f32 %v3404, %v3870
        %v4273 = vadd.f32 %v3405, %v3872
        %v4274 = vadd.f32 %v3406, %v3875
        %v4275 = vadd.f32 %v3407, %v3877
        %v4276 = vadd.f32 %v3408, %v3879
        %v4277 = vadd.f32 %v3409, %v3881
        %v4278 = vadd.f32 %v3410, %v3884
        %v4279 = vadd.f32 %v3411, %v3886
        %v4280 = vadd.f32 %v3412, %v3888
        %v4281 = vadd.f32 %v3413, %v3890
        %v4282 = vadd.f32 %v3414, %v3893
        %v4283 = vadd.f32 %v3415, %v3895
        %v4284 = vadd.f32 %v3416, %v3897
        %v4285 = vadd.f32 %v3417, %v3899
        %v4286 = vadd.f32 %v3418, %v3902
        %v4287 = vadd.f32 %v3419, %v3904
        %v4288 = vadd.f32 %v3420, %v3906
        %v4289 = vadd.f32 %v3421, %v3908
        %v4290 = vadd.f32 %v3422, %v3911
        %v4291 = vadd.f32 %v3423, %v3913
        %v4292 = vadd.f32 %v3424, %v3915
        %v4293 = vadd.f32 %v3425, %v3917
        %v4294 = vadd.f32 %v3426, %v3920
        %v4295 = vadd.f32 %v3427, %v3922
        %v4296 = vadd.f32 %v3428, %v3924
        %v4297 = vadd.f32 %v3429, %v3926
        %v4298 = vadd.f32 %v3430, %v3929
        %v4299 = vadd.f32 %v3431, %v3931
        %v4300 = vadd.f32 %v3432, %v3933
        %v4301 = vadd.f32 %v3433, %v3935
        %v4302 = vadd.f32 %v3434, %v3938
        %v4303 = vadd.f32 %v3435, %v3940
        %v4304 = vadd.f32 %v3436, %v3942
        %v4305 = vadd.f32 %v3437, %v3944
        %v4306 = vadd.f32 %v3438, %v3947
        %v4307 = vadd.f32 %v3439, %v3949
        %v4308 = vadd.f32 %v3440, %v3951
        %v4309 = vadd.f32 %v3441, %v3953
        %v4310 = vadd.f32 %v3442, %v3956
        %v4311 = vadd.f32 %v3443, %v3958
        %v4312 = vadd.f32 %v3444, %v3960
        %v4313 = vadd.f32 %v3445, %v3962
        %v4314 = vadd.f32 %v3446, %v3965
        %v4315 = vadd.f32 %v3447, %v3967
        %v4316 = vadd.f32 %v3448, %v3969
        %v4317 = vadd.f32 %v3449, %v3971
        %v4318 = vadd.f32 %v3450, %v3974
        %v4319 = vadd.f32 %v3451, %v3976
        %v4320 = vadd.f32 %v3452, %v3978
        %v4321 = vadd.f32 %v3453, %v3980
        %v4322 = vadd.f32 %v3454, %v3983
        %v4323 = vadd.f32 %v3455, %v3985
        %v4324 = vadd.f32 %v3456, %v3987
        %v4325 = vadd.f32 %v3457, %v3989
        %v4326 = vadd.f32 %v3458, %v3992
        %v4327 = vadd.f32 %v3459, %v3994
        %v4328 = vadd.f32 %v3460, %v3996
        %v4329 = vadd.f32 %v3461, %v3998
        %v4330 = vadd.f32 %v3462, %v4001
        %v4331 = vadd.f32 %v3463, %v4003
        %v4332 = vadd.f32 %v3464, %v4005
        %v4333 = vadd.f32 %v3465, %v4007
        %v4334 = vadd.f32 %v3466, %v4010
        %v4335 = vadd.f32 %v3467, %v4012
        %v4336 = vadd.f32 %v3468, %v4014
        %v4337 = vadd.f32 %v3469, %v4016
        %v4338 = vadd.f32 %v3470, %v4019
        %v4339 = vadd.f32 %v3471, %v4021
        %v4340 = vadd.f32 %v3472, %v4023
        %v4341 = vadd.f32 %v3473, %v4025
        %v4342 = vadd.f32 %v3474, %v4028
        %v4343 = vadd.f32 %v3475, %v4030
        %v4344 = vadd.f32 %v3476, %v4032
        %v4345 = vadd.f32 %v3477, %v4034
        %v4346 = vadd.f32 %v3478, %v4037
        %v4347 = vadd.f32 %v3479, %v4039
        %v4348 = vadd.f32 %v3480, %v4041
        %v4349 = vadd.f32 %v3481, %v4043
        %v4350 = vadd.f32 %v3482, %v4046
        %v4351 = vadd.f32 %v3483, %v4048
        %v4352 = vadd.f32 %v3484, %v4050
        %v4353 = vadd.f32 %v3485, %v4052
        %v4354 = vadd.f32 %v3486, %v4055
        %v4355 = vadd.f32 %v3487, %v4057
        %v4356 = vadd.f32 %v3488, %v4059
        %v4357 = vadd.f32 %v3489, %v4061
        %v4358 = vadd.f32 %v3490, %v4064
        %v4359 = vadd.f32 %v3491, %v4066
        %v4360 = vadd.f32 %v3492, %v4068
        %v4361 = vadd.f32 %v3493, %v4070
        %v4362 = vadd.f32 %v3494, %v4073
        %v4363 = vadd.f32 %v3495, %v4075
        %v4364 = vadd.f32 %v3496, %v4077
        %v4365 = vadd.f32 %v3497, %v4079
        %v4366 = vadd.f32 %v3498, %v4082
        %v4367 = vadd.f32 %v3499, %v4084
        %v4368 = vadd.f32 %v3500, %v4086
        %v4369 = vadd.f32 %v3501, %v4088
        %v4370 = vadd.f32 %v3502, %v4091
        %v4371 = vadd.f32 %v3503, %v4093
        %v4372 = vadd.f32 %v3504, %v4095
        %v4373 = vadd.f32 %v3505, %v4097
        %v4374 = vadd.f32 %v3506, %v4100
        %v4375 = vadd.f32 %v3507, %v4102
        %v4376 = vadd.f32 %v3508, %v4104
        %v4377 = vadd.f32 %v3509, %v4106
        %v4378 = vadd.f32 %v3510, %v4109
        %v4379 = vadd.f32 %v3511, %v4111
        %v4380 = vadd.f32 %v3512, %v4113
        %v4381 = vadd.f32 %v3513, %v4115
        %v4382 = vadd.f32 %v3514, %v4118
        %v4383 = vadd.f32 %v3515, %v4120
        %v4384 = vadd.f32 %v3516, %v4122
        %v4385 = vadd.f32 %v3517, %v4124
        %v4386 = vadd.f32 %v3518, %v4127
        %v4387 = vadd.f32 %v3519, %v4129
        %v4388 = vadd.f32 %v3520, %v4131
        %v4389 = vadd.f32 %v3521, %v4133
        %v4390 = vlaneseq
        %v4391 = vshrl.u32 %v4390, 7
        %v4392 = vsub.s32 0, %v4391
        %v4393 = vrot.slane %v395, %v4392
        %v4394 = vmul.f32 %v233, %v4393
        %v4395 = vmul.f32 %v234, %v4393
        %v4396 = vmul.f32 %v235, %v4393
        %v4397 = vmul.f32 %v236, %v4393
        %v4398 = vmul.f32 %v238, %v4393
        %v4399 = vmul.f32 %v239, %v4393
        %v4400 = vmul.f32 %v240, %v4393
        %v4401 = vmul.f32 %v241, %v4393
        %v4402 = vmul.f32 %v243, %v4393
        %v4403 = vmul.f32 %v244, %v4393
        %v4404 = vmul.f32 %v245, %v4393
        %v4405 = vmul.f32 %v246, %v4393
        %v4406 = vmul.f32 %v248, %v4393
        %v4407 = vmul.f32 %v249, %v4393
        %v4408 = vmul.f32 %v250, %v4393
        %v4409 = vmul.f32 %v251, %v4393
        %v4410 = vmul.f32 %v253, %v4393
        %v4411 = vmul.f32 %v254, %v4393
        %v4412 = vmul.f32 %v255, %v4393
        %v4413 = vmul.f32 %v256, %v4393
        %v4414 = vmul.f32 %v258, %v4393
        %v4415 = vmul.f32 %v259, %v4393
        %v4416 = vmul.f32 %v260, %v4393
        %v4417 = vmul.f32 %v261, %v4393
        %v4418 = vmul.f32 %v263, %v4393
        %v4419 = vmul.f32 %v264, %v4393
        %v4420 = vmul.f32 %v265, %v4393
        %v4421 = vmul.f32 %v266, %v4393
        %v4422 = vmul.f32 %v268, %v4393
        %v4423 = vmul.f32 %v269, %v4393
        %v4424 = vmul.f32 %v270, %v4393
        %v4425 = vmul.f32 %v271, %v4393
        %v4426 = vmul.f32 %v273, %v4393
        %v4427 = vmul.f32 %v274, %v4393
        %v4428 = vmul.f32 %v275, %v4393
        %v4429 = vmul.f32 %v276, %v4393
        %v4430 = vmul.f32 %v278, %v4393
        %v4431 = vmul.f32 %v279, %v4393
        %v4432 = vmul.f32 %v280, %v4393
        %v4433 = vmul.f32 %v281, %v4393
        %v4434 = vmul.f32 %v283, %v4393
        %v4435 = vmul.f32 %v284, %v4393
        %v4436 = vmul.f32 %v285, %v4393
        %v4437 = vmul.f32 %v286, %v4393
        %v4438 = vmul.f32 %v288, %v4393
        %v4439 = vmul.f32 %v289, %v4393
        %v4440 = vmul.f32 %v290, %v4393
        %v4441 = vmul.f32 %v291, %v4393
        %v4442 = vmul.f32 %v293, %v4393
        %v4443 = vmul.f32 %v294, %v4393
        %v4444 = vmul.f32 %v295, %v4393
        %v4445 = vmul.f32 %v296, %v4393
        %v4446 = vmul.f32 %v298, %v4393
        %v4447 = vmul.f32 %v299, %v4393
        %v4448 = vmul.f32 %v300, %v4393
        %v4449 = vmul.f32 %v301, %v4393
        %v4450 = vmul.f32 %v303, %v4393
        %v4451 = vmul.f32 %v304, %v4393
        %v4452 = vmul.f32 %v305, %v4393
        %v4453 = vmul.f32 %v306, %v4393
        %v4454 = vmul.f32 %v308, %v4393
        %v4455 = vmul.f32 %v309, %v4393
        %v4456 = vmul.f32 %v310, %v4393
        %v4457 = vmul.f32 %v311, %v4393
        %v4458 = vmul.f32 %v313, %v4393
        %v4459 = vmul.f32 %v314, %v4393
        %v4460 = vmul.f32 %v315, %v4393
        %v4461 = vmul.f32 %v316, %v4393
        %v4462 = vmul.f32 %v318, %v4393
        %v4463 = vmul.f32 %v319, %v4393
        %v4464 = vmul.f32 %v320, %v4393
        %v4465 = vmul.f32 %v321, %v4393
        %v4466 = vmul.f32 %v323, %v4393
        %v4467 = vmul.f32 %v324, %v4393
        %v4468 = vmul.f32 %v325, %v4393
        %v4469 = vmul.f32 %v326, %v4393
        %v4470 = vmul.f32 %v328, %v4393
        %v4471 = vmul.f32 %v329, %v4393
        %v4472 = vmul.f32 %v330, %v4393
        %v4473 = vmul.f32 %v331, %v4393
        %v4474 = vmul.f32 %v333, %v4393
        %v4475 = vmul.f32 %v334, %v4393
        %v4476 = vmul.f32 %v335, %v4393
        %v4477 = vmul.f32 %v336, %v4393
        %v4478 = vmul.f32 %v338, %v4393
        %v4479 = vmul.f32 %v339, %v4393
        %v4480 = vmul.f32 %v340, %v4393
        %v4481 = vmul.f32 %v341, %v4393
        %v4482 = vmul.f32 %v343, %v4393
        %v4483 = vmul.f32 %v344, %v4393
        %v4484 = vmul.f32 %v345, %v4393
        %v4485 = vmul.f32 %v346, %v4393
        %v4486 = vmul.f32 %v348, %v4393
        %v4487 = vmul.f32 %v349, %v4393
        %v4488 = vmul.f32 %v350, %v4393
        %v4489 = vmul.f32 %v351, %v4393
        %v4490 = vmul.f32 %v353, %v4393
        %v4491 = vmul.f32 %v354, %v4393
        %v4492 = vmul.f32 %v355, %v4393
        %v4493 = vmul.f32 %v356, %v4393
        %v4494 = vmul.f32 %v358, %v4393
        %v4495 = vmul.f32 %v359, %v4393
        %v4496 = vmul.f32 %v360, %v4393
        %v4497 = vmul.f32 %v361, %v4393
        %v4498 = vmul.f32 %v363, %v4393
        %v4499 = vmul.f32 %v364, %v4393
        %v4500 = vmul.f32 %v365, %v4393
        %v4501 = vmul.f32 %v366, %v4393
        %v4502 = vmul.f32 %v368, %v4393
        %v4503 = vmul.f32 %v369, %v4393
        %v4504 = vmul.f32 %v370, %v4393
        %v4505 = vmul.f32 %v371, %v4393
        %v4506 = vmul.f32 %v373, %v4393
        %v4507 = vmul.f32 %v374, %v4393
        %v4508 = vmul.f32 %v375, %v4393
        %v4509 = vmul.f32 %v376, %v4393
        %v4510 = vmul.f32 %v378, %v4393
        %v4511 = vmul.f32 %v379, %v4393
        %v4512 = vmul.f32 %v380, %v4393
        %v4513 = vmul.f32 %v381, %v4393
        %v4514 = vmul.f32 %v383, %v4393
        %v4515 = vmul.f32 %v384, %v4393
        %v4516 = vmul.f32 %v385, %v4393
        %v4517 = vmul.f32 %v386, %v4393
        %v4518 = vmul.f32 %v388, %v4393
        %v4519 = vmul.f32 %v389, %v4393
        %v4520 = vmul.f32 %v390, %v4393
        %v4521 = vmul.f32 %v391, %v4393
        %v4522 = vadd.f32 %v4262, %v4394
        %v4523 = vadd.f32 %v4263, %v4395
        %v4524 = vadd.f32 %v4264, %v4396
        %v4525 = vadd.f32 %v4265, %v4397
        %v4526 = vadd.f32 %v4266, %v4398
        %v4527 = vadd.f32 %v4267, %v4399
        %v4528 = vadd.f32 %v4268, %v4400
        %v4529 = vadd.f32 %v4269, %v4401
        %v4530 = vadd.f32 %v4270, %v4402
        %v4531 = vadd.f32 %v4271, %v4403
        %v4532 = vadd.f32 %v4272, %v4404
        %v4533 = vadd.f32 %v4273, %v4405
        %v4534 = vadd.f32 %v4274, %v4406
        %v4535 = vadd.f32 %v4275, %v4407
        %v4536 = vadd.f32 %v4276, %v4408
        %v4537 = vadd.f32 %v4277, %v4409
        %v4538 = vadd.f32 %v4278, %v4410
        %v4539 = vadd.f32 %v4279, %v4411
        %v4540 = vadd.f32 %v4280, %v4412
        %v4541 = vadd.f32 %v4281, %v4413
        %v4542 = vadd.f32 %v4282, %v4414
        %v4543 = vadd.f32 %v4283, %v4415
        %v4544 = vadd.f32 %v4284, %v4416
        %v4545 = vadd.f32 %v4285, %v4417
        %v4546 = vadd.f32 %v4286, %v4418
        %v4547 = vadd.f32 %v4287, %v4419
        %v4548 = vadd.f32 %v4288, %v4420
        %v4549 = vadd.f32 %v4289, %v4421
        %v4550 = vadd.f32 %v4290, %v4422
        %v4551 = vadd.f32 %v4291, %v4423
        %v4552 = vadd.f32 %v4292, %v4424
        %v4553 = vadd.f32 %v4293, %v4425
        %v4554 = vadd.f32 %v4294, %v4426
        %v4555 = vadd.f32 %v4295, %v4427
        %v4556 = vadd.f32 %v4296, %v4428
        %v4557 = vadd.f32 %v4297, %v4429
        %v4558 = vadd.f32 %v4298, %v4430
        %v4559 = vadd.f32 %v4299, %v4431
        %v4560 = vadd.f32 %v4300, %v4432
        %v4561 = vadd.f32 %v4301, %v4433
        %v4562 = vadd.f32 %v4302, %v4434
        %v4563 = vadd.f32 %v4303, %v4435
        %v4564 = vadd.f32 %v4304, %v4436
        %v4565 = vadd.f32 %v4305, %v4437
        %v4566 = vadd.f32 %v4306, %v4438
        %v4567 = vadd.f32 %v4307, %v4439
        %v4568 = vadd.f32 %v4308, %v4440
        %v4569 = vadd.f32 %v4309, %v4441
        %v4570 = vadd.f32 %v4310, %v4442
        %v4571 = vadd.f32 %v4311, %v4443
        %v4572 = vadd.f32 %v4312, %v4444
        %v4573 = vadd.f32 %v4313, %v4445
        %v4574 = vadd.f32 %v4314, %v4446
        %v4575 = vadd.f32 %v4315, %v4447
        %v4576 = vadd.f32 %v4316, %v4448
        %v4577 = vadd.f32 %v4317, %v4449
        %v4578 = vadd.f32 %v4318, %v4450
        %v4579 = vadd.f32 %v4319, %v4451
        %v4580 = vadd.f32 %v4320, %v4452
        %v4581 = vadd.f32 %v4321, %v4453
        %v4582 = vadd.f32 %v4322, %v4454
        %v4583 = vadd.f32 %v4323, %v4455
        %v4584 = vadd.f32 %v4324, %v4456
        %v4585 = vadd.f32 %v4325, %v4457
        %v4586 = vadd.f32 %v4326, %v4458
        %v4587 = vadd.f32 %v4327, %v4459
        %v4588 = vadd.f32 %v4328, %v4460
        %v4589 = vadd.f32 %v4329, %v4461
        %v4590 = vadd.f32 %v4330, %v4462
        %v4591 = vadd.f32 %v4331, %v4463
        %v4592 = vadd.f32 %v4332, %v4464
        %v4593 = vadd.f32 %v4333, %v4465
        %v4594 = vadd.f32 %v4334, %v4466
        %v4595 = vadd.f32 %v4335, %v4467
        %v4596 = vadd.f32 %v4336, %v4468
        %v4597 = vadd.f32 %v4337, %v4469
        %v4598 = vadd.f32 %v4338, %v4470
        %v4599 = vadd.f32 %v4339, %v4471
        %v4600 = vadd.f32 %v4340, %v4472
        %v4601 = vadd.f32 %v4341, %v4473
        %v4602 = vadd.f32 %v4342, %v4474
        %v4603 = vadd.f32 %v4343, %v4475
        %v4604 = vadd.f32 %v4344, %v4476
        %v4605 = vadd.f32 %v4345, %v4477
        %v4606 = vadd.f32 %v4346, %v4478
        %v4607 = vadd.f32 %v4347, %v4479
        %v4608 = vadd.f32 %v4348, %v4480
        %v4609 = vadd.f32 %v4349, %v4481
        %v4610 = vadd.f32 %v4350, %v4482
        %v4611 = vadd.f32 %v4351, %v4483
        %v4612 = vadd.f32 %v4352, %v4484
        %v4613 = vadd.f32 %v4353, %v4485
        %v4614 = vadd.f32 %v4354, %v4486
        %v4615 = vadd.f32 %v4355, %v4487
        %v4616 = vadd.f32 %v4356, %v4488
        %v4617 = vadd.f32 %v4357, %v4489
        %v4618 = vadd.f32 %v4358, %v4490
        %v4619 = vadd.f32 %v4359, %v4491
        %v4620 = vadd.f32 %v4360, %v4492
        %v4621 = vadd.f32 %v4361, %v4493
        %v4622 = vadd.f32 %v4362, %v4494
        %v4623 = vadd.f32 %v4363, %v4495
        %v4624 = vadd.f32 %v4364, %v4496
        %v4625 = vadd.f32 %v4365, %v4497
        %v4626 = vadd.f32 %v4366, %v4498
        %v4627 = vadd.f32 %v4367, %v4499
        %v4628 = vadd.f32 %v4368, %v4500
        %v4629 = vadd.f32 %v4369, %v4501
        %v4630 = vadd.f32 %v4370, %v4502
        %v4631 = vadd.f32 %v4371, %v4503
        %v4632 = vadd.f32 %v4372, %v4504
        %v4633 = vadd.f32 %v4373, %v4505
        %v4634 = vadd.f32 %v4374, %v4506
        %v4635 = vadd.f32 %v4375, %v4507
        %v4636 = vadd.f32 %v4376, %v4508
        %v4637 = vadd.f32 %v4377, %v4509
        %v4638 = vadd.f32 %v4378, %v4510
        %v4639 = vadd.f32 %v4379, %v4511
        %v4640 = vadd.f32 %v4380, %v4512
        %v4641 = vadd.f32 %v4381, %v4513
        %v4642 = vadd.f32 %v4382, %v4514
        %v4643 = vadd.f32 %v4383, %v4515
        %v4644 = vadd.f32 %v4384, %v4516
        %v4645 = vadd.f32 %v4385, %v4517
        %v4646 = vadd.f32 %v4386, %v4518
        %v4647 = vadd.f32 %v4387, %v4519
        %v4648 = vadd.f32 %v4388, %v4520
        %v4649 = vadd.f32 %v4389, %v4521
        %v4650 = vlaneseq
        %v4651 = vshrl.u32 %v4650, 7
        %v4652 = vsub.s32 1, %v4651
        %v4653 = vrot.slane %v395, %v4652
        %v4654 = vmul.f32 %v233, %v4653
        %v4655 = vmul.f32 %v234, %v4653
        %v4656 = vmul.f32 %v235, %v4653
        %v4657 = vmul.f32 %v236, %v4653
        %v4658 = vmul.f32 %v237, %v4653
        %v4659 = vmul.f32 %v238, %v4653
        %v4660 = vmul.f32 %v239, %v4653
        %v4661 = vmul.f32 %v240, %v4653
        %v4662 = vmul.f32 %v241, %v4653
        %v4663 = vmul.f32 %v242, %v4653
        %v4664 = vmul.f32 %v243, %v4653
        %v4665 = vmul.f32 %v244, %v4653
        %v4666 = vmul.f32 %v245, %v4653
        %v4667 = vmul.f32 %v246, %v4653
        %v4668 = vmul.f32 %v247, %v4653
        %v4669 = vmul.f32 %v248, %v4653
        %v4670 = vmul.f32 %v249, %v4653
        %v4671 = vmul.f32 %v250, %v4653
        %v4672 = vmul.f32 %v251, %v4653
        %v4673 = vmul.f32 %v252, %v4653
        %v4674 = vmul.f32 %v253, %v4653
        %v4675 = vmul.f32 %v254, %v4653
        %v4676 = vmul.f32 %v255, %v4653
        %v4677 = vmul.f32 %v256, %v4653
        %v4678 = vmul.f32 %v257, %v4653
        %v4679 = vmul.f32 %v258, %v4653
        %v4680 = vmul.f32 %v259, %v4653
        %v4681 = vmul.f32 %v260, %v4653
        %v4682 = vmul.f32 %v261, %v4653
        %v4683 = vmul.f32 %v262, %v4653
        %v4684 = vmul.f32 %v263, %v4653
        %v4685 = vmul.f32 %v264, %v4653
        %v4686 = vmul.f32 %v265, %v4653
        %v4687 = vmul.f32 %v266, %v4653
        %v4688 = vmul.f32 %v267, %v4653
        %v4689 = vmul.f32 %v268, %v4653
        %v4690 = vmul.f32 %v269, %v4653
        %v4691 = vmul.f32 %v270, %v4653
        %v4692 = vmul.f32 %v271, %v4653
        %v4693 = vmul.f32 %v272, %v4653
        %v4694 = vmul.f32 %v273, %v4653
        %v4695 = vmul.f32 %v274, %v4653
        %v4696 = vmul.f32 %v275, %v4653
        %v4697 = vmul.f32 %v276, %v4653
        %v4698 = vmul.f32 %v277, %v4653
        %v4699 = vmul.f32 %v278, %v4653
        %v4700 = vmul.f32 %v279, %v4653
        %v4701 = vmul.f32 %v280, %v4653
        %v4702 = vmul.f32 %v281, %v4653
        %v4703 = vmul.f32 %v282, %v4653
        %v4704 = vmul.f32 %v283, %v4653
        %v4705 = vmul.f32 %v284, %v4653
        %v4706 = vmul.f32 %v285, %v4653
        %v4707 = vmul.f32 %v286, %v4653
        %v4708 = vmul.f32 %v287, %v4653
        %v4709 = vmul.f32 %v288, %v4653
        %v4710 = vmul.f32 %v289, %v4653
        %v4711 = vmul.f32 %v290, %v4653
        %v4712 = vmul.f32 %v291, %v4653
        %v4713 = vmul.f32 %v292, %v4653
        %v4714 = vmul.f32 %v293, %v4653
        %v4715 = vmul.f32 %v294, %v4653
        %v4716 = vmul.f32 %v295, %v4653
        %v4717 = vmul.f32 %v296, %v4653
        %v4718 = vmul.f32 %v297, %v4653
        %v4719 = vmul.f32 %v298, %v4653
        %v4720 = vmul.f32 %v299, %v4653
        %v4721 = vmul.f32 %v300, %v4653
        %v4722 = vmul.f32 %v301, %v4653
        %v4723 = vmul.f32 %v302, %v4653
        %v4724 = vmul.f32 %v303, %v4653
        %v4725 = vmul.f32 %v304, %v4653
        %v4726 = vmul.f32 %v305, %v4653
        %v4727 = vmul.f32 %v306, %v4653
        %v4728 = vmul.f32 %v307, %v4653
        %v4729 = vmul.f32 %v308, %v4653
        %v4730 = vmul.f32 %v309, %v4653
        %v4731 = vmul.f32 %v310, %v4653
        %v4732 = vmul.f32 %v311, %v4653
        %v4733 = vmul.f32 %v312, %v4653
        %v4734 = vmul.f32 %v313, %v4653
        %v4735 = vmul.f32 %v314, %v4653
        %v4736 = vmul.f32 %v315, %v4653
        %v4737 = vmul.f32 %v316, %v4653
        %v4738 = vmul.f32 %v317, %v4653
        %v4739 = vmul.f32 %v318, %v4653
        %v4740 = vmul.f32 %v319, %v4653
        %v4741 = vmul.f32 %v320, %v4653
        %v4742 = vmul.f32 %v321, %v4653
        %v4743 = vmul.f32 %v322, %v4653
        %v4744 = vmul.f32 %v323, %v4653
        %v4745 = vmul.f32 %v324, %v4653
        %v4746 = vmul.f32 %v325, %v4653
        %v4747 = vmul.f32 %v326, %v4653
        %v4748 = vmul.f32 %v327, %v4653
        %v4749 = vmul.f32 %v328, %v4653
        %v4750 = vmul.f32 %v329, %v4653
        %v4751 = vmul.f32 %v330, %v4653
        %v4752 = vmul.f32 %v331, %v4653
        %v4753 = vmul.f32 %v332, %v4653
        %v4754 = vmul.f32 %v333, %v4653
        %v4755 = vmul.f32 %v334, %v4653
        %v4756 = vmul.f32 %v335, %v4653
        %v4757 = vmul.f32 %v336, %v4653
        %v4758 = vmul.f32 %v337, %v4653
        %v4759 = vmul.f32 %v338, %v4653
        %v4760 = vmul.f32 %v339, %v4653
        %v4761 = vmul.f32 %v340, %v4653
        %v4762 = vmul.f32 %v341, %v4653
        %v4763 = vmul.f32 %v342, %v4653
        %v4764 = vmul.f32 %v343, %v4653
        %v4765 = vmul.f32 %v344, %v4653
        %v4766 = vmul.f32 %v345, %v4653
        %v4767 = vmul.f32 %v346, %v4653
        %v4768 = vmul.f32 %v347, %v4653
        %v4769 = vmul.f32 %v348, %v4653
        %v4770 = vmul.f32 %v349, %v4653
        %v4771 = vmul.f32 %v350, %v4653
        %v4772 = vmul.f32 %v351, %v4653
        %v4773 = vmul.f32 %v352, %v4653
        %v4774 = vmul.f32 %v353, %v4653
        %v4775 = vmul.f32 %v354, %v4653
        %v4776 = vmul.f32 %v355, %v4653
        %v4777 = vmul.f32 %v356, %v4653
        %v4778 = vmul.f32 %v357, %v4653
        %v4779 = vmul.f32 %v358, %v4653
        %v4780 = vmul.f32 %v359, %v4653
        %v4781 = vmul.f32 %v360, %v4653
        %v4782 = vmul.f32 %v361, %v4653
        %v4783 = vmul.f32 %v362, %v4653
        %v4784 = vmul.f32 %v363, %v4653
        %v4785 = vmul.f32 %v364, %v4653
        %v4786 = vmul.f32 %v365, %v4653
        %v4787 = vmul.f32 %v366, %v4653
        %v4788 = vmul.f32 %v367, %v4653
        %v4789 = vmul.f32 %v368, %v4653
        %v4790 = vmul.f32 %v369, %v4653
        %v4791 = vmul.f32 %v370, %v4653
        %v4792 = vmul.f32 %v371, %v4653
        %v4793 = vmul.f32 %v372, %v4653
        %v4794 = vmul.f32 %v373, %v4653
        %v4795 = vmul.f32 %v374, %v4653
        %v4796 = vmul.f32 %v375, %v4653
        %v4797 = vmul.f32 %v376, %v4653
        %v4798 = vmul.f32 %v377, %v4653
        %v4799 = vmul.f32 %v378, %v4653
        %v4800 = vmul.f32 %v379, %v4653
        %v4801 = vmul.f32 %v380, %v4653
        %v4802 = vmul.f32 %v381, %v4653
        %v4803 = vmul.f32 %v382, %v4653
        %v4804 = vmul.f32 %v383, %v4653
        %v4805 = vmul.f32 %v384, %v4653
        %v4806 = vmul.f32 %v385, %v4653
        %v4807 = vmul.f32 %v386, %v4653
        %v4808 = vmul.f32 %v387, %v4653
        %v4809 = vmul.f32 %v388, %v4653
        %v4810 = vmul.f32 %v389, %v4653
        %v4811 = vmul.f32 %v390, %v4653
        %v4812 = vmul.f32 %v391, %v4653
        %v4813 = vmul.f32 %v392, %v4653
        %v4974 = vrot.slane %v4654, 1
        %v4975 = vrot.slane %v4655, 1
        %v4976 = vsel %vm980, %v4974, %v4975
        %v4977 = vrot.slane %v4656, 1
        %v4978 = vsel %vm980, %v4975, %v4977
        %v4979 = vrot.slane %v4657, 1
        %v4980 = vsel %vm980, %v4977, %v4979
        %v4981 = vrot.slane %v4658, 1
        %v4982 = vsel %vm980, %v4979, %v4981
        %v4983 = vrot.slane %v4659, 1
        %v4984 = vrot.slane %v4660, 1
        %v4985 = vsel %vm980, %v4983, %v4984
        %v4986 = vrot.slane %v4661, 1
        %v4987 = vsel %vm980, %v4984, %v4986
        %v4988 = vrot.slane %v4662, 1
        %v4989 = vsel %vm980, %v4986, %v4988
        %v4990 = vrot.slane %v4663, 1
        %v4991 = vsel %vm980, %v4988, %v4990
        %v4992 = vrot.slane %v4664, 1
        %v4993 = vrot.slane %v4665, 1
        %v4994 = vsel %vm980, %v4992, %v4993
        %v4995 = vrot.slane %v4666, 1
        %v4996 = vsel %vm980, %v4993, %v4995
        %v4997 = vrot.slane %v4667, 1
        %v4998 = vsel %vm980, %v4995, %v4997
        %v4999 = vrot.slane %v4668, 1
        %v5000 = vsel %vm980, %v4997, %v4999
        %v5001 = vrot.slane %v4669, 1
        %v5002 = vrot.slane %v4670, 1
        %v5003 = vsel %vm980, %v5001, %v5002
        %v5004 = vrot.slane %v4671, 1
        %v5005 = vsel %vm980, %v5002, %v5004
        %v5006 = vrot.slane %v4672, 1
        %v5007 = vsel %vm980, %v5004, %v5006
        %v5008 = vrot.slane %v4673, 1
        %v5009 = vsel %vm980, %v5006, %v5008
        %v5010 = vrot.slane %v4674, 1
        %v5011 = vrot.slane %v4675, 1
        %v5012 = vsel %vm980, %v5010, %v5011
        %v5013 = vrot.slane %v4676, 1
        %v5014 = vsel %vm980, %v5011, %v5013
        %v5015 = vrot.slane %v4677, 1
        %v5016 = vsel %vm980, %v5013, %v5015
        %v5017 = vrot.slane %v4678, 1
        %v5018 = vsel %vm980, %v5015, %v5017
        %v5019 = vrot.slane %v4679, 1
        %v5020 = vrot.slane %v4680, 1
        %v5021 = vsel %vm980, %v5019, %v5020
        %v5022 = vrot.slane %v4681, 1
        %v5023 = vsel %vm980, %v5020, %v5022
        %v5024 = vrot.slane %v4682, 1
        %v5025 = vsel %vm980, %v5022, %v5024
        %v5026 = vrot.slane %v4683, 1
        %v5027 = vsel %vm980, %v5024, %v5026
        %v5028 = vrot.slane %v4684, 1
        %v5029 = vrot.slane %v4685, 1
        %v5030 = vsel %vm980, %v5028, %v5029
        %v5031 = vrot.slane %v4686, 1
        %v5032 = vsel %vm980, %v5029, %v5031
        %v5033 = vrot.slane %v4687, 1
        %v5034 = vsel %vm980, %v5031, %v5033
        %v5035 = vrot.slane %v4688, 1
        %v5036 = vsel %vm980, %v5033, %v5035
        %v5037 = vrot.slane %v4689, 1
        %v5038 = vrot.slane %v4690, 1
        %v5039 = vsel %vm980, %v5037, %v5038
        %v5040 = vrot.slane %v4691, 1
        %v5041 = vsel %vm980, %v5038, %v5040
        %v5042 = vrot.slane %v4692, 1
        %v5043 = vsel %vm980, %v5040, %v5042
        %v5044 = vrot.slane %v4693, 1
        %v5045 = vsel %vm980, %v5042, %v5044
        %v5046 = vrot.slane %v4694, 1
        %v5047 = vrot.slane %v4695, 1
        %v5048 = vsel %vm980, %v5046, %v5047
        %v5049 = vrot.slane %v4696, 1
        %v5050 = vsel %vm980, %v5047, %v5049
        %v5051 = vrot.slane %v4697, 1
        %v5052 = vsel %vm980, %v5049, %v5051
        %v5053 = vrot.slane %v4698, 1
        %v5054 = vsel %vm980, %v5051, %v5053
        %v5055 = vrot.slane %v4699, 1
        %v5056 = vrot.slane %v4700, 1
        %v5057 = vsel %vm980, %v5055, %v5056
        %v5058 = vrot.slane %v4701, 1
        %v5059 = vsel %vm980, %v5056, %v5058
        %v5060 = vrot.slane %v4702, 1
        %v5061 = vsel %vm980, %v5058, %v5060
        %v5062 = vrot.slane %v4703, 1
        %v5063 = vsel %vm980, %v5060, %v5062
        %v5064 = vrot.slane %v4704, 1
        %v5065 = vrot.slane %v4705, 1
        %v5066 = vsel %vm980, %v5064, %v5065
        %v5067 = vrot.slane %v4706, 1
        %v5068 = vsel %vm980, %v5065, %v5067
        %v5069 = vrot.slane %v4707, 1
        %v5070 = vsel %vm980, %v5067, %v5069
        %v5071 = vrot.slane %v4708, 1
        %v5072 = vsel %vm980, %v5069, %v5071
        %v5073 = vrot.slane %v4709, 1
        %v5074 = vrot.slane %v4710, 1
        %v5075 = vsel %vm980, %v5073, %v5074
        %v5076 = vrot.slane %v4711, 1
        %v5077 = vsel %vm980, %v5074, %v5076
        %v5078 = vrot.slane %v4712, 1
        %v5079 = vsel %vm980, %v5076, %v5078
        %v5080 = vrot.slane %v4713, 1
        %v5081 = vsel %vm980, %v5078, %v5080
        %v5082 = vrot.slane %v4714, 1
        %v5083 = vrot.slane %v4715, 1
        %v5084 = vsel %vm980, %v5082, %v5083
        %v5085 = vrot.slane %v4716, 1
        %v5086 = vsel %vm980, %v5083, %v5085
        %v5087 = vrot.slane %v4717, 1
        %v5088 = vsel %vm980, %v5085, %v5087
        %v5089 = vrot.slane %v4718, 1
        %v5090 = vsel %vm980, %v5087, %v5089
        %v5091 = vrot.slane %v4719, 1
        %v5092 = vrot.slane %v4720, 1
        %v5093 = vsel %vm980, %v5091, %v5092
        %v5094 = vrot.slane %v4721, 1
        %v5095 = vsel %vm980, %v5092, %v5094
        %v5096 = vrot.slane %v4722, 1
        %v5097 = vsel %vm980, %v5094, %v5096
        %v5098 = vrot.slane %v4723, 1
        %v5099 = vsel %vm980, %v5096, %v5098
        %v5100 = vrot.slane %v4724, 1
        %v5101 = vrot.slane %v4725, 1
        %v5102 = vsel %vm980, %v5100, %v5101
        %v5103 = vrot.slane %v4726, 1
        %v5104 = vsel %vm980, %v5101, %v5103
        %v5105 = vrot.slane %v4727, 1
        %v5106 = vsel %vm980, %v5103, %v5105
        %v5107 = vrot.slane %v4728, 1
        %v5108 = vsel %vm980, %v5105, %v5107
        %v5109 = vrot.slane %v4729, 1
        %v5110 = vrot.slane %v4730, 1
        %v5111 = vsel %vm980, %v5109, %v5110
        %v5112 = vrot.slane %v4731, 1
        %v5113 = vsel %vm980, %v5110, %v5112
        %v5114 = vrot.slane %v4732, 1
        %v5115 = vsel %vm980, %v5112, %v5114
        %v5116 = vrot.slane %v4733, 1
        %v5117 = vsel %vm980, %v5114, %v5116
        %v5118 = vrot.slane %v4734, 1
        %v5119 = vrot.slane %v4735, 1
        %v5120 = vsel %vm980, %v5118, %v5119
        %v5121 = vrot.slane %v4736, 1
        %v5122 = vsel %vm980, %v5119, %v5121
        %v5123 = vrot.slane %v4737, 1
        %v5124 = vsel %vm980, %v5121, %v5123
        %v5125 = vrot.slane %v4738, 1
        %v5126 = vsel %vm980, %v5123, %v5125
        %v5127 = vrot.slane %v4739, 1
        %v5128 = vrot.slane %v4740, 1
        %v5129 = vsel %vm980, %v5127, %v5128
        %v5130 = vrot.slane %v4741, 1
        %v5131 = vsel %vm980, %v5128, %v5130
        %v5132 = vrot.slane %v4742, 1
        %v5133 = vsel %vm980, %v5130, %v5132
        %v5134 = vrot.slane %v4743, 1
        %v5135 = vsel %vm980, %v5132, %v5134
        %v5136 = vrot.slane %v4744, 1
        %v5137 = vrot.slane %v4745, 1
        %v5138 = vsel %vm980, %v5136, %v5137
        %v5139 = vrot.slane %v4746, 1
        %v5140 = vsel %vm980, %v5137, %v5139
        %v5141 = vrot.slane %v4747, 1
        %v5142 = vsel %vm980, %v5139, %v5141
        %v5143 = vrot.slane %v4748, 1
        %v5144 = vsel %vm980, %v5141, %v5143
        %v5145 = vrot.slane %v4749, 1
        %v5146 = vrot.slane %v4750, 1
        %v5147 = vsel %vm980, %v5145, %v5146
        %v5148 = vrot.slane %v4751, 1
        %v5149 = vsel %vm980, %v5146, %v5148
        %v5150 = vrot.slane %v4752, 1
        %v5151 = vsel %vm980, %v5148, %v5150
        %v5152 = vrot.slane %v4753, 1
        %v5153 = vsel %vm980, %v5150, %v5152
        %v5154 = vrot.slane %v4754, 1
        %v5155 = vrot.slane %v4755, 1
        %v5156 = vsel %vm980, %v5154, %v5155
        %v5157 = vrot.slane %v4756, 1
        %v5158 = vsel %vm980, %v5155, %v5157
        %v5159 = vrot.slane %v4757, 1
        %v5160 = vsel %vm980, %v5157, %v5159
        %v5161 = vrot.slane %v4758, 1
        %v5162 = vsel %vm980, %v5159, %v5161
        %v5163 = vrot.slane %v4759, 1
        %v5164 = vrot.slane %v4760, 1
        %v5165 = vsel %vm980, %v5163, %v5164
        %v5166 = vrot.slane %v4761, 1
        %v5167 = vsel %vm980, %v5164, %v5166
        %v5168 = vrot.slane %v4762, 1
        %v5169 = vsel %vm980, %v5166, %v5168
        %v5170 = vrot.slane %v4763, 1
        %v5171 = vsel %vm980, %v5168, %v5170
        %v5172 = vrot.slane %v4764, 1
        %v5173 = vrot.slane %v4765, 1
        %v5174 = vsel %vm980, %v5172, %v5173
        %v5175 = vrot.slane %v4766, 1
        %v5176 = vsel %vm980, %v5173, %v5175
        %v5177 = vrot.slane %v4767, 1
        %v5178 = vsel %vm980, %v5175, %v5177
        %v5179 = vrot.slane %v4768, 1
        %v5180 = vsel %vm980, %v5177, %v5179
        %v5181 = vrot.slane %v4769, 1
        %v5182 = vrot.slane %v4770, 1
        %v5183 = vsel %vm980, %v5181, %v5182
        %v5184 = vrot.slane %v4771, 1
        %v5185 = vsel %vm980, %v5182, %v5184
        %v5186 = vrot.slane %v4772, 1
        %v5187 = vsel %vm980, %v5184, %v5186
        %v5188 = vrot.slane %v4773, 1
        %v5189 = vsel %vm980, %v5186, %v5188
        %v5190 = vrot.slane %v4774, 1
        %v5191 = vrot.slane %v4775, 1
        %v5192 = vsel %vm980, %v5190, %v5191
        %v5193 = vrot.slane %v4776, 1
        %v5194 = vsel %vm980, %v5191, %v5193
        %v5195 = vrot.slane %v4777, 1
        %v5196 = vsel %vm980, %v5193, %v5195
        %v5197 = vrot.slane %v4778, 1
        %v5198 = vsel %vm980, %v5195, %v5197
        %v5199 = vrot.slane %v4779, 1
        %v5200 = vrot.slane %v4780, 1
        %v5201 = vsel %vm980, %v5199, %v5200
        %v5202 = vrot.slane %v4781, 1
        %v5203 = vsel %vm980, %v5200, %v5202
        %v5204 = vrot.slane %v4782, 1
        %v5205 = vsel %vm980, %v5202, %v5204
        %v5206 = vrot.slane %v4783, 1
        %v5207 = vsel %vm980, %v5204, %v5206
        %v5208 = vrot.slane %v4784, 1
        %v5209 = vrot.slane %v4785, 1
        %v5210 = vsel %vm980, %v5208, %v5209
        %v5211 = vrot.slane %v4786, 1
        %v5212 = vsel %vm980, %v5209, %v5211
        %v5213 = vrot.slane %v4787, 1
        %v5214 = vsel %vm980, %v5211, %v5213
        %v5215 = vrot.slane %v4788, 1
        %v5216 = vsel %vm980, %v5213, %v5215
        %v5217 = vrot.slane %v4789, 1
        %v5218 = vrot.slane %v4790, 1
        %v5219 = vsel %vm980, %v5217, %v5218
        %v5220 = vrot.slane %v4791, 1
        %v5221 = vsel %vm980, %v5218, %v5220
        %v5222 = vrot.slane %v4792, 1
        %v5223 = vsel %vm980, %v5220, %v5222
        %v5224 = vrot.slane %v4793, 1
        %v5225 = vsel %vm980, %v5222, %v5224
        %v5226 = vrot.slane %v4794, 1
        %v5227 = vrot.slane %v4795, 1
        %v5228 = vsel %vm980, %v5226, %v5227
        %v5229 = vrot.slane %v4796, 1
        %v5230 = vsel %vm980, %v5227, %v5229
        %v5231 = vrot.slane %v4797, 1
        %v5232 = vsel %vm980, %v5229, %v5231
        %v5233 = vrot.slane %v4798, 1
        %v5234 = vsel %vm980, %v5231, %v5233
        %v5235 = vrot.slane %v4799, 1
        %v5236 = vrot.slane %v4800, 1
        %v5237 = vsel %vm980, %v5235, %v5236
        %v5238 = vrot.slane %v4801, 1
        %v5239 = vsel %vm980, %v5236, %v5238
        %v5240 = vrot.slane %v4802, 1
        %v5241 = vsel %vm980, %v5238, %v5240
        %v5242 = vrot.slane %v4803, 1
        %v5243 = vsel %vm980, %v5240, %v5242
        %v5244 = vrot.slane %v4804, 1
        %v5245 = vrot.slane %v4805, 1
        %v5246 = vsel %vm980, %v5244, %v5245
        %v5247 = vrot.slane %v4806, 1
        %v5248 = vsel %vm980, %v5245, %v5247
        %v5249 = vrot.slane %v4807, 1
        %v5250 = vsel %vm980, %v5247, %v5249
        %v5251 = vrot.slane %v4808, 1
        %v5252 = vsel %vm980, %v5249, %v5251
        %v5253 = vrot.slane %v4809, 1
        %v5254 = vrot.slane %v4810, 1
        %v5255 = vsel %vm980, %v5253, %v5254
        %v5256 = vrot.slane %v4811, 1
        %v5257 = vsel %vm980, %v5254, %v5256
        %v5258 = vrot.slane %v4812, 1
        %v5259 = vsel %vm980, %v5256, %v5258
        %v5260 = vrot.slane %v4813, 1
        %v5261 = vsel %vm980, %v5258, %v5260
        %v5390 = vadd.f32 %v4522, %v4976
        %v5391 = vadd.f32 %v4523, %v4978
        %v5392 = vadd.f32 %v4524, %v4980
        %v5393 = vadd.f32 %v4525, %v4982
        %v5394 = vadd.f32 %v4526, %v4985
        %v5395 = vadd.f32 %v4527, %v4987
        %v5396 = vadd.f32 %v4528, %v4989
        %v5397 = vadd.f32 %v4529, %v4991
        %v5398 = vadd.f32 %v4530, %v4994
        %v5399 = vadd.f32 %v4531, %v4996
        %v5400 = vadd.f32 %v4532, %v4998
        %v5401 = vadd.f32 %v4533, %v5000
        %v5402 = vadd.f32 %v4534, %v5003
        %v5403 = vadd.f32 %v4535, %v5005
        %v5404 = vadd.f32 %v4536, %v5007
        %v5405 = vadd.f32 %v4537, %v5009
        %v5406 = vadd.f32 %v4538, %v5012
        %v5407 = vadd.f32 %v4539, %v5014
        %v5408 = vadd.f32 %v4540, %v5016
        %v5409 = vadd.f32 %v4541, %v5018
        %v5410 = vadd.f32 %v4542, %v5021
        %v5411 = vadd.f32 %v4543, %v5023
        %v5412 = vadd.f32 %v4544, %v5025
        %v5413 = vadd.f32 %v4545, %v5027
        %v5414 = vadd.f32 %v4546, %v5030
        %v5415 = vadd.f32 %v4547, %v5032
        %v5416 = vadd.f32 %v4548, %v5034
        %v5417 = vadd.f32 %v4549, %v5036
        %v5418 = vadd.f32 %v4550, %v5039
        %v5419 = vadd.f32 %v4551, %v5041
        %v5420 = vadd.f32 %v4552, %v5043
        %v5421 = vadd.f32 %v4553, %v5045
        %v5422 = vadd.f32 %v4554, %v5048
        %v5423 = vadd.f32 %v4555, %v5050
        %v5424 = vadd.f32 %v4556, %v5052
        %v5425 = vadd.f32 %v4557, %v5054
        %v5426 = vadd.f32 %v4558, %v5057
        %v5427 = vadd.f32 %v4559, %v5059
        %v5428 = vadd.f32 %v4560, %v5061
        %v5429 = vadd.f32 %v4561, %v5063
        %v5430 = vadd.f32 %v4562, %v5066
        %v5431 = vadd.f32 %v4563, %v5068
        %v5432 = vadd.f32 %v4564, %v5070
        %v5433 = vadd.f32 %v4565, %v5072
        %v5434 = vadd.f32 %v4566, %v5075
        %v5435 = vadd.f32 %v4567, %v5077
        %v5436 = vadd.f32 %v4568, %v5079
        %v5437 = vadd.f32 %v4569, %v5081
        %v5438 = vadd.f32 %v4570, %v5084
        %v5439 = vadd.f32 %v4571, %v5086
        %v5440 = vadd.f32 %v4572, %v5088
        %v5441 = vadd.f32 %v4573, %v5090
        %v5442 = vadd.f32 %v4574, %v5093
        %v5443 = vadd.f32 %v4575, %v5095
        %v5444 = vadd.f32 %v4576, %v5097
        %v5445 = vadd.f32 %v4577, %v5099
        %v5446 = vadd.f32 %v4578, %v5102
        %v5447 = vadd.f32 %v4579, %v5104
        %v5448 = vadd.f32 %v4580, %v5106
        %v5449 = vadd.f32 %v4581, %v5108
        %v5450 = vadd.f32 %v4582, %v5111
        %v5451 = vadd.f32 %v4583, %v5113
        %v5452 = vadd.f32 %v4584, %v5115
        %v5453 = vadd.f32 %v4585, %v5117
        %v5454 = vadd.f32 %v4586, %v5120
        %v5455 = vadd.f32 %v4587, %v5122
        %v5456 = vadd.f32 %v4588, %v5124
        %v5457 = vadd.f32 %v4589, %v5126
        %v5458 = vadd.f32 %v4590, %v5129
        %v5459 = vadd.f32 %v4591, %v5131
        %v5460 = vadd.f32 %v4592, %v5133
        %v5461 = vadd.f32 %v4593, %v5135
        %v5462 = vadd.f32 %v4594, %v5138
        %v5463 = vadd.f32 %v4595, %v5140
        %v5464 = vadd.f32 %v4596, %v5142
        %v5465 = vadd.f32 %v4597, %v5144
        %v5466 = vadd.f32 %v4598, %v5147
        %v5467 = vadd.f32 %v4599, %v5149
        %v5468 = vadd.f32 %v4600, %v5151
        %v5469 = vadd.f32 %v4601, %v5153
        %v5470 = vadd.f32 %v4602, %v5156
        %v5471 = vadd.f32 %v4603, %v5158
        %v5472 = vadd.f32 %v4604, %v5160
        %v5473 = vadd.f32 %v4605, %v5162
        %v5474 = vadd.f32 %v4606, %v5165
        %v5475 = vadd.f32 %v4607, %v5167
        %v5476 = vadd.f32 %v4608, %v5169
        %v5477 = vadd.f32 %v4609, %v5171
        %v5478 = vadd.f32 %v4610, %v5174
        %v5479 = vadd.f32 %v4611, %v5176
        %v5480 = vadd.f32 %v4612, %v5178
        %v5481 = vadd.f32 %v4613, %v5180
        %v5482 = vadd.f32 %v4614, %v5183
        %v5483 = vadd.f32 %v4615, %v5185
        %v5484 = vadd.f32 %v4616, %v5187
        %v5485 = vadd.f32 %v4617, %v5189
        %v5486 = vadd.f32 %v4618, %v5192
        %v5487 = vadd.f32 %v4619, %v5194
        %v5488 = vadd.f32 %v4620, %v5196
        %v5489 = vadd.f32 %v4621, %v5198
        %v5490 = vadd.f32 %v4622, %v5201
        %v5491 = vadd.f32 %v4623, %v5203
        %v5492 = vadd.f32 %v4624, %v5205
        %v5493 = vadd.f32 %v4625, %v5207
        %v5494 = vadd.f32 %v4626, %v5210
        %v5495 = vadd.f32 %v4627, %v5212
        %v5496 = vadd.f32 %v4628, %v5214
        %v5497 = vadd.f32 %v4629, %v5216
        %v5498 = vadd.f32 %v4630, %v5219
        %v5499 = vadd.f32 %v4631, %v5221
        %v5500 = vadd.f32 %v4632, %v5223
        %v5501 = vadd.f32 %v4633, %v5225
        %v5502 = vadd.f32 %v4634, %v5228
        %v5503 = vadd.f32 %v4635, %v5230
        %v5504 = vadd.f32 %v4636, %v5232
        %v5505 = vadd.f32 %v4637, %v5234
        %v5506 = vadd.f32 %v4638, %v5237
        %v5507 = vadd.f32 %v4639, %v5239
        %v5508 = vadd.f32 %v4640, %v5241
        %v5509 = vadd.f32 %v4641, %v5243
        %v5510 = vadd.f32 %v4642, %v5246
        %v5511 = vadd.f32 %v4643, %v5248
        %v5512 = vadd.f32 %v4644, %v5250
        %v5513 = vadd.f32 %v4645, %v5252
        %v5514 = vadd.f32 %v4646, %v5255
        %v5515 = vadd.f32 %v4647, %v5257
        %v5516 = vadd.f32 %v4648, %v5259
        %v5517 = vadd.f32 %v4649, %v5261
        %v5518 = vlaneseq
        %v5519 = vshrl.u32 %v5518, 7
        %v5520 = vsub.s32 2, %v5519
        %v5521 = vrot.slane %v395, %v5520
        %v5522 = vmul.f32 %v233, %v5521
        %v5523 = vmul.f32 %v234, %v5521
        %v5524 = vmul.f32 %v235, %v5521
        %v5525 = vmul.f32 %v236, %v5521
        %v5526 = vmul.f32 %v237, %v5521
        %v5527 = vmul.f32 %v238, %v5521
        %v5528 = vmul.f32 %v239, %v5521
        %v5529 = vmul.f32 %v240, %v5521
        %v5530 = vmul.f32 %v241, %v5521
        %v5531 = vmul.f32 %v242, %v5521
        %v5532 = vmul.f32 %v243, %v5521
        %v5533 = vmul.f32 %v244, %v5521
        %v5534 = vmul.f32 %v245, %v5521
        %v5535 = vmul.f32 %v246, %v5521
        %v5536 = vmul.f32 %v247, %v5521
        %v5537 = vmul.f32 %v248, %v5521
        %v5538 = vmul.f32 %v249, %v5521
        %v5539 = vmul.f32 %v250, %v5521
        %v5540 = vmul.f32 %v251, %v5521
        %v5541 = vmul.f32 %v252, %v5521
        %v5542 = vmul.f32 %v253, %v5521
        %v5543 = vmul.f32 %v254, %v5521
        %v5544 = vmul.f32 %v255, %v5521
        %v5545 = vmul.f32 %v256, %v5521
        %v5546 = vmul.f32 %v257, %v5521
        %v5547 = vmul.f32 %v258, %v5521
        %v5548 = vmul.f32 %v259, %v5521
        %v5549 = vmul.f32 %v260, %v5521
        %v5550 = vmul.f32 %v261, %v5521
        %v5551 = vmul.f32 %v262, %v5521
        %v5552 = vmul.f32 %v263, %v5521
        %v5553 = vmul.f32 %v264, %v5521
        %v5554 = vmul.f32 %v265, %v5521
        %v5555 = vmul.f32 %v266, %v5521
        %v5556 = vmul.f32 %v267, %v5521
        %v5557 = vmul.f32 %v268, %v5521
        %v5558 = vmul.f32 %v269, %v5521
        %v5559 = vmul.f32 %v270, %v5521
        %v5560 = vmul.f32 %v271, %v5521
        %v5561 = vmul.f32 %v272, %v5521
        %v5562 = vmul.f32 %v273, %v5521
        %v5563 = vmul.f32 %v274, %v5521
        %v5564 = vmul.f32 %v275, %v5521
        %v5565 = vmul.f32 %v276, %v5521
        %v5566 = vmul.f32 %v277, %v5521
        %v5567 = vmul.f32 %v278, %v5521
        %v5568 = vmul.f32 %v279, %v5521
        %v5569 = vmul.f32 %v280, %v5521
        %v5570 = vmul.f32 %v281, %v5521
        %v5571 = vmul.f32 %v282, %v5521
        %v5572 = vmul.f32 %v283, %v5521
        %v5573 = vmul.f32 %v284, %v5521
        %v5574 = vmul.f32 %v285, %v5521
        %v5575 = vmul.f32 %v286, %v5521
        %v5576 = vmul.f32 %v287, %v5521
        %v5577 = vmul.f32 %v288, %v5521
        %v5578 = vmul.f32 %v289, %v5521
        %v5579 = vmul.f32 %v290, %v5521
        %v5580 = vmul.f32 %v291, %v5521
        %v5581 = vmul.f32 %v292, %v5521
        %v5582 = vmul.f32 %v293, %v5521
        %v5583 = vmul.f32 %v294, %v5521
        %v5584 = vmul.f32 %v295, %v5521
        %v5585 = vmul.f32 %v296, %v5521
        %v5586 = vmul.f32 %v297, %v5521
        %v5587 = vmul.f32 %v298, %v5521
        %v5588 = vmul.f32 %v299, %v5521
        %v5589 = vmul.f32 %v300, %v5521
        %v5590 = vmul.f32 %v301, %v5521
        %v5591 = vmul.f32 %v302, %v5521
        %v5592 = vmul.f32 %v303, %v5521
        %v5593 = vmul.f32 %v304, %v5521
        %v5594 = vmul.f32 %v305, %v5521
        %v5595 = vmul.f32 %v306, %v5521
        %v5596 = vmul.f32 %v307, %v5521
        %v5597 = vmul.f32 %v308, %v5521
        %v5598 = vmul.f32 %v309, %v5521
        %v5599 = vmul.f32 %v310, %v5521
        %v5600 = vmul.f32 %v311, %v5521
        %v5601 = vmul.f32 %v312, %v5521
        %v5602 = vmul.f32 %v313, %v5521
        %v5603 = vmul.f32 %v314, %v5521
        %v5604 = vmul.f32 %v315, %v5521
        %v5605 = vmul.f32 %v316, %v5521
        %v5606 = vmul.f32 %v317, %v5521
        %v5607 = vmul.f32 %v318, %v5521
        %v5608 = vmul.f32 %v319, %v5521
        %v5609 = vmul.f32 %v320, %v5521
        %v5610 = vmul.f32 %v321, %v5521
        %v5611 = vmul.f32 %v322, %v5521
        %v5612 = vmul.f32 %v323, %v5521
        %v5613 = vmul.f32 %v324, %v5521
        %v5614 = vmul.f32 %v325, %v5521
        %v5615 = vmul.f32 %v326, %v5521
        %v5616 = vmul.f32 %v327, %v5521
        %v5617 = vmul.f32 %v328, %v5521
        %v5618 = vmul.f32 %v329, %v5521
        %v5619 = vmul.f32 %v330, %v5521
        %v5620 = vmul.f32 %v331, %v5521
        %v5621 = vmul.f32 %v332, %v5521
        %v5622 = vmul.f32 %v333, %v5521
        %v5623 = vmul.f32 %v334, %v5521
        %v5624 = vmul.f32 %v335, %v5521
        %v5625 = vmul.f32 %v336, %v5521
        %v5626 = vmul.f32 %v337, %v5521
        %v5627 = vmul.f32 %v338, %v5521
        %v5628 = vmul.f32 %v339, %v5521
        %v5629 = vmul.f32 %v340, %v5521
        %v5630 = vmul.f32 %v341, %v5521
        %v5631 = vmul.f32 %v342, %v5521
        %v5632 = vmul.f32 %v343, %v5521
        %v5633 = vmul.f32 %v344, %v5521
        %v5634 = vmul.f32 %v345, %v5521
        %v5635 = vmul.f32 %v346, %v5521
        %v5636 = vmul.f32 %v347, %v5521
        %v5637 = vmul.f32 %v348, %v5521
        %v5638 = vmul.f32 %v349, %v5521
        %v5639 = vmul.f32 %v350, %v5521
        %v5640 = vmul.f32 %v351, %v5521
        %v5641 = vmul.f32 %v352, %v5521
        %v5642 = vmul.f32 %v353, %v5521
        %v5643 = vmul.f32 %v354, %v5521
        %v5644 = vmul.f32 %v355, %v5521
        %v5645 = vmul.f32 %v356, %v5521
        %v5646 = vmul.f32 %v357, %v5521
        %v5647 = vmul.f32 %v358, %v5521
        %v5648 = vmul.f32 %v359, %v5521
        %v5649 = vmul.f32 %v360, %v5521
        %v5650 = vmul.f32 %v361, %v5521
        %v5651 = vmul.f32 %v362, %v5521
        %v5652 = vmul.f32 %v363, %v5521
        %v5653 = vmul.f32 %v364, %v5521
        %v5654 = vmul.f32 %v365, %v5521
        %v5655 = vmul.f32 %v366, %v5521
        %v5656 = vmul.f32 %v367, %v5521
        %v5657 = vmul.f32 %v368, %v5521
        %v5658 = vmul.f32 %v369, %v5521
        %v5659 = vmul.f32 %v370, %v5521
        %v5660 = vmul.f32 %v371, %v5521
        %v5661 = vmul.f32 %v372, %v5521
        %v5662 = vmul.f32 %v373, %v5521
        %v5663 = vmul.f32 %v374, %v5521
        %v5664 = vmul.f32 %v375, %v5521
        %v5665 = vmul.f32 %v376, %v5521
        %v5666 = vmul.f32 %v377, %v5521
        %v5667 = vmul.f32 %v378, %v5521
        %v5668 = vmul.f32 %v379, %v5521
        %v5669 = vmul.f32 %v380, %v5521
        %v5670 = vmul.f32 %v381, %v5521
        %v5671 = vmul.f32 %v382, %v5521
        %v5672 = vmul.f32 %v383, %v5521
        %v5673 = vmul.f32 %v384, %v5521
        %v5674 = vmul.f32 %v385, %v5521
        %v5675 = vmul.f32 %v386, %v5521
        %v5676 = vmul.f32 %v387, %v5521
        %v5677 = vmul.f32 %v388, %v5521
        %v5678 = vmul.f32 %v389, %v5521
        %v5679 = vmul.f32 %v390, %v5521
        %v5680 = vmul.f32 %v391, %v5521
        %v5681 = vmul.f32 %v392, %v5521
        %v5842 = vrot.slane %v5522, 2
        %v5843 = vrot.slane %v5523, 2
        %v5844 = vsel %vm1849, %v5842, %v5843
        %v5845 = vrot.slane %v5524, 2
        %v5846 = vsel %vm1849, %v5843, %v5845
        %v5847 = vrot.slane %v5525, 2
        %v5848 = vsel %vm1849, %v5845, %v5847
        %v5849 = vrot.slane %v5526, 2
        %v5850 = vsel %vm1849, %v5847, %v5849
        %v5851 = vrot.slane %v5527, 2
        %v5852 = vrot.slane %v5528, 2
        %v5853 = vsel %vm1849, %v5851, %v5852
        %v5854 = vrot.slane %v5529, 2
        %v5855 = vsel %vm1849, %v5852, %v5854
        %v5856 = vrot.slane %v5530, 2
        %v5857 = vsel %vm1849, %v5854, %v5856
        %v5858 = vrot.slane %v5531, 2
        %v5859 = vsel %vm1849, %v5856, %v5858
        %v5860 = vrot.slane %v5532, 2
        %v5861 = vrot.slane %v5533, 2
        %v5862 = vsel %vm1849, %v5860, %v5861
        %v5863 = vrot.slane %v5534, 2
        %v5864 = vsel %vm1849, %v5861, %v5863
        %v5865 = vrot.slane %v5535, 2
        %v5866 = vsel %vm1849, %v5863, %v5865
        %v5867 = vrot.slane %v5536, 2
        %v5868 = vsel %vm1849, %v5865, %v5867
        %v5869 = vrot.slane %v5537, 2
        %v5870 = vrot.slane %v5538, 2
        %v5871 = vsel %vm1849, %v5869, %v5870
        %v5872 = vrot.slane %v5539, 2
        %v5873 = vsel %vm1849, %v5870, %v5872
        %v5874 = vrot.slane %v5540, 2
        %v5875 = vsel %vm1849, %v5872, %v5874
        %v5876 = vrot.slane %v5541, 2
        %v5877 = vsel %vm1849, %v5874, %v5876
        %v5878 = vrot.slane %v5542, 2
        %v5879 = vrot.slane %v5543, 2
        %v5880 = vsel %vm1849, %v5878, %v5879
        %v5881 = vrot.slane %v5544, 2
        %v5882 = vsel %vm1849, %v5879, %v5881
        %v5883 = vrot.slane %v5545, 2
        %v5884 = vsel %vm1849, %v5881, %v5883
        %v5885 = vrot.slane %v5546, 2
        %v5886 = vsel %vm1849, %v5883, %v5885
        %v5887 = vrot.slane %v5547, 2
        %v5888 = vrot.slane %v5548, 2
        %v5889 = vsel %vm1849, %v5887, %v5888
        %v5890 = vrot.slane %v5549, 2
        %v5891 = vsel %vm1849, %v5888, %v5890
        %v5892 = vrot.slane %v5550, 2
        %v5893 = vsel %vm1849, %v5890, %v5892
        %v5894 = vrot.slane %v5551, 2
        %v5895 = vsel %vm1849, %v5892, %v5894
        %v5896 = vrot.slane %v5552, 2
        %v5897 = vrot.slane %v5553, 2
        %v5898 = vsel %vm1849, %v5896, %v5897
        %v5899 = vrot.slane %v5554, 2
        %v5900 = vsel %vm1849, %v5897, %v5899
        %v5901 = vrot.slane %v5555, 2
        %v5902 = vsel %vm1849, %v5899, %v5901
        %v5903 = vrot.slane %v5556, 2
        %v5904 = vsel %vm1849, %v5901, %v5903
        %v5905 = vrot.slane %v5557, 2
        %v5906 = vrot.slane %v5558, 2
        %v5907 = vsel %vm1849, %v5905, %v5906
        %v5908 = vrot.slane %v5559, 2
        %v5909 = vsel %vm1849, %v5906, %v5908
        %v5910 = vrot.slane %v5560, 2
        %v5911 = vsel %vm1849, %v5908, %v5910
        %v5912 = vrot.slane %v5561, 2
        %v5913 = vsel %vm1849, %v5910, %v5912
        %v5914 = vrot.slane %v5562, 2
        %v5915 = vrot.slane %v5563, 2
        %v5916 = vsel %vm1849, %v5914, %v5915
        %v5917 = vrot.slane %v5564, 2
        %v5918 = vsel %vm1849, %v5915, %v5917
        %v5919 = vrot.slane %v5565, 2
        %v5920 = vsel %vm1849, %v5917, %v5919
        %v5921 = vrot.slane %v5566, 2
        %v5922 = vsel %vm1849, %v5919, %v5921
        %v5923 = vrot.slane %v5567, 2
        %v5924 = vrot.slane %v5568, 2
        %v5925 = vsel %vm1849, %v5923, %v5924
        %v5926 = vrot.slane %v5569, 2
        %v5927 = vsel %vm1849, %v5924, %v5926
        %v5928 = vrot.slane %v5570, 2
        %v5929 = vsel %vm1849, %v5926, %v5928
        %v5930 = vrot.slane %v5571, 2
        %v5931 = vsel %vm1849, %v5928, %v5930
        %v5932 = vrot.slane %v5572, 2
        %v5933 = vrot.slane %v5573, 2
        %v5934 = vsel %vm1849, %v5932, %v5933
        %v5935 = vrot.slane %v5574, 2
        %v5936 = vsel %vm1849, %v5933, %v5935
        %v5937 = vrot.slane %v5575, 2
        %v5938 = vsel %vm1849, %v5935, %v5937
        %v5939 = vrot.slane %v5576, 2
        %v5940 = vsel %vm1849, %v5937, %v5939
        %v5941 = vrot.slane %v5577, 2
        %v5942 = vrot.slane %v5578, 2
        %v5943 = vsel %vm1849, %v5941, %v5942
        %v5944 = vrot.slane %v5579, 2
        %v5945 = vsel %vm1849, %v5942, %v5944
        %v5946 = vrot.slane %v5580, 2
        %v5947 = vsel %vm1849, %v5944, %v5946
        %v5948 = vrot.slane %v5581, 2
        %v5949 = vsel %vm1849, %v5946, %v5948
        %v5950 = vrot.slane %v5582, 2
        %v5951 = vrot.slane %v5583, 2
        %v5952 = vsel %vm1849, %v5950, %v5951
        %v5953 = vrot.slane %v5584, 2
        %v5954 = vsel %vm1849, %v5951, %v5953
        %v5955 = vrot.slane %v5585, 2
        %v5956 = vsel %vm1849, %v5953, %v5955
        %v5957 = vrot.slane %v5586, 2
        %v5958 = vsel %vm1849, %v5955, %v5957
        %v5959 = vrot.slane %v5587, 2
        %v5960 = vrot.slane %v5588, 2
        %v5961 = vsel %vm1849, %v5959, %v5960
        %v5962 = vrot.slane %v5589, 2
        %v5963 = vsel %vm1849, %v5960, %v5962
        %v5964 = vrot.slane %v5590, 2
        %v5965 = vsel %vm1849, %v5962, %v5964
        %v5966 = vrot.slane %v5591, 2
        %v5967 = vsel %vm1849, %v5964, %v5966
        %v5968 = vrot.slane %v5592, 2
        %v5969 = vrot.slane %v5593, 2
        %v5970 = vsel %vm1849, %v5968, %v5969
        %v5971 = vrot.slane %v5594, 2
        %v5972 = vsel %vm1849, %v5969, %v5971
        %v5973 = vrot.slane %v5595, 2
        %v5974 = vsel %vm1849, %v5971, %v5973
        %v5975 = vrot.slane %v5596, 2
        %v5976 = vsel %vm1849, %v5973, %v5975
        %v5977 = vrot.slane %v5597, 2
        %v5978 = vrot.slane %v5598, 2
        %v5979 = vsel %vm1849, %v5977, %v5978
        %v5980 = vrot.slane %v5599, 2
        %v5981 = vsel %vm1849, %v5978, %v5980
        %v5982 = vrot.slane %v5600, 2
        %v5983 = vsel %vm1849, %v5980, %v5982
        %v5984 = vrot.slane %v5601, 2
        %v5985 = vsel %vm1849, %v5982, %v5984
        %v5986 = vrot.slane %v5602, 2
        %v5987 = vrot.slane %v5603, 2
        %v5988 = vsel %vm1849, %v5986, %v5987
        %v5989 = vrot.slane %v5604, 2
        %v5990 = vsel %vm1849, %v5987, %v5989
        %v5991 = vrot.slane %v5605, 2
        %v5992 = vsel %vm1849, %v5989, %v5991
        %v5993 = vrot.slane %v5606, 2
        %v5994 = vsel %vm1849, %v5991, %v5993
        %v5995 = vrot.slane %v5607, 2
        %v5996 = vrot.slane %v5608, 2
        %v5997 = vsel %vm1849, %v5995, %v5996
        %v5998 = vrot.slane %v5609, 2
        %v5999 = vsel %vm1849, %v5996, %v5998
        %v6000 = vrot.slane %v5610, 2
        %v6001 = vsel %vm1849, %v5998, %v6000
        %v6002 = vrot.slane %v5611, 2
        %v6003 = vsel %vm1849, %v6000, %v6002
        %v6004 = vrot.slane %v5612, 2
        %v6005 = vrot.slane %v5613, 2
        %v6006 = vsel %vm1849, %v6004, %v6005
        %v6007 = vrot.slane %v5614, 2
        %v6008 = vsel %vm1849, %v6005, %v6007
        %v6009 = vrot.slane %v5615, 2
        %v6010 = vsel %vm1849, %v6007, %v6009
        %v6011 = vrot.slane %v5616, 2
        %v6012 = vsel %vm1849, %v6009, %v6011
        %v6013 = vrot.slane %v5617, 2
        %v6014 = vrot.slane %v5618, 2
        %v6015 = vsel %vm1849, %v6013, %v6014
        %v6016 = vrot.slane %v5619, 2
        %v6017 = vsel %vm1849, %v6014, %v6016
        %v6018 = vrot.slane %v5620, 2
        %v6019 = vsel %vm1849, %v6016, %v6018
        %v6020 = vrot.slane %v5621, 2
        %v6021 = vsel %vm1849, %v6018, %v6020
        %v6022 = vrot.slane %v5622, 2
        %v6023 = vrot.slane %v5623, 2
        %v6024 = vsel %vm1849, %v6022, %v6023
        %v6025 = vrot.slane %v5624, 2
        %v6026 = vsel %vm1849, %v6023, %v6025
        %v6027 = vrot.slane %v5625, 2
        %v6028 = vsel %vm1849, %v6025, %v6027
        %v6029 = vrot.slane %v5626, 2
        %v6030 = vsel %vm1849, %v6027, %v6029
        %v6031 = vrot.slane %v5627, 2
        %v6032 = vrot.slane %v5628, 2
        %v6033 = vsel %vm1849, %v6031, %v6032
        %v6034 = vrot.slane %v5629, 2
        %v6035 = vsel %vm1849, %v6032, %v6034
        %v6036 = vrot.slane %v5630, 2
        %v6037 = vsel %vm1849, %v6034, %v6036
        %v6038 = vrot.slane %v5631, 2
        %v6039 = vsel %vm1849, %v6036, %v6038
        %v6040 = vrot.slane %v5632, 2
        %v6041 = vrot.slane %v5633, 2
        %v6042 = vsel %vm1849, %v6040, %v6041
        %v6043 = vrot.slane %v5634, 2
        %v6044 = vsel %vm1849, %v6041, %v6043
        %v6045 = vrot.slane %v5635, 2
        %v6046 = vsel %vm1849, %v6043, %v6045
        %v6047 = vrot.slane %v5636, 2
        %v6048 = vsel %vm1849, %v6045, %v6047
        %v6049 = vrot.slane %v5637, 2
        %v6050 = vrot.slane %v5638, 2
        %v6051 = vsel %vm1849, %v6049, %v6050
        %v6052 = vrot.slane %v5639, 2
        %v6053 = vsel %vm1849, %v6050, %v6052
        %v6054 = vrot.slane %v5640, 2
        %v6055 = vsel %vm1849, %v6052, %v6054
        %v6056 = vrot.slane %v5641, 2
        %v6057 = vsel %vm1849, %v6054, %v6056
        %v6058 = vrot.slane %v5642, 2
        %v6059 = vrot.slane %v5643, 2
        %v6060 = vsel %vm1849, %v6058, %v6059
        %v6061 = vrot.slane %v5644, 2
        %v6062 = vsel %vm1849, %v6059, %v6061
        %v6063 = vrot.slane %v5645, 2
        %v6064 = vsel %vm1849, %v6061, %v6063
        %v6065 = vrot.slane %v5646, 2
        %v6066 = vsel %vm1849, %v6063, %v6065
        %v6067 = vrot.slane %v5647, 2
        %v6068 = vrot.slane %v5648, 2
        %v6069 = vsel %vm1849, %v6067, %v6068
        %v6070 = vrot.slane %v5649, 2
        %v6071 = vsel %vm1849, %v6068, %v6070
        %v6072 = vrot.slane %v5650, 2
        %v6073 = vsel %vm1849, %v6070, %v6072
        %v6074 = vrot.slane %v5651, 2
        %v6075 = vsel %vm1849, %v6072, %v6074
        %v6076 = vrot.slane %v5652, 2
        %v6077 = vrot.slane %v5653, 2
        %v6078 = vsel %vm1849, %v6076, %v6077
        %v6079 = vrot.slane %v5654, 2
        %v6080 = vsel %vm1849, %v6077, %v6079
        %v6081 = vrot.slane %v5655, 2
        %v6082 = vsel %vm1849, %v6079, %v6081
        %v6083 = vrot.slane %v5656, 2
        %v6084 = vsel %vm1849, %v6081, %v6083
        %v6085 = vrot.slane %v5657, 2
        %v6086 = vrot.slane %v5658, 2
        %v6087 = vsel %vm1849, %v6085, %v6086
        %v6088 = vrot.slane %v5659, 2
        %v6089 = vsel %vm1849, %v6086, %v6088
        %v6090 = vrot.slane %v5660, 2
        %v6091 = vsel %vm1849, %v6088, %v6090
        %v6092 = vrot.slane %v5661, 2
        %v6093 = vsel %vm1849, %v6090, %v6092
        %v6094 = vrot.slane %v5662, 2
        %v6095 = vrot.slane %v5663, 2
        %v6096 = vsel %vm1849, %v6094, %v6095
        %v6097 = vrot.slane %v5664, 2
        %v6098 = vsel %vm1849, %v6095, %v6097
        %v6099 = vrot.slane %v5665, 2
        %v6100 = vsel %vm1849, %v6097, %v6099
        %v6101 = vrot.slane %v5666, 2
        %v6102 = vsel %vm1849, %v6099, %v6101
        %v6103 = vrot.slane %v5667, 2
        %v6104 = vrot.slane %v5668, 2
        %v6105 = vsel %vm1849, %v6103, %v6104
        %v6106 = vrot.slane %v5669, 2
        %v6107 = vsel %vm1849, %v6104, %v6106
        %v6108 = vrot.slane %v5670, 2
        %v6109 = vsel %vm1849, %v6106, %v6108
        %v6110 = vrot.slane %v5671, 2
        %v6111 = vsel %vm1849, %v6108, %v6110
        %v6112 = vrot.slane %v5672, 2
        %v6113 = vrot.slane %v5673, 2
        %v6114 = vsel %vm1849, %v6112, %v6113
        %v6115 = vrot.slane %v5674, 2
        %v6116 = vsel %vm1849, %v6113, %v6115
        %v6117 = vrot.slane %v5675, 2
        %v6118 = vsel %vm1849, %v6115, %v6117
        %v6119 = vrot.slane %v5676, 2
        %v6120 = vsel %vm1849, %v6117, %v6119
        %v6121 = vrot.slane %v5677, 2
        %v6122 = vrot.slane %v5678, 2
        %v6123 = vsel %vm1849, %v6121, %v6122
        %v6124 = vrot.slane %v5679, 2
        %v6125 = vsel %vm1849, %v6122, %v6124
        %v6126 = vrot.slane %v5680, 2
        %v6127 = vsel %vm1849, %v6124, %v6126
        %v6128 = vrot.slane %v5681, 2
        %v6129 = vsel %vm1849, %v6126, %v6128
        %v6258 = vadd.f32 %v5390, %v5844
        %v6259 = vadd.f32 %v5391, %v5846
        %v6260 = vadd.f32 %v5392, %v5848
        %v6261 = vadd.f32 %v5393, %v5850
        %v6262 = vadd.f32 %v5394, %v5853
        %v6263 = vadd.f32 %v5395, %v5855
        %v6264 = vadd.f32 %v5396, %v5857
        %v6265 = vadd.f32 %v5397, %v5859
        %v6266 = vadd.f32 %v5398, %v5862
        %v6267 = vadd.f32 %v5399, %v5864
        %v6268 = vadd.f32 %v5400, %v5866
        %v6269 = vadd.f32 %v5401, %v5868
        %v6270 = vadd.f32 %v5402, %v5871
        %v6271 = vadd.f32 %v5403, %v5873
        %v6272 = vadd.f32 %v5404, %v5875
        %v6273 = vadd.f32 %v5405, %v5877
        %v6274 = vadd.f32 %v5406, %v5880
        %v6275 = vadd.f32 %v5407, %v5882
        %v6276 = vadd.f32 %v5408, %v5884
        %v6277 = vadd.f32 %v5409, %v5886
        %v6278 = vadd.f32 %v5410, %v5889
        %v6279 = vadd.f32 %v5411, %v5891
        %v6280 = vadd.f32 %v5412, %v5893
        %v6281 = vadd.f32 %v5413, %v5895
        %v6282 = vadd.f32 %v5414, %v5898
        %v6283 = vadd.f32 %v5415, %v5900
        %v6284 = vadd.f32 %v5416, %v5902
        %v6285 = vadd.f32 %v5417, %v5904
        %v6286 = vadd.f32 %v5418, %v5907
        %v6287 = vadd.f32 %v5419, %v5909
        %v6288 = vadd.f32 %v5420, %v5911
        %v6289 = vadd.f32 %v5421, %v5913
        %v6290 = vadd.f32 %v5422, %v5916
        %v6291 = vadd.f32 %v5423, %v5918
        %v6292 = vadd.f32 %v5424, %v5920
        %v6293 = vadd.f32 %v5425, %v5922
        %v6294 = vadd.f32 %v5426, %v5925
        %v6295 = vadd.f32 %v5427, %v5927
        %v6296 = vadd.f32 %v5428, %v5929
        %v6297 = vadd.f32 %v5429, %v5931
        %v6298 = vadd.f32 %v5430, %v5934
        %v6299 = vadd.f32 %v5431, %v5936
        %v6300 = vadd.f32 %v5432, %v5938
        %v6301 = vadd.f32 %v5433, %v5940
        %v6302 = vadd.f32 %v5434, %v5943
        %v6303 = vadd.f32 %v5435, %v5945
        %v6304 = vadd.f32 %v5436, %v5947
        %v6305 = vadd.f32 %v5437, %v5949
        %v6306 = vadd.f32 %v5438, %v5952
        %v6307 = vadd.f32 %v5439, %v5954
        %v6308 = vadd.f32 %v5440, %v5956
        %v6309 = vadd.f32 %v5441, %v5958
        %v6310 = vadd.f32 %v5442, %v5961
        %v6311 = vadd.f32 %v5443, %v5963
        %v6312 = vadd.f32 %v5444, %v5965
        %v6313 = vadd.f32 %v5445, %v5967
        %v6314 = vadd.f32 %v5446, %v5970
        %v6315 = vadd.f32 %v5447, %v5972
        %v6316 = vadd.f32 %v5448, %v5974
        %v6317 = vadd.f32 %v5449, %v5976
        %v6318 = vadd.f32 %v5450, %v5979
        %v6319 = vadd.f32 %v5451, %v5981
        %v6320 = vadd.f32 %v5452, %v5983
        %v6321 = vadd.f32 %v5453, %v5985
        %v6322 = vadd.f32 %v5454, %v5988
        %v6323 = vadd.f32 %v5455, %v5990
        %v6324 = vadd.f32 %v5456, %v5992
        %v6325 = vadd.f32 %v5457, %v5994
        %v6326 = vadd.f32 %v5458, %v5997
        %v6327 = vadd.f32 %v5459, %v5999
        %v6328 = vadd.f32 %v5460, %v6001
        %v6329 = vadd.f32 %v5461, %v6003
        %v6330 = vadd.f32 %v5462, %v6006
        %v6331 = vadd.f32 %v5463, %v6008
        %v6332 = vadd.f32 %v5464, %v6010
        %v6333 = vadd.f32 %v5465, %v6012
        %v6334 = vadd.f32 %v5466, %v6015
        %v6335 = vadd.f32 %v5467, %v6017
        %v6336 = vadd.f32 %v5468, %v6019
        %v6337 = vadd.f32 %v5469, %v6021
        %v6338 = vadd.f32 %v5470, %v6024
        %v6339 = vadd.f32 %v5471, %v6026
        %v6340 = vadd.f32 %v5472, %v6028
        %v6341 = vadd.f32 %v5473, %v6030
        %v6342 = vadd.f32 %v5474, %v6033
        %v6343 = vadd.f32 %v5475, %v6035
        %v6344 = vadd.f32 %v5476, %v6037
        %v6345 = vadd.f32 %v5477, %v6039
        %v6346 = vadd.f32 %v5478, %v6042
        %v6347 = vadd.f32 %v5479, %v6044
        %v6348 = vadd.f32 %v5480, %v6046
        %v6349 = vadd.f32 %v5481, %v6048
        %v6350 = vadd.f32 %v5482, %v6051
        %v6351 = vadd.f32 %v5483, %v6053
        %v6352 = vadd.f32 %v5484, %v6055
        %v6353 = vadd.f32 %v5485, %v6057
        %v6354 = vadd.f32 %v5486, %v6060
        %v6355 = vadd.f32 %v5487, %v6062
        %v6356 = vadd.f32 %v5488, %v6064
        %v6357 = vadd.f32 %v5489, %v6066
        %v6358 = vadd.f32 %v5490, %v6069
        %v6359 = vadd.f32 %v5491, %v6071
        %v6360 = vadd.f32 %v5492, %v6073
        %v6361 = vadd.f32 %v5493, %v6075
        %v6362 = vadd.f32 %v5494, %v6078
        %v6363 = vadd.f32 %v5495, %v6080
        %v6364 = vadd.f32 %v5496, %v6082
        %v6365 = vadd.f32 %v5497, %v6084
        %v6366 = vadd.f32 %v5498, %v6087
        %v6367 = vadd.f32 %v5499, %v6089
        %v6368 = vadd.f32 %v5500, %v6091
        %v6369 = vadd.f32 %v5501, %v6093
        %v6370 = vadd.f32 %v5502, %v6096
        %v6371 = vadd.f32 %v5503, %v6098
        %v6372 = vadd.f32 %v5504, %v6100
        %v6373 = vadd.f32 %v5505, %v6102
        %v6374 = vadd.f32 %v5506, %v6105
        %v6375 = vadd.f32 %v5507, %v6107
        %v6376 = vadd.f32 %v5508, %v6109
        %v6377 = vadd.f32 %v5509, %v6111
        %v6378 = vadd.f32 %v5510, %v6114
        %v6379 = vadd.f32 %v5511, %v6116
        %v6380 = vadd.f32 %v5512, %v6118
        %v6381 = vadd.f32 %v5513, %v6120
        %v6382 = vadd.f32 %v5514, %v6123
        %v6383 = vadd.f32 %v5515, %v6125
        %v6384 = vadd.f32 %v5516, %v6127
        %v6385 = vadd.f32 %v5517, %v6129
        %v6386 = vld [vmem:[%s2] sm:$0x1]
        %v6388 = vlaneseq
        %v6389 = vshrl.u32 %v6388, 7
        %v6390 = vsub.s32 0, %v6389
        %v6391 = vrot.slane %v6386, %v6390
        %v6393 = vadd.f32 %v6258, %v6391
        %v6394 = vadd.f32 %v6259, %v6391
        %v6395 = vadd.f32 %v6260, %v6391
        %v6396 = vadd.f32 %v6261, %v6391
        %v6397 = vadd.f32 %v6262, %v6391
        %v6398 = vadd.f32 %v6263, %v6391
        %v6399 = vadd.f32 %v6264, %v6391
        %v6400 = vadd.f32 %v6265, %v6391
        %v6401 = vadd.f32 %v6266, %v6391
        %v6402 = vadd.f32 %v6267, %v6391
        %v6403 = vadd.f32 %v6268, %v6391
        %v6404 = vadd.f32 %v6269, %v6391
        %v6405 = vadd.f32 %v6270, %v6391
        %v6406 = vadd.f32 %v6271, %v6391
        %v6407 = vadd.f32 %v6272, %v6391
        %v6408 = vadd.f32 %v6273, %v6391
        %v6409 = vadd.f32 %v6274, %v6391
        %v6410 = vadd.f32 %v6275, %v6391
        %v6411 = vadd.f32 %v6276, %v6391
        %v6412 = vadd.f32 %v6277, %v6391
        %v6413 = vadd.f32 %v6278, %v6391
        %v6414 = vadd.f32 %v6279, %v6391
        %v6415 = vadd.f32 %v6280, %v6391
        %v6416 = vadd.f32 %v6281, %v6391
        %v6417 = vadd.f32 %v6282, %v6391
        %v6418 = vadd.f32 %v6283, %v6391
        %v6419 = vadd.f32 %v6284, %v6391
        %v6420 = vadd.f32 %v6285, %v6391
        %v6421 = vadd.f32 %v6286, %v6391
        %v6422 = vadd.f32 %v6287, %v6391
        %v6423 = vadd.f32 %v6288, %v6391
        %v6424 = vadd.f32 %v6289, %v6391
        %v6425 = vadd.f32 %v6290, %v6391
        %v6426 = vadd.f32 %v6291, %v6391
        %v6427 = vadd.f32 %v6292, %v6391
        %v6428 = vadd.f32 %v6293, %v6391
        %v6429 = vadd.f32 %v6294, %v6391
        %v6430 = vadd.f32 %v6295, %v6391
        %v6431 = vadd.f32 %v6296, %v6391
        %v6432 = vadd.f32 %v6297, %v6391
        %v6433 = vadd.f32 %v6298, %v6391
        %v6434 = vadd.f32 %v6299, %v6391
        %v6435 = vadd.f32 %v6300, %v6391
        %v6436 = vadd.f32 %v6301, %v6391
        %v6437 = vadd.f32 %v6302, %v6391
        %v6438 = vadd.f32 %v6303, %v6391
        %v6439 = vadd.f32 %v6304, %v6391
        %v6440 = vadd.f32 %v6305, %v6391
        %v6441 = vadd.f32 %v6306, %v6391
        %v6442 = vadd.f32 %v6307, %v6391
        %v6443 = vadd.f32 %v6308, %v6391
        %v6444 = vadd.f32 %v6309, %v6391
        %v6445 = vadd.f32 %v6310, %v6391
        %v6446 = vadd.f32 %v6311, %v6391
        %v6447 = vadd.f32 %v6312, %v6391
        %v6448 = vadd.f32 %v6313, %v6391
        %v6449 = vadd.f32 %v6314, %v6391
        %v6450 = vadd.f32 %v6315, %v6391
        %v6451 = vadd.f32 %v6316, %v6391
        %v6452 = vadd.f32 %v6317, %v6391
        %v6453 = vadd.f32 %v6318, %v6391
        %v6454 = vadd.f32 %v6319, %v6391
        %v6455 = vadd.f32 %v6320, %v6391
        %v6456 = vadd.f32 %v6321, %v6391
        %v6457 = vadd.f32 %v6322, %v6391
        %v6458 = vadd.f32 %v6323, %v6391
        %v6459 = vadd.f32 %v6324, %v6391
        %v6460 = vadd.f32 %v6325, %v6391
        %v6461 = vadd.f32 %v6326, %v6391
        %v6462 = vadd.f32 %v6327, %v6391
        %v6463 = vadd.f32 %v6328, %v6391
        %v6464 = vadd.f32 %v6329, %v6391
        %v6465 = vadd.f32 %v6330, %v6391
        %v6466 = vadd.f32 %v6331, %v6391
        %v6467 = vadd.f32 %v6332, %v6391
        %v6468 = vadd.f32 %v6333, %v6391
        %v6469 = vadd.f32 %v6334, %v6391
        %v6470 = vadd.f32 %v6335, %v6391
        %v6471 = vadd.f32 %v6336, %v6391
        %v6472 = vadd.f32 %v6337, %v6391
        %v6473 = vadd.f32 %v6338, %v6391
        %v6474 = vadd.f32 %v6339, %v6391
        %v6475 = vadd.f32 %v6340, %v6391
        %v6476 = vadd.f32 %v6341, %v6391
        %v6477 = vadd.f32 %v6342, %v6391
        %v6478 = vadd.f32 %v6343, %v6391
        %v6479 = vadd.f32 %v6344, %v6391
        %v6480 = vadd.f32 %v6345, %v6391
        %v6481 = vadd.f32 %v6346, %v6391
        %v6482 = vadd.f32 %v6347, %v6391
        %v6483 = vadd.f32 %v6348, %v6391
        %v6484 = vadd.f32 %v6349, %v6391
        %v6485 = vadd.f32 %v6350, %v6391
        %v6486 = vadd.f32 %v6351, %v6391
        %v6487 = vadd.f32 %v6352, %v6391
        %v6488 = vadd.f32 %v6353, %v6391
        %v6489 = vadd.f32 %v6354, %v6391
        %v6490 = vadd.f32 %v6355, %v6391
        %v6491 = vadd.f32 %v6356, %v6391
        %v6492 = vadd.f32 %v6357, %v6391
        %v6493 = vadd.f32 %v6358, %v6391
        %v6494 = vadd.f32 %v6359, %v6391
        %v6495 = vadd.f32 %v6360, %v6391
        %v6496 = vadd.f32 %v6361, %v6391
        %v6497 = vadd.f32 %v6362, %v6391
        %v6498 = vadd.f32 %v6363, %v6391
        %v6499 = vadd.f32 %v6364, %v6391
        %v6500 = vadd.f32 %v6365, %v6391
        %v6501 = vadd.f32 %v6366, %v6391
        %v6502 = vadd.f32 %v6367, %v6391
        %v6503 = vadd.f32 %v6368, %v6391
        %v6504 = vadd.f32 %v6369, %v6391
        %v6505 = vadd.f32 %v6370, %v6391
        %v6506 = vadd.f32 %v6371, %v6391
        %v6507 = vadd.f32 %v6372, %v6391
        %v6508 = vadd.f32 %v6373, %v6391
        %v6509 = vadd.f32 %v6374, %v6391
        %v6510 = vadd.f32 %v6375, %v6391
        %v6511 = vadd.f32 %v6376, %v6391
        %v6512 = vadd.f32 %v6377, %v6391
        %v6513 = vadd.f32 %v6378, %v6391
        %v6514 = vadd.f32 %v6379, %v6391
        %v6515 = vadd.f32 %v6380, %v6391
        %v6516 = vadd.f32 %v6381, %v6391
        %v6517 = vadd.f32 %v6382, %v6391
        %v6518 = vadd.f32 %v6383, %v6391
        %v6519 = vadd.f32 %v6384, %v6391
        %v6520 = vadd.f32 %v6385, %v6391
        %v6521 = vld [vmem:[%s3] sm:$0x7]
        %vm6522 = vcmask 23552
        %v6524 = vsel %vm6522, %v6393, 0
        %v6527 = vsel %vm6522, %v6394, 0
        %v6530 = vsel %vm6522, %v6395, 0
        %v6533 = vsel %vm6522, %v6396, 0
        %v6536 = vsel %vm6522, %v6397, 0
        %v6539 = vsel %vm6522, %v6398, 0
        %v6542 = vsel %vm6522, %v6399, 0
        %v6545 = vsel %vm6522, %v6400, 0
        %v6548 = vsel %vm6522, %v6401, 0
        %v6551 = vsel %vm6522, %v6402, 0
        %v6554 = vsel %vm6522, %v6403, 0
        %v6557 = vsel %vm6522, %v6404, 0
        %v6560 = vsel %vm6522, %v6405, 0
        %v6563 = vsel %vm6522, %v6406, 0
        %v6566 = vsel %vm6522, %v6407, 0
        %v6569 = vsel %vm6522, %v6408, 0
        %v6572 = vsel %vm6522, %v6409, 0
        %v6575 = vsel %vm6522, %v6410, 0
        %v6578 = vsel %vm6522, %v6411, 0
        %v6581 = vsel %vm6522, %v6412, 0
        %v6584 = vsel %vm6522, %v6413, 0
        %v6587 = vsel %vm6522, %v6414, 0
        %v6590 = vsel %vm6522, %v6415, 0
        %v6593 = vsel %vm6522, %v6416, 0
        %v6596 = vsel %vm6522, %v6417, 0
        %v6599 = vsel %vm6522, %v6418, 0
        %v6602 = vsel %vm6522, %v6419, 0
        %v6605 = vsel %vm6522, %v6420, 0
        %v6608 = vsel %vm6522, %v6421, 0
        %v6611 = vsel %vm6522, %v6422, 0
        %v6614 = vsel %vm6522, %v6423, 0
        %v6617 = vsel %vm6522, %v6424, 0
        %v6620 = vsel %vm6522, %v6425, 0
        %v6623 = vsel %vm6522, %v6426, 0
        %v6626 = vsel %vm6522, %v6427, 0
        %v6629 = vsel %vm6522, %v6428, 0
        %v6632 = vsel %vm6522, %v6429, 0
        %v6635 = vsel %vm6522, %v6430, 0
        %v6638 = vsel %vm6522, %v6431, 0
        %v6641 = vsel %vm6522, %v6432, 0
        %v6644 = vsel %vm6522, %v6433, 0
        %v6647 = vsel %vm6522, %v6434, 0
        %v6650 = vsel %vm6522, %v6435, 0
        %v6653 = vsel %vm6522, %v6436, 0
        %v6656 = vsel %vm6522, %v6437, 0
        %v6659 = vsel %vm6522, %v6438, 0
        %v6662 = vsel %vm6522, %v6439, 0
        %v6665 = vsel %vm6522, %v6440, 0
        %v6668 = vsel %vm6522, %v6441, 0
        %v6671 = vsel %vm6522, %v6442, 0
        %v6674 = vsel %vm6522, %v6443, 0
        %v6677 = vsel %vm6522, %v6444, 0
        %v6680 = vsel %vm6522, %v6445, 0
        %v6683 = vsel %vm6522, %v6446, 0
        %v6686 = vsel %vm6522, %v6447, 0
        %v6689 = vsel %vm6522, %v6448, 0
        %v6692 = vsel %vm6522, %v6449, 0
        %v6695 = vsel %vm6522, %v6450, 0
        %v6698 = vsel %vm6522, %v6451, 0
        %v6701 = vsel %vm6522, %v6452, 0
        %v6704 = vsel %vm6522, %v6453, 0
        %v6707 = vsel %vm6522, %v6454, 0
        %v6710 = vsel %vm6522, %v6455, 0
        %v6713 = vsel %vm6522, %v6456, 0
        %v6716 = vsel %vm6522, %v6457, 0
        %v6719 = vsel %vm6522, %v6458, 0
        %v6722 = vsel %vm6522, %v6459, 0
        %v6725 = vsel %vm6522, %v6460, 0
        %v6728 = vsel %vm6522, %v6461, 0
        %v6731 = vsel %vm6522, %v6462, 0
        %v6734 = vsel %vm6522, %v6463, 0
        %v6737 = vsel %vm6522, %v6464, 0
        %v6740 = vsel %vm6522, %v6465, 0
        %v6743 = vsel %vm6522, %v6466, 0
        %v6746 = vsel %vm6522, %v6467, 0
        %v6749 = vsel %vm6522, %v6468, 0
        %v6752 = vsel %vm6522, %v6469, 0
        %v6755 = vsel %vm6522, %v6470, 0
        %v6758 = vsel %vm6522, %v6471, 0
        %v6761 = vsel %vm6522, %v6472, 0
        %v6764 = vsel %vm6522, %v6473, 0
        %v6767 = vsel %vm6522, %v6474, 0
        %v6770 = vsel %vm6522, %v6475, 0
        %v6773 = vsel %vm6522, %v6476, 0
        %v6776 = vsel %vm6522, %v6477, 0
        %v6779 = vsel %vm6522, %v6478, 0
        %v6782 = vsel %vm6522, %v6479, 0
        %v6785 = vsel %vm6522, %v6480, 0
        %v6788 = vsel %vm6522, %v6481, 0
        %v6791 = vsel %vm6522, %v6482, 0
        %v6794 = vsel %vm6522, %v6483, 0
        %v6797 = vsel %vm6522, %v6484, 0
        %v6800 = vsel %vm6522, %v6485, 0
        %v6803 = vsel %vm6522, %v6486, 0
        %v6806 = vsel %vm6522, %v6487, 0
        %v6809 = vsel %vm6522, %v6488, 0
        %v6812 = vsel %vm6522, %v6489, 0
        %v6815 = vsel %vm6522, %v6490, 0
        %v6818 = vsel %vm6522, %v6491, 0
        %v6821 = vsel %vm6522, %v6492, 0
        %v6824 = vsel %vm6522, %v6493, 0
        %v6827 = vsel %vm6522, %v6494, 0
        %v6830 = vsel %vm6522, %v6495, 0
        %v6833 = vsel %vm6522, %v6496, 0
        %v6836 = vsel %vm6522, %v6497, 0
        %v6839 = vsel %vm6522, %v6498, 0
        %v6842 = vsel %vm6522, %v6499, 0
        %v6845 = vsel %vm6522, %v6500, 0
        %v6848 = vsel %vm6522, %v6501, 0
        %v6851 = vsel %vm6522, %v6502, 0
        %v6854 = vsel %vm6522, %v6503, 0
        %v6857 = vsel %vm6522, %v6504, 0
        %v6860 = vsel %vm6522, %v6505, 0
        %v6863 = vsel %vm6522, %v6506, 0
        %v6866 = vsel %vm6522, %v6507, 0
        %v6869 = vsel %vm6522, %v6508, 0
        %v6872 = vsel %vm6522, %v6509, 0
        %v6875 = vsel %vm6522, %v6510, 0
        %v6878 = vsel %vm6522, %v6511, 0
        %v6881 = vsel %vm6522, %v6512, 0
        %v6884 = vsel %vm6522, %v6513, 0
        %v6887 = vsel %vm6522, %v6514, 0
        %v6890 = vsel %vm6522, %v6515, 0
        %v6893 = vsel %vm6522, %v6516, 0
        %v6896 = vsel %vm6522, %v6517, 0
        %v6899 = vsel %vm6522, %v6518, 0
        %v6902 = vsel %vm6522, %v6519, 0
        %v6905 = vsel %vm6522, %v6520, 0
        %vm6907 = vcmask 1042432
        %v6909 = vsel %vm6907, %v6521, 0
        %6911 = vmatprep.subr.mxu0 0.0
        %6912 = vmatpush1.msra.mxu0 %v6909
        %6913 = vmatprep.subr.mxu0 0.0
        %6914 = vmatpush1.msra.mxu0 0.0
        %6915 = vmatprep.subr.mxu0 0.0
        %6916 = vmatpush1.msra.mxu0 0.0
        %6917 = vmatprep.subr.mxu0 0.0
        %6918 = vmatpush1.msra.mxu0 0.0
        %6919 = vmatprep.subr.mxu0 0.0
        %6920 = vmatpush1.msra.mxu0 0.0
        %6921 = vmatprep.subr.mxu0 0.0
        %6922 = vmatpush1.msra.mxu0 0.0
        %6923 = vmatprep.subr.mxu0 0.0
        %6924 = vmatpush1.msra.mxu0 0.0
        %6925 = vmatprep.subr.mxu0 0.0
        %6926 = vmatpush1.msra.mxu0 0.0
        %6927 = vmatprep.subr.mxu0 0.0
        %6928 = vmatpush1.msra.mxu0 0.0
        %6929 = vmatprep.subr.mxu0 0.0
        %6930 = vmatpush1.msra.mxu0 0.0
        %6931 = vmatprep.subr.mxu0 0.0
        %6932 = vmatpush1.msra.mxu0 0.0
        %6933 = vmatprep.subr.mxu0 0.0
        %6934 = vmatpush1.msra.mxu0 0.0
        %6935 = vmatprep.subr.mxu0 0.0
        %6936 = vmatpush1.msra.mxu0 0.0
        %6937 = vmatprep.subr.mxu0 0.0
        %6938 = vmatpush1.msra.mxu0 0.0
        %6939 = vmatprep.subr.mxu0 0.0
        %6940 = vmatpush1.msra.mxu0 0.0
        %6941 = vmatprep.subr.mxu0 0.0
        %6942 = vmatpush1.msra.mxu0 0.0
        %6943 = vmatprep.subr.mxu0 0.0
        %6944 = vmatpush1.msra.mxu0 0.0
        %6945 = vmatprep.subr.mxu0 0.0
        %6946 = vmatpush1.msra.mxu0 0.0
        %6947 = vmatprep.subr.mxu0 0.0
        %6948 = vmatpush1.msra.mxu0 0.0
        %6949 = vmatprep.subr.mxu0 0.0
        %6950 = vmatpush1.msra.mxu0 0.0
        %6951 = vmatprep.subr.mxu0 0.0
        %6952 = vmatpush1.msra.mxu0 0.0
        %6953 = vmatprep.subr.mxu0 0.0
        %6954 = vmatpush1.msra.mxu0 0.0
        %6955 = vmatprep.subr.mxu0 0.0
        %6956 = vmatpush1.msra.mxu0 0.0
        %6957 = vmatprep.subr.mxu0 0.0
        %6958 = vmatpush1.msra.mxu0 0.0
        %6959 = vmatprep.subr.mxu0 0.0
        %6960 = vmatpush1.msra.mxu0 0.0
        %6961 = vmatprep.subr.mxu0 0.0
        %6962 = vmatpush1.msra.mxu0 0.0
        %6963 = vmatprep.subr.mxu0 0.0
        %6964 = vmatpush1.msra.mxu0 0.0
        %6965 = vmatprep.subr.mxu0 0.0
        %6966 = vmatpush1.msra.mxu0 0.0
        %6967 = vmatprep.subr.mxu0 0.0
        %6968 = vmatpush1.msra.mxu0 0.0
        %6969 = vmatprep.subr.mxu0 0.0
        %6970 = vmatpush1.msra.mxu0 0.0
        %6971 = vmatprep.subr.mxu0 0.0
        %6972 = vmatpush1.msra.mxu0 0.0
        %6973 = vmatprep.subr.mxu0 0.0
        %6974 = vmatpush1.msra.mxu0 0.0
        %6975 = vmatprep.mubr.f32.mxu0 0.0
        %6976 = vmatmul.mubr.f32.gmra.mrb[0].mxu0 %v6524
        %v6977 = vpop.f32.mrb[0].mxu0
        %v6978 = vadd.f32 0.0, %v6977
        %v6979 = vpop.f32.mrb[0].mxu0
        %6980 = vmatprep.mubr.f32.mxu0 0.0
        %6981 = vmatmul.mubr.f32.gmra.mrb[0].mxu0 %v6527
        %v6982 = vpop.f32.mrb[0].mxu0
        %v6983 = vadd.f32 0.0, %v6982
        %v6984 = vpop.f32.mrb[0].mxu0
        %6985 = vmatprep.mubr.f32.mxu0 0.0
        %6986 = vmatmul.mubr.f32.gmra.mrb[0].mxu0 %v6530
        %v6987 = vpop.f32.mrb[0].mxu0
        %v6988 = vadd.f32 0.0, %v6987
        %v6989 = vpop.f32.mrb[0].mxu0
        %6990 = vmatprep.mubr.f32.mxu0 0.0
        %6991 = vmatmul.mubr.f32.gmra.mrb[0].mxu0 %v6533
        %v6992 = vpop.f32.mrb[0].mxu0
        %v6993 = vadd.f32 0.0, %v6992
        %v6994 = vpop.f32.mrb[0].mxu0
        %6995 = vmatprep.mubr.f32.mxu0 0.0
        %6996 = vmatmul.mubr.f32.gmra.mrb[0].mxu0 %v6536
        %v6997 = vpop.f32.mrb[0].mxu0
        %v6998 = vadd.f32 0.0, %v6997
        %v6999 = vpop.f32.mrb[0].mxu0
        %7000 = vmatprep.mubr.f32.mxu0 0.0
        %7001 = vmatmul.mubr.f32.gmra.mrb[0].mxu0 %v6539
        %v7002 = vpop.f32.mrb[0].mxu0
        %v7003 = vadd.f32 0.0, %v7002
        %v7004 = vpop.f32.mrb[0].mxu0
        %7005 = vmatprep.mubr.f32.mxu0 0.0
        %7006 = vmatmul.mubr.f32.gmra.mrb[0].mxu0 %v6542
        %v7007 = vpop.f32.mrb[0].mxu0
        %v7008 = vadd.f32 0.0, %v7007
        %v7009 = vpop.f32.mrb[0].mxu0
        %7010 = vmatprep.mubr.f32.mxu0 0.0
        %7011 = vmatmul.mubr.f32.gmra.mrb[0].mxu0 %v6545
        %v7012 = vpop.f32.mrb[0].mxu0
        %v7013 = vadd.f32 0.0, %v7012
        %v7014 = vpop.f32.mrb[0].mxu0
        %7015 = vmatprep.mubr.f32.mxu0 0.0
        %7016 = vmatmul.mubr.f32.gmra.mrb[0].mxu0 %v6548
        %v7017 = vpop.f32.mrb[0].mxu0
        %v7018 = vadd.f32 0.0, %v7017
        %v7019 = vpop.f32.mrb[0].mxu0
        %7020 = vmatprep.mubr.f32.mxu0 0.0
        %7021 = vmatmul.mubr.f32.gmra.mrb[0].mxu0 %v6551
        %v7022 = vpop.f32.mrb[0].mxu0
        %v7023 = vadd.f32 0.0, %v7022
        %v7024 = vpop.f32.mrb[0].mxu0
        %7025 = vmatprep.mubr.f32.mxu0 0.0
        %7026 = vmatmul.mubr.f32.gmra.mrb[0].mxu0 %v6554
        %v7027 = vpop.f32.mrb[0].mxu0
        %v7028 = vadd.f32 0.0, %v7027
        %v7029 = vpop.f32.mrb[0].mxu0
        %7030 = vmatprep.mubr.f32.mxu0 0.0
        %7031 = vmatmul.mubr.f32.gmra.mrb[0].mxu0 %v6557
        %v7032 = vpop.f32.mrb[0].mxu0
        %v7033 = vadd.f32 0.0, %v7032
        %v7034 = vpop.f32.mrb[0].mxu0
        %7035 = vmatprep.mubr.f32.mxu0 0.0
        %7036 = vmatmul.mubr.f32.gmra.mrb[0].mxu0 %v6560
        %v7037 = vpop.f32.mrb[0].mxu0
        %v7038 = vadd.f32 0.0, %v7037
        %v7039 = vpop.f32.mrb[0].mxu0
        %7040 = vmatprep.mubr.f32.mxu0 0.0
        %7041 = vmatmul.mubr.f32.gmra.mrb[0].mxu0 %v6563
        %v7042 = vpop.f32.mrb[0].mxu0
        %v7043 = vadd.f32 0.0, %v7042
        %v7044 = vpop.f32.mrb[0].mxu0
        %7045 = vmatprep.mubr.f32.mxu0 0.0
        %7046 = vmatmul.mubr.f32.gmra.mrb[0].mxu0 %v6566
        %v7047 = vpop.f32.mrb[0].mxu0
        %v7048 = vadd.f32 0.0, %v7047
        %v7049 = vpop.f32.mrb[0].mxu0
        %7050 = vmatprep.mubr.f32.mxu0 0.0
        %7051 = vmatmul.mubr.f32.gmra.mrb[0].mxu0 %v6569
        %v7052 = vpop.f32.mrb[0].mxu0
        %v7053 = vadd.f32 0.0, %v7052
        %v7054 = vpop.f32.mrb[0].mxu0
        %7055 = vmatprep.mubr.f32.mxu0 0.0
        %7056 = vmatmul.mubr.f32.gmra.mrb[0].mxu0 %v6572
        %v7057 = vpop.f32.mrb[0].mxu0
        %v7058 = vadd.f32 0.0, %v7057
        %v7059 = vpop.f32.mrb[0].mxu0
        %7060 = vmatprep.mubr.f32.mxu0 0.0
        %7061 = vmatmul.mubr.f32.gmra.mrb[0].mxu0 %v6575
        %v7062 = vpop.f32.mrb[0].mxu0
        %v7063 = vadd.f32 0.0, %v7062
        %v7064 = vpop.f32.mrb[0].mxu0
        %7065 = vmatprep.mubr.f32.mxu0 0.0
        %7066 = vmatmul.mubr.f32.gmra.mrb[0].mxu0 %v6578
        %v7067 = vpop.f32.mrb[0].mxu0
        %v7068 = vadd.f32 0.0, %v7067
        %v7069 = vpop.f32.mrb[0].mxu0
        %7070 = vmatprep.mubr.f32.mxu0 0.0
        %7071 = vmatmul.mubr.f32.gmra.mrb[0].mxu0 %v6581
        %v7072 = vpop.f32.mrb[0].mxu0
        %v7073 = vadd.f32 0.0, %v7072
        %v7074 = vpop.f32.mrb[0].mxu0
        %7075 = vmatprep.mubr.f32.mxu0 0.0
        %7076 = vmatmul.mubr.f32.gmra.mrb[0].mxu0 %v6584
        %v7077 = vpop.f32.mrb[0].mxu0
        %v7078 = vadd.f32 0.0, %v7077
        %v7079 = vpop.f32.mrb[0].mxu0
        %7080 = vmatprep.mubr.f32.mxu0 0.0
        %7081 = vmatmul.mubr.f32.gmra.mrb[0].mxu0 %v6587
        %v7082 = vpop.f32.mrb[0].mxu0
        %v7083 = vadd.f32 0.0, %v7082
        %v7084 = vpop.f32.mrb[0].mxu0
        %7085 = vmatprep.mubr.f32.mxu0 0.0
        %7086 = vmatmul.mubr.f32.gmra.mrb[0].mxu0 %v6590
        %v7087 = vpop.f32.mrb[0].mxu0
        %v7088 = vadd.f32 0.0, %v7087
        %v7089 = vpop.f32.mrb[0].mxu0
        %7090 = vmatprep.mubr.f32.mxu0 0.0
        %7091 = vmatmul.mubr.f32.gmra.mrb[0].mxu0 %v6593
        %v7092 = vpop.f32.mrb[0].mxu0
        %v7093 = vadd.f32 0.0, %v7092
        %v7094 = vpop.f32.mrb[0].mxu0
        %7095 = vmatprep.mubr.f32.mxu0 0.0
        %7096 = vmatmul.mubr.f32.gmra.mrb[0].mxu0 %v6596
        %v7097 = vpop.f32.mrb[0].mxu0
        %v7098 = vadd.f32 0.0, %v7097
        %v7099 = vpop.f32.mrb[0].mxu0
        %7100 = vmatprep.mubr.f32.mxu0 0.0
        %7101 = vmatmul.mubr.f32.gmra.mrb[0].mxu0 %v6599
        %v7102 = vpop.f32.mrb[0].mxu0
        %v7103 = vadd.f32 0.0, %v7102
        %v7104 = vpop.f32.mrb[0].mxu0
        %7105 = vmatprep.mubr.f32.mxu0 0.0
        %7106 = vmatmul.mubr.f32.gmra.mrb[0].mxu0 %v6602
        %v7107 = vpop.f32.mrb[0].mxu0
        %v7108 = vadd.f32 0.0, %v7107
        %v7109 = vpop.f32.mrb[0].mxu0
        %7110 = vmatprep.mubr.f32.mxu0 0.0
        %7111 = vmatmul.mubr.f32.gmra.mrb[0].mxu0 %v6605
        %v7112 = vpop.f32.mrb[0].mxu0
        %v7113 = vadd.f32 0.0, %v7112
        %v7114 = vpop.f32.mrb[0].mxu0
        %7115 = vmatprep.mubr.f32.mxu0 0.0
        %7116 = vmatmul.mubr.f32.gmra.mrb[0].mxu0 %v6608
        %v7117 = vpop.f32.mrb[0].mxu0
        %v7118 = vadd.f32 0.0, %v7117
        %v7119 = vpop.f32.mrb[0].mxu0
        %7120 = vmatprep.mubr.f32.mxu0 0.0
        %7121 = vmatmul.mubr.f32.gmra.mrb[0].mxu0 %v6611
        %v7122 = vpop.f32.mrb[0].mxu0
        %v7123 = vadd.f32 0.0, %v7122
        %v7124 = vpop.f32.mrb[0].mxu0
        %7125 = vmatprep.mubr.f32.mxu0 0.0
        %7126 = vmatmul.mubr.f32.gmra.mrb[0].mxu0 %v6614
        %v7127 = vpop.f32.mrb[0].mxu0
        %v7128 = vadd.f32 0.0, %v7127
        %v7129 = vpop.f32.mrb[0].mxu0
        %7130 = vmatprep.mubr.f32.mxu0 0.0
        %7131 = vmatmul.mubr.f32.gmra.mrb[0].mxu0 %v6617
        %v7132 = vpop.f32.mrb[0].mxu0
        %v7133 = vadd.f32 0.0, %v7132
        %v7134 = vpop.f32.mrb[0].mxu0
        %7135 = vmatprep.mubr.f32.mxu0 0.0
        %7136 = vmatmul.mubr.f32.gmra.mrb[0].mxu0 %v6620
        %v7137 = vpop.f32.mrb[0].mxu0
        %v7138 = vadd.f32 0.0, %v7137
        %v7139 = vpop.f32.mrb[0].mxu0
        %7140 = vmatprep.mubr.f32.mxu0 0.0
        %7141 = vmatmul.mubr.f32.gmra.mrb[0].mxu0 %v6623
        %v7142 = vpop.f32.mrb[0].mxu0
        %v7143 = vadd.f32 0.0, %v7142
        %v7144 = vpop.f32.mrb[0].mxu0
        %7145 = vmatprep.mubr.f32.mxu0 0.0
        %7146 = vmatmul.mubr.f32.gmra.mrb[0].mxu0 %v6626
        %v7147 = vpop.f32.mrb[0].mxu0
        %v7148 = vadd.f32 0.0, %v7147
        %v7149 = vpop.f32.mrb[0].mxu0
        %7150 = vmatprep.mubr.f32.mxu0 0.0
        %7151 = vmatmul.mubr.f32.gmra.mrb[0].mxu0 %v6629
        %v7152 = vpop.f32.mrb[0].mxu0
        %v7153 = vadd.f32 0.0, %v7152
        %v7154 = vpop.f32.mrb[0].mxu0
        %7155 = vmatprep.mubr.f32.mxu0 0.0
        %7156 = vmatmul.mubr.f32.gmra.mrb[0].mxu0 %v6632
        %v7157 = vpop.f32.mrb[0].mxu0
        %v7158 = vadd.f32 0.0, %v7157
        %v7159 = vpop.f32.mrb[0].mxu0
        %7160 = vmatprep.mubr.f32.mxu0 0.0
        %7161 = vmatmul.mubr.f32.gmra.mrb[0].mxu0 %v6635
        %v7162 = vpop.f32.mrb[0].mxu0
        %v7163 = vadd.f32 0.0, %v7162
        %v7164 = vpop.f32.mrb[0].mxu0
        %7165 = vmatprep.mubr.f32.mxu0 0.0
        %7166 = vmatmul.mubr.f32.gmra.mrb[0].mxu0 %v6638
        %v7167 = vpop.f32.mrb[0].mxu0
        %v7168 = vadd.f32 0.0, %v7167
        %v7169 = vpop.f32.mrb[0].mxu0
        %7170 = vmatprep.mubr.f32.mxu0 0.0
        %7171 = vmatmul.mubr.f32.gmra.mrb[0].mxu0 %v6641
        %v7172 = vpop.f32.mrb[0].mxu0
        %v7173 = vadd.f32 0.0, %v7172
        %v7174 = vpop.f32.mrb[0].mxu0
        %7175 = vmatprep.mubr.f32.mxu0 0.0
        %7176 = vmatmul.mubr.f32.gmra.mrb[0].mxu0 %v6644
        %v7177 = vpop.f32.mrb[0].mxu0
        %v7178 = vadd.f32 0.0, %v7177
        %v7179 = vpop.f32.mrb[0].mxu0
        %7180 = vmatprep.mubr.f32.mxu0 0.0
        %7181 = vmatmul.mubr.f32.gmra.mrb[0].mxu0 %v6647
        %v7182 = vpop.f32.mrb[0].mxu0
        %v7183 = vadd.f32 0.0, %v7182
        %v7184 = vpop.f32.mrb[0].mxu0
        %7185 = vmatprep.mubr.f32.mxu0 0.0
        %7186 = vmatmul.mubr.f32.gmra.mrb[0].mxu0 %v6650
        %v7187 = vpop.f32.mrb[0].mxu0
        %v7188 = vadd.f32 0.0, %v7187
        %v7189 = vpop.f32.mrb[0].mxu0
        %7190 = vmatprep.mubr.f32.mxu0 0.0
        %7191 = vmatmul.mubr.f32.gmra.mrb[0].mxu0 %v6653
        %v7192 = vpop.f32.mrb[0].mxu0
        %v7193 = vadd.f32 0.0, %v7192
        %v7194 = vpop.f32.mrb[0].mxu0
        %7195 = vmatprep.mubr.f32.mxu0 0.0
        %7196 = vmatmul.mubr.f32.gmra.mrb[0].mxu0 %v6656
        %v7197 = vpop.f32.mrb[0].mxu0
        %v7198 = vadd.f32 0.0, %v7197
        %v7199 = vpop.f32.mrb[0].mxu0
        %7200 = vmatprep.mubr.f32.mxu0 0.0
        %7201 = vmatmul.mubr.f32.gmra.mrb[0].mxu0 %v6659
        %v7202 = vpop.f32.mrb[0].mxu0
        %v7203 = vadd.f32 0.0, %v7202
        %v7204 = vpop.f32.mrb[0].mxu0
        %7205 = vmatprep.mubr.f32.mxu0 0.0
        %7206 = vmatmul.mubr.f32.gmra.mrb[0].mxu0 %v6662
        %v7207 = vpop.f32.mrb[0].mxu0
        %v7208 = vadd.f32 0.0, %v7207
        %v7209 = vpop.f32.mrb[0].mxu0
        %7210 = vmatprep.mubr.f32.mxu0 0.0
        %7211 = vmatmul.mubr.f32.gmra.mrb[0].mxu0 %v6665
        %v7212 = vpop.f32.mrb[0].mxu0
        %v7213 = vadd.f32 0.0, %v7212
        %v7214 = vpop.f32.mrb[0].mxu0
        %7215 = vmatprep.mubr.f32.mxu0 0.0
        %7216 = vmatmul.mubr.f32.gmra.mrb[0].mxu0 %v6668
        %v7217 = vpop.f32.mrb[0].mxu0
        %v7218 = vadd.f32 0.0, %v7217
        %v7219 = vpop.f32.mrb[0].mxu0
        %7220 = vmatprep.mubr.f32.mxu0 0.0
        %7221 = vmatmul.mubr.f32.gmra.mrb[0].mxu0 %v6671
        %v7222 = vpop.f32.mrb[0].mxu0
        %v7223 = vadd.f32 0.0, %v7222
        %v7224 = vpop.f32.mrb[0].mxu0
        %7225 = vmatprep.mubr.f32.mxu0 0.0
        %7226 = vmatmul.mubr.f32.gmra.mrb[0].mxu0 %v6674
        %v7227 = vpop.f32.mrb[0].mxu0
        %v7228 = vadd.f32 0.0, %v7227
        %v7229 = vpop.f32.mrb[0].mxu0
        %7230 = vmatprep.mubr.f32.mxu0 0.0
        %7231 = vmatmul.mubr.f32.gmra.mrb[0].mxu0 %v6677
        %v7232 = vpop.f32.mrb[0].mxu0
        %v7233 = vadd.f32 0.0, %v7232
        %v7234 = vpop.f32.mrb[0].mxu0
        %7235 = vmatprep.mubr.f32.mxu0 0.0
        %7236 = vmatmul.mubr.f32.gmra.mrb[0].mxu0 %v6680
        %v7237 = vpop.f32.mrb[0].mxu0
        %v7238 = vadd.f32 0.0, %v7237
        %v7239 = vpop.f32.mrb[0].mxu0
        %7240 = vmatprep.mubr.f32.mxu0 0.0
        %7241 = vmatmul.mubr.f32.gmra.mrb[0].mxu0 %v6683
        %v7242 = vpop.f32.mrb[0].mxu0
        %v7243 = vadd.f32 0.0, %v7242
        %v7244 = vpop.f32.mrb[0].mxu0
        %7245 = vmatprep.mubr.f32.mxu0 0.0
        %7246 = vmatmul.mubr.f32.gmra.mrb[0].mxu0 %v6686
        %v7247 = vpop.f32.mrb[0].mxu0
        %v7248 = vadd.f32 0.0, %v7247
        %v7249 = vpop.f32.mrb[0].mxu0
        %7250 = vmatprep.mubr.f32.mxu0 0.0
        %7251 = vmatmul.mubr.f32.gmra.mrb[0].mxu0 %v6689
        %v7252 = vpop.f32.mrb[0].mxu0
        %v7253 = vadd.f32 0.0, %v7252
        %v7254 = vpop.f32.mrb[0].mxu0
        %7255 = vmatprep.mubr.f32.mxu0 0.0
        %7256 = vmatmul.mubr.f32.gmra.mrb[0].mxu0 %v6692
        %v7257 = vpop.f32.mrb[0].mxu0
        %v7258 = vadd.f32 0.0, %v7257
        %v7259 = vpop.f32.mrb[0].mxu0
        %7260 = vmatprep.mubr.f32.mxu0 0.0
        %7261 = vmatmul.mubr.f32.gmra.mrb[0].mxu0 %v6695
        %v7262 = vpop.f32.mrb[0].mxu0
        %v7263 = vadd.f32 0.0, %v7262
        %v7264 = vpop.f32.mrb[0].mxu0
        %7265 = vmatprep.mubr.f32.mxu0 0.0
        %7266 = vmatmul.mubr.f32.gmra.mrb[0].mxu0 %v6698
        %v7267 = vpop.f32.mrb[0].mxu0
        %v7268 = vadd.f32 0.0, %v7267
        %v7269 = vpop.f32.mrb[0].mxu0
        %7270 = vmatprep.mubr.f32.mxu0 0.0
        %7271 = vmatmul.mubr.f32.gmra.mrb[0].mxu0 %v6701
        %v7272 = vpop.f32.mrb[0].mxu0
        %v7273 = vadd.f32 0.0, %v7272
        %v7274 = vpop.f32.mrb[0].mxu0
        %7275 = vmatprep.mubr.f32.mxu0 0.0
        %7276 = vmatmul.mubr.f32.gmra.mrb[0].mxu0 %v6704
        %v7277 = vpop.f32.mrb[0].mxu0
        %v7278 = vadd.f32 0.0, %v7277
        %v7279 = vpop.f32.mrb[0].mxu0
        %7280 = vmatprep.mubr.f32.mxu0 0.0
        %7281 = vmatmul.mubr.f32.gmra.mrb[0].mxu0 %v6707
        %v7282 = vpop.f32.mrb[0].mxu0
        %v7283 = vadd.f32 0.0, %v7282
        %v7284 = vpop.f32.mrb[0].mxu0
        %7285 = vmatprep.mubr.f32.mxu0 0.0
        %7286 = vmatmul.mubr.f32.gmra.mrb[0].mxu0 %v6710
        %v7287 = vpop.f32.mrb[0].mxu0
        %v7288 = vadd.f32 0.0, %v7287
        %v7289 = vpop.f32.mrb[0].mxu0
        %7290 = vmatprep.mubr.f32.mxu0 0.0
        %7291 = vmatmul.mubr.f32.gmra.mrb[0].mxu0 %v6713
        %v7292 = vpop.f32.mrb[0].mxu0
        %v7293 = vadd.f32 0.0, %v7292
        %v7294 = vpop.f32.mrb[0].mxu0
        %7295 = vmatprep.mubr.f32.mxu0 0.0
        %7296 = vmatmul.mubr.f32.gmra.mrb[0].mxu0 %v6716
        %v7297 = vpop.f32.mrb[0].mxu0
        %v7298 = vadd.f32 0.0, %v7297
        %v7299 = vpop.f32.mrb[0].mxu0
        %7300 = vmatprep.mubr.f32.mxu0 0.0
        %7301 = vmatmul.mubr.f32.gmra.mrb[0].mxu0 %v6719
        %v7302 = vpop.f32.mrb[0].mxu0
        %v7303 = vadd.f32 0.0, %v7302
        %v7304 = vpop.f32.mrb[0].mxu0
        %7305 = vmatprep.mubr.f32.mxu0 0.0
        %7306 = vmatmul.mubr.f32.gmra.mrb[0].mxu0 %v6722
        %v7307 = vpop.f32.mrb[0].mxu0
        %v7308 = vadd.f32 0.0, %v7307
        %v7309 = vpop.f32.mrb[0].mxu0
        %7310 = vmatprep.mubr.f32.mxu0 0.0
        %7311 = vmatmul.mubr.f32.gmra.mrb[0].mxu0 %v6725
        %v7312 = vpop.f32.mrb[0].mxu0
        %v7313 = vadd.f32 0.0, %v7312
        %v7314 = vpop.f32.mrb[0].mxu0
        %7315 = vmatprep.mubr.f32.mxu0 0.0
        %7316 = vmatmul.mubr.f32.gmra.mrb[0].mxu0 %v6728
        %v7317 = vpop.f32.mrb[0].mxu0
        %v7318 = vadd.f32 0.0, %v7317
        %v7319 = vpop.f32.mrb[0].mxu0
        %7320 = vmatprep.mubr.f32.mxu0 0.0
        %7321 = vmatmul.mubr.f32.gmra.mrb[0].mxu0 %v6731
        %v7322 = vpop.f32.mrb[0].mxu0
        %v7323 = vadd.f32 0.0, %v7322
        %v7324 = vpop.f32.mrb[0].mxu0
        %7325 = vmatprep.mubr.f32.mxu0 0.0
        %7326 = vmatmul.mubr.f32.gmra.mrb[0].mxu0 %v6734
        %v7327 = vpop.f32.mrb[0].mxu0
        %v7328 = vadd.f32 0.0, %v7327
        %v7329 = vpop.f32.mrb[0].mxu0
        %7330 = vmatprep.mubr.f32.mxu0 0.0
        %7331 = vmatmul.mubr.f32.gmra.mrb[0].mxu0 %v6737
        %v7332 = vpop.f32.mrb[0].mxu0
        %v7333 = vadd.f32 0.0, %v7332
        %v7334 = vpop.f32.mrb[0].mxu0
        %7335 = vmatprep.mubr.f32.mxu0 0.0
        %7336 = vmatmul.mubr.f32.gmra.mrb[0].mxu0 %v6740
        %v7337 = vpop.f32.mrb[0].mxu0
        %v7338 = vadd.f32 0.0, %v7337
        %v7339 = vpop.f32.mrb[0].mxu0
        %7340 = vmatprep.mubr.f32.mxu0 0.0
        %7341 = vmatmul.mubr.f32.gmra.mrb[0].mxu0 %v6743
        %v7342 = vpop.f32.mrb[0].mxu0
        %v7343 = vadd.f32 0.0, %v7342
        %v7344 = vpop.f32.mrb[0].mxu0
        %7345 = vmatprep.mubr.f32.mxu0 0.0
        %7346 = vmatmul.mubr.f32.gmra.mrb[0].mxu0 %v6746
        %v7347 = vpop.f32.mrb[0].mxu0
        %v7348 = vadd.f32 0.0, %v7347
        %v7349 = vpop.f32.mrb[0].mxu0
        %7350 = vmatprep.mubr.f32.mxu0 0.0
        %7351 = vmatmul.mubr.f32.gmra.mrb[0].mxu0 %v6749
        %v7352 = vpop.f32.mrb[0].mxu0
        %v7353 = vadd.f32 0.0, %v7352
        %v7354 = vpop.f32.mrb[0].mxu0
        %7355 = vmatprep.mubr.f32.mxu0 0.0
        %7356 = vmatmul.mubr.f32.gmra.mrb[0].mxu0 %v6752
        %v7357 = vpop.f32.mrb[0].mxu0
        %v7358 = vadd.f32 0.0, %v7357
        %v7359 = vpop.f32.mrb[0].mxu0
        %7360 = vmatprep.mubr.f32.mxu0 0.0
        %7361 = vmatmul.mubr.f32.gmra.mrb[0].mxu0 %v6755
        %v7362 = vpop.f32.mrb[0].mxu0
        %v7363 = vadd.f32 0.0, %v7362
        %v7364 = vpop.f32.mrb[0].mxu0
        %7365 = vmatprep.mubr.f32.mxu0 0.0
        %7366 = vmatmul.mubr.f32.gmra.mrb[0].mxu0 %v6758
        %v7367 = vpop.f32.mrb[0].mxu0
        %v7368 = vadd.f32 0.0, %v7367
        %v7369 = vpop.f32.mrb[0].mxu0
        %7370 = vmatprep.mubr.f32.mxu0 0.0
        %7371 = vmatmul.mubr.f32.gmra.mrb[0].mxu0 %v6761
        %v7372 = vpop.f32.mrb[0].mxu0
        %v7373 = vadd.f32 0.0, %v7372
        %v7374 = vpop.f32.mrb[0].mxu0
        %7375 = vmatprep.mubr.f32.mxu0 0.0
        %7376 = vmatmul.mubr.f32.gmra.mrb[0].mxu0 %v6764
        %v7377 = vpop.f32.mrb[0].mxu0
        %v7378 = vadd.f32 0.0, %v7377
        %v7379 = vpop.f32.mrb[0].mxu0
        %7380 = vmatprep.mubr.f32.mxu0 0.0
        %7381 = vmatmul.mubr.f32.gmra.mrb[0].mxu0 %v6767
        %v7382 = vpop.f32.mrb[0].mxu0
        %v7383 = vadd.f32 0.0, %v7382
        %v7384 = vpop.f32.mrb[0].mxu0
        %7385 = vmatprep.mubr.f32.mxu0 0.0
        %7386 = vmatmul.mubr.f32.gmra.mrb[0].mxu0 %v6770
        %v7387 = vpop.f32.mrb[0].mxu0
        %v7388 = vadd.f32 0.0, %v7387
        %v7389 = vpop.f32.mrb[0].mxu0
        %7390 = vmatprep.mubr.f32.mxu0 0.0
        %7391 = vmatmul.mubr.f32.gmra.mrb[0].mxu0 %v6773
        %v7392 = vpop.f32.mrb[0].mxu0
        %v7393 = vadd.f32 0.0, %v7392
        %v7394 = vpop.f32.mrb[0].mxu0
        %7395 = vmatprep.mubr.f32.mxu0 0.0
        %7396 = vmatmul.mubr.f32.gmra.mrb[0].mxu0 %v6776
        %v7397 = vpop.f32.mrb[0].mxu0
        %v7398 = vadd.f32 0.0, %v7397
        %v7399 = vpop.f32.mrb[0].mxu0
        %7400 = vmatprep.mubr.f32.mxu0 0.0
        %7401 = vmatmul.mubr.f32.gmra.mrb[0].mxu0 %v6779
        %v7402 = vpop.f32.mrb[0].mxu0
        %v7403 = vadd.f32 0.0, %v7402
        %v7404 = vpop.f32.mrb[0].mxu0
        %7405 = vmatprep.mubr.f32.mxu0 0.0
        %7406 = vmatmul.mubr.f32.gmra.mrb[0].mxu0 %v6782
        %v7407 = vpop.f32.mrb[0].mxu0
        %v7408 = vadd.f32 0.0, %v7407
        %v7409 = vpop.f32.mrb[0].mxu0
        %7410 = vmatprep.mubr.f32.mxu0 0.0
        %7411 = vmatmul.mubr.f32.gmra.mrb[0].mxu0 %v6785
        %v7412 = vpop.f32.mrb[0].mxu0
        %v7413 = vadd.f32 0.0, %v7412
        %v7414 = vpop.f32.mrb[0].mxu0
        %7415 = vmatprep.mubr.f32.mxu0 0.0
        %7416 = vmatmul.mubr.f32.gmra.mrb[0].mxu0 %v6788
        %v7417 = vpop.f32.mrb[0].mxu0
        %v7418 = vadd.f32 0.0, %v7417
        %v7419 = vpop.f32.mrb[0].mxu0
        %7420 = vmatprep.mubr.f32.mxu0 0.0
        %7421 = vmatmul.mubr.f32.gmra.mrb[0].mxu0 %v6791
        %v7422 = vpop.f32.mrb[0].mxu0
        %v7423 = vadd.f32 0.0, %v7422
        %v7424 = vpop.f32.mrb[0].mxu0
        %7425 = vmatprep.mubr.f32.mxu0 0.0
        %7426 = vmatmul.mubr.f32.gmra.mrb[0].mxu0 %v6794
        %v7427 = vpop.f32.mrb[0].mxu0
        %v7428 = vadd.f32 0.0, %v7427
        %v7429 = vpop.f32.mrb[0].mxu0
        %7430 = vmatprep.mubr.f32.mxu0 0.0
        %7431 = vmatmul.mubr.f32.gmra.mrb[0].mxu0 %v6797
        %v7432 = vpop.f32.mrb[0].mxu0
        %v7433 = vadd.f32 0.0, %v7432
        %v7434 = vpop.f32.mrb[0].mxu0
        %7435 = vmatprep.mubr.f32.mxu0 0.0
        %7436 = vmatmul.mubr.f32.gmra.mrb[0].mxu0 %v6800
        %v7437 = vpop.f32.mrb[0].mxu0
        %v7438 = vadd.f32 0.0, %v7437
        %v7439 = vpop.f32.mrb[0].mxu0
        %7440 = vmatprep.mubr.f32.mxu0 0.0
        %7441 = vmatmul.mubr.f32.gmra.mrb[0].mxu0 %v6803
        %v7442 = vpop.f32.mrb[0].mxu0
        %v7443 = vadd.f32 0.0, %v7442
        %v7444 = vpop.f32.mrb[0].mxu0
        %7445 = vmatprep.mubr.f32.mxu0 0.0
        %7446 = vmatmul.mubr.f32.gmra.mrb[0].mxu0 %v6806
        %v7447 = vpop.f32.mrb[0].mxu0
        %v7448 = vadd.f32 0.0, %v7447
        %v7449 = vpop.f32.mrb[0].mxu0
        %7450 = vmatprep.mubr.f32.mxu0 0.0
        %7451 = vmatmul.mubr.f32.gmra.mrb[0].mxu0 %v6809
        %v7452 = vpop.f32.mrb[0].mxu0
        %v7453 = vadd.f32 0.0, %v7452
        %v7454 = vpop.f32.mrb[0].mxu0
        %7455 = vmatprep.mubr.f32.mxu0 0.0
        %7456 = vmatmul.mubr.f32.gmra.mrb[0].mxu0 %v6812
        %v7457 = vpop.f32.mrb[0].mxu0
        %v7458 = vadd.f32 0.0, %v7457
        %v7459 = vpop.f32.mrb[0].mxu0
        %7460 = vmatprep.mubr.f32.mxu0 0.0
        %7461 = vmatmul.mubr.f32.gmra.mrb[0].mxu0 %v6815
        %v7462 = vpop.f32.mrb[0].mxu0
        %v7463 = vadd.f32 0.0, %v7462
        %v7464 = vpop.f32.mrb[0].mxu0
        %7465 = vmatprep.mubr.f32.mxu0 0.0
        %7466 = vmatmul.mubr.f32.gmra.mrb[0].mxu0 %v6818
        %v7467 = vpop.f32.mrb[0].mxu0
        %v7468 = vadd.f32 0.0, %v7467
        %v7469 = vpop.f32.mrb[0].mxu0
        %7470 = vmatprep.mubr.f32.mxu0 0.0
        %7471 = vmatmul.mubr.f32.gmra.mrb[0].mxu0 %v6821
        %v7472 = vpop.f32.mrb[0].mxu0
        %v7473 = vadd.f32 0.0, %v7472
        %v7474 = vpop.f32.mrb[0].mxu0
        %7475 = vmatprep.mubr.f32.mxu0 0.0
        %7476 = vmatmul.mubr.f32.gmra.mrb[0].mxu0 %v6824
        %v7477 = vpop.f32.mrb[0].mxu0
        %v7478 = vadd.f32 0.0, %v7477
        %v7479 = vpop.f32.mrb[0].mxu0
        %7480 = vmatprep.mubr.f32.mxu0 0.0
        %7481 = vmatmul.mubr.f32.gmra.mrb[0].mxu0 %v6827
        %v7482 = vpop.f32.mrb[0].mxu0
        %v7483 = vadd.f32 0.0, %v7482
        %v7484 = vpop.f32.mrb[0].mxu0
        %7485 = vmatprep.mubr.f32.mxu0 0.0
        %7486 = vmatmul.mubr.f32.gmra.mrb[0].mxu0 %v6830
        %v7487 = vpop.f32.mrb[0].mxu0
        %v7488 = vadd.f32 0.0, %v7487
        %v7489 = vpop.f32.mrb[0].mxu0
        %7490 = vmatprep.mubr.f32.mxu0 0.0
        %7491 = vmatmul.mubr.f32.gmra.mrb[0].mxu0 %v6833
        %v7492 = vpop.f32.mrb[0].mxu0
        %v7493 = vadd.f32 0.0, %v7492
        %v7494 = vpop.f32.mrb[0].mxu0
        %7495 = vmatprep.mubr.f32.mxu0 0.0
        %7496 = vmatmul.mubr.f32.gmra.mrb[0].mxu0 %v6836
        %v7497 = vpop.f32.mrb[0].mxu0
        %v7498 = vadd.f32 0.0, %v7497
        %v7499 = vpop.f32.mrb[0].mxu0
        %7500 = vmatprep.mubr.f32.mxu0 0.0
        %7501 = vmatmul.mubr.f32.gmra.mrb[0].mxu0 %v6839
        %v7502 = vpop.f32.mrb[0].mxu0
        %v7503 = vadd.f32 0.0, %v7502
        %v7504 = vpop.f32.mrb[0].mxu0
        %7505 = vmatprep.mubr.f32.mxu0 0.0
        %7506 = vmatmul.mubr.f32.gmra.mrb[0].mxu0 %v6842
        %v7507 = vpop.f32.mrb[0].mxu0
        %v7508 = vadd.f32 0.0, %v7507
        %v7509 = vpop.f32.mrb[0].mxu0
        %7510 = vmatprep.mubr.f32.mxu0 0.0
        %7511 = vmatmul.mubr.f32.gmra.mrb[0].mxu0 %v6845
        %v7512 = vpop.f32.mrb[0].mxu0
        %v7513 = vadd.f32 0.0, %v7512
        %v7514 = vpop.f32.mrb[0].mxu0
        %7515 = vmatprep.mubr.f32.mxu0 0.0
        %7516 = vmatmul.mubr.f32.gmra.mrb[0].mxu0 %v6848
        %v7517 = vpop.f32.mrb[0].mxu0
        %v7518 = vadd.f32 0.0, %v7517
        %v7519 = vpop.f32.mrb[0].mxu0
        %7520 = vmatprep.mubr.f32.mxu0 0.0
        %7521 = vmatmul.mubr.f32.gmra.mrb[0].mxu0 %v6851
        %v7522 = vpop.f32.mrb[0].mxu0
        %v7523 = vadd.f32 0.0, %v7522
        %v7524 = vpop.f32.mrb[0].mxu0
        %7525 = vmatprep.mubr.f32.mxu0 0.0
        %7526 = vmatmul.mubr.f32.gmra.mrb[0].mxu0 %v6854
        %v7527 = vpop.f32.mrb[0].mxu0
        %v7528 = vadd.f32 0.0, %v7527
        %v7529 = vpop.f32.mrb[0].mxu0
        %7530 = vmatprep.mubr.f32.mxu0 0.0
        %7531 = vmatmul.mubr.f32.gmra.mrb[0].mxu0 %v6857
        %v7532 = vpop.f32.mrb[0].mxu0
        %v7533 = vadd.f32 0.0, %v7532
        %v7534 = vpop.f32.mrb[0].mxu0
        %7535 = vmatprep.mubr.f32.mxu0 0.0
        %7536 = vmatmul.mubr.f32.gmra.mrb[0].mxu0 %v6860
        %v7537 = vpop.f32.mrb[0].mxu0
        %v7538 = vadd.f32 0.0, %v7537
        %v7539 = vpop.f32.mrb[0].mxu0
        %7540 = vmatprep.mubr.f32.mxu0 0.0
        %7541 = vmatmul.mubr.f32.gmra.mrb[0].mxu0 %v6863
        %v7542 = vpop.f32.mrb[0].mxu0
        %v7543 = vadd.f32 0.0, %v7542
        %v7544 = vpop.f32.mrb[0].mxu0
        %7545 = vmatprep.mubr.f32.mxu0 0.0
        %7546 = vmatmul.mubr.f32.gmra.mrb[0].mxu0 %v6866
        %v7547 = vpop.f32.mrb[0].mxu0
        %v7548 = vadd.f32 0.0, %v7547
        %v7549 = vpop.f32.mrb[0].mxu0
        %7550 = vmatprep.mubr.f32.mxu0 0.0
        %7551 = vmatmul.mubr.f32.gmra.mrb[0].mxu0 %v6869
        %v7552 = vpop.f32.mrb[0].mxu0
        %v7553 = vadd.f32 0.0, %v7552
        %v7554 = vpop.f32.mrb[0].mxu0
        %7555 = vmatprep.mubr.f32.mxu0 0.0
        %7556 = vmatmul.mubr.f32.gmra.mrb[0].mxu0 %v6872
        %v7557 = vpop.f32.mrb[0].mxu0
        %v7558 = vadd.f32 0.0, %v7557
        %v7559 = vpop.f32.mrb[0].mxu0
        %7560 = vmatprep.mubr.f32.mxu0 0.0
        %7561 = vmatmul.mubr.f32.gmra.mrb[0].mxu0 %v6875
        %v7562 = vpop.f32.mrb[0].mxu0
        %v7563 = vadd.f32 0.0, %v7562
        %v7564 = vpop.f32.mrb[0].mxu0
        %7565 = vmatprep.mubr.f32.mxu0 0.0
        %7566 = vmatmul.mubr.f32.gmra.mrb[0].mxu0 %v6878
        %v7567 = vpop.f32.mrb[0].mxu0
        %v7568 = vadd.f32 0.0, %v7567
        %v7569 = vpop.f32.mrb[0].mxu0
        %7570 = vmatprep.mubr.f32.mxu0 0.0
        %7571 = vmatmul.mubr.f32.gmra.mrb[0].mxu0 %v6881
        %v7572 = vpop.f32.mrb[0].mxu0
        %v7573 = vadd.f32 0.0, %v7572
        %v7574 = vpop.f32.mrb[0].mxu0
        %7575 = vmatprep.mubr.f32.mxu0 0.0
        %7576 = vmatmul.mubr.f32.gmra.mrb[0].mxu0 %v6884
        %v7577 = vpop.f32.mrb[0].mxu0
        %v7578 = vadd.f32 0.0, %v7577
        %v7579 = vpop.f32.mrb[0].mxu0
        %7580 = vmatprep.mubr.f32.mxu0 0.0
        %7581 = vmatmul.mubr.f32.gmra.mrb[0].mxu0 %v6887
        %v7582 = vpop.f32.mrb[0].mxu0
        %v7583 = vadd.f32 0.0, %v7582
        %v7584 = vpop.f32.mrb[0].mxu0
        %7585 = vmatprep.mubr.f32.mxu0 0.0
        %7586 = vmatmul.mubr.f32.gmra.mrb[0].mxu0 %v6890
        %v7587 = vpop.f32.mrb[0].mxu0
        %v7588 = vadd.f32 0.0, %v7587
        %v7589 = vpop.f32.mrb[0].mxu0
        %7590 = vmatprep.mubr.f32.mxu0 0.0
        %7591 = vmatmul.mubr.f32.gmra.mrb[0].mxu0 %v6893
        %v7592 = vpop.f32.mrb[0].mxu0
        %v7593 = vadd.f32 0.0, %v7592
        %v7594 = vpop.f32.mrb[0].mxu0
        %7595 = vmatprep.mubr.f32.mxu0 0.0
        %7596 = vmatmul.mubr.f32.gmra.mrb[0].mxu0 %v6896
        %v7597 = vpop.f32.mrb[0].mxu0
        %v7598 = vadd.f32 0.0, %v7597
        %v7599 = vpop.f32.mrb[0].mxu0
        %7600 = vmatprep.mubr.f32.mxu0 0.0
        %7601 = vmatmul.mubr.f32.gmra.mrb[0].mxu0 %v6899
        %v7602 = vpop.f32.mrb[0].mxu0
        %v7603 = vadd.f32 0.0, %v7602
        %v7604 = vpop.f32.mrb[0].mxu0
        %7605 = vmatprep.mubr.f32.mxu0 0.0
        %7606 = vmatmul.mubr.f32.gmra.mrb[0].mxu0 %v6902
        %v7607 = vpop.f32.mrb[0].mxu0
        %v7608 = vadd.f32 0.0, %v7607
        %v7609 = vpop.f32.mrb[0].mxu0
        %7610 = vmatprep.mubr.f32.mxu0 0.0
        %7611 = vmatmul.mubr.f32.gmra.mrb[0].mxu0 %v6905
        %v7612 = vpop.f32.mrb[0].mxu0
        %v7613 = vadd.f32 0.0, %v7612
        %v7614 = vpop.f32.mrb[0].mxu0
        %7615 = vdwg.mxu0
        %v7616 = vld [vmem:[%s4] sm:$0x1]
        %v7617 = vlaneseq
        %v7618 = vshrl.u32 %v7617, 7
        %v7619 = vsub.s32 0, %v7618
        %v7620 = vrot.slane %v7616, %v7619
        %v7621 = vmul.f32 %v6978, %v7620
        %v7622 = vmul.f32 %v6983, %v7620
        %v7623 = vmul.f32 %v6988, %v7620
        %v7624 = vmul.f32 %v6993, %v7620
        %v7625 = vmul.f32 %v6998, %v7620
        %v7626 = vmul.f32 %v7003, %v7620
        %v7627 = vmul.f32 %v7008, %v7620
        %v7628 = vmul.f32 %v7013, %v7620
        %v7629 = vmul.f32 %v7018, %v7620
        %v7630 = vmul.f32 %v7023, %v7620
        %v7631 = vmul.f32 %v7028, %v7620
        %v7632 = vmul.f32 %v7033, %v7620
        %v7633 = vmul.f32 %v7038, %v7620
        %v7634 = vmul.f32 %v7043, %v7620
        %v7635 = vmul.f32 %v7048, %v7620
        %v7636 = vmul.f32 %v7053, %v7620
        %v7637 = vmul.f32 %v7058, %v7620
        %v7638 = vmul.f32 %v7063, %v7620
        %v7639 = vmul.f32 %v7068, %v7620
        %v7640 = vmul.f32 %v7073, %v7620
        %v7641 = vmul.f32 %v7078, %v7620
        %v7642 = vmul.f32 %v7083, %v7620
        %v7643 = vmul.f32 %v7088, %v7620
        %v7644 = vmul.f32 %v7093, %v7620
        %v7645 = vmul.f32 %v7098, %v7620
        %v7646 = vmul.f32 %v7103, %v7620
        %v7647 = vmul.f32 %v7108, %v7620
        %v7648 = vmul.f32 %v7113, %v7620
        %v7649 = vmul.f32 %v7118, %v7620
        %v7650 = vmul.f32 %v7123, %v7620
        %v7651 = vmul.f32 %v7128, %v7620
        %v7652 = vmul.f32 %v7133, %v7620
        %v7653 = vmul.f32 %v7138, %v7620
        %v7654 = vmul.f32 %v7143, %v7620
        %v7655 = vmul.f32 %v7148, %v7620
        %v7656 = vmul.f32 %v7153, %v7620
        %v7657 = vmul.f32 %v7158, %v7620
        %v7658 = vmul.f32 %v7163, %v7620
        %v7659 = vmul.f32 %v7168, %v7620
        %v7660 = vmul.f32 %v7173, %v7620
        %v7661 = vmul.f32 %v7178, %v7620
        %v7662 = vmul.f32 %v7183, %v7620
        %v7663 = vmul.f32 %v7188, %v7620
        %v7664 = vmul.f32 %v7193, %v7620
        %v7665 = vmul.f32 %v7198, %v7620
        %v7666 = vmul.f32 %v7203, %v7620
        %v7667 = vmul.f32 %v7208, %v7620
        %v7668 = vmul.f32 %v7213, %v7620
        %v7669 = vmul.f32 %v7218, %v7620
        %v7670 = vmul.f32 %v7223, %v7620
        %v7671 = vmul.f32 %v7228, %v7620
        %v7672 = vmul.f32 %v7233, %v7620
        %v7673 = vmul.f32 %v7238, %v7620
        %v7674 = vmul.f32 %v7243, %v7620
        %v7675 = vmul.f32 %v7248, %v7620
        %v7676 = vmul.f32 %v7253, %v7620
        %v7677 = vmul.f32 %v7258, %v7620
        %v7678 = vmul.f32 %v7263, %v7620
        %v7679 = vmul.f32 %v7268, %v7620
        %v7680 = vmul.f32 %v7273, %v7620
        %v7681 = vmul.f32 %v7278, %v7620
        %v7682 = vmul.f32 %v7283, %v7620
        %v7683 = vmul.f32 %v7288, %v7620
        %v7684 = vmul.f32 %v7293, %v7620
        %v7685 = vmul.f32 %v7298, %v7620
        %v7686 = vmul.f32 %v7303, %v7620
        %v7687 = vmul.f32 %v7308, %v7620
        %v7688 = vmul.f32 %v7313, %v7620
        %v7689 = vmul.f32 %v7318, %v7620
        %v7690 = vmul.f32 %v7323, %v7620
        %v7691 = vmul.f32 %v7328, %v7620
        %v7692 = vmul.f32 %v7333, %v7620
        %v7693 = vmul.f32 %v7338, %v7620
        %v7694 = vmul.f32 %v7343, %v7620
        %v7695 = vmul.f32 %v7348, %v7620
        %v7696 = vmul.f32 %v7353, %v7620
        %v7697 = vmul.f32 %v7358, %v7620
        %v7698 = vmul.f32 %v7363, %v7620
        %v7699 = vmul.f32 %v7368, %v7620
        %v7700 = vmul.f32 %v7373, %v7620
        %v7701 = vmul.f32 %v7378, %v7620
        %v7702 = vmul.f32 %v7383, %v7620
        %v7703 = vmul.f32 %v7388, %v7620
        %v7704 = vmul.f32 %v7393, %v7620
        %v7705 = vmul.f32 %v7398, %v7620
        %v7706 = vmul.f32 %v7403, %v7620
        %v7707 = vmul.f32 %v7408, %v7620
        %v7708 = vmul.f32 %v7413, %v7620
        %v7709 = vmul.f32 %v7418, %v7620
        %v7710 = vmul.f32 %v7423, %v7620
        %v7711 = vmul.f32 %v7428, %v7620
        %v7712 = vmul.f32 %v7433, %v7620
        %v7713 = vmul.f32 %v7438, %v7620
        %v7714 = vmul.f32 %v7443, %v7620
        %v7715 = vmul.f32 %v7448, %v7620
        %v7716 = vmul.f32 %v7453, %v7620
        %v7717 = vmul.f32 %v7458, %v7620
        %v7718 = vmul.f32 %v7463, %v7620
        %v7719 = vmul.f32 %v7468, %v7620
        %v7720 = vmul.f32 %v7473, %v7620
        %v7721 = vmul.f32 %v7478, %v7620
        %v7722 = vmul.f32 %v7483, %v7620
        %v7723 = vmul.f32 %v7488, %v7620
        %v7724 = vmul.f32 %v7493, %v7620
        %v7725 = vmul.f32 %v7498, %v7620
        %v7726 = vmul.f32 %v7503, %v7620
        %v7727 = vmul.f32 %v7508, %v7620
        %v7728 = vmul.f32 %v7513, %v7620
        %v7729 = vmul.f32 %v7518, %v7620
        %v7730 = vmul.f32 %v7523, %v7620
        %v7731 = vmul.f32 %v7528, %v7620
        %v7732 = vmul.f32 %v7533, %v7620
        %v7733 = vmul.f32 %v7538, %v7620
        %v7734 = vmul.f32 %v7543, %v7620
        %v7735 = vmul.f32 %v7548, %v7620
        %v7736 = vmul.f32 %v7553, %v7620
        %v7737 = vmul.f32 %v7558, %v7620
        %v7738 = vmul.f32 %v7563, %v7620
        %v7739 = vmul.f32 %v7568, %v7620
        %v7740 = vmul.f32 %v7573, %v7620
        %v7741 = vmul.f32 %v7578, %v7620
        %v7742 = vmul.f32 %v7583, %v7620
        %v7743 = vmul.f32 %v7588, %v7620
        %v7744 = vmul.f32 %v7593, %v7620
        %v7745 = vmul.f32 %v7598, %v7620
        %v7746 = vmul.f32 %v7603, %v7620
        %v7747 = vmul.f32 %v7608, %v7620
        %v7748 = vmul.f32 %v7613, %v7620
        %v7749 = vld [vmem:[%s4 + $0x1] sm:$0x1]
        %v7750 = vlaneseq
        %v7751 = vshrl.u32 %v7750, 7
        %v7752 = vsub.s32 0, %v7751
        %v7753 = vrot.slane %v7749, %v7752
        %v7754 = vadd.f32 %v7621, %v7753
        %v7755 = vadd.f32 %v7622, %v7753
        %v7756 = vadd.f32 %v7623, %v7753
        %v7757 = vadd.f32 %v7624, %v7753
        %v7758 = vadd.f32 %v7625, %v7753
        %v7759 = vadd.f32 %v7626, %v7753
        %v7760 = vadd.f32 %v7627, %v7753
        %v7761 = vadd.f32 %v7628, %v7753
        %v7762 = vadd.f32 %v7629, %v7753
        %v7763 = vadd.f32 %v7630, %v7753
        %v7764 = vadd.f32 %v7631, %v7753
        %v7765 = vadd.f32 %v7632, %v7753
        %v7766 = vadd.f32 %v7633, %v7753
        %v7767 = vadd.f32 %v7634, %v7753
        %v7768 = vadd.f32 %v7635, %v7753
        %v7769 = vadd.f32 %v7636, %v7753
        %v7770 = vadd.f32 %v7637, %v7753
        %v7771 = vadd.f32 %v7638, %v7753
        %v7772 = vadd.f32 %v7639, %v7753
        %v7773 = vadd.f32 %v7640, %v7753
        %v7774 = vadd.f32 %v7641, %v7753
        %v7775 = vadd.f32 %v7642, %v7753
        %v7776 = vadd.f32 %v7643, %v7753
        %v7777 = vadd.f32 %v7644, %v7753
        %v7778 = vadd.f32 %v7645, %v7753
        %v7779 = vadd.f32 %v7646, %v7753
        %v7780 = vadd.f32 %v7647, %v7753
        %v7781 = vadd.f32 %v7648, %v7753
        %v7782 = vadd.f32 %v7649, %v7753
        %v7783 = vadd.f32 %v7650, %v7753
        %v7784 = vadd.f32 %v7651, %v7753
        %v7785 = vadd.f32 %v7652, %v7753
        %v7786 = vadd.f32 %v7653, %v7753
        %v7787 = vadd.f32 %v7654, %v7753
        %v7788 = vadd.f32 %v7655, %v7753
        %v7789 = vadd.f32 %v7656, %v7753
        %v7790 = vadd.f32 %v7657, %v7753
        %v7791 = vadd.f32 %v7658, %v7753
        %v7792 = vadd.f32 %v7659, %v7753
        %v7793 = vadd.f32 %v7660, %v7753
        %v7794 = vadd.f32 %v7661, %v7753
        %v7795 = vadd.f32 %v7662, %v7753
        %v7796 = vadd.f32 %v7663, %v7753
        %v7797 = vadd.f32 %v7664, %v7753
        %v7798 = vadd.f32 %v7665, %v7753
        %v7799 = vadd.f32 %v7666, %v7753
        %v7800 = vadd.f32 %v7667, %v7753
        %v7801 = vadd.f32 %v7668, %v7753
        %v7802 = vadd.f32 %v7669, %v7753
        %v7803 = vadd.f32 %v7670, %v7753
        %v7804 = vadd.f32 %v7671, %v7753
        %v7805 = vadd.f32 %v7672, %v7753
        %v7806 = vadd.f32 %v7673, %v7753
        %v7807 = vadd.f32 %v7674, %v7753
        %v7808 = vadd.f32 %v7675, %v7753
        %v7809 = vadd.f32 %v7676, %v7753
        %v7810 = vadd.f32 %v7677, %v7753
        %v7811 = vadd.f32 %v7678, %v7753
        %v7812 = vadd.f32 %v7679, %v7753
        %v7813 = vadd.f32 %v7680, %v7753
        %v7814 = vadd.f32 %v7681, %v7753
        %v7815 = vadd.f32 %v7682, %v7753
        %v7816 = vadd.f32 %v7683, %v7753
        %v7817 = vadd.f32 %v7684, %v7753
        %v7818 = vadd.f32 %v7685, %v7753
        %v7819 = vadd.f32 %v7686, %v7753
        %v7820 = vadd.f32 %v7687, %v7753
        %v7821 = vadd.f32 %v7688, %v7753
        %v7822 = vadd.f32 %v7689, %v7753
        %v7823 = vadd.f32 %v7690, %v7753
        %v7824 = vadd.f32 %v7691, %v7753
        %v7825 = vadd.f32 %v7692, %v7753
        %v7826 = vadd.f32 %v7693, %v7753
        %v7827 = vadd.f32 %v7694, %v7753
        %v7828 = vadd.f32 %v7695, %v7753
        %v7829 = vadd.f32 %v7696, %v7753
        %v7830 = vadd.f32 %v7697, %v7753
        %v7831 = vadd.f32 %v7698, %v7753
        %v7832 = vadd.f32 %v7699, %v7753
        %v7833 = vadd.f32 %v7700, %v7753
        %v7834 = vadd.f32 %v7701, %v7753
        %v7835 = vadd.f32 %v7702, %v7753
        %v7836 = vadd.f32 %v7703, %v7753
        %v7837 = vadd.f32 %v7704, %v7753
        %v7838 = vadd.f32 %v7705, %v7753
        %v7839 = vadd.f32 %v7706, %v7753
        %v7840 = vadd.f32 %v7707, %v7753
        %v7841 = vadd.f32 %v7708, %v7753
        %v7842 = vadd.f32 %v7709, %v7753
        %v7843 = vadd.f32 %v7710, %v7753
        %v7844 = vadd.f32 %v7711, %v7753
        %v7845 = vadd.f32 %v7712, %v7753
        %v7846 = vadd.f32 %v7713, %v7753
        %v7847 = vadd.f32 %v7714, %v7753
        %v7848 = vadd.f32 %v7715, %v7753
        %v7849 = vadd.f32 %v7716, %v7753
        %v7850 = vadd.f32 %v7717, %v7753
        %v7851 = vadd.f32 %v7718, %v7753
        %v7852 = vadd.f32 %v7719, %v7753
        %v7853 = vadd.f32 %v7720, %v7753
        %v7854 = vadd.f32 %v7721, %v7753
        %v7855 = vadd.f32 %v7722, %v7753
        %v7856 = vadd.f32 %v7723, %v7753
        %v7857 = vadd.f32 %v7724, %v7753
        %v7858 = vadd.f32 %v7725, %v7753
        %v7859 = vadd.f32 %v7726, %v7753
        %v7860 = vadd.f32 %v7727, %v7753
        %v7861 = vadd.f32 %v7728, %v7753
        %v7862 = vadd.f32 %v7729, %v7753
        %v7863 = vadd.f32 %v7730, %v7753
        %v7864 = vadd.f32 %v7731, %v7753
        %v7865 = vadd.f32 %v7732, %v7753
        %v7866 = vadd.f32 %v7733, %v7753
        %v7867 = vadd.f32 %v7734, %v7753
        %v7868 = vadd.f32 %v7735, %v7753
        %v7869 = vadd.f32 %v7736, %v7753
        %v7870 = vadd.f32 %v7737, %v7753
        %v7871 = vadd.f32 %v7738, %v7753
        %v7872 = vadd.f32 %v7739, %v7753
        %v7873 = vadd.f32 %v7740, %v7753
        %v7874 = vadd.f32 %v7741, %v7753
        %v7875 = vadd.f32 %v7742, %v7753
        %v7876 = vadd.f32 %v7743, %v7753
        %v7877 = vadd.f32 %v7744, %v7753
        %v7878 = vadd.f32 %v7745, %v7753
        %v7879 = vadd.f32 %v7746, %v7753
        %v7880 = vadd.f32 %v7747, %v7753
        %v7881 = vadd.f32 %v7748, %v7753
        %v7882 = vmax.f32 %v7754, 0.0
        %v7883 = vmax.f32 %v7755, 0.0
        %v7884 = vmax.f32 %v7756, 0.0
        %v7885 = vmax.f32 %v7757, 0.0
        %v7886 = vmax.f32 %v7758, 0.0
        %v7887 = vmax.f32 %v7759, 0.0
        %v7888 = vmax.f32 %v7760, 0.0
        %v7889 = vmax.f32 %v7761, 0.0
        %v7890 = vmax.f32 %v7762, 0.0
        %v7891 = vmax.f32 %v7763, 0.0
        %v7892 = vmax.f32 %v7764, 0.0
        %v7893 = vmax.f32 %v7765, 0.0
        %v7894 = vmax.f32 %v7766, 0.0
        %v7895 = vmax.f32 %v7767, 0.0
        %v7896 = vmax.f32 %v7768, 0.0
        %v7897 = vmax.f32 %v7769, 0.0
        %v7898 = vmax.f32 %v7770, 0.0
        %v7899 = vmax.f32 %v7771, 0.0
        %v7900 = vmax.f32 %v7772, 0.0
        %v7901 = vmax.f32 %v7773, 0.0
        %v7902 = vmax.f32 %v7774, 0.0
        %v7903 = vmax.f32 %v7775, 0.0
        %v7904 = vmax.f32 %v7776, 0.0
        %v7905 = vmax.f32 %v7777, 0.0
        %v7906 = vmax.f32 %v7778, 0.0
        %v7907 = vmax.f32 %v7779, 0.0
        %v7908 = vmax.f32 %v7780, 0.0
        %v7909 = vmax.f32 %v7781, 0.0
        %v7910 = vmax.f32 %v7782, 0.0
        %v7911 = vmax.f32 %v7783, 0.0
        %v7912 = vmax.f32 %v7784, 0.0
        %v7913 = vmax.f32 %v7785, 0.0
        %v7914 = vmax.f32 %v7786, 0.0
        %v7915 = vmax.f32 %v7787, 0.0
        %v7916 = vmax.f32 %v7788, 0.0
        %v7917 = vmax.f32 %v7789, 0.0
        %v7918 = vmax.f32 %v7790, 0.0
        %v7919 = vmax.f32 %v7791, 0.0
        %v7920 = vmax.f32 %v7792, 0.0
        %v7921 = vmax.f32 %v7793, 0.0
        %v7922 = vmax.f32 %v7794, 0.0
        %v7923 = vmax.f32 %v7795, 0.0
        %v7924 = vmax.f32 %v7796, 0.0
        %v7925 = vmax.f32 %v7797, 0.0
        %v7926 = vmax.f32 %v7798, 0.0
        %v7927 = vmax.f32 %v7799, 0.0
        %v7928 = vmax.f32 %v7800, 0.0
        %v7929 = vmax.f32 %v7801, 0.0
        %v7930 = vmax.f32 %v7802, 0.0
        %v7931 = vmax.f32 %v7803, 0.0
        %v7932 = vmax.f32 %v7804, 0.0
        %v7933 = vmax.f32 %v7805, 0.0
        %v7934 = vmax.f32 %v7806, 0.0
        %v7935 = vmax.f32 %v7807, 0.0
        %v7936 = vmax.f32 %v7808, 0.0
        %v7937 = vmax.f32 %v7809, 0.0
        %v7938 = vmax.f32 %v7810, 0.0
        %v7939 = vmax.f32 %v7811, 0.0
        %v7940 = vmax.f32 %v7812, 0.0
        %v7941 = vmax.f32 %v7813, 0.0
        %v7942 = vmax.f32 %v7814, 0.0
        %v7943 = vmax.f32 %v7815, 0.0
        %v7944 = vmax.f32 %v7816, 0.0
        %v7945 = vmax.f32 %v7817, 0.0
        %v7946 = vmax.f32 %v7818, 0.0
        %v7947 = vmax.f32 %v7819, 0.0
        %v7948 = vmax.f32 %v7820, 0.0
        %v7949 = vmax.f32 %v7821, 0.0
        %v7950 = vmax.f32 %v7822, 0.0
        %v7951 = vmax.f32 %v7823, 0.0
        %v7952 = vmax.f32 %v7824, 0.0
        %v7953 = vmax.f32 %v7825, 0.0
        %v7954 = vmax.f32 %v7826, 0.0
        %v7955 = vmax.f32 %v7827, 0.0
        %v7956 = vmax.f32 %v7828, 0.0
        %v7957 = vmax.f32 %v7829, 0.0
        %v7958 = vmax.f32 %v7830, 0.0
        %v7959 = vmax.f32 %v7831, 0.0
        %v7960 = vmax.f32 %v7832, 0.0
        %v7961 = vmax.f32 %v7833, 0.0
        %v7962 = vmax.f32 %v7834, 0.0
        %v7963 = vmax.f32 %v7835, 0.0
        %v7964 = vmax.f32 %v7836, 0.0
        %v7965 = vmax.f32 %v7837, 0.0
        %v7966 = vmax.f32 %v7838, 0.0
        %v7967 = vmax.f32 %v7839, 0.0
        %v7968 = vmax.f32 %v7840, 0.0
        %v7969 = vmax.f32 %v7841, 0.0
        %v7970 = vmax.f32 %v7842, 0.0
        %v7971 = vmax.f32 %v7843, 0.0
        %v7972 = vmax.f32 %v7844, 0.0
        %v7973 = vmax.f32 %v7845, 0.0
        %v7974 = vmax.f32 %v7846, 0.0
        %v7975 = vmax.f32 %v7847, 0.0
        %v7976 = vmax.f32 %v7848, 0.0
        %v7977 = vmax.f32 %v7849, 0.0
        %v7978 = vmax.f32 %v7850, 0.0
        %v7979 = vmax.f32 %v7851, 0.0
        %v7980 = vmax.f32 %v7852, 0.0
        %v7981 = vmax.f32 %v7853, 0.0
        %v7982 = vmax.f32 %v7854, 0.0
        %v7983 = vmax.f32 %v7855, 0.0
        %v7984 = vmax.f32 %v7856, 0.0
        %v7985 = vmax.f32 %v7857, 0.0
        %v7986 = vmax.f32 %v7858, 0.0
        %v7987 = vmax.f32 %v7859, 0.0
        %v7988 = vmax.f32 %v7860, 0.0
        %v7989 = vmax.f32 %v7861, 0.0
        %v7990 = vmax.f32 %v7862, 0.0
        %v7991 = vmax.f32 %v7863, 0.0
        %v7992 = vmax.f32 %v7864, 0.0
        %v7993 = vmax.f32 %v7865, 0.0
        %v7994 = vmax.f32 %v7866, 0.0
        %v7995 = vmax.f32 %v7867, 0.0
        %v7996 = vmax.f32 %v7868, 0.0
        %v7997 = vmax.f32 %v7869, 0.0
        %v7998 = vmax.f32 %v7870, 0.0
        %v7999 = vmax.f32 %v7871, 0.0
        %v8000 = vmax.f32 %v7872, 0.0
        %v8001 = vmax.f32 %v7873, 0.0
        %v8002 = vmax.f32 %v7874, 0.0
        %v8003 = vmax.f32 %v7875, 0.0
        %v8004 = vmax.f32 %v7876, 0.0
        %v8005 = vmax.f32 %v7877, 0.0
        %v8006 = vmax.f32 %v7878, 0.0
        %v8007 = vmax.f32 %v7879, 0.0
        %v8008 = vmax.f32 %v7880, 0.0
        %v8009 = vmax.f32 %v7881, 0.0
        %vm8010 = vcmask 261120
        %8011 = vst.msk [vmem:[%s217] sm:$0xff] %vm8010, %v7882
        %8012 = vst.msk [vmem:[%s217 + $0x8] sm:$0xff] %vm8010, %v7883
        %8013 = vst.msk [vmem:[%s217 + $0x10] sm:$0xff] %vm8010, %v7884
        %8014 = vst.msk [vmem:[%s217 + $0x18] sm:$0xff] %vm8010, %v7885
        %8015 = vst.msk [vmem:[%s217 + $0x20] sm:$0xff] %vm8010, %v7886
        %8016 = vst.msk [vmem:[%s217 + $0x28] sm:$0xff] %vm8010, %v7887
        %8017 = vst.msk [vmem:[%s217 + $0x30] sm:$0xff] %vm8010, %v7888
        %8018 = vst.msk [vmem:[%s217 + $0x38] sm:$0xff] %vm8010, %v7889
        %8019 = vst.msk [vmem:[%s217 + $0x40] sm:$0xff] %vm8010, %v7890
        %8020 = vst.msk [vmem:[%s217 + $0x48] sm:$0xff] %vm8010, %v7891
        %8021 = vst.msk [vmem:[%s217 + $0x50] sm:$0xff] %vm8010, %v7892
        %8022 = vst.msk [vmem:[%s217 + $0x58] sm:$0xff] %vm8010, %v7893
        %8023 = vst.msk [vmem:[%s217 + $0x60] sm:$0xff] %vm8010, %v7894
        %8024 = vst.msk [vmem:[%s217 + $0x68] sm:$0xff] %vm8010, %v7895
        %8025 = vst.msk [vmem:[%s217 + $0x70] sm:$0xff] %vm8010, %v7896
        %8026 = vst.msk [vmem:[%s217 + $0x78] sm:$0xff] %vm8010, %v7897
        %8027 = vst.msk [vmem:[%s217 + $0x80] sm:$0xff] %vm8010, %v7898
        %8028 = vst.msk [vmem:[%s217 + $0x88] sm:$0xff] %vm8010, %v7899
        %8029 = vst.msk [vmem:[%s217 + $0x90] sm:$0xff] %vm8010, %v7900
        %8030 = vst.msk [vmem:[%s217 + $0x98] sm:$0xff] %vm8010, %v7901
        %8031 = vst.msk [vmem:[%s217 + $0xa0] sm:$0xff] %vm8010, %v7902
        %8032 = vst.msk [vmem:[%s217 + $0xa8] sm:$0xff] %vm8010, %v7903
        %8033 = vst.msk [vmem:[%s217 + $0xb0] sm:$0xff] %vm8010, %v7904
        %8034 = vst.msk [vmem:[%s217 + $0xb8] sm:$0xff] %vm8010, %v7905
        %8035 = vst.msk [vmem:[%s217 + $0xc0] sm:$0xff] %vm8010, %v7906
        %8036 = vst.msk [vmem:[%s217 + $0xc8] sm:$0xff] %vm8010, %v7907
        %8037 = vst.msk [vmem:[%s217 + $0xd0] sm:$0xff] %vm8010, %v7908
        %8038 = vst.msk [vmem:[%s217 + $0xd8] sm:$0xff] %vm8010, %v7909
        %8039 = vst.msk [vmem:[%s217 + $0xe0] sm:$0xff] %vm8010, %v7910
        %8040 = vst.msk [vmem:[%s217 + $0xe8] sm:$0xff] %vm8010, %v7911
        %8041 = vst.msk [vmem:[%s217 + $0xf0] sm:$0xff] %vm8010, %v7912
        %8042 = vst.msk [vmem:[%s217 + $0xf8] sm:$0xff] %vm8010, %v7913
        %8043 = vst.msk [vmem:[%s217 + $0x100] sm:$0xff] %vm8010, %v7914
        %8044 = vst.msk [vmem:[%s217 + $0x108] sm:$0xff] %vm8010, %v7915
        %8045 = vst.msk [vmem:[%s217 + $0x110] sm:$0xff] %vm8010, %v7916
        %8046 = vst.msk [vmem:[%s217 + $0x118] sm:$0xff] %vm8010, %v7917
        %8047 = vst.msk [vmem:[%s217 + $0x120] sm:$0xff] %vm8010, %v7918
        %8048 = vst.msk [vmem:[%s217 + $0x128] sm:$0xff] %vm8010, %v7919
        %8049 = vst.msk [vmem:[%s217 + $0x130] sm:$0xff] %vm8010, %v7920
        %8050 = vst.msk [vmem:[%s217 + $0x138] sm:$0xff] %vm8010, %v7921
        %8051 = vst.msk [vmem:[%s217 + $0x140] sm:$0xff] %vm8010, %v7922
        %8052 = vst.msk [vmem:[%s217 + $0x148] sm:$0xff] %vm8010, %v7923
        %8053 = vst.msk [vmem:[%s217 + $0x150] sm:$0xff] %vm8010, %v7924
        %8054 = vst.msk [vmem:[%s217 + $0x158] sm:$0xff] %vm8010, %v7925
        %8055 = vst.msk [vmem:[%s217 + $0x160] sm:$0xff] %vm8010, %v7926
        %8056 = vst.msk [vmem:[%s217 + $0x168] sm:$0xff] %vm8010, %v7927
        %8057 = vst.msk [vmem:[%s217 + $0x170] sm:$0xff] %vm8010, %v7928
        %8058 = vst.msk [vmem:[%s217 + $0x178] sm:$0xff] %vm8010, %v7929
        %8059 = vst.msk [vmem:[%s217 + $0x180] sm:$0xff] %vm8010, %v7930
        %8060 = vst.msk [vmem:[%s217 + $0x188] sm:$0xff] %vm8010, %v7931
        %8061 = vst.msk [vmem:[%s217 + $0x190] sm:$0xff] %vm8010, %v7932
        %8062 = vst.msk [vmem:[%s217 + $0x198] sm:$0xff] %vm8010, %v7933
        %8063 = vst.msk [vmem:[%s217 + $0x1a0] sm:$0xff] %vm8010, %v7934
        %8064 = vst.msk [vmem:[%s217 + $0x1a8] sm:$0xff] %vm8010, %v7935
        %8065 = vst.msk [vmem:[%s217 + $0x1b0] sm:$0xff] %vm8010, %v7936
        %8066 = vst.msk [vmem:[%s217 + $0x1b8] sm:$0xff] %vm8010, %v7937
        %8067 = vst.msk [vmem:[%s217 + $0x1c0] sm:$0xff] %vm8010, %v7938
        %8068 = vst.msk [vmem:[%s217 + $0x1c8] sm:$0xff] %vm8010, %v7939
        %8069 = vst.msk [vmem:[%s217 + $0x1d0] sm:$0xff] %vm8010, %v7940
        %8070 = vst.msk [vmem:[%s217 + $0x1d8] sm:$0xff] %vm8010, %v7941
        %8071 = vst.msk [vmem:[%s217 + $0x1e0] sm:$0xff] %vm8010, %v7942
        %8072 = vst.msk [vmem:[%s217 + $0x1e8] sm:$0xff] %vm8010, %v7943
        %8073 = vst.msk [vmem:[%s217 + $0x1f0] sm:$0xff] %vm8010, %v7944
        %8074 = vst.msk [vmem:[%s217 + $0x1f8] sm:$0xff] %vm8010, %v7945
        %8075 = vst.msk [vmem:[%s217 + $0x200] sm:$0xff] %vm8010, %v7946
        %8076 = vst.msk [vmem:[%s217 + $0x208] sm:$0xff] %vm8010, %v7947
        %8077 = vst.msk [vmem:[%s217 + $0x210] sm:$0xff] %vm8010, %v7948
        %8078 = vst.msk [vmem:[%s217 + $0x218] sm:$0xff] %vm8010, %v7949
        %8079 = vst.msk [vmem:[%s217 + $0x220] sm:$0xff] %vm8010, %v7950
        %8080 = vst.msk [vmem:[%s217 + $0x228] sm:$0xff] %vm8010, %v7951
        %8081 = vst.msk [vmem:[%s217 + $0x230] sm:$0xff] %vm8010, %v7952
        %8082 = vst.msk [vmem:[%s217 + $0x238] sm:$0xff] %vm8010, %v7953
        %8083 = vst.msk [vmem:[%s217 + $0x240] sm:$0xff] %vm8010, %v7954
        %8084 = vst.msk [vmem:[%s217 + $0x248] sm:$0xff] %vm8010, %v7955
        %8085 = vst.msk [vmem:[%s217 + $0x250] sm:$0xff] %vm8010, %v7956
        %8086 = vst.msk [vmem:[%s217 + $0x258] sm:$0xff] %vm8010, %v7957
        %8087 = vst.msk [vmem:[%s217 + $0x260] sm:$0xff] %vm8010, %v7958
        %8088 = vst.msk [vmem:[%s217 + $0x268] sm:$0xff] %vm8010, %v7959
        %8089 = vst.msk [vmem:[%s217 + $0x270] sm:$0xff] %vm8010, %v7960
        %8090 = vst.msk [vmem:[%s217 + $0x278] sm:$0xff] %vm8010, %v7961
        %8091 = vst.msk [vmem:[%s217 + $0x280] sm:$0xff] %vm8010, %v7962
        %8092 = vst.msk [vmem:[%s217 + $0x288] sm:$0xff] %vm8010, %v7963
        %8093 = vst.msk [vmem:[%s217 + $0x290] sm:$0xff] %vm8010, %v7964
        %8094 = vst.msk [vmem:[%s217 + $0x298] sm:$0xff] %vm8010, %v7965
        %8095 = vst.msk [vmem:[%s217 + $0x2a0] sm:$0xff] %vm8010, %v7966
        %8096 = vst.msk [vmem:[%s217 + $0x2a8] sm:$0xff] %vm8010, %v7967
        %8097 = vst.msk [vmem:[%s217 + $0x2b0] sm:$0xff] %vm8010, %v7968
        %8098 = vst.msk [vmem:[%s217 + $0x2b8] sm:$0xff] %vm8010, %v7969
        %8099 = vst.msk [vmem:[%s217 + $0x2c0] sm:$0xff] %vm8010, %v7970
        %8100 = vst.msk [vmem:[%s217 + $0x2c8] sm:$0xff] %vm8010, %v7971
        %8101 = vst.msk [vmem:[%s217 + $0x2d0] sm:$0xff] %vm8010, %v7972
        %8102 = vst.msk [vmem:[%s217 + $0x2d8] sm:$0xff] %vm8010, %v7973
        %8103 = vst.msk [vmem:[%s217 + $0x2e0] sm:$0xff] %vm8010, %v7974
        %8104 = vst.msk [vmem:[%s217 + $0x2e8] sm:$0xff] %vm8010, %v7975
        %8105 = vst.msk [vmem:[%s217 + $0x2f0] sm:$0xff] %vm8010, %v7976
        %8106 = vst.msk [vmem:[%s217 + $0x2f8] sm:$0xff] %vm8010, %v7977
        %8107 = vst.msk [vmem:[%s217 + $0x300] sm:$0xff] %vm8010, %v7978
        %8108 = vst.msk [vmem:[%s217 + $0x308] sm:$0xff] %vm8010, %v7979
        %8109 = vst.msk [vmem:[%s217 + $0x310] sm:$0xff] %vm8010, %v7980
        %8110 = vst.msk [vmem:[%s217 + $0x318] sm:$0xff] %vm8010, %v7981
        %8111 = vst.msk [vmem:[%s217 + $0x320] sm:$0xff] %vm8010, %v7982
        %8112 = vst.msk [vmem:[%s217 + $0x328] sm:$0xff] %vm8010, %v7983
        %8113 = vst.msk [vmem:[%s217 + $0x330] sm:$0xff] %vm8010, %v7984
        %8114 = vst.msk [vmem:[%s217 + $0x338] sm:$0xff] %vm8010, %v7985
        %8115 = vst.msk [vmem:[%s217 + $0x340] sm:$0xff] %vm8010, %v7986
        %8116 = vst.msk [vmem:[%s217 + $0x348] sm:$0xff] %vm8010, %v7987
        %8117 = vst.msk [vmem:[%s217 + $0x350] sm:$0xff] %vm8010, %v7988
        %8118 = vst.msk [vmem:[%s217 + $0x358] sm:$0xff] %vm8010, %v7989
        %8119 = vst.msk [vmem:[%s217 + $0x360] sm:$0xff] %vm8010, %v7990
        %8120 = vst.msk [vmem:[%s217 + $0x368] sm:$0xff] %vm8010, %v7991
        %8121 = vst.msk [vmem:[%s217 + $0x370] sm:$0xff] %vm8010, %v7992
        %8122 = vst.msk [vmem:[%s217 + $0x378] sm:$0xff] %vm8010, %v7993
        %8123 = vst.msk [vmem:[%s217 + $0x380] sm:$0xff] %vm8010, %v7994
        %8124 = vst.msk [vmem:[%s217 + $0x388] sm:$0xff] %vm8010, %v7995
        %8125 = vst.msk [vmem:[%s217 + $0x390] sm:$0xff] %vm8010, %v7996
        %8126 = vst.msk [vmem:[%s217 + $0x398] sm:$0xff] %vm8010, %v7997
        %8127 = vst.msk [vmem:[%s217 + $0x3a0] sm:$0xff] %vm8010, %v7998
        %8128 = vst.msk [vmem:[%s217 + $0x3a8] sm:$0xff] %vm8010, %v7999
        %8129 = vst.msk [vmem:[%s217 + $0x3b0] sm:$0xff] %vm8010, %v8000
        %8130 = vst.msk [vmem:[%s217 + $0x3b8] sm:$0xff] %vm8010, %v8001
        %8131 = vst.msk [vmem:[%s217 + $0x3c0] sm:$0xff] %vm8010, %v8002
        %8132 = vst.msk [vmem:[%s217 + $0x3c8] sm:$0xff] %vm8010, %v8003
        %8133 = vst.msk [vmem:[%s217 + $0x3d0] sm:$0xff] %vm8010, %v8004
        %8134 = vst.msk [vmem:[%s217 + $0x3d8] sm:$0xff] %vm8010, %v8005
        %8135 = vst.msk [vmem:[%s217 + $0x3e0] sm:$0xff] %vm8010, %v8006
        %8136 = vst.msk [vmem:[%s217 + $0x3e8] sm:$0xff] %vm8010, %v8007
        %8137 = vst.msk [vmem:[%s217 + $0x3f0] sm:$0xff] %vm8010, %v8008
        %8138 = vst.msk [vmem:[%s217 + $0x3f8] sm:$0xff] %vm8010, %v8009
        %s8139 = sand.u32 %s137, 1
        %s8140 = scalar_lea.sflag [#allocation3], %s8139
        %s8141 = sand.u32 %s137, 1
        %s8142 = smul.addr %s8141, 1024
        %s8143 = scalar_lea.vmem [#allocation2], %s8142
        // Predicated region
        $region41: #{tpu_custom_call.1} parent=39 // pred_check
          %p8144 = pneg %p147
        $region42: #{tpu_custom_call.1} parent=39 // pred_check_branch
          %8146 = sbr.rel (%p8144) target = $region44
        $region43: #{tpu_custom_call.1} parent=39 // pred_region
          %s8148 = ssub.s32 16384, 16384
          %8149 = vsyncadd %s8140, %s8148
          %s8150 = smul.addr %s19, 128
          %s8151 = smul.addr %s8150, 128
          %s8152 = scalar_lea.hbm %s5, %s8151
          %s8153 = sshll.u32 %s8143, 4
          %s8154 = int_to_ptr.vmem [resolvable:$true] %s8153
          %8159 = dma.vmem_to_hbm [thread:$0]  %s8154, 16384, %s8152, %s8140, 128, 128, 8
        $region44: #{tpu_custom_call.1} parent=39 // pred_fallthru
          _
      $region40: #{tpu_custom_call.1} parent=5 // pred_fallthru
        _
      %p8160 = scmp.le.s32.totalorder 2, %s14
      // Predicated region
      $region45: #{tpu_custom_call.1} parent=5 // pred_check
        %p8161 = pneg %p8160
      $region46: #{tpu_custom_call.1} parent=5 // pred_check_branch
        %8163 = sbr.rel (%p8161) target = $region48
      $region47: #{tpu_custom_call.1} parent=5 // pred_region
        %s8164 = ssub.s32 %s14, 2
        // Predicated region
        $region49: #{tpu_custom_call.1} parent=47 // pred_check
          %p8165 = pneg %p153
        $region50: #{tpu_custom_call.1} parent=47 // pred_check_branch
          %8167 = sbr.rel (%p8165) target = $region52
        $region51: #{tpu_custom_call.1} parent=47 // pred_region
          %s8168 = sand.u32 %s138, 1
          %s8169 = scalar_lea.sflag [#allocation3], %s8168
          %s8170 = sand.u32 %s138, 1
          %s8171 = smul.addr %s8170, 1024
          %s8172 = scalar_lea.vmem [#allocation2], %s8171
          %8173 = dma.done %s8169, 16384
        $region52: #{tpu_custom_call.1} parent=47 // pred_fallthru
          _
      $region48: #{tpu_custom_call.1} parent=5 // pred_fallthru
        _
    $region6: #{tpu_custom_call.1} parent=1 // loop_footer
      %s18 = sadd.s32 1, %s14
    $region7: #{tpu_custom_call.1} parent=1 // loop_footer_branch
      %13 = sbr.rel target = $region3
    $region8: #{tpu_custom_call.1} parent=1 // loop_exit
      _
    %8174 = vsyncpa [#allocation3], 1
    %s8175 = scalar_lea.sflag [#allocation3], 1
    %8176 = vsyncpa %s8175, 1

</llo_original>
